<compile_context>
chip_gen: v7x
topology: tpu7x:2x2x1
jax: 0.10.0
libtpu: 0.0.40
codegen_flags: <defaults>
</compile_context>

<pallas_src>
import jax
import jax.numpy as jnp
from jax.experimental import pallas as pl
from jax.experimental.pallas import tpu as pltpu

_BN_EPS = 1e-5
_MM_DTYPE = jnp.bfloat16   # MXU operand dtype (f32 accumulate + f32 epilogue)


def _round_up(x, m):
    return ((x + m - 1) // m) * m


def _pick_tile(size, align, max_tile):
    """Return (tile, padded_size) with tile % align == 0 and padded % tile == 0."""
    s = _round_up(size, align)
    if s <= max_tile:
        return s, s
    best = align
    for blocks in range(max_tile // align, 0, -1):
        t = blocks * align
        if s % t == 0:
            best = t
            break
    if best >= max_tile // 4:          # exact divisor, no zero-padding waste
        return best, s
    return max_tile, _round_up(s, max_tile)   # fall back: pad to tile multiple


# ---------------------------------------------------------------------------
# Tiled, pipelined fused matmul kernel:  act((x @ w) + shift)
# ---------------------------------------------------------------------------
def _make_mm_kernel(activation):
    def kernel(x_ref, w_ref, s_ref, o_ref, acc_ref):
        @pl.when(pl.program_id(2) == 0)
        def _init():
            acc_ref[...] = jnp.zeros_like(acc_ref)

        acc_ref[...] += jnp.dot(x_ref[...], w_ref[...],
                                preferred_element_type=jnp.float32)

        @pl.when(pl.program_id(2) == pl.num_programs(2) - 1)
        def _finalize():
            acc = acc_ref[...] + s_ref[...]
            if activation == "relu":
                acc = jnp.maximum(acc, 0.0)
            elif activation == "sigmoid":
                acc = jax.nn.sigmoid(acc)
            o_ref[...] = acc.astype(o_ref.dtype)

    return kernel


def _matmul_shift_act(x, w, shift, activation=None):
    """x: (M, K) float, w: (K, N) bf16/f32, shift: (N,) f32 -> (M, N) f32."""
    M, K = x.shape
    K2, N = w.shape
    assert K == K2
    tm, Mp = _pick_tile(M, 8, 256)
    tn, Np = _pick_tile(N, 128, 256)
    tk, Kp = _pick_tile(K, 128, 1024)

    xd = x.astype(_MM_DTYPE)
    wd = w.astype(_MM_DTYPE)
    if (Mp, Kp) != (M, K):
        xd = jnp.pad(xd, ((0, Mp - M), (0, Kp - K)))
    if (Kp, Np) != (K, N):
        wd = jnp.pad(wd, ((0, Kp - K), (0, Np - N)))
    sh = shift.astype(jnp.float32).reshape(1, N)
    if Np != N:
        sh = jnp.pad(sh, ((0, 0), (0, Np - N)))

    out = pl.pallas_call(
        _make_mm_kernel(activation),
        out_shape=jax.ShapeDtypeStruct((Mp, Np), jnp.float32),
        grid=(Mp // tm, Np // tn, Kp // tk),
        in_specs=[
            pl.BlockSpec((tm, tk), lambda i, j, k: (i, k)),
            pl.BlockSpec((tk, tn), lambda i, j, k: (k, j)),
            pl.BlockSpec((1, tn), lambda i, j, k: (0, j)),
        ],
        out_specs=pl.BlockSpec((tm, tn), lambda i, j, k: (i, j)),
        scratch_shapes=[pltpu.VMEM((tm, tn), jnp.float32)],
        compiler_params=pltpu.CompilerParams(
            dimension_semantics=("parallel", "parallel", "arbitrary"),
            vmem_limit_bytes=32 * 1024 * 1024,
        ),
    )(xd, wd, sh)
    if (Mp, Np) != (M, N):
        out = out[:M, :N]
    return out


# ---------------------------------------------------------------------------
# NHWC im2col + conv wrappers (all matmuls go through the kernel above)
# ---------------------------------------------------------------------------
def _im2col_nhwc(x, kh, kw, stride=1):
    # x: (B, H, W, C) already padded.  K order = (ky, kx, c).
    B, H, W, C = x.shape
    Ho = (H - kh) // stride + 1
    Wo = (W - kw) // stride + 1
    cols = []
    for i in range(kh):
        for j in range(kw):
            cols.append(x[:, i:i + (Ho - 1) * stride + 1:stride,
                            j:j + (Wo - 1) * stride + 1:stride, :])
    return jnp.concatenate(cols, axis=-1), Ho, Wo


def _conv2d_nhwc(x, wmat, shift, activation, kh, kw, stride=1, padding=0):
    B = x.shape[0]
    if padding:
        x = jnp.pad(x, ((0, 0), (padding, padding), (padding, padding), (0, 0)))
    patches, Ho, Wo = _im2col_nhwc(x, kh, kw, stride)
    K = patches.shape[-1]
    out = _matmul_shift_act(patches.reshape(B * Ho * Wo, K), wmat, shift, activation)
    return out.reshape(B, Ho, Wo, -1)


def _conv_transpose_phases(x, wmat, shift4, activation):
    """ConvTranspose2d(k=4, s=2, p=1) as a 3x3 conv with 4*Co phase channels."""
    B, H, W, _ = x.shape
    out = _conv2d_nhwc(x, wmat, shift4, activation, kh=3, kw=3, stride=1, padding=1)
    Co = out.shape[-1] // 4
    out = out.reshape(B, H, W, 2, 2, Co)                        # (b,h,w,py,px,co)
    out = jnp.transpose(out, (0, 1, 3, 2, 4, 5)).reshape(B, 2 * H, 2 * W, Co)
    return out


# ---------------------------------------------------------------------------
# Fused final stage: Conv2d(32 -> Co) + Sigmoid + bilinear resize, one kernel.
# ---------------------------------------------------------------------------
def _bilinear_matrix(in_size, out_size):
    # PyTorch F.interpolate(mode="bilinear", align_corners=False) as a matrix.
    o = jnp.arange(out_size, dtype=jnp.float32)
    src = (o + 0.5) * (in_size / out_size) - 0.5
    src = jnp.clip(src, 0.0, in_size - 1)
    i0 = jnp.floor(src).astype(jnp.int32)
    i1 = jnp.minimum(i0 + 1, in_size - 1)
    w1 = src - i0.astype(jnp.float32)
    w0 = 1.0 - w1
    rows = jnp.arange(out_size)
    M = jnp.zeros((out_size, in_size), jnp.float32)
    M = M.at[rows, i0].add(w0)
    M = M.at[rows, i1].add(w1)
    return M


def _final_conv_sigmoid_resize(x, wvec, bias, hr_size):
    """x: (B,H,W,Ci) NHWC; wvec: (Co,1,1,9*Ci); bias: (Co,) -> (B,Co,hr) NCHW."""
    B, H, W, Ci = x.shape
    Co, K = wvec.shape[0], wvec.shape[-1]
    Ho, Wo = hr_size

    xp = jnp.pad(x, ((0, 0), (1, 1), (1, 1), (0, 0)))
    patches, Hc, Wc = _im2col_nhwc(xp, 3, 3, 1)                 # (B, H, W, K)

    Hop = _round_up(Ho, 8)
    Wop = _round_up(Wo, 128)
    Mh = _bilinear_matrix(Hc, Ho)                               # (Ho, Hc)
    Mw = _bilinear_matrix(Wc, Wo)                               # (Wo, Wc)
    Mhp = jnp.pad(Mh, ((0, Hop - Ho), (0, 0)))                  # (Hop, Hc)
    MwTp = jnp.pad(Mw.T, ((0, 0), (0, Wop - Wo)))               # (Wc, Wop)

    def kernel(p_ref, w_ref, b_ref, mh_ref, mwt_ref, o_ref):
        c = pl.program_id(1)
        # Conv with a single output channel = VPU weighted sum over K lanes.
        y = jnp.sum(p_ref[0] * w_ref[0], axis=-1) + b_ref[c]    # (Hc, Wc)
        y = jax.nn.sigmoid(y)
        # Separable bilinear resize: Mh @ y @ Mw^T, both matrices in VMEM.
        t = jnp.dot(mh_ref[...], y, preferred_element_type=jnp.float32)
        o_ref[0, 0] = jnp.dot(t, mwt_ref[...], preferred_element_type=jnp.float32)

    out = pl.pallas_call(
        kernel,
        out_shape=jax.ShapeDtypeStruct((B, Co, Hop, Wop), jnp.float32),
        grid=(B, Co),
        in_specs=[
            pl.BlockSpec((1, Hc, Wc, K), lambda b, c: (b, 0, 0, 0)),
            pl.BlockSpec((1, 1, 1, K), lambda b, c: (c, 0, 0, 0)),
            pl.BlockSpec(memory_space=pltpu.MemorySpace.SMEM),
            pl.BlockSpec((Hop, Hc), lambda b, c: (0, 0)),
            pl.BlockSpec((Wc, Wop), lambda b, c: (0, 0)),
        ],
        out_specs=pl.BlockSpec((1, 1, Hop, Wop), lambda b, c: (b, c, 0, 0)),
        compiler_params=pltpu.CompilerParams(
            dimension_semantics=("parallel", "parallel")),
    )(patches, wvec, bias.astype(jnp.float32), Mhp, MwTp)
    return out[:, :, :Ho, :Wo]                                  # already NCHW


# ---------------------------------------------------------------------------
# Trace-time weight preparation: BN fold, phase decomposition, matmul layout.
# ---------------------------------------------------------------------------
def _convT_phase_weights(wt):
    """wt: (Ci, Co, 4, 4) -> (3, 3, Ci, 4*Co) 3x3-conv weights (phase-major N)."""
    Ci, Co = wt.shape[0], wt.shape[1]
    TAP = ((3, 1), (2, 0))   # TAP[parity][d]: kernel index used by window offset d
    w3 = jnp.zeros((3, 3, Ci, 4, Co), jnp.float32)
    for py in range(2):
        for px in range(2):
            ph = py * 2 + px
            for dy in range(2):
                for dx in range(2):
                    w3 = w3.at[py + dy, px + dx, :, ph, :].set(
                        wt[:, :, TAP[py][dy], TAP[px][dx]])
    return w3.reshape(3, 3, Ci, 4 * Co)


def _prepare_weights(p):
    def conv_mat(w, scale=None):
        Co, Ci, kh, kw = w.shape
        if scale is not None:
            w = w * scale[:, None, None, None]
        return jnp.transpose(w, (2, 3, 1, 0)).reshape(kh * kw * Ci, Co).astype(_MM_DTYPE)

    def bn_fold(bn, bias):
        scale = bn["gamma"] / jnp.sqrt(bn["var"] + _BN_EPS)
        shift = bn["beta"] + scale * (bias - bn["mean"])
        return scale, shift

    prep = {}
    prep["enc"] = (conv_mat(p["enc_w"]), p["enc_b"].astype(jnp.float32))

    s, sh = bn_fold(p["pf1_bn"], p["pf1_b"])
    prep["pf1"] = (conv_mat(p["pf1_w"], s), sh)
    s, sh = bn_fold(p["pf2_bn"], p["pf2_b"])
    prep["pf2"] = (conv_mat(p["pf2_w"], s), sh)

    for name in ("up1", "up2", "up3"):
        s, sh = bn_fold(p[name + "_bn"], p[name + "_b"])
        wt = p[name + "_w"] * s[None, :, None, None]            # fold BN scale (per Co)
        Ci, Co = wt.shape[0], wt.shape[1]
        wmat = _convT_phase_weights(wt).reshape(9 * Ci, 4 * Co).astype(_MM_DTYPE)
        prep[name] = (wmat, jnp.tile(sh, 4))

    fw = p["fin_w"]                                             # (Co, 32, 3, 3)
    Co, Ci, kh, kw = fw.shape
    fvec = jnp.transpose(fw, (0, 2, 3, 1)).reshape(Co, 1, 1, kh * kw * Ci)
    prep["fin"] = (fvec.astype(jnp.float32), p["fin_b"].astype(jnp.float32))
    return prep


# ---------------------------------------------------------------------------
# Deterministic parameter initialization (shapes mirror the PyTorch __init__)
# ---------------------------------------------------------------------------
def init_params(key, in_channels=1, latent_dim=32):
    keys = iter(jax.random.split(key, 64))

    def w(shape, s=0.05):
        return jax.random.normal(next(keys), shape, jnp.float32) * s

    def b(n):
        return jax.random.normal(next(keys), (n,), jnp.float32) * 0.01

    def bn(n):
        return dict(gamma=1.0 + w((n,), 0.02), beta=b(n),
                    mean=jnp.zeros((n,), jnp.float32),
                    var=jnp.ones((n,), jnp.float32))

    p = {}
    # encoder stand-in (encoder is an external arg in the PyTorch module):
    # Conv2d(in_channels, latent_dim, kernel_size=8, stride=8) -> /8 downsample.
    p["enc_w"], p["enc_b"] = w((latent_dim, in_channels, 8, 8)), b(latent_dim)
    # process_features
    p["pf1_w"], p["pf1_b"], p["pf1_bn"] = w((256, latent_dim, 3, 3)), b(256), bn(256)
    p["pf2_w"], p["pf2_b"], p["pf2_bn"] = w((256, 256, 3, 3)), b(256), bn(256)
    # upsampler (ConvTranspose2d weights are (C_in, C_out, 4, 4))
    p["up1_w"], p["up1_b"], p["up1_bn"] = w((256, 128, 4, 4)), b(128), bn(128)
    p["up2_w"], p["up2_b"], p["up2_bn"] = w((128, 64, 4, 4)), b(64), bn(64)
    p["up3_w"], p["up3_b"], p["up3_bn"] = w((64, 32, 4, 4)), b(32), bn(32)
    # final
    p["fin_w"], p["fin_b"] = w((in_channels, 32, 3, 3)), b(in_channels)
    return p


# ---------------------------------------------------------------------------
# Forward pass (mirrors ImprovedSuperResolutionModel.forward, inference mode)
# ---------------------------------------------------------------------------
def forward(params, x, hr_size=(30, 30)):
    prep = _prepare_weights(params)

    f = jnp.transpose(x, (0, 2, 3, 1))                          # NCHW -> NHWC once
    # encoder stand-in: Conv2d(in, latent, k=8, s=8)
    w, b = prep["enc"]
    f = _conv2d_nhwc(f, w, b, None, kh=8, kw=8, stride=8, padding=0)
    # process_features: Conv3x3 -> BN -> ReLU, twice
    w, b = prep["pf1"]
    f = _conv2d_nhwc(f, w, b, "relu", kh=3, kw=3, stride=1, padding=1)
    w, b = prep["pf2"]
    f = _conv2d_nhwc(f, w, b, "relu", kh=3, kw=3, stride=1, padding=1)
    # upsampler: ConvTranspose4x4 s2 p1 -> BN -> ReLU, three times (x8 upsample)
    for name in ("up1", "up2", "up3"):
        w, b = prep[name]
        f = _conv_transpose_phases(f, w, b, "relu")
    # final: Conv3x3 -> Sigmoid -> bilinear resize (align_corners=False).
    # When the conv output already equals hr_size the bilinear matrices are
    # exact identities, matching the PyTorch skip branch.
    wv, bv = prep["fin"]
    return _final_conv_sigmoid_resize(f, wv, bv, hr_size)


if __name__ == "__main__":
    key = jax.random.PRNGKey(0)
    pkey, xkey = jax.random.split(key)

    in_channels, latent_dim = 1, 32
    lr_size, hr_size = (16, 16), (30, 30)

    params = init_params(pkey, in_channels=in_channels, latent_dim=latent_dim)
    x = jax.random.normal(xkey, (2, in_channels, *lr_size), jnp.float32)

    fwd = jax.jit(lambda p, xx: forward(p, xx, hr_size=hr_size))
    out = fwd(params, x)
    out = jax.block_until_ready(out)

    assert out.shape == (2, in_channels, *hr_size), out.shape
    assert bool(jnp.all(jnp.isfinite(out)))
    print("KERNEL_OK")
</pallas_src>

<mosaic_0001>
module attributes {stable_mosaic.version = 11 : i64} {
  func.func @kernel(%arg0: i32, %arg1: i32, %arg2: i32, %arg3: memref<8x128xbf16, #tpu.memory_space<vmem>>, %arg4: memref<128x128xbf16, #tpu.memory_space<vmem>>, %arg5: memref<1x128xf32, #tpu.memory_space<vmem>>, %arg6: memref<8x128xf32, #tpu.memory_space<vmem>>, %arg7: memref<8x128xf32, #tpu.memory_space<vmem>>) attributes {dimension_semantics = [#tpu.dimension_semantics<parallel>, #tpu.dimension_semantics<parallel>, #tpu.dimension_semantics<arbitrary>], iteration_bounds = array<i64: 1, 1, 1>, scalar_prefetch = 0 : i64, scratch_operands = 1 : i64, tpu.core_type = #tpu.core_type<tc>, window_params = [{transform_indices = @transform_0, window_bounds = array<i64: 8, 128>}, {transform_indices = @transform_1, window_bounds = array<i64: 128, 128>}, {transform_indices = @transform_2, window_bounds = array<i64: 1, 128>}, {transform_indices = @transform_3, window_bounds = array<i64: 8, 128>}]} {
    %c0_i32 = arith.constant 0 : i32
    %0 = arith.cmpi eq, %arg2, %c0_i32 : i32
    %1 = arith.extui %0 : i1 to i32
    %c0_i32_0 = arith.constant 0 : i32
    %2 = arith.cmpi ne, %1, %c0_i32_0 : i32
    scf.if %2 {
      %cst_10 = arith.constant 0.000000e+00 : f32
      %12 = vector.broadcast %cst_10 : f32 to vector<8x128xf32>
      %c0_11 = arith.constant 0 : index
      %c0_12 = arith.constant 0 : index
      %13 = vector.load %arg7[%c0_11, %c0_12] : memref<8x128xf32, #tpu.memory_space<vmem>>, vector<8x128xf32>
      tpu.vector_store %arg7[%c0_11, %c0_12], %12 {strides = array<i32>} : memref<8x128xf32, #tpu.memory_space<vmem>>, vector<8x128xf32>,
    } else {
    }
    %c0 = arith.constant 0 : index
    %c0_1 = arith.constant 0 : index
    %3 = vector.load %arg7[%c0, %c0_1] : memref<8x128xf32, #tpu.memory_space<vmem>>, vector<8x128xf32>
    %c0_2 = arith.constant 0 : index
    %c0_3 = arith.constant 0 : index
    %4 = vector.load %arg3[%c0_2, %c0_3] : memref<8x128xbf16, #tpu.memory_space<vmem>>, vector<8x128xbf16>
    %c0_4 = arith.constant 0 : index
    %c0_5 = arith.constant 0 : index
    %5 = vector.load %arg4[%c0_4, %c0_5] : memref<128x128xbf16, #tpu.memory_space<vmem>>, vector<128x128xbf16>
    %cst = arith.constant dense<0.000000e+00> : vector<8x128xf32>
    %6 = tpu.matmul %4, %5, %cst {dimension_numbers = #tpu.dot_dimension_numbers<[1], [0], [0], [1], [0, 0, 1, 1], [], []>} : vector<8x128xbf16>, vector<128x128xbf16>, vector<8x128xf32> -> vector<8x128xf32>
    %7 = arith.addf %3, %6 : vector<8x128xf32>
    %c0_6 = arith.constant 0 : index
    %c0_7 = arith.constant 0 : index
    %8 = vector.load %arg7[%c0_6, %c0_7] : memref<8x128xf32, #tpu.memory_space<vmem>>, vector<8x128xf32>
    tpu.vector_store %arg7[%c0_6, %c0_7], %7 {strides = array<i32>} : memref<8x128xf32, #tpu.memory_space<vmem>>, vector<8x128xf32>,
    %c0_i32_8 = arith.constant 0 : i32
    %9 = arith.cmpi eq, %arg2, %c0_i32_8 : i32
    %10 = arith.extui %9 : i1 to i32
    %c0_i32_9 = arith.constant 0 : i32
    %11 = arith.cmpi ne, %10, %c0_i32_9 : i32
    scf.if %11 {
      %c0_10 = arith.constant 0 : index
      %c0_11 = arith.constant 0 : index
      %12 = vector.load %arg7[%c0_10, %c0_11] : memref<8x128xf32, #tpu.memory_space<vmem>>, vector<8x128xf32>
      %c0_12 = arith.constant 0 : index
      %c0_13 = arith.constant 0 : index
      %13 = vector.load %arg5[%c0_12, %c0_13] : memref<1x128xf32, #tpu.memory_space<vmem>>, vector<1x128xf32>
      %14 = vector.broadcast %13 : vector<1x128xf32> to vector<8x128xf32>
      %15 = arith.addf %12, %14 : vector<8x128xf32>
      %c0_14 = arith.constant 0 : index
      %c0_15 = arith.constant 0 : index
      %16 = vector.load %arg6[%c0_14, %c0_15] : memref<8x128xf32, #tpu.memory_space<vmem>>, vector<8x128xf32>
      tpu.vector_store %arg6[%c0_14, %c0_15], %15 {strides = array<i32>} : memref<8x128xf32, #tpu.memory_space<vmem>>, vector<8x128xf32>,
    } else {
    }
    return
  }
  func.func @transform_0(%arg0: i32, %arg1: i32, %arg2: i32) -> (i32, i32) {
    %c0_i32 = arith.constant 0 : i32
    return %arg0, %arg2 : i32, i32
  }
  func.func @transform_1(%arg0: i32, %arg1: i32, %arg2: i32) -> (i32, i32) {
    %c0_i32 = arith.constant 0 : i32
    return %arg2, %arg1 : i32, i32
  }
  func.func @transform_2(%arg0: i32, %arg1: i32, %arg2: i32) -> (i32, i32) {
    %c0_i32 = arith.constant 0 : i32
    %c0_i32_0 = arith.constant 0 : i32
    return %c0_i32, %arg1 : i32, i32
  }
  func.func @transform_3(%arg0: i32, %arg1: i32, %arg2: i32) -> (i32, i32) {
    %c0_i32 = arith.constant 0 : i32
    return %arg0, %arg1 : i32, i32
  }
}

module attributes {stable_mosaic.version = 11 : i64} {
  func.func @kernel(%arg0: i32, %arg1: i32, %arg2: i32, %arg3: memref<8x384xbf16, #tpu.memory_space<vmem>>, %arg4: memref<384x256xbf16, #tpu.memory_space<vmem>>, %arg5: memref<1x256xf32, #tpu.memory_space<vmem>>, %arg6: memref<8x256xf32, #tpu.memory_space<vmem>>, %arg7: memref<8x256xf32, #tpu.memory_space<vmem>>) attributes {dimension_semantics = [#tpu.dimension_semantics<parallel>, #tpu.dimension_semantics<parallel>, #tpu.dimension_semantics<arbitrary>], iteration_bounds = array<i64: 1, 1, 1>, scalar_prefetch = 0 : i64, scratch_operands = 1 : i64, tpu.core_type = #tpu.core_type<tc>, window_params = [{transform_indices = @transform_0, window_bounds = array<i64: 8, 384>}, {transform_indices = @transform_1, window_bounds = array<i64: 384, 256>}, {transform_indices = @transform_2, window_bounds = array<i64: 1, 256>}, {transform_indices = @transform_3, window_bounds = array<i64: 8, 256>}]} {
    %c0_i32 = arith.constant 0 : i32
    %0 = arith.cmpi eq, %arg2, %c0_i32 : i32
    %1 = arith.extui %0 : i1 to i32
    %c0_i32_0 = arith.constant 0 : i32
    %2 = arith.cmpi ne, %1, %c0_i32_0 : i32
    scf.if %2 {
      %cst_10 = arith.constant 0.000000e+00 : f32
      %12 = vector.broadcast %cst_10 : f32 to vector<8x256xf32>
      %c0_11 = arith.constant 0 : index
      %c0_12 = arith.constant 0 : index
      %13 = vector.load %arg7[%c0_11, %c0_12] : memref<8x256xf32, #tpu.memory_space<vmem>>, vector<8x256xf32>
      tpu.vector_store %arg7[%c0_11, %c0_12], %12 {strides = array<i32>} : memref<8x256xf32, #tpu.memory_space<vmem>>, vector<8x256xf32>,
    } else {
    }
    %c0 = arith.constant 0 : index
    %c0_1 = arith.constant 0 : index
    %3 = vector.load %arg7[%c0, %c0_1] : memref<8x256xf32, #tpu.memory_space<vmem>>, vector<8x256xf32>
    %c0_2 = arith.constant 0 : index
    %c0_3 = arith.constant 0 : index
    %4 = vector.load %arg3[%c0_2, %c0_3] : memref<8x384xbf16, #tpu.memory_space<vmem>>, vector<8x384xbf16>
    %c0_4 = arith.constant 0 : index
    %c0_5 = arith.constant 0 : index
    %5 = vector.load %arg4[%c0_4, %c0_5] : memref<384x256xbf16, #tpu.memory_space<vmem>>, vector<384x256xbf16>
    %cst = arith.constant dense<0.000000e+00> : vector<8x256xf32>
    %6 = tpu.matmul %4, %5, %cst {dimension_numbers = #tpu.dot_dimension_numbers<[1], [0], [0], [1], [0, 0, 1, 1], [], []>} : vector<8x384xbf16>, vector<384x256xbf16>, vector<8x256xf32> -> vector<8x256xf32>
    %7 = arith.addf %3, %6 : vector<8x256xf32>
    %c0_6 = arith.constant 0 : index
    %c0_7 = arith.constant 0 : index
    %8 = vector.load %arg7[%c0_6, %c0_7] : memref<8x256xf32, #tpu.memory_space<vmem>>, vector<8x256xf32>
    tpu.vector_store %arg7[%c0_6, %c0_7], %7 {strides = array<i32>} : memref<8x256xf32, #tpu.memory_space<vmem>>, vector<8x256xf32>,
    %c0_i32_8 = arith.constant 0 : i32
    %9 = arith.cmpi eq, %arg2, %c0_i32_8 : i32
    %10 = arith.extui %9 : i1 to i32
    %c0_i32_9 = arith.constant 0 : i32
    %11 = arith.cmpi ne, %10, %c0_i32_9 : i32
    scf.if %11 {
      %c0_10 = arith.constant 0 : index
      %c0_11 = arith.constant 0 : index
      %12 = vector.load %arg7[%c0_10, %c0_11] : memref<8x256xf32, #tpu.memory_space<vmem>>, vector<8x256xf32>
      %c0_12 = arith.constant 0 : index
      %c0_13 = arith.constant 0 : index
      %13 = vector.load %arg5[%c0_12, %c0_13] : memref<1x256xf32, #tpu.memory_space<vmem>>, vector<1x256xf32>
      %14 = vector.broadcast %13 : vector<1x256xf32> to vector<8x256xf32>
      %15 = arith.addf %12, %14 : vector<8x256xf32>
      %cst_14 = arith.constant 0.000000e+00 : f32
      %16 = vector.broadcast %cst_14 : f32 to vector<8x256xf32>
      %17 = arith.maximumf %15, %16 : vector<8x256xf32>
      %c0_15 = arith.constant 0 : index
      %c0_16 = arith.constant 0 : index
      %18 = vector.load %arg6[%c0_15, %c0_16] : memref<8x256xf32, #tpu.memory_space<vmem>>, vector<8x256xf32>
      tpu.vector_store %arg6[%c0_15, %c0_16], %17 {strides = array<i32>} : memref<8x256xf32, #tpu.memory_space<vmem>>, vector<8x256xf32>,
    } else {
    }
    return
  }
  func.func @transform_0(%arg0: i32, %arg1: i32, %arg2: i32) -> (i32, i32) {
    %c0_i32 = arith.constant 0 : i32
    return %arg0, %arg2 : i32, i32
  }
  func.func @transform_1(%arg0: i32, %arg1: i32, %arg2: i32) -> (i32, i32) {
    %c0_i32 = arith.constant 0 : i32
    return %arg2, %arg1 : i32, i32
  }
  func.func @transform_2(%arg0: i32, %arg1: i32, %arg2: i32) -> (i32, i32) {
    %c0_i32 = arith.constant 0 : i32
    %c0_i32_0 = arith.constant 0 : i32
    return %c0_i32, %arg1 : i32, i32
  }
  func.func @transform_3(%arg0: i32, %arg1: i32, %arg2: i32) -> (i32, i32) {
    %c0_i32 = arith.constant 0 : i32
    return %arg0, %arg1 : i32, i32
  }
}

module attributes {stable_mosaic.version = 11 : i64} {
  func.func @kernel(%arg0: i32, %arg1: i32, %arg2: i32, %arg3: memref<8x768xbf16, #tpu.memory_space<vmem>>, %arg4: memref<768x256xbf16, #tpu.memory_space<vmem>>, %arg5: memref<1x256xf32, #tpu.memory_space<vmem>>, %arg6: memref<8x256xf32, #tpu.memory_space<vmem>>, %arg7: memref<8x256xf32, #tpu.memory_space<vmem>>) attributes {dimension_semantics = [#tpu.dimension_semantics<parallel>, #tpu.dimension_semantics<parallel>, #tpu.dimension_semantics<arbitrary>], iteration_bounds = array<i64: 1, 1, 3>, scalar_prefetch = 0 : i64, scratch_operands = 1 : i64, tpu.core_type = #tpu.core_type<tc>, window_params = [{transform_indices = @transform_0, window_bounds = array<i64: 8, 768>}, {transform_indices = @transform_1, window_bounds = array<i64: 768, 256>}, {transform_indices = @transform_2, window_bounds = array<i64: 1, 256>}, {transform_indices = @transform_3, window_bounds = array<i64: 8, 256>}]} {
    %c0_i32 = arith.constant 0 : i32
    %0 = arith.cmpi eq, %arg2, %c0_i32 : i32
    %1 = arith.extui %0 : i1 to i32
    %c0_i32_0 = arith.constant 0 : i32
    %2 = arith.cmpi ne, %1, %c0_i32_0 : i32
    scf.if %2 {
      %cst_9 = arith.constant 0.000000e+00 : f32
      %12 = vector.broadcast %cst_9 : f32 to vector<8x256xf32>
      %c0_10 = arith.constant 0 : index
      %c0_11 = arith.constant 0 : index
      %13 = vector.load %arg7[%c0_10, %c0_11] : memref<8x256xf32, #tpu.memory_space<vmem>>, vector<8x256xf32>
      tpu.vector_store %arg7[%c0_10, %c0_11], %12 {strides = array<i32>} : memref<8x256xf32, #tpu.memory_space<vmem>>, vector<8x256xf32>,
    } else {
    }
    %c0 = arith.constant 0 : index
    %c0_1 = arith.constant 0 : index
    %3 = vector.load %arg7[%c0, %c0_1] : memref<8x256xf32, #tpu.memory_space<vmem>>, vector<8x256xf32>
    %c0_2 = arith.constant 0 : index
    %c0_3 = arith.constant 0 : index
    %4 = vector.load %arg3[%c0_2, %c0_3] : memref<8x768xbf16, #tpu.memory_space<vmem>>, vector<8x768xbf16>
    %c0_4 = arith.constant 0 : index
    %c0_5 = arith.constant 0 : index
    %5 = vector.load %arg4[%c0_4, %c0_5] : memref<768x256xbf16, #tpu.memory_space<vmem>>, vector<768x256xbf16>
    %cst = arith.constant dense<0.000000e+00> : vector<8x256xf32>
    %6 = tpu.matmul %4, %5, %cst {dimension_numbers = #tpu.dot_dimension_numbers<[1], [0], [0], [1], [0, 0, 1, 1], [], []>} : vector<8x768xbf16>, vector<768x256xbf16>, vector<8x256xf32> -> vector<8x256xf32>
    %7 = arith.addf %3, %6 : vector<8x256xf32>
    %c0_6 = arith.constant 0 : index
    %c0_7 = arith.constant 0 : index
    %8 = vector.load %arg7[%c0_6, %c0_7] : memref<8x256xf32, #tpu.memory_space<vmem>>, vector<8x256xf32>
    tpu.vector_store %arg7[%c0_6, %c0_7], %7 {strides = array<i32>} : memref<8x256xf32, #tpu.memory_space<vmem>>, vector<8x256xf32>,
    %c2_i32 = arith.constant 2 : i32
    %9 = arith.cmpi eq, %arg2, %c2_i32 : i32
    %10 = arith.extui %9 : i1 to i32
    %c0_i32_8 = arith.constant 0 : i32
    %11 = arith.cmpi ne, %10, %c0_i32_8 : i32
    scf.if %11 {
      %c0_9 = arith.constant 0 : index
      %c0_10 = arith.constant 0 : index
      %12 = vector.load %arg7[%c0_9, %c0_10] : memref<8x256xf32, #tpu.memory_space<vmem>>, vector<8x256xf32>
      %c0_11 = arith.constant 0 : index
      %c0_12 = arith.constant 0 : index
      %13 = vector.load %arg5[%c0_11, %c0_12] : memref<1x256xf32, #tpu.memory_space<vmem>>, vector<1x256xf32>
      %14 = vector.broadcast %13 : vector<1x256xf32> to vector<8x256xf32>
      %15 = arith.addf %12, %14 : vector<8x256xf32>
      %cst_13 = arith.constant 0.000000e+00 : f32
      %16 = vector.broadcast %cst_13 : f32 to vector<8x256xf32>
      %17 = arith.maximumf %15, %16 : vector<8x256xf32>
      %c0_14 = arith.constant 0 : index
      %c0_15 = arith.constant 0 : index
      %18 = vector.load %arg6[%c0_14, %c0_15] : memref<8x256xf32, #tpu.memory_space<vmem>>, vector<8x256xf32>
      tpu.vector_store %arg6[%c0_14, %c0_15], %17 {strides = array<i32>} : memref<8x256xf32, #tpu.memory_space<vmem>>, vector<8x256xf32>,
    } else {
    }
    return
  }
  func.func @transform_0(%arg0: i32, %arg1: i32, %arg2: i32) -> (i32, i32) {
    %c0_i32 = arith.constant 0 : i32
    return %arg0, %arg2 : i32, i32
  }
  func.func @transform_1(%arg0: i32, %arg1: i32, %arg2: i32) -> (i32, i32) {
    %c0_i32 = arith.constant 0 : i32
    return %arg2, %arg1 : i32, i32
  }
  func.func @transform_2(%arg0: i32, %arg1: i32, %arg2: i32) -> (i32, i32) {
    %c0_i32 = arith.constant 0 : i32
    %c0_i32_0 = arith.constant 0 : i32
    return %c0_i32, %arg1 : i32, i32
  }
  func.func @transform_3(%arg0: i32, %arg1: i32, %arg2: i32) -> (i32, i32) {
    %c0_i32 = arith.constant 0 : i32
    return %arg0, %arg1 : i32, i32
  }
}

module attributes {stable_mosaic.version = 11 : i64} {
  func.func @kernel(%arg0: i32, %arg1: i32, %arg2: i32, %arg3: memref<8x768xbf16, #tpu.memory_space<vmem>>, %arg4: memref<768x256xbf16, #tpu.memory_space<vmem>>, %arg5: memref<1x256xf32, #tpu.memory_space<vmem>>, %arg6: memref<8x256xf32, #tpu.memory_space<vmem>>, %arg7: memref<8x256xf32, #tpu.memory_space<vmem>>) attributes {dimension_semantics = [#tpu.dimension_semantics<parallel>, #tpu.dimension_semantics<parallel>, #tpu.dimension_semantics<arbitrary>], iteration_bounds = array<i64: 1, 2, 3>, scalar_prefetch = 0 : i64, scratch_operands = 1 : i64, tpu.core_type = #tpu.core_type<tc>, window_params = [{transform_indices = @transform_0, window_bounds = array<i64: 8, 768>}, {transform_indices = @transform_1, window_bounds = array<i64: 768, 256>}, {transform_indices = @transform_2, window_bounds = array<i64: 1, 256>}, {transform_indices = @transform_3, window_bounds = array<i64: 8, 256>}]} {
    %c0_i32 = arith.constant 0 : i32
    %0 = arith.cmpi eq, %arg2, %c0_i32 : i32
    %1 = arith.extui %0 : i1 to i32
    %c0_i32_0 = arith.constant 0 : i32
    %2 = arith.cmpi ne, %1, %c0_i32_0 : i32
    scf.if %2 {
      %cst_9 = arith.constant 0.000000e+00 : f32
      %12 = vector.broadcast %cst_9 : f32 to vector<8x256xf32>
      %c0_10 = arith.constant 0 : index
      %c0_11 = arith.constant 0 : index
      %13 = vector.load %arg7[%c0_10, %c0_11] : memref<8x256xf32, #tpu.memory_space<vmem>>, vector<8x256xf32>
      tpu.vector_store %arg7[%c0_10, %c0_11], %12 {strides = array<i32>} : memref<8x256xf32, #tpu.memory_space<vmem>>, vector<8x256xf32>,
    } else {
    }
    %c0 = arith.constant 0 : index
    %c0_1 = arith.constant 0 : index
    %3 = vector.load %arg7[%c0, %c0_1] : memref<8x256xf32, #tpu.memory_space<vmem>>, vector<8x256xf32>
    %c0_2 = arith.constant 0 : index
    %c0_3 = arith.constant 0 : index
    %4 = vector.load %arg3[%c0_2, %c0_3] : memref<8x768xbf16, #tpu.memory_space<vmem>>, vector<8x768xbf16>
    %c0_4 = arith.constant 0 : index
    %c0_5 = arith.constant 0 : index
    %5 = vector.load %arg4[%c0_4, %c0_5] : memref<768x256xbf16, #tpu.memory_space<vmem>>, vector<768x256xbf16>
    %cst = arith.constant dense<0.000000e+00> : vector<8x256xf32>
    %6 = tpu.matmul %4, %5, %cst {dimension_numbers = #tpu.dot_dimension_numbers<[1], [0], [0], [1], [0, 0, 1, 1], [], []>} : vector<8x768xbf16>, vector<768x256xbf16>, vector<8x256xf32> -> vector<8x256xf32>
    %7 = arith.addf %3, %6 : vector<8x256xf32>
    %c0_6 = arith.constant 0 : index
    %c0_7 = arith.constant 0 : index
    %8 = vector.load %arg7[%c0_6, %c0_7] : memref<8x256xf32, #tpu.memory_space<vmem>>, vector<8x256xf32>
    tpu.vector_store %arg7[%c0_6, %c0_7], %7 {strides = array<i32>} : memref<8x256xf32, #tpu.memory_space<vmem>>, vector<8x256xf32>,
    %c2_i32 = arith.constant 2 : i32
    %9 = arith.cmpi eq, %arg2, %c2_i32 : i32
    %10 = arith.extui %9 : i1 to i32
    %c0_i32_8 = arith.constant 0 : i32
    %11 = arith.cmpi ne, %10, %c0_i32_8 : i32
    scf.if %11 {
      %c0_9 = arith.constant 0 : index
      %c0_10 = arith.constant 0 : index
      %12 = vector.load %arg7[%c0_9, %c0_10] : memref<8x256xf32, #tpu.memory_space<vmem>>, vector<8x256xf32>
      %c0_11 = arith.constant 0 : index
      %c0_12 = arith.constant 0 : index
      %13 = vector.load %arg5[%c0_11, %c0_12] : memref<1x256xf32, #tpu.memory_space<vmem>>, vector<1x256xf32>
      %14 = vector.broadcast %13 : vector<1x256xf32> to vector<8x256xf32>
      %15 = arith.addf %12, %14 : vector<8x256xf32>
      %cst_13 = arith.constant 0.000000e+00 : f32
      %16 = vector.broadcast %cst_13 : f32 to vector<8x256xf32>
      %17 = arith.maximumf %15, %16 : vector<8x256xf32>
      %c0_14 = arith.constant 0 : index
      %c0_15 = arith.constant 0 : index
      %18 = vector.load %arg6[%c0_14, %c0_15] : memref<8x256xf32, #tpu.memory_space<vmem>>, vector<8x256xf32>
      tpu.vector_store %arg6[%c0_14, %c0_15], %17 {strides = array<i32>} : memref<8x256xf32, #tpu.memory_space<vmem>>, vector<8x256xf32>,
    } else {
    }
    return
  }
  func.func @transform_0(%arg0: i32, %arg1: i32, %arg2: i32) -> (i32, i32) {
    %c0_i32 = arith.constant 0 : i32
    return %arg0, %arg2 : i32, i32
  }
  func.func @transform_1(%arg0: i32, %arg1: i32, %arg2: i32) -> (i32, i32) {
    %c0_i32 = arith.constant 0 : i32
    return %arg2, %arg1 : i32, i32
  }
  func.func @transform_2(%arg0: i32, %arg1: i32, %arg2: i32) -> (i32, i32) {
    %c0_i32 = arith.constant 0 : i32
    %c0_i32_0 = arith.constant 0 : i32
    return %c0_i32, %arg1 : i32, i32
  }
  func.func @transform_3(%arg0: i32, %arg1: i32, %arg2: i32) -> (i32, i32) {
    %c0_i32 = arith.constant 0 : i32
    return %arg0, %arg1 : i32, i32
  }
}

module attributes {stable_mosaic.version = 11 : i64} {
  func.func @kernel(%arg0: i32, %arg1: i32, %arg2: i32, %arg3: memref<32x384xbf16, #tpu.memory_space<vmem>>, %arg4: memref<384x256xbf16, #tpu.memory_space<vmem>>, %arg5: memref<1x256xf32, #tpu.memory_space<vmem>>, %arg6: memref<32x256xf32, #tpu.memory_space<vmem>>, %arg7: memref<32x256xf32, #tpu.memory_space<vmem>>) attributes {dimension_semantics = [#tpu.dimension_semantics<parallel>, #tpu.dimension_semantics<parallel>, #tpu.dimension_semantics<arbitrary>], iteration_bounds = array<i64: 1, 1, 3>, scalar_prefetch = 0 : i64, scratch_operands = 1 : i64, tpu.core_type = #tpu.core_type<tc>, window_params = [{transform_indices = @transform_0, window_bounds = array<i64: 32, 384>}, {transform_indices = @transform_1, window_bounds = array<i64: 384, 256>}, {transform_indices = @transform_2, window_bounds = array<i64: 1, 256>}, {transform_indices = @transform_3, window_bounds = array<i64: 32, 256>}]} {
    %c0_i32 = arith.constant 0 : i32
    %0 = arith.cmpi eq, %arg2, %c0_i32 : i32
    %1 = arith.extui %0 : i1 to i32
    %c0_i32_0 = arith.constant 0 : i32
    %2 = arith.cmpi ne, %1, %c0_i32_0 : i32
    scf.if %2 {
      %cst_9 = arith.constant 0.000000e+00 : f32
      %12 = vector.broadcast %cst_9 : f32 to vector<32x256xf32>
      %c0_10 = arith.constant 0 : index
      %c0_11 = arith.constant 0 : index
      %13 = vector.load %arg7[%c0_10, %c0_11] : memref<32x256xf32, #tpu.memory_space<vmem>>, vector<32x256xf32>
      tpu.vector_store %arg7[%c0_10, %c0_11], %12 {strides = array<i32>} : memref<32x256xf32, #tpu.memory_space<vmem>>, vector<32x256xf32>,
    } else {
    }
    %c0 = arith.constant 0 : index
    %c0_1 = arith.constant 0 : index
    %3 = vector.load %arg7[%c0, %c0_1] : memref<32x256xf32, #tpu.memory_space<vmem>>, vector<32x256xf32>
    %c0_2 = arith.constant 0 : index
    %c0_3 = arith.constant 0 : index
    %4 = vector.load %arg3[%c0_2, %c0_3] : memref<32x384xbf16, #tpu.memory_space<vmem>>, vector<32x384xbf16>
    %c0_4 = arith.constant 0 : index
    %c0_5 = arith.constant 0 : index
    %5 = vector.load %arg4[%c0_4, %c0_5] : memref<384x256xbf16, #tpu.memory_space<vmem>>, vector<384x256xbf16>
    %cst = arith.constant dense<0.000000e+00> : vector<32x256xf32>
    %6 = tpu.matmul %4, %5, %cst {dimension_numbers = #tpu.dot_dimension_numbers<[1], [0], [0], [1], [0, 0, 1, 1], [], []>} : vector<32x384xbf16>, vector<384x256xbf16>, vector<32x256xf32> -> vector<32x256xf32>
    %7 = arith.addf %3, %6 : vector<32x256xf32>
    %c0_6 = arith.constant 0 : index
    %c0_7 = arith.constant 0 : index
    %8 = vector.load %arg7[%c0_6, %c0_7] : memref<32x256xf32, #tpu.memory_space<vmem>>, vector<32x256xf32>
    tpu.vector_store %arg7[%c0_6, %c0_7], %7 {strides = array<i32>} : memref<32x256xf32, #tpu.memory_space<vmem>>, vector<32x256xf32>,
    %c2_i32 = arith.constant 2 : i32
    %9 = arith.cmpi eq, %arg2, %c2_i32 : i32
    %10 = arith.extui %9 : i1 to i32
    %c0_i32_8 = arith.constant 0 : i32
    %11 = arith.cmpi ne, %10, %c0_i32_8 : i32
    scf.if %11 {
      %c0_9 = arith.constant 0 : index
      %c0_10 = arith.constant 0 : index
      %12 = vector.load %arg7[%c0_9, %c0_10] : memref<32x256xf32, #tpu.memory_space<vmem>>, vector<32x256xf32>
      %c0_11 = arith.constant 0 : index
      %c0_12 = arith.constant 0 : index
      %13 = vector.load %arg5[%c0_11, %c0_12] : memref<1x256xf32, #tpu.memory_space<vmem>>, vector<1x256xf32>
      %14 = vector.broadcast %13 : vector<1x256xf32> to vector<32x256xf32>
      %15 = arith.addf %12, %14 : vector<32x256xf32>
      %cst_13 = arith.constant 0.000000e+00 : f32
      %16 = vector.broadcast %cst_13 : f32 to vector<32x256xf32>
      %17 = arith.maximumf %15, %16 : vector<32x256xf32>
      %c0_14 = arith.constant 0 : index
      %c0_15 = arith.constant 0 : index
      %18 = vector.load %arg6[%c0_14, %c0_15] : memref<32x256xf32, #tpu.memory_space<vmem>>, vector<32x256xf32>
      tpu.vector_store %arg6[%c0_14, %c0_15], %17 {strides = array<i32>} : memref<32x256xf32, #tpu.memory_space<vmem>>, vector<32x256xf32>,
    } else {
    }
    return
  }
  func.func @transform_0(%arg0: i32, %arg1: i32, %arg2: i32) -> (i32, i32) {
    %c0_i32 = arith.constant 0 : i32
    return %arg0, %arg2 : i32, i32
  }
  func.func @transform_1(%arg0: i32, %arg1: i32, %arg2: i32) -> (i32, i32) {
    %c0_i32 = arith.constant 0 : i32
    return %arg2, %arg1 : i32, i32
  }
  func.func @transform_2(%arg0: i32, %arg1: i32, %arg2: i32) -> (i32, i32) {
    %c0_i32 = arith.constant 0 : i32
    %c0_i32_0 = arith.constant 0 : i32
    return %c0_i32, %arg1 : i32, i32
  }
  func.func @transform_3(%arg0: i32, %arg1: i32, %arg2: i32) -> (i32, i32) {
    %c0_i32 = arith.constant 0 : i32
    return %arg0, %arg1 : i32, i32
  }
}

module attributes {stable_mosaic.version = 11 : i64} {
  func.func @kernel(%arg0: i32, %arg1: i32, %arg2: i32, %arg3: memref<128x640xbf16, #tpu.memory_space<vmem>>, %arg4: memref<640x128xbf16, #tpu.memory_space<vmem>>, %arg5: memref<1x128xf32, #tpu.memory_space<vmem>>, %arg6: memref<128x128xf32, #tpu.memory_space<vmem>>, %arg7: memref<128x128xf32, #tpu.memory_space<vmem>>) attributes {dimension_semantics = [#tpu.dimension_semantics<parallel>, #tpu.dimension_semantics<parallel>, #tpu.dimension_semantics<arbitrary>], iteration_bounds = array<i64: 1, 1, 1>, scalar_prefetch = 0 : i64, scratch_operands = 1 : i64, tpu.core_type = #tpu.core_type<tc>, window_params = [{transform_indices = @transform_0, window_bounds = array<i64: 128, 640>}, {transform_indices = @transform_1, window_bounds = array<i64: 640, 128>}, {transform_indices = @transform_2, window_bounds = array<i64: 1, 128>}, {transform_indices = @transform_3, window_bounds = array<i64: 128, 128>}]} {
    %c0_i32 = arith.constant 0 : i32
    %0 = arith.cmpi eq, %arg2, %c0_i32 : i32
    %1 = arith.extui %0 : i1 to i32
    %c0_i32_0 = arith.constant 0 : i32
    %2 = arith.cmpi ne, %1, %c0_i32_0 : i32
    scf.if %2 {
      %cst_10 = arith.constant 0.000000e+00 : f32
      %12 = vector.broadcast %cst_10 : f32 to vector<128x128xf32>
      %c0_11 = arith.constant 0 : index
      %c0_12 = arith.constant 0 : index
      %13 = vector.load %arg7[%c0_11, %c0_12] : memref<128x128xf32, #tpu.memory_space<vmem>>, vector<128x128xf32>
      tpu.vector_store %arg7[%c0_11, %c0_12], %12 {strides = array<i32>} : memref<128x128xf32, #tpu.memory_space<vmem>>, vector<128x128xf32>,
    } else {
    }
    %c0 = arith.constant 0 : index
    %c0_1 = arith.constant 0 : index
    %3 = vector.load %arg7[%c0, %c0_1] : memref<128x128xf32, #tpu.memory_space<vmem>>, vector<128x128xf32>
    %c0_2 = arith.constant 0 : index
    %c0_3 = arith.constant 0 : index
    %4 = vector.load %arg3[%c0_2, %c0_3] : memref<128x640xbf16, #tpu.memory_space<vmem>>, vector<128x640xbf16>
    %c0_4 = arith.constant 0 : index
    %c0_5 = arith.constant 0 : index
    %5 = vector.load %arg4[%c0_4, %c0_5] : memref<640x128xbf16, #tpu.memory_space<vmem>>, vector<640x128xbf16>
    %cst = arith.constant dense<0.000000e+00> : vector<128x128xf32>
    %6 = tpu.matmul %4, %5, %cst {dimension_numbers = #tpu.dot_dimension_numbers<[1], [0], [0], [1], [0, 0, 1, 1], [], []>} : vector<128x640xbf16>, vector<640x128xbf16>, vector<128x128xf32> -> vector<128x128xf32>
    %7 = arith.addf %3, %6 : vector<128x128xf32>
    %c0_6 = arith.constant 0 : index
    %c0_7 = arith.constant 0 : index
    %8 = vector.load %arg7[%c0_6, %c0_7] : memref<128x128xf32, #tpu.memory_space<vmem>>, vector<128x128xf32>
    tpu.vector_store %arg7[%c0_6, %c0_7], %7 {strides = array<i32>} : memref<128x128xf32, #tpu.memory_space<vmem>>, vector<128x128xf32>,
    %c0_i32_8 = arith.constant 0 : i32
    %9 = arith.cmpi eq, %arg2, %c0_i32_8 : i32
    %10 = arith.extui %9 : i1 to i32
    %c0_i32_9 = arith.constant 0 : i32
    %11 = arith.cmpi ne, %10, %c0_i32_9 : i32
    scf.if %11 {
      %c0_10 = arith.constant 0 : index
      %c0_11 = arith.constant 0 : index
      %12 = vector.load %arg7[%c0_10, %c0_11] : memref<128x128xf32, #tpu.memory_space<vmem>>, vector<128x128xf32>
      %c0_12 = arith.constant 0 : index
      %c0_13 = arith.constant 0 : index
      %13 = vector.load %arg5[%c0_12, %c0_13] : memref<1x128xf32, #tpu.memory_space<vmem>>, vector<1x128xf32>
      %14 = vector.broadcast %13 : vector<1x128xf32> to vector<128x128xf32>
      %15 = arith.addf %12, %14 : vector<128x128xf32>
      %cst_14 = arith.constant 0.000000e+00 : f32
      %16 = vector.broadcast %cst_14 : f32 to vector<128x128xf32>
      %17 = arith.maximumf %15, %16 : vector<128x128xf32>
      %c0_15 = arith.constant 0 : index
      %c0_16 = arith.constant 0 : index
      %18 = vector.load %arg6[%c0_15, %c0_16] : memref<128x128xf32, #tpu.memory_space<vmem>>, vector<128x128xf32>
      tpu.vector_store %arg6[%c0_15, %c0_16], %17 {strides = array<i32>} : memref<128x128xf32, #tpu.memory_space<vmem>>, vector<128x128xf32>,
    } else {
    }
    return
  }
  func.func @transform_0(%arg0: i32, %arg1: i32, %arg2: i32) -> (i32, i32) {
    %c0_i32 = arith.constant 0 : i32
    return %arg0, %arg2 : i32, i32
  }
  func.func @transform_1(%arg0: i32, %arg1: i32, %arg2: i32) -> (i32, i32) {
    %c0_i32 = arith.constant 0 : i32
    return %arg2, %arg1 : i32, i32
  }
  func.func @transform_2(%arg0: i32, %arg1: i32, %arg2: i32) -> (i32, i32) {
    %c0_i32 = arith.constant 0 : i32
    %c0_i32_0 = arith.constant 0 : i32
    return %c0_i32, %arg1 : i32, i32
  }
  func.func @transform_3(%arg0: i32, %arg1: i32, %arg2: i32) -> (i32, i32) {
    %c0_i32 = arith.constant 0 : i32
    return %arg0, %arg1 : i32, i32
  }
}

module attributes {stable_mosaic.version = 11 : i64} {
  func.func @kernel(%arg0: i32, %arg1: i32, %arg2: memref<1x16x16x288xf32, #tpu.memory_space<vmem>>, %arg3: memref<1x1x1x288xf32, #tpu.memory_space<vmem>>, %arg4: memref<1xf32, #tpu.memory_space<smem>>, %arg5: memref<32x16xf32, #tpu.memory_space<vmem>>, %arg6: memref<16x128xf32, #tpu.memory_space<vmem>>, %arg7: memref<1x1x32x128xf32, #tpu.memory_space<vmem>>) attributes {dimension_semantics = [#tpu.dimension_semantics<parallel>, #tpu.dimension_semantics<parallel>], iteration_bounds = array<i64: 2, 1>, scalar_prefetch = 0 : i64, scratch_operands = 0 : i64, tpu.core_type = #tpu.core_type<tc>, window_params = [{transform_indices = @transform_0, window_bounds = array<i64: 1, 16, 16, 288>}, {transform_indices = @transform_1, window_bounds = array<i64: 1, 1, 1, 288>}, {transform_indices = @transform_2, window_bounds = array<i64: 1>}, {pipeline_mode = #tpu.pipeline_mode<synchronous>, transform_indices = @transform_3, window_bounds = array<i64: 32, 16>}, {pipeline_mode = #tpu.pipeline_mode<synchronous>, transform_indices = @transform_4, window_bounds = array<i64: 16, 128>}, {transform_indices = @transform_5, window_bounds = array<i64: 1, 1, 32, 128>}]} {
    %c0 = arith.constant 0 : index
    %c0_0 = arith.constant 0 : index
    %c0_1 = arith.constant 0 : index
    %c0_2 = arith.constant 0 : index
    %0 = vector.load %arg2[%c0, %c0_0, %c0_1, %c0_2] : memref<1x16x16x288xf32, #tpu.memory_space<vmem>>, vector<1x16x16x288xf32>
    %1 = vector.shape_cast %0 : vector<1x16x16x288xf32> to vector<16x16x288xf32>
    %c0_3 = arith.constant 0 : index
    %c0_4 = arith.constant 0 : index
    %c0_5 = arith.constant 0 : index
    %c0_6 = arith.constant 0 : index
    %2 = vector.load %arg3[%c0_3, %c0_4, %c0_5, %c0_6] : memref<1x1x1x288xf32, #tpu.memory_space<vmem>>, vector<1x1x1x288xf32>
    %3 = vector.shape_cast %2 : vector<1x1x1x288xf32> to vector<1x1x288xf32>
    %4 = vector.broadcast %3 : vector<1x1x288xf32> to vector<16x16x288xf32>
    %5 = arith.mulf %1, %4 : vector<16x16x288xf32>
    %cst = arith.constant dense<0.000000e+00> : vector<16x16xf32>
    %6 = vector.multi_reduction <add>, %5, %cst [2] : vector<16x16x288xf32> to vector<16x16xf32>
    %7 = arith.index_cast %arg1 : i32 to index
    %8 = memref.load %arg4[%7] : memref<1xf32, #tpu.memory_space<smem>>
    %9 = vector.broadcast %8 : f32 to vector<16x16xf32>
    %10 = arith.addf %6, %9 : vector<16x16xf32>
    %11 = arith.negf %10 : vector<16x16xf32>
    %12 = math.exp %11 : vector<16x16xf32>
    %cst_7 = arith.constant 1.000000e+00 : f32
    %13 = vector.broadcast %cst_7 : f32 to vector<16x16xf32>
    %14 = arith.addf %13, %12 : vector<16x16xf32>
    %15 = arith.divf %13, %14 : vector<16x16xf32>
    %c0_8 = arith.constant 0 : index
    %c0_9 = arith.constant 0 : index
    %16 = vector.load %arg5[%c0_8, %c0_9] : memref<32x16xf32, #tpu.memory_space<vmem>>, vector<32x16xf32>
    %cst_10 = arith.constant dense<0.000000e+00> : vector<32x16xf32>
    %17 = tpu.matmul %16, %15, %cst_10 {dimension_numbers = #tpu.dot_dimension_numbers<[1], [0], [0], [1], [0, 0, 1, 1], [], []>} : vector<32x16xf32>, vector<16x16xf32>, vector<32x16xf32> -> vector<32x16xf32>
    %c0_11 = arith.constant 0 : index
    %c0_12 = arith.constant 0 : index
    %18 = vector.load %arg6[%c0_11, %c0_12] : memref<16x128xf32, #tpu.memory_space<vmem>>, vector<16x128xf32>
    %cst_13 = arith.constant dense<0.000000e+00> : vector<32x128xf32>
    %19 = tpu.matmul %17, %18, %cst_13 {dimension_numbers = #tpu.dot_dimension_numbers<[1], [0], [0], [1], [0, 0, 1, 1], [], []>} : vector<32x16xf32>, vector<16x128xf32>, vector<32x128xf32> -> vector<32x128xf32>
    %c0_14 = arith.constant 0 : index
    %c0_15 = arith.constant 0 : index
    %c0_16 = arith.constant 0 : index
    %c0_17 = arith.constant 0 : index
    %20 = vector.load %arg7[%c0_14, %c0_15, %c0_16, %c0_17] : memref<1x1x32x128xf32, #tpu.memory_space<vmem>>, vector<1x1x32x128xf32>
    %21 = vector.shape_cast %20 : vector<1x1x32x128xf32> to vector<32x128xf32>
    %22 = vector.shape_cast %19 : vector<32x128xf32> to vector<1x1x32x128xf32>
    tpu.vector_store %arg7[%c0_14, %c0_15, %c0_16, %c0_17], %22 {strides = array<i32>} : memref<1x1x32x128xf32, #tpu.memory_space<vmem>>, vector<1x1x32x128xf32>,
    return
  }
  func.func @transform_0(%arg0: i32, %arg1: i32) -> (i32, i32, i32, i32) {
    %c0_i32 = arith.constant 0 : i32
    %c0_i32_0 = arith.constant 0 : i32
    %c0_i32_1 = arith.constant 0 : i32
    %c0_i32_2 = arith.constant 0 : i32
    return %arg0, %c0_i32, %c0_i32_0, %c0_i32_1 : i32, i32, i32, i32
  }
  func.func @transform_1(%arg0: i32, %arg1: i32) -> (i32, i32, i32, i32) {
    %c0_i32 = arith.constant 0 : i32
    %c0_i32_0 = arith.constant 0 : i32
    %c0_i32_1 = arith.constant 0 : i32
    %c0_i32_2 = arith.constant 0 : i32
    return %arg1, %c0_i32, %c0_i32_0, %c0_i32_1 : i32, i32, i32, i32
  }
  func.func @transform_2(%arg0: i32, %arg1: i32) -> i32 {
    %c0_i32 = arith.constant 0 : i32
    %c0_i32_0 = arith.constant 0 : i32
    return %c0_i32 : i32
  }
  func.func @transform_3(%arg0: i32, %arg1: i32) -> (i32, i32) {
    %c0_i32 = arith.constant 0 : i32
    %c0_i32_0 = arith.constant 0 : i32
    %c0_i32_1 = arith.constant 0 : i32
    return %c0_i32, %c0_i32_0 : i32, i32
  }
  func.func @transform_4(%arg0: i32, %arg1: i32) -> (i32, i32) {
    %c0_i32 = arith.constant 0 : i32
    %c0_i32_0 = arith.constant 0 : i32
    %c0_i32_1 = arith.constant 0 : i32
    return %c0_i32, %c0_i32_0 : i32, i32
  }
  func.func @transform_5(%arg0: i32, %arg1: i32) -> (i32, i32, i32, i32) {
    %c0_i32 = arith.constant 0 : i32
    %c0_i32_0 = arith.constant 0 : i32
    %c0_i32_1 = arith.constant 0 : i32
    return %arg0, %arg1, %c0_i32, %c0_i32_0 : i32, i32, i32, i32
  }
}

</mosaic_0001>

<llo_original>
// kernel: _lambda_.7
$region0: #{_lambda_.7}
  #allocation0 [shape = 'u32[]', space=smem, size = 0x4, offset = 0x4, fixed_abs, tag = 'smem constant byte address 0x4 - core index']
  #allocation1 [shape = 'u32[144,128]{1,0:T(1,128)}', space=vmem, size = 0x12000, scoped, tag = 'internal scratch']
  #allocation2 [shape = 'f32[8,128]{1,0:T(8,128)}', space=vmem, size = 0x1000, scoped, tag = 'scratch operand']
  %s0 = inlined_call_operand.vmem [shape: bf16[8,128], index: 0, kind: input, shape index: {}]
  %s1 = inlined_call_operand.vmem [shape: bf16[128,128], index: 1, kind: input, shape index: {}]
  %s2 = inlined_call_operand.vmem [shape: f32[1,128], index: 2, kind: input, shape index: {}]
  %s3 = inlined_call_operand.vmem [shape: f32[8,128], index: 3, kind: output, shape index: {}]
  %s4 = sld [smem:[#allocation0]]
  $region30: #{_lambda_.7} parent=0
    _
  %s6 = ssub.s32 1, %s4
  %s7 = scalar_select 0, %s6, %s4
  // Predicated region
  $region2: #{_lambda_.7} parent=0 // pred_check
    _
  $region3: #{_lambda_.7} parent=0 // pred_check_branch
    %9 = sbr.rel (0) target = $region5
  $region4: #{_lambda_.7} parent=0 // pred_region
    _
  $region5: #{_lambda_.7} parent=0 // pred_fallthru
    _
  // Predicated region
  $region6: #{_lambda_.7} parent=0 // pred_check
    _
  $region7: #{_lambda_.7} parent=0 // pred_check_branch
    %11 = sbr.rel (0) target = $region9
  $region8: #{_lambda_.7} parent=0 // pred_region
    _
  $region9: #{_lambda_.7} parent=0 // pred_fallthru
    _
  // Predicated region
  $region10: #{_lambda_.7} parent=0 // pred_check
    _
  $region11: #{_lambda_.7} parent=0 // pred_check_branch
    %13 = sbr.rel (0) target = $region13
  $region12: #{_lambda_.7} parent=0 // pred_region
    _
  $region13: #{_lambda_.7} parent=0 // pred_fallthru
    _
  %p15 = scmp.eq.s32.totalorder 0, 0
  // Predicated region
  $region14: #{_lambda_.7} parent=0 // pred_check
    %p16 = pneg %p15
  $region15: #{_lambda_.7} parent=0 // pred_check_branch
    %18 = sbr.rel (%p16) target = $region17
  $region16: #{_lambda_.7} parent=0 // pred_region
    %19 = vst [vmem:[#allocation2] sm:$0xff] 0.0
  $region17: #{_lambda_.7} parent=0 // pred_fallthru
    _
  %v20 = vld [vmem:[#allocation2] sm:$0xff]
  %v21 = vld [vmem:[%s0] sm:$0xf]
  %v22 = vld [vmem:[%s1] sm:$0xf]
  %v23 = vld [vmem:[%s1 + $0x4] sm:$0xf]
  %v24 = vld [vmem:[%s1 + $0x8] sm:$0xf]
  %v25 = vld [vmem:[%s1 + $0xc] sm:$0xf]
  %v26 = vld [vmem:[%s1 + $0x10] sm:$0xf]
  %v27 = vld [vmem:[%s1 + $0x14] sm:$0xf]
  %v28 = vld [vmem:[%s1 + $0x18] sm:$0xf]
  %v29 = vld [vmem:[%s1 + $0x1c] sm:$0xf]
  %v30 = vld [vmem:[%s1 + $0x20] sm:$0xf]
  %v31 = vld [vmem:[%s1 + $0x24] sm:$0xf]
  %v32 = vld [vmem:[%s1 + $0x28] sm:$0xf]
  %v33 = vld [vmem:[%s1 + $0x2c] sm:$0xf]
  %v34 = vld [vmem:[%s1 + $0x30] sm:$0xf]
  %v35 = vld [vmem:[%s1 + $0x34] sm:$0xf]
  %v36 = vld [vmem:[%s1 + $0x38] sm:$0xf]
  %v37 = vld [vmem:[%s1 + $0x3c] sm:$0xf]
  %v54 = vunpack.c.l.b16 %v22
  %v55 = vunpack.c.l.b16 %v23
  %v56 = vunpack.c.l.b16 %v24
  %v57 = vunpack.c.l.b16 %v25
  %v58 = vunpack.c.l.b16 %v26
  %v59 = vunpack.c.l.b16 %v27
  %v60 = vunpack.c.l.b16 %v28
  %v61 = vunpack.c.l.b16 %v29
  %v62 = vunpack.c.l.b16 %v30
  %v63 = vunpack.c.l.b16 %v31
  %v64 = vunpack.c.l.b16 %v32
  %v65 = vunpack.c.l.b16 %v33
  %v66 = vunpack.c.l.b16 %v34
  %v67 = vunpack.c.l.b16 %v35
  %v68 = vunpack.c.l.b16 %v36
  %v69 = vunpack.c.l.b16 %v37
  %v70 = vpack.c.b16 %v55, %v54
  %v71 = vpack.c.b16 %v57, %v56
  %v72 = vpack.c.b16 %v59, %v58
  %v73 = vpack.c.b16 %v61, %v60
  %v74 = vpack.c.b16 %v63, %v62
  %v75 = vpack.c.b16 %v65, %v64
  %v76 = vpack.c.b16 %v67, %v66
  %v77 = vpack.c.b16 %v69, %v68
  %86 = vmatprep.subr.bf16.mxu0 0
  %87 = vmatpush1.bf16.msra.mxu0 %v70
  %88 = vmatprep.subr.bf16.mxu0 0
  %89 = vmatpush1.bf16.msra.mxu0 %v71
  %90 = vmatprep.subr.bf16.mxu0 0
  %91 = vmatpush1.bf16.msra.mxu0 %v72
  %92 = vmatprep.subr.bf16.mxu0 0
  %93 = vmatpush1.bf16.msra.mxu0 %v73
  %94 = vmatprep.subr.bf16.mxu0 0
  %95 = vmatpush1.bf16.msra.mxu0 %v74
  %96 = vmatprep.subr.bf16.mxu0 0
  %97 = vmatpush1.bf16.msra.mxu0 %v75
  %98 = vmatprep.subr.bf16.mxu0 0
  %99 = vmatpush1.bf16.msra.mxu0 %v76
  %100 = vmatprep.subr.bf16.mxu0 0
  %101 = vmatpush1.bf16.msra.mxu0 %v77
  %102 = vmatprep.subr.bf16.mxu0 0
  %103 = vmatpush1.bf16.msra.mxu0 0
  %104 = vmatprep.subr.bf16.mxu0 0
  %105 = vmatpush1.bf16.msra.mxu0 0
  %106 = vmatprep.subr.bf16.mxu0 0
  %107 = vmatpush1.bf16.msra.mxu0 0
  %108 = vmatprep.subr.bf16.mxu0 0
  %109 = vmatpush1.bf16.msra.mxu0 0
  %110 = vmatprep.subr.bf16.mxu0 0
  %111 = vmatpush1.bf16.msra.mxu0 0
  %112 = vmatprep.subr.bf16.mxu0 0
  %113 = vmatpush1.bf16.msra.mxu0 0
  %114 = vmatprep.subr.bf16.mxu0 0
  %115 = vmatpush1.bf16.msra.mxu0 0
  %116 = vmatprep.subr.bf16.mxu0 0
  %117 = vmatpush1.bf16.msra.mxu0 0
  %118 = vmatprep.mubr.bf16.mxu0 0
  %119 = vmatmul.mubr.bf16.gmra.mrb[0].mxu0 %v21
  %v120 = vpop.f32.mrb[0].mxu0
  %v121 = vadd.f32 0.0, %v120
  %v122 = vpop.f32.mrb[0].mxu0
  %v123 = vpop.f32.mrb[0].mxu0
  %v124 = vpop.f32.mrb[0].mxu0
  %125 = vdwg.mxu0
  %v126 = vadd.f32 %v20, %v121
  %127 = vst [vmem:[#allocation2] sm:$0xff] %v126
  // Predicated region
  $region18: #{_lambda_.7} parent=0 // pred_check
    %p128 = pneg %p15
  $region19: #{_lambda_.7} parent=0 // pred_check_branch
    %130 = sbr.rel (%p128) target = $region21
  $region20: #{_lambda_.7} parent=0 // pred_region
    %v131 = vld [vmem:[#allocation2] sm:$0xff]
    %v132 = vld [vmem:[%s2] sm:$0x1]
    %v134 = vlaneseq
    %v135 = vshrl.u32 %v134, 7
    %v136 = vsub.s32 0, %v135
    %v137 = vrot.slane %v132, %v136
    %v139 = vadd.f32 %v131, %v137
    %140 = vst [vmem:[%s3] sm:$0xff] %v139
  $region21: #{_lambda_.7} parent=0 // pred_fallthru
    _
  // Predicated region
  $region22: #{_lambda_.7} parent=0 // pred_check
    _
  $region23: #{_lambda_.7} parent=0 // pred_check_branch
    %142 = sbr.rel (0) target = $region25
  $region24: #{_lambda_.7} parent=0 // pred_region
    _
  $region25: #{_lambda_.7} parent=0 // pred_fallthru
    _
  // Predicated region
  $region26: #{_lambda_.7} parent=0 // pred_check
    _
  $region27: #{_lambda_.7} parent=0 // pred_check_branch
    %144 = sbr.rel (0) target = $region29
  $region28: #{_lambda_.7} parent=0 // pred_region
    _
  $region29: #{_lambda_.7} parent=0 // pred_fallthru
    _

// kernel: _lambda_.8
$region0: #{_lambda_.8}
  #allocation0 [shape = 'u32[]', space=smem, size = 0x4, offset = 0x4, fixed_abs, tag = 'smem constant byte address 0x4 - core index']
  #allocation1 [shape = 'u32[144,128]{1,0:T(1,128)}', space=vmem, size = 0x12000, scoped, tag = 'internal scratch']
  #allocation2 [shape = 'f32[8,256]{1,0:T(8,128)}', space=vmem, size = 0x2000, scoped, tag = 'scratch operand']
  %s0 = inlined_call_operand.vmem [shape: bf16[8,384], index: 0, kind: input, shape index: {}]
  %s1 = inlined_call_operand.vmem [shape: bf16[384,256], index: 1, kind: input, shape index: {}]
  %s2 = inlined_call_operand.vmem [shape: f32[1,256], index: 2, kind: input, shape index: {}]
  %s3 = inlined_call_operand.vmem [shape: f32[8,256], index: 3, kind: output, shape index: {}]
  %s4 = sld [smem:[#allocation0]]
  $region30: #{_lambda_.8} parent=0
    _
  %s6 = ssub.s32 1, %s4
  %s7 = scalar_select 0, %s6, %s4
  // Predicated region
  $region2: #{_lambda_.8} parent=0 // pred_check
    _
  $region3: #{_lambda_.8} parent=0 // pred_check_branch
    %9 = sbr.rel (0) target = $region5
  $region4: #{_lambda_.8} parent=0 // pred_region
    _
  $region5: #{_lambda_.8} parent=0 // pred_fallthru
    _
  // Predicated region
  $region6: #{_lambda_.8} parent=0 // pred_check
    _
  $region7: #{_lambda_.8} parent=0 // pred_check_branch
    %11 = sbr.rel (0) target = $region9
  $region8: #{_lambda_.8} parent=0 // pred_region
    _
  $region9: #{_lambda_.8} parent=0 // pred_fallthru
    _
  // Predicated region
  $region10: #{_lambda_.8} parent=0 // pred_check
    _
  $region11: #{_lambda_.8} parent=0 // pred_check_branch
    %13 = sbr.rel (0) target = $region13
  $region12: #{_lambda_.8} parent=0 // pred_region
    _
  $region13: #{_lambda_.8} parent=0 // pred_fallthru
    _
  %p15 = scmp.eq.s32.totalorder 0, 0
  // Predicated region
  $region14: #{_lambda_.8} parent=0 // pred_check
    %p16 = pneg %p15
  $region15: #{_lambda_.8} parent=0 // pred_check_branch
    %18 = sbr.rel (%p16) target = $region17
  $region16: #{_lambda_.8} parent=0 // pred_region
    %19 = vst [vmem:[#allocation2] sm:$0xff] 0.0
    %20 = vst [vmem:[#allocation2 + $0x8] sm:$0xff] 0.0
  $region17: #{_lambda_.8} parent=0 // pred_fallthru
    _
  %v21 = vld [vmem:[#allocation2] sm:$0xff]
  %v22 = vld [vmem:[#allocation2 + $0x8] sm:$0xff]
  %v23 = vld [vmem:[%s0] sm:$0xff]
  %v24 = vld [vmem:[%s0 + $0x8] sm:$0xf]
  %v25 = vld [vmem:[%s1] sm:$0xff]
  %v26 = vld [vmem:[%s1 + $0x8] sm:$0xff]
  %v27 = vld [vmem:[%s1 + $0x10] sm:$0xff]
  %v28 = vld [vmem:[%s1 + $0x18] sm:$0xff]
  %v29 = vld [vmem:[%s1 + $0x20] sm:$0xff]
  %v30 = vld [vmem:[%s1 + $0x28] sm:$0xff]
  %v31 = vld [vmem:[%s1 + $0x30] sm:$0xff]
  %v32 = vld [vmem:[%s1 + $0x38] sm:$0xff]
  %v33 = vld [vmem:[%s1 + $0x40] sm:$0xff]
  %v34 = vld [vmem:[%s1 + $0x48] sm:$0xff]
  %v35 = vld [vmem:[%s1 + $0x50] sm:$0xff]
  %v36 = vld [vmem:[%s1 + $0x58] sm:$0xff]
  %v37 = vld [vmem:[%s1 + $0x60] sm:$0xff]
  %v38 = vld [vmem:[%s1 + $0x68] sm:$0xff]
  %v39 = vld [vmem:[%s1 + $0x70] sm:$0xff]
  %v40 = vld [vmem:[%s1 + $0x78] sm:$0xff]
  %v41 = vld [vmem:[%s1 + $0x80] sm:$0xff]
  %v42 = vld [vmem:[%s1 + $0x88] sm:$0xff]
  %v43 = vld [vmem:[%s1 + $0x90] sm:$0xff]
  %v44 = vld [vmem:[%s1 + $0x98] sm:$0xff]
  %v45 = vld [vmem:[%s1 + $0xa0] sm:$0xff]
  %v46 = vld [vmem:[%s1 + $0xa8] sm:$0xff]
  %v47 = vld [vmem:[%s1 + $0xb0] sm:$0xff]
  %v48 = vld [vmem:[%s1 + $0xb8] sm:$0xff]
  %v49 = vld [vmem:[%s1 + $0xc0] sm:$0xff]
  %v50 = vld [vmem:[%s1 + $0xc8] sm:$0xff]
  %v51 = vld [vmem:[%s1 + $0xd0] sm:$0xff]
  %v52 = vld [vmem:[%s1 + $0xd8] sm:$0xff]
  %v53 = vld [vmem:[%s1 + $0xe0] sm:$0xff]
  %v54 = vld [vmem:[%s1 + $0xe8] sm:$0xff]
  %v55 = vld [vmem:[%s1 + $0xf0] sm:$0xff]
  %v56 = vld [vmem:[%s1 + $0xf8] sm:$0xff]
  %v57 = vld [vmem:[%s1 + $0x100] sm:$0xff]
  %v58 = vld [vmem:[%s1 + $0x108] sm:$0xff]
  %v59 = vld [vmem:[%s1 + $0x110] sm:$0xff]
  %v60 = vld [vmem:[%s1 + $0x118] sm:$0xff]
  %v61 = vld [vmem:[%s1 + $0x120] sm:$0xff]
  %v62 = vld [vmem:[%s1 + $0x128] sm:$0xff]
  %v63 = vld [vmem:[%s1 + $0x130] sm:$0xff]
  %v64 = vld [vmem:[%s1 + $0x138] sm:$0xff]
  %v65 = vld [vmem:[%s1 + $0x140] sm:$0xff]
  %v66 = vld [vmem:[%s1 + $0x148] sm:$0xff]
  %v67 = vld [vmem:[%s1 + $0x150] sm:$0xff]
  %v68 = vld [vmem:[%s1 + $0x158] sm:$0xff]
  %v69 = vld [vmem:[%s1 + $0x160] sm:$0xff]
  %v70 = vld [vmem:[%s1 + $0x168] sm:$0xff]
  %v71 = vld [vmem:[%s1 + $0x170] sm:$0xff]
  %v72 = vld [vmem:[%s1 + $0x178] sm:$0xff]
  %v75 = vunpack.c.l.b16 %v23
  %v76 = vunpack.c.h.b16 %v23
  %v77 = vunpack.c.l.b16 %v24
  %v78 = vpack.c.b16 %v75, %v75
  %v79 = vpack.c.b16 %v76, %v76
  %v80 = vpack.c.b16 %v77, %v77
  %v132 = vunpack.c.l.b16 %v25
  %v133 = vunpack.c.h.b16 %v25
  %v134 = vunpack.c.l.b16 %v26
  %v135 = vunpack.c.h.b16 %v26
  %v136 = vunpack.c.l.b16 %v27
  %v137 = vunpack.c.h.b16 %v27
  %v138 = vunpack.c.l.b16 %v28
  %v139 = vunpack.c.h.b16 %v28
  %v140 = vunpack.c.l.b16 %v29
  %v141 = vunpack.c.h.b16 %v29
  %v142 = vunpack.c.l.b16 %v30
  %v143 = vunpack.c.h.b16 %v30
  %v144 = vunpack.c.l.b16 %v31
  %v145 = vunpack.c.h.b16 %v31
  %v146 = vunpack.c.l.b16 %v32
  %v147 = vunpack.c.h.b16 %v32
  %v148 = vunpack.c.l.b16 %v33
  %v149 = vunpack.c.h.b16 %v33
  %v150 = vunpack.c.l.b16 %v34
  %v151 = vunpack.c.h.b16 %v34
  %v152 = vunpack.c.l.b16 %v35
  %v153 = vunpack.c.h.b16 %v35
  %v154 = vunpack.c.l.b16 %v36
  %v155 = vunpack.c.h.b16 %v36
  %v156 = vunpack.c.l.b16 %v37
  %v157 = vunpack.c.h.b16 %v37
  %v158 = vunpack.c.l.b16 %v38
  %v159 = vunpack.c.h.b16 %v38
  %v160 = vunpack.c.l.b16 %v39
  %v161 = vunpack.c.h.b16 %v39
  %v162 = vunpack.c.l.b16 %v40
  %v163 = vunpack.c.h.b16 %v40
  %v164 = vunpack.c.l.b16 %v41
  %v165 = vunpack.c.h.b16 %v41
  %v166 = vunpack.c.l.b16 %v42
  %v167 = vunpack.c.h.b16 %v42
  %v168 = vunpack.c.l.b16 %v43
  %v169 = vunpack.c.h.b16 %v43
  %v170 = vunpack.c.l.b16 %v44
  %v171 = vunpack.c.h.b16 %v44
  %v172 = vunpack.c.l.b16 %v45
  %v173 = vunpack.c.h.b16 %v45
  %v174 = vunpack.c.l.b16 %v46
  %v175 = vunpack.c.h.b16 %v46
  %v176 = vunpack.c.l.b16 %v47
  %v177 = vunpack.c.h.b16 %v47
  %v178 = vunpack.c.l.b16 %v48
  %v179 = vunpack.c.h.b16 %v48
  %v180 = vunpack.c.l.b16 %v49
  %v181 = vunpack.c.h.b16 %v49
  %v182 = vunpack.c.l.b16 %v50
  %v183 = vunpack.c.h.b16 %v50
  %v184 = vunpack.c.l.b16 %v51
  %v185 = vunpack.c.h.b16 %v51
  %v186 = vunpack.c.l.b16 %v52
  %v187 = vunpack.c.h.b16 %v52
  %v188 = vunpack.c.l.b16 %v53
  %v189 = vunpack.c.h.b16 %v53
  %v190 = vunpack.c.l.b16 %v54
  %v191 = vunpack.c.h.b16 %v54
  %v192 = vunpack.c.l.b16 %v55
  %v193 = vunpack.c.h.b16 %v55
  %v194 = vunpack.c.l.b16 %v56
  %v195 = vunpack.c.h.b16 %v56
  %v196 = vunpack.c.l.b16 %v57
  %v197 = vunpack.c.h.b16 %v57
  %v198 = vunpack.c.l.b16 %v58
  %v199 = vunpack.c.h.b16 %v58
  %v200 = vunpack.c.l.b16 %v59
  %v201 = vunpack.c.h.b16 %v59
  %v202 = vunpack.c.l.b16 %v60
  %v203 = vunpack.c.h.b16 %v60
  %v204 = vunpack.c.l.b16 %v61
  %v205 = vunpack.c.h.b16 %v61
  %v206 = vunpack.c.l.b16 %v62
  %v207 = vunpack.c.h.b16 %v62
  %v208 = vunpack.c.l.b16 %v63
  %v209 = vunpack.c.h.b16 %v63
  %v210 = vunpack.c.l.b16 %v64
  %v211 = vunpack.c.h.b16 %v64
  %v212 = vunpack.c.l.b16 %v65
  %v213 = vunpack.c.h.b16 %v65
  %v214 = vunpack.c.l.b16 %v66
  %v215 = vunpack.c.h.b16 %v66
  %v216 = vunpack.c.l.b16 %v67
  %v217 = vunpack.c.h.b16 %v67
  %v218 = vunpack.c.l.b16 %v68
  %v219 = vunpack.c.h.b16 %v68
  %v220 = vunpack.c.l.b16 %v69
  %v221 = vunpack.c.h.b16 %v69
  %v222 = vunpack.c.l.b16 %v70
  %v223 = vunpack.c.h.b16 %v70
  %v224 = vunpack.c.l.b16 %v71
  %v225 = vunpack.c.h.b16 %v71
  %v226 = vunpack.c.l.b16 %v72
  %v227 = vunpack.c.h.b16 %v72
  %v228 = vpack.c.b16 %v134, %v132
  %v229 = vpack.c.b16 %v135, %v133
  %v230 = vpack.c.b16 %v138, %v136
  %v231 = vpack.c.b16 %v139, %v137
  %v232 = vpack.c.b16 %v142, %v140
  %v233 = vpack.c.b16 %v143, %v141
  %v234 = vpack.c.b16 %v146, %v144
  %v235 = vpack.c.b16 %v147, %v145
  %v236 = vpack.c.b16 %v150, %v148
  %v237 = vpack.c.b16 %v151, %v149
  %v238 = vpack.c.b16 %v154, %v152
  %v239 = vpack.c.b16 %v155, %v153
  %v240 = vpack.c.b16 %v158, %v156
  %v241 = vpack.c.b16 %v159, %v157
  %v242 = vpack.c.b16 %v162, %v160
  %v243 = vpack.c.b16 %v163, %v161
  %v244 = vpack.c.b16 %v166, %v164
  %v245 = vpack.c.b16 %v167, %v165
  %v246 = vpack.c.b16 %v170, %v168
  %v247 = vpack.c.b16 %v171, %v169
  %v248 = vpack.c.b16 %v174, %v172
  %v249 = vpack.c.b16 %v175, %v173
  %v250 = vpack.c.b16 %v178, %v176
  %v251 = vpack.c.b16 %v179, %v177
  %v252 = vpack.c.b16 %v182, %v180
  %v253 = vpack.c.b16 %v183, %v181
  %v254 = vpack.c.b16 %v186, %v184
  %v255 = vpack.c.b16 %v187, %v185
  %v256 = vpack.c.b16 %v190, %v188
  %v257 = vpack.c.b16 %v191, %v189
  %v258 = vpack.c.b16 %v194, %v192
  %v259 = vpack.c.b16 %v195, %v193
  %v260 = vpack.c.b16 %v198, %v196
  %v261 = vpack.c.b16 %v199, %v197
  %v262 = vpack.c.b16 %v202, %v200
  %v263 = vpack.c.b16 %v203, %v201
  %v264 = vpack.c.b16 %v206, %v204
  %v265 = vpack.c.b16 %v207, %v205
  %v266 = vpack.c.b16 %v210, %v208
  %v267 = vpack.c.b16 %v211, %v209
  %v268 = vpack.c.b16 %v214, %v212
  %v269 = vpack.c.b16 %v215, %v213
  %v270 = vpack.c.b16 %v218, %v216
  %v271 = vpack.c.b16 %v219, %v217
  %v272 = vpack.c.b16 %v222, %v220
  %v273 = vpack.c.b16 %v223, %v221
  %v274 = vpack.c.b16 %v226, %v224
  %v275 = vpack.c.b16 %v227, %v225
  %324 = vmatprep.subr.bf16.mxu0 %v229
  %325 = vmatpush1.bf16.msra.mxu0 %v228
  %326 = vmatprep.subr.bf16.mxu0 %v231
  %327 = vmatpush1.bf16.msra.mxu0 %v230
  %328 = vmatprep.subr.bf16.mxu0 %v233
  %329 = vmatpush1.bf16.msra.mxu0 %v232
  %330 = vmatprep.subr.bf16.mxu0 %v235
  %331 = vmatpush1.bf16.msra.mxu0 %v234
  %332 = vmatprep.subr.bf16.mxu0 %v237
  %333 = vmatpush1.bf16.msra.mxu0 %v236
  %334 = vmatprep.subr.bf16.mxu0 %v239
  %335 = vmatpush1.bf16.msra.mxu0 %v238
  %336 = vmatprep.subr.bf16.mxu0 %v241
  %337 = vmatpush1.bf16.msra.mxu0 %v240
  %338 = vmatprep.subr.bf16.mxu0 %v243
  %339 = vmatpush1.bf16.msra.mxu0 %v242
  %340 = vmatprep.subr.bf16.mxu0 %v245
  %341 = vmatpush1.bf16.msra.mxu0 %v244
  %342 = vmatprep.subr.bf16.mxu0 %v247
  %343 = vmatpush1.bf16.msra.mxu0 %v246
  %344 = vmatprep.subr.bf16.mxu0 %v249
  %345 = vmatpush1.bf16.msra.mxu0 %v248
  %346 = vmatprep.subr.bf16.mxu0 %v251
  %347 = vmatpush1.bf16.msra.mxu0 %v250
  %348 = vmatprep.subr.bf16.mxu0 %v253
  %349 = vmatpush1.bf16.msra.mxu0 %v252
  %350 = vmatprep.subr.bf16.mxu0 %v255
  %351 = vmatpush1.bf16.msra.mxu0 %v254
  %352 = vmatprep.subr.bf16.mxu0 %v257
  %353 = vmatpush1.bf16.msra.mxu0 %v256
  %354 = vmatprep.subr.bf16.mxu0 %v259
  %355 = vmatpush1.bf16.msra.mxu0 %v258
  %356 = vmatprep.mubr.bf16.mxu0 %v79
  %357 = vmatmul.mubr.bf16.gmra.mrb[0].mxu0 %v78
  %v358 = vpop.f32.mrb[0].mxu0
  %v359 = vadd.f32 0.0, %v358
  %v360 = vpop.f32.mrb[0].mxu0
  %v361 = vadd.f32 0.0, %v360
  %v362 = vpop.f32.mrb[0].mxu0
  %v363 = vpop.f32.mrb[0].mxu0
  %364 = vdwg.mxu0
  %365 = vmatprep.subr.bf16.mxu0 %v261
  %366 = vmatpush1.bf16.msra.mxu0 %v260
  %367 = vmatprep.subr.bf16.mxu0 %v263
  %368 = vmatpush1.bf16.msra.mxu0 %v262
  %369 = vmatprep.subr.bf16.mxu0 %v265
  %370 = vmatpush1.bf16.msra.mxu0 %v264
  %371 = vmatprep.subr.bf16.mxu0 %v267
  %372 = vmatpush1.bf16.msra.mxu0 %v266
  %373 = vmatprep.subr.bf16.mxu0 %v269
  %374 = vmatpush1.bf16.msra.mxu0 %v268
  %375 = vmatprep.subr.bf16.mxu0 %v271
  %376 = vmatpush1.bf16.msra.mxu0 %v270
  %377 = vmatprep.subr.bf16.mxu0 %v273
  %378 = vmatpush1.bf16.msra.mxu0 %v272
  %379 = vmatprep.subr.bf16.mxu0 %v275
  %380 = vmatpush1.bf16.msra.mxu0 %v274
  %381 = vmatprep.subr.bf16.mxu0 0
  %382 = vmatpush1.bf16.msra.mxu0 0
  %383 = vmatprep.subr.bf16.mxu0 0
  %384 = vmatpush1.bf16.msra.mxu0 0
  %385 = vmatprep.subr.bf16.mxu0 0
  %386 = vmatpush1.bf16.msra.mxu0 0
  %387 = vmatprep.subr.bf16.mxu0 0
  %388 = vmatpush1.bf16.msra.mxu0 0
  %389 = vmatprep.subr.bf16.mxu0 0
  %390 = vmatpush1.bf16.msra.mxu0 0
  %391 = vmatprep.subr.bf16.mxu0 0
  %392 = vmatpush1.bf16.msra.mxu0 0
  %393 = vmatprep.subr.bf16.mxu0 0
  %394 = vmatpush1.bf16.msra.mxu0 0
  %395 = vmatprep.subr.bf16.mxu0 0
  %396 = vmatpush1.bf16.msra.mxu0 0
  %397 = vmatprep.mubr.bf16.mxu0 0
  %398 = vmatmul.mubr.bf16.gmra.mrb[0].mxu0 %v80
  %v399 = vpop.f32.mrb[0].mxu0
  %v400 = vadd.f32 %v359, %v399
  %v401 = vpop.f32.mrb[0].mxu0
  %v402 = vadd.f32 %v361, %v401
  %v403 = vpop.f32.mrb[0].mxu0
  %v404 = vpop.f32.mrb[0].mxu0
  %405 = vdwg.mxu0
  %v406 = vadd.f32 %v21, %v400
  %v407 = vadd.f32 %v22, %v402
  %408 = vst [vmem:[#allocation2] sm:$0xff] %v406
  %409 = vst [vmem:[#allocation2 + $0x8] sm:$0xff] %v407
  // Predicated region
  $region18: #{_lambda_.8} parent=0 // pred_check
    %p410 = pneg %p15
  $region19: #{_lambda_.8} parent=0 // pred_check_branch
    %412 = sbr.rel (%p410) target = $region21
  $region20: #{_lambda_.8} parent=0 // pred_region
    %v413 = vld [vmem:[#allocation2] sm:$0xff]
    %v414 = vld [vmem:[#allocation2 + $0x8] sm:$0xff]
    %v415 = vld [vmem:[%s2] sm:$0x3]
    %v417 = vlaneseq
    %v418 = vshrl.u32 %v417, 7
    %v419 = vsub.s32 0, %v418
    %v420 = vrot.slane %v415, %v419
    %v421 = vlaneseq
    %v422 = vshrl.u32 %v421, 7
    %v423 = vsub.s32 1, %v422
    %v424 = vrot.slane %v415, %v423
    %v427 = vadd.f32 %v413, %v420
    %v428 = vadd.f32 %v414, %v424
    %v429 = vmax.f32 %v427, 0.0
    %v430 = vmax.f32 %v428, 0.0
    %431 = vst [vmem:[%s3] sm:$0xff] %v429
    %432 = vst [vmem:[%s3 + $0x8] sm:$0xff] %v430
  $region21: #{_lambda_.8} parent=0 // pred_fallthru
    _
  // Predicated region
  $region22: #{_lambda_.8} parent=0 // pred_check
    _
  $region23: #{_lambda_.8} parent=0 // pred_check_branch
    %434 = sbr.rel (0) target = $region25
  $region24: #{_lambda_.8} parent=0 // pred_region
    _
  $region25: #{_lambda_.8} parent=0 // pred_fallthru
    _
  // Predicated region
  $region26: #{_lambda_.8} parent=0 // pred_check
    _
  $region27: #{_lambda_.8} parent=0 // pred_check_branch
    %436 = sbr.rel (0) target = $region29
  $region28: #{_lambda_.8} parent=0 // pred_region
    _
  $region29: #{_lambda_.8} parent=0 // pred_fallthru
    _

// kernel: _lambda_.9
$region0: #{_lambda_.9}
  #allocation0 [shape = 'u32[]', space=smem, size = 0x4, offset = 0x4, fixed_abs, tag = 'smem constant byte address 0x4 - core index']
  #allocation1 [shape = 'u32[144,128]{1,0:T(1,128)}', space=vmem, size = 0x12000, scoped, tag = 'internal scratch']
  #allocation2 [shape = 'f32[8,256]{1,0:T(8,128)}', space=vmem, size = 0x2000, scoped, tag = 'scratch operand']
  %s0 = inlined_call_operand.vmem [shape: bf16[8,2304], index: 0, kind: input, shape index: {}]
  %s1 = inlined_call_operand.vmem [shape: bf16[2304,256], index: 1, kind: input, shape index: {}]
  %s2 = inlined_call_operand.vmem [shape: f32[1,256], index: 2, kind: input, shape index: {}]
  %s3 = inlined_call_operand.vmem [shape: f32[8,256], index: 3, kind: output, shape index: {}]
  %s4 = sld [smem:[#allocation0]]
  $region53: #{_lambda_.9} parent=0
    _
  %s6 = ssub.s32 1, %s4
  %s7 = scalar_select 0, %s6, %s4
  loop: start=0, step=1, limit=5
  $region2: #{_lambda_.9} parent=0 // loop_pre_header
    _
  $region3: #{_lambda_.9} parent=0 // loop_header
    %s9 = sphi 0, %s13
    %p10 = scmp.ge.s32.totalorder %s9, 5
    %s16 = sphi 0, %s35
    %s17 = sphi 0, %s31
    %s18 = sphi 0, %s27
    %s19 = sphi 0, %s16
    %s20 = sphi 0, %s17
    %s21 = sphi 0, %s18
    %s22 = sphi 0, %s19
    %s23 = sphi 0, %s20
    %s24 = sphi 0, %s21
    %s40 = sphi 0, %s42
    %s43 = sphi 0, %s40
    %s44 = sphi 0, %s43
    %s60 = sphi 0, %s44
    %s68 = sphi 0, %s70
    %s71 = sphi 0, %s68
    %s72 = sphi 0, %s71
    %s88 = sphi 0, %s72
    %s94 = sphi 0, %s96
    %s97 = sphi 0, %s94
    %s98 = sphi 0, %s97
    %s114 = sphi 0, %s98
    %s122 = sphi 0, %s124
    %s125 = sphi 0, %s122
    %s126 = sphi 0, %s125
    %s142 = sphi 0, %s126
  $region4: #{_lambda_.9} parent=0 // loop_header_branch
    %12 = sbr.rel (%p10) target = $region8
  $region5: #{_lambda_.9} parent=0 // loop_body
    %s14 = ssub.s32 %s9, 1
    %s15 = ssub.s32 %s9, 2
    %s25 = sadd.s32 1, %s18
    %p26 = scmp.ge.s32.totalorder %s25, 3
    %s27 = scalar_select %p26, 0, %s25
    %s28 = sadd.s32 1, %s17
    %s29 = scalar_select %p26, %s28, %s17
    %p30 = scmp.ge.s32.totalorder %s29, 1
    %s31 = scalar_select %p30, 0, %s29
    %s32 = sadd.s32 1, %s16
    %s33 = scalar_select %p30, %s32, %s16
    %p34 = scmp.ge.s32.totalorder %s33, 1
    %s35 = scalar_select %p34, 0, %s33
    %s36 = ssub.s32 %s16, %s35
    %s37 = ssub.s32 %s18, %s27
    %s38 = sor.u32 %s36, %s37
    %p39 = scmp.eq.s32.totalorder %s38, 0
    %s41 = sadd.s32 %s40, 1
    %s42 = scalar_select %p39, %s40, %s41
    %p45 = pneg %p39
    %p46 = scmp.eq.s32.totalorder %s9, 2
    %p47 = por %p45, %p46
    %p48 = scmp.ne.s32.totalorder %s40, %s43
    %p49 = scmp.eq.s32.totalorder %s9, 0
    %p50 = por %p48, %p49
    %p51 = scmp.ne.s32.totalorder %s40, %s43
    %p52 = scmp.eq.s32.totalorder %s14, 2
    %p53 = por %p51, %p52
    %p54 = scmp.ne.s32.totalorder %s43, %s44
    %p55 = scmp.eq.s32.totalorder %s14, 0
    %p56 = por %p54, %p55
    %p57 = scmp.ne.s32.totalorder %s43, %s44
    %p58 = scmp.eq.s32.totalorder %s15, 2
    %p59 = por %p57, %p58
    %p61 = scmp.ne.s32.totalorder %s44, %s60
    %p62 = scmp.eq.s32.totalorder %s15, 0
    %p63 = por %p61, %p62
    %s64 = ssub.s32 %s18, %s27
    %s65 = ssub.s32 %s17, %s31
    %s66 = sor.u32 %s64, %s65
    %p67 = scmp.eq.s32.totalorder %s66, 0
    %s69 = sadd.s32 %s68, 1
    %s70 = scalar_select %p67, %s68, %s69
    %p73 = pneg %p67
    %p74 = scmp.eq.s32.totalorder %s9, 2
    %p75 = por %p73, %p74
    %p76 = scmp.ne.s32.totalorder %s68, %s71
    %p77 = scmp.eq.s32.totalorder %s9, 0
    %p78 = por %p76, %p77
    %p79 = scmp.ne.s32.totalorder %s68, %s71
    %p80 = scmp.eq.s32.totalorder %s14, 2
    %p81 = por %p79, %p80
    %p82 = scmp.ne.s32.totalorder %s71, %s72
    %p83 = scmp.eq.s32.totalorder %s14, 0
    %p84 = por %p82, %p83
    %p85 = scmp.ne.s32.totalorder %s71, %s72
    %p86 = scmp.eq.s32.totalorder %s15, 2
    %p87 = por %p85, %p86
    %p89 = scmp.ne.s32.totalorder %s72, %s88
    %p90 = scmp.eq.s32.totalorder %s15, 0
    %p91 = por %p89, %p90
    %s92 = ssub.s32 %s17, %s31
    %p93 = scmp.eq.s32.totalorder %s92, 0
    %s95 = sadd.s32 %s94, 1
    %s96 = scalar_select %p93, %s94, %s95
    %p99 = pneg %p93
    %p100 = scmp.eq.s32.totalorder %s9, 2
    %p101 = por %p99, %p100
    %p102 = scmp.ne.s32.totalorder %s94, %s97
    %p103 = scmp.eq.s32.totalorder %s9, 0
    %p104 = por %p102, %p103
    %p105 = scmp.ne.s32.totalorder %s94, %s97
    %p106 = scmp.eq.s32.totalorder %s14, 2
    %p107 = por %p105, %p106
    %p108 = scmp.ne.s32.totalorder %s97, %s98
    %p109 = scmp.eq.s32.totalorder %s14, 0
    %p110 = por %p108, %p109
    %p111 = scmp.ne.s32.totalorder %s97, %s98
    %p112 = scmp.eq.s32.totalorder %s15, 2
    %p113 = por %p111, %p112
    %p115 = scmp.ne.s32.totalorder %s98, %s114
    %p116 = scmp.eq.s32.totalorder %s15, 0
    %p117 = por %p115, %p116
    %s118 = ssub.s32 %s16, %s35
    %s119 = ssub.s32 %s17, %s31
    %s120 = sor.u32 %s118, %s119
    %p121 = scmp.eq.s32.totalorder %s120, 0
    %s123 = sadd.s32 %s122, 1
    %s124 = scalar_select %p121, %s122, %s123
    %p127 = pneg %p121
    %p128 = scmp.eq.s32.totalorder %s9, 2
    %p129 = por %p127, %p128
    %p130 = scmp.ne.s32.totalorder %s122, %s125
    %p131 = scmp.eq.s32.totalorder %s9, 0
    %p132 = por %p130, %p131
    %p133 = scmp.ne.s32.totalorder %s122, %s125
    %p134 = scmp.eq.s32.totalorder %s14, 2
    %p135 = por %p133, %p134
    %p136 = scmp.ne.s32.totalorder %s125, %s126
    %p137 = scmp.eq.s32.totalorder %s14, 0
    %p138 = por %p136, %p137
    %p139 = scmp.ne.s32.totalorder %s125, %s126
    %p140 = scmp.eq.s32.totalorder %s15, 2
    %p141 = por %p139, %p140
    %p143 = scmp.ne.s32.totalorder %s126, %s142
    %p144 = scmp.eq.s32.totalorder %s15, 0
    %p145 = por %p143, %p144
    %p146 = scmp.le.s32.totalorder 1, %s9
    %p147 = scmp.lt.s32.totalorder %s9, 4
    %p148 = pnand %p146, %p147
    %p149 = pneg %p148
    // Predicated region
    $region9: #{_lambda_.9} parent=5 // pred_check
      _
    $region10: #{_lambda_.9} parent=5 // pred_check_branch
      %151 = sbr.rel (%p148) target = $region12
    $region11: #{_lambda_.9} parent=5 // pred_region
      %s152 = ssub.s32 %s9, 1
      // Predicated region
      $region13: #{_lambda_.9} parent=11 // pred_check
        %p153 = pneg %p110
      $region14: #{_lambda_.9} parent=11 // pred_check_branch
        %155 = sbr.rel (%p153) target = $region16
      $region15: #{_lambda_.9} parent=11 // pred_region
        %s156 = smul.u32 2, %s20
        %p157 = scmp.lt.s32.totalorder %s156, 1
        %s158 = scalar_select %p157, %s156, 1
        %s159 = scalar_lea.vmem %s2, %s158
        %s160 = smul.u32 2, %s20
      $region16: #{_lambda_.9} parent=11 // pred_fallthru
        _
    $region12: #{_lambda_.9} parent=5 // pred_fallthru
      _
    %p161 = scmp.lt.s32.totalorder %s9, 3
    // Predicated region
    $region17: #{_lambda_.9} parent=5 // pred_check
      %p162 = pneg %p161
    $region18: #{_lambda_.9} parent=5 // pred_check_branch
      %164 = sbr.rel (%p162) target = $region20
    $region19: #{_lambda_.9} parent=5 // pred_region
      // Predicated region
      $region21: #{_lambda_.9} parent=19 // pred_check
        %p165 = pneg %p50
      $region22: #{_lambda_.9} parent=19 // pred_check_branch
        %167 = sbr.rel (%p165) target = $region24
      $region23: #{_lambda_.9} parent=19 // pred_region
        %s168 = smul.u32 6, %s18
        %p169 = scmp.lt.s32.totalorder %s16, 0
        %s170 = scalar_select %p169, %s16, 0
        %p171 = scmp.lt.s32.totalorder %s168, 17
        %s172 = scalar_select %p171, %s168, 17
        %s173 = smul.addr %s170, 18
        %s174 = sadd.s32 %s172, %s173
        %s175 = smul.addr %s174, 4
        %s176 = scalar_lea.vmem %s0, %s175
        %s177 = smul.u32 6, %s18
      $region24: #{_lambda_.9} parent=19 // pred_fallthru
        _
      // Predicated region
      $region25: #{_lambda_.9} parent=19 // pred_check
        %p178 = pneg %p78
      $region26: #{_lambda_.9} parent=19 // pred_check_branch
        %180 = sbr.rel (%p178) target = $region28
      $region27: #{_lambda_.9} parent=19 // pred_region
        %s181 = smul.u32 96, %s18
        %s182 = smul.u32 2, %s17
        %p183 = scmp.lt.s32.totalorder %s181, 287
        %s184 = scalar_select %p183, %s181, 287
        %p185 = scmp.lt.s32.totalorder %s182, 1
        %s186 = scalar_select %p185, %s182, 1
        %s187 = smul.addr %s184, 2
        %s188 = sadd.s32 %s186, %s187
        %s189 = smul.addr %s188, 4
        %s190 = scalar_lea.vmem %s1, %s189
        %s191 = smul.u32 96, %s18
        %s192 = smul.u32 2, %s17
      $region28: #{_lambda_.9} parent=19 // pred_fallthru
        _
    $region20: #{_lambda_.9} parent=5 // pred_fallthru
      _
    %p193 = scmp.le.s32.totalorder 1, %s9
    %p194 = scmp.lt.s32.totalorder %s9, 4
    %p195 = pnand %p193, %p194
    %p196 = pneg %p195
    // Predicated region
    $region29: #{_lambda_.9} parent=5 // pred_check
      _
    $region30: #{_lambda_.9} parent=5 // pred_check_branch
      %198 = sbr.rel (%p195) target = $region32
    $region31: #{_lambda_.9} parent=5 // pred_region
      %s199 = ssub.s32 %s9, 1
      %s200 = smul.u32 6, %s21
      %p201 = scmp.lt.s32.totalorder %s19, 0
      %s202 = scalar_select %p201, %s19, 0
      %p203 = scmp.lt.s32.totalorder %s200, 17
      %s204 = scalar_select %p203, %s200, 17
      %s205 = smul.addr %s202, 18
      %s206 = sadd.s32 %s204, %s205
      %s207 = smul.addr %s206, 4
      %s208 = scalar_lea.vmem %s0, %s207
      %p209 = pneg %p56
      %p210 = pneg %p53
      %s211 = smul.u32 96, %s21
      %s212 = smul.u32 2, %s20
      %p213 = scmp.lt.s32.totalorder %s211, 287
      %s214 = scalar_select %p213, %s211, 287
      %p215 = scmp.lt.s32.totalorder %s212, 1
      %s216 = scalar_select %p215, %s212, 1
      %s217 = smul.addr %s214, 2
      %s218 = sadd.s32 %s216, %s217
      %s219 = smul.addr %s218, 4
      %s220 = scalar_lea.vmem %s1, %s219
      %p221 = pneg %p84
      %p222 = pneg %p81
      %s223 = smul.u32 2, %s20
      %p224 = scmp.lt.s32.totalorder %s223, 1
      %s225 = scalar_select %p224, %s223, 1
      %s226 = scalar_lea.vmem %s2, %s225
      %p227 = pneg %p110
      %p228 = pneg %p107
      %p229 = pneg %p138
      %p230 = pneg %p135
      %s231 = smul.u32 2, %s20
      %p232 = scmp.lt.s32.totalorder %s19, 0
      %s233 = scalar_select %p232, %s19, 0
      %p234 = scmp.lt.s32.totalorder %s231, 1
      %s235 = scalar_select %p234, %s231, 1
      %s236 = smul.addr %s233, 2
      %s237 = sadd.s32 %s235, %s236
      %s238 = smul.addr %s237, 8
      %s239 = scalar_lea.vmem %s3, %s238
      %s240 = smul.u32 6, %s21
      %p241 = scmp.lt.s32.totalorder %s19, 0
      %s242 = scalar_select %p241, %s19, 0
      %p243 = scmp.lt.s32.totalorder %s240, 17
      %s244 = scalar_select %p243, %s240, 17
      %s245 = smul.addr %s242, 18
      %s246 = sadd.s32 %s244, %s245
      %s247 = smul.addr %s246, 4
      %s248 = scalar_lea.vmem %s0, %s247
      %s249 = smul.u32 6, %s21
      %s250 = smul.u32 96, %s21
      %s251 = smul.u32 2, %s20
      %p252 = scmp.lt.s32.totalorder %s250, 287
      %s253 = scalar_select %p252, %s250, 287
      %p254 = scmp.lt.s32.totalorder %s251, 1
      %s255 = scalar_select %p254, %s251, 1
      %s256 = smul.addr %s253, 2
      %s257 = sadd.s32 %s255, %s256
      %s258 = smul.addr %s257, 4
      %s259 = scalar_lea.vmem %s1, %s258
      %s260 = smul.u32 96, %s21
      %s261 = smul.u32 2, %s20
      %s262 = smul.u32 2, %s20
      %p263 = scmp.lt.s32.totalorder %s262, 1
      %s264 = scalar_select %p263, %s262, 1
      %s265 = scalar_lea.vmem %s2, %s264
      %s266 = smul.u32 2, %s20
      %s267 = smul.u32 2, %s20
      %p268 = scmp.lt.s32.totalorder %s19, 0
      %s269 = scalar_select %p268, %s19, 0
      %p270 = scmp.lt.s32.totalorder %s267, 1
      %s271 = scalar_select %p270, %s267, 1
      %s272 = smul.addr %s269, 2
      %s273 = sadd.s32 %s271, %s272
      %s274 = smul.addr %s273, 8
      %s275 = scalar_lea.vmem %s3, %s274
      %s276 = smul.u32 2, %s20
      %p277 = scmp.eq.s32.totalorder %s21, 0
      // Predicated region
      $region33: #{_lambda_.9} parent=31 // pred_check
        %p278 = pneg %p277
      $region34: #{_lambda_.9} parent=31 // pred_check_branch
        %280 = sbr.rel (%p278) target = $region36
      $region35: #{_lambda_.9} parent=31 // pred_region
        %281 = vst [vmem:[#allocation2] sm:$0xff] 0.0
        %282 = vst [vmem:[#allocation2 + $0x8] sm:$0xff] 0.0
      $region36: #{_lambda_.9} parent=31 // pred_fallthru
        _
      %v283 = vld [vmem:[#allocation2] sm:$0xff]
      %v284 = vld [vmem:[#allocation2 + $0x8] sm:$0xff]
      %v285 = vld [vmem:[%s248] sm:$0xff]
      %v286 = vld [vmem:[%s248 + $0x8] sm:$0xff]
      %v287 = vld [vmem:[%s248 + $0x10] sm:$0xff]
      %v288 = vld [vmem:[%s259] sm:$0xff]
      %v289 = vld [vmem:[%s259 + $0x8] sm:$0xff]
      %v290 = vld [vmem:[%s259 + $0x10] sm:$0xff]
      %v291 = vld [vmem:[%s259 + $0x18] sm:$0xff]
      %v292 = vld [vmem:[%s259 + $0x20] sm:$0xff]
      %v293 = vld [vmem:[%s259 + $0x28] sm:$0xff]
      %v294 = vld [vmem:[%s259 + $0x30] sm:$0xff]
      %v295 = vld [vmem:[%s259 + $0x38] sm:$0xff]
      %v296 = vld [vmem:[%s259 + $0x40] sm:$0xff]
      %v297 = vld [vmem:[%s259 + $0x48] sm:$0xff]
      %v298 = vld [vmem:[%s259 + $0x50] sm:$0xff]
      %v299 = vld [vmem:[%s259 + $0x58] sm:$0xff]
      %v300 = vld [vmem:[%s259 + $0x60] sm:$0xff]
      %v301 = vld [vmem:[%s259 + $0x68] sm:$0xff]
      %v302 = vld [vmem:[%s259 + $0x70] sm:$0xff]
      %v303 = vld [vmem:[%s259 + $0x78] sm:$0xff]
      %v304 = vld [vmem:[%s259 + $0x80] sm:$0xff]
      %v305 = vld [vmem:[%s259 + $0x88] sm:$0xff]
      %v306 = vld [vmem:[%s259 + $0x90] sm:$0xff]
      %v307 = vld [vmem:[%s259 + $0x98] sm:$0xff]
      %v308 = vld [vmem:[%s259 + $0xa0] sm:$0xff]
      %v309 = vld [vmem:[%s259 + $0xa8] sm:$0xff]
      %v310 = vld [vmem:[%s259 + $0xb0] sm:$0xff]
      %v311 = vld [vmem:[%s259 + $0xb8] sm:$0xff]
      %v312 = vld [vmem:[%s259 + $0xc0] sm:$0xff]
      %v313 = vld [vmem:[%s259 + $0xc8] sm:$0xff]
      %v314 = vld [vmem:[%s259 + $0xd0] sm:$0xff]
      %v315 = vld [vmem:[%s259 + $0xd8] sm:$0xff]
      %v316 = vld [vmem:[%s259 + $0xe0] sm:$0xff]
      %v317 = vld [vmem:[%s259 + $0xe8] sm:$0xff]
      %v318 = vld [vmem:[%s259 + $0xf0] sm:$0xff]
      %v319 = vld [vmem:[%s259 + $0xf8] sm:$0xff]
      %v320 = vld [vmem:[%s259 + $0x100] sm:$0xff]
      %v321 = vld [vmem:[%s259 + $0x108] sm:$0xff]
      %v322 = vld [vmem:[%s259 + $0x110] sm:$0xff]
      %v323 = vld [vmem:[%s259 + $0x118] sm:$0xff]
      %v324 = vld [vmem:[%s259 + $0x120] sm:$0xff]
      %v325 = vld [vmem:[%s259 + $0x128] sm:$0xff]
      %v326 = vld [vmem:[%s259 + $0x130] sm:$0xff]
      %v327 = vld [vmem:[%s259 + $0x138] sm:$0xff]
      %v328 = vld [vmem:[%s259 + $0x140] sm:$0xff]
      %v329 = vld [vmem:[%s259 + $0x148] sm:$0xff]
      %v330 = vld [vmem:[%s259 + $0x150] sm:$0xff]
      %v331 = vld [vmem:[%s259 + $0x158] sm:$0xff]
      %v332 = vld [vmem:[%s259 + $0x160] sm:$0xff]
      %v333 = vld [vmem:[%s259 + $0x168] sm:$0xff]
      %v334 = vld [vmem:[%s259 + $0x170] sm:$0xff]
      %v335 = vld [vmem:[%s259 + $0x178] sm:$0xff]
      %v336 = vld [vmem:[%s259 + $0x180] sm:$0xff]
      %v337 = vld [vmem:[%s259 + $0x188] sm:$0xff]
      %v338 = vld [vmem:[%s259 + $0x190] sm:$0xff]
      %v339 = vld [vmem:[%s259 + $0x198] sm:$0xff]
      %v340 = vld [vmem:[%s259 + $0x1a0] sm:$0xff]
      %v341 = vld [vmem:[%s259 + $0x1a8] sm:$0xff]
      %v342 = vld [vmem:[%s259 + $0x1b0] sm:$0xff]
      %v343 = vld [vmem:[%s259 + $0x1b8] sm:$0xff]
      %v344 = vld [vmem:[%s259 + $0x1c0] sm:$0xff]
      %v345 = vld [vmem:[%s259 + $0x1c8] sm:$0xff]
      %v346 = vld [vmem:[%s259 + $0x1d0] sm:$0xff]
      %v347 = vld [vmem:[%s259 + $0x1d8] sm:$0xff]
      %v348 = vld [vmem:[%s259 + $0x1e0] sm:$0xff]
      %v349 = vld [vmem:[%s259 + $0x1e8] sm:$0xff]
      %v350 = vld [vmem:[%s259 + $0x1f0] sm:$0xff]
      %v351 = vld [vmem:[%s259 + $0x1f8] sm:$0xff]
      %v352 = vld [vmem:[%s259 + $0x200] sm:$0xff]
      %v353 = vld [vmem:[%s259 + $0x208] sm:$0xff]
      %v354 = vld [vmem:[%s259 + $0x210] sm:$0xff]
      %v355 = vld [vmem:[%s259 + $0x218] sm:$0xff]
      %v356 = vld [vmem:[%s259 + $0x220] sm:$0xff]
      %v357 = vld [vmem:[%s259 + $0x228] sm:$0xff]
      %v358 = vld [vmem:[%s259 + $0x230] sm:$0xff]
      %v359 = vld [vmem:[%s259 + $0x238] sm:$0xff]
      %v360 = vld [vmem:[%s259 + $0x240] sm:$0xff]
      %v361 = vld [vmem:[%s259 + $0x248] sm:$0xff]
      %v362 = vld [vmem:[%s259 + $0x250] sm:$0xff]
      %v363 = vld [vmem:[%s259 + $0x258] sm:$0xff]
      %v364 = vld [vmem:[%s259 + $0x260] sm:$0xff]
      %v365 = vld [vmem:[%s259 + $0x268] sm:$0xff]
      %v366 = vld [vmem:[%s259 + $0x270] sm:$0xff]
      %v367 = vld [vmem:[%s259 + $0x278] sm:$0xff]
      %v368 = vld [vmem:[%s259 + $0x280] sm:$0xff]
      %v369 = vld [vmem:[%s259 + $0x288] sm:$0xff]
      %v370 = vld [vmem:[%s259 + $0x290] sm:$0xff]
      %v371 = vld [vmem:[%s259 + $0x298] sm:$0xff]
      %v372 = vld [vmem:[%s259 + $0x2a0] sm:$0xff]
      %v373 = vld [vmem:[%s259 + $0x2a8] sm:$0xff]
      %v374 = vld [vmem:[%s259 + $0x2b0] sm:$0xff]
      %v375 = vld [vmem:[%s259 + $0x2b8] sm:$0xff]
      %v376 = vld [vmem:[%s259 + $0x2c0] sm:$0xff]
      %v377 = vld [vmem:[%s259 + $0x2c8] sm:$0xff]
      %v378 = vld [vmem:[%s259 + $0x2d0] sm:$0xff]
      %v379 = vld [vmem:[%s259 + $0x2d8] sm:$0xff]
      %v380 = vld [vmem:[%s259 + $0x2e0] sm:$0xff]
      %v381 = vld [vmem:[%s259 + $0x2e8] sm:$0xff]
      %v382 = vld [vmem:[%s259 + $0x2f0] sm:$0xff]
      %v383 = vld [vmem:[%s259 + $0x2f8] sm:$0xff]
      %v387 = vunpack.c.l.b16 %v285
      %v388 = vunpack.c.h.b16 %v285
      %v389 = vunpack.c.l.b16 %v286
      %v390 = vunpack.c.h.b16 %v286
      %v391 = vunpack.c.l.b16 %v287
      %v392 = vunpack.c.h.b16 %v287
      %v393 = vpack.c.b16 %v387, %v387
      %v394 = vpack.c.b16 %v388, %v388
      %v395 = vpack.c.b16 %v389, %v389
      %v396 = vpack.c.b16 %v390, %v390
      %v397 = vpack.c.b16 %v391, %v391
      %v398 = vpack.c.b16 %v392, %v392
      %v501 = vunpack.c.l.b16 %v288
      %v502 = vunpack.c.h.b16 %v288
      %v503 = vunpack.c.l.b16 %v289
      %v504 = vunpack.c.h.b16 %v289
      %v505 = vunpack.c.l.b16 %v290
      %v506 = vunpack.c.h.b16 %v290
      %v507 = vunpack.c.l.b16 %v291
      %v508 = vunpack.c.h.b16 %v291
      %v509 = vunpack.c.l.b16 %v292
      %v510 = vunpack.c.h.b16 %v292
      %v511 = vunpack.c.l.b16 %v293
      %v512 = vunpack.c.h.b16 %v293
      %v513 = vunpack.c.l.b16 %v294
      %v514 = vunpack.c.h.b16 %v294
      %v515 = vunpack.c.l.b16 %v295
      %v516 = vunpack.c.h.b16 %v295
      %v517 = vunpack.c.l.b16 %v296
      %v518 = vunpack.c.h.b16 %v296
      %v519 = vunpack.c.l.b16 %v297
      %v520 = vunpack.c.h.b16 %v297
      %v521 = vunpack.c.l.b16 %v298
      %v522 = vunpack.c.h.b16 %v298
      %v523 = vunpack.c.l.b16 %v299
      %v524 = vunpack.c.h.b16 %v299
      %v525 = vunpack.c.l.b16 %v300
      %v526 = vunpack.c.h.b16 %v300
      %v527 = vunpack.c.l.b16 %v301
      %v528 = vunpack.c.h.b16 %v301
      %v529 = vunpack.c.l.b16 %v302
      %v530 = vunpack.c.h.b16 %v302
      %v531 = vunpack.c.l.b16 %v303
      %v532 = vunpack.c.h.b16 %v303
      %v533 = vunpack.c.l.b16 %v304
      %v534 = vunpack.c.h.b16 %v304
      %v535 = vunpack.c.l.b16 %v305
      %v536 = vunpack.c.h.b16 %v305
      %v537 = vunpack.c.l.b16 %v306
      %v538 = vunpack.c.h.b16 %v306
      %v539 = vunpack.c.l.b16 %v307
      %v540 = vunpack.c.h.b16 %v307
      %v541 = vunpack.c.l.b16 %v308
      %v542 = vunpack.c.h.b16 %v308
      %v543 = vunpack.c.l.b16 %v309
      %v544 = vunpack.c.h.b16 %v309
      %v545 = vunpack.c.l.b16 %v310
      %v546 = vunpack.c.h.b16 %v310
      %v547 = vunpack.c.l.b16 %v311
      %v548 = vunpack.c.h.b16 %v311
      %v549 = vunpack.c.l.b16 %v312
      %v550 = vunpack.c.h.b16 %v312
      %v551 = vunpack.c.l.b16 %v313
      %v552 = vunpack.c.h.b16 %v313
      %v553 = vunpack.c.l.b16 %v314
      %v554 = vunpack.c.h.b16 %v314
      %v555 = vunpack.c.l.b16 %v315
      %v556 = vunpack.c.h.b16 %v315
      %v557 = vunpack.c.l.b16 %v316
      %v558 = vunpack.c.h.b16 %v316
      %v559 = vunpack.c.l.b16 %v317
      %v560 = vunpack.c.h.b16 %v317
      %v561 = vunpack.c.l.b16 %v318
      %v562 = vunpack.c.h.b16 %v318
      %v563 = vunpack.c.l.b16 %v319
      %v564 = vunpack.c.h.b16 %v319
      %v565 = vunpack.c.l.b16 %v320
      %v566 = vunpack.c.h.b16 %v320
      %v567 = vunpack.c.l.b16 %v321
      %v568 = vunpack.c.h.b16 %v321
      %v569 = vunpack.c.l.b16 %v322
      %v570 = vunpack.c.h.b16 %v322
      %v571 = vunpack.c.l.b16 %v323
      %v572 = vunpack.c.h.b16 %v323
      %v573 = vunpack.c.l.b16 %v324
      %v574 = vunpack.c.h.b16 %v324
      %v575 = vunpack.c.l.b16 %v325
      %v576 = vunpack.c.h.b16 %v325
      %v577 = vunpack.c.l.b16 %v326
      %v578 = vunpack.c.h.b16 %v326
      %v579 = vunpack.c.l.b16 %v327
      %v580 = vunpack.c.h.b16 %v327
      %v581 = vunpack.c.l.b16 %v328
      %v582 = vunpack.c.h.b16 %v328
      %v583 = vunpack.c.l.b16 %v329
      %v584 = vunpack.c.h.b16 %v329
      %v585 = vunpack.c.l.b16 %v330
      %v586 = vunpack.c.h.b16 %v330
      %v587 = vunpack.c.l.b16 %v331
      %v588 = vunpack.c.h.b16 %v331
      %v589 = vunpack.c.l.b16 %v332
      %v590 = vunpack.c.h.b16 %v332
      %v591 = vunpack.c.l.b16 %v333
      %v592 = vunpack.c.h.b16 %v333
      %v593 = vunpack.c.l.b16 %v334
      %v594 = vunpack.c.h.b16 %v334
      %v595 = vunpack.c.l.b16 %v335
      %v596 = vunpack.c.h.b16 %v335
      %v597 = vunpack.c.l.b16 %v336
      %v598 = vunpack.c.h.b16 %v336
      %v599 = vunpack.c.l.b16 %v337
      %v600 = vunpack.c.h.b16 %v337
      %v601 = vunpack.c.l.b16 %v338
      %v602 = vunpack.c.h.b16 %v338
      %v603 = vunpack.c.l.b16 %v339
      %v604 = vunpack.c.h.b16 %v339
      %v605 = vunpack.c.l.b16 %v340
      %v606 = vunpack.c.h.b16 %v340
      %v607 = vunpack.c.l.b16 %v341
      %v608 = vunpack.c.h.b16 %v341
      %v609 = vunpack.c.l.b16 %v342
      %v610 = vunpack.c.h.b16 %v342
      %v611 = vunpack.c.l.b16 %v343
      %v612 = vunpack.c.h.b16 %v343
      %v613 = vunpack.c.l.b16 %v344
      %v614 = vunpack.c.h.b16 %v344
      %v615 = vunpack.c.l.b16 %v345
      %v616 = vunpack.c.h.b16 %v345
      %v617 = vunpack.c.l.b16 %v346
      %v618 = vunpack.c.h.b16 %v346
      %v619 = vunpack.c.l.b16 %v347
      %v620 = vunpack.c.h.b16 %v347
      %v621 = vunpack.c.l.b16 %v348
      %v622 = vunpack.c.h.b16 %v348
      %v623 = vunpack.c.l.b16 %v349
      %v624 = vunpack.c.h.b16 %v349
      %v625 = vunpack.c.l.b16 %v350
      %v626 = vunpack.c.h.b16 %v350
      %v627 = vunpack.c.l.b16 %v351
      %v628 = vunpack.c.h.b16 %v351
      %v629 = vunpack.c.l.b16 %v352
      %v630 = vunpack.c.h.b16 %v352
      %v631 = vunpack.c.l.b16 %v353
      %v632 = vunpack.c.h.b16 %v353
      %v633 = vunpack.c.l.b16 %v354
      %v634 = vunpack.c.h.b16 %v354
      %v635 = vunpack.c.l.b16 %v355
      %v636 = vunpack.c.h.b16 %v355
      %v637 = vunpack.c.l.b16 %v356
      %v638 = vunpack.c.h.b16 %v356
      %v639 = vunpack.c.l.b16 %v357
      %v640 = vunpack.c.h.b16 %v357
      %v641 = vunpack.c.l.b16 %v358
      %v642 = vunpack.c.h.b16 %v358
      %v643 = vunpack.c.l.b16 %v359
      %v644 = vunpack.c.h.b16 %v359
      %v645 = vunpack.c.l.b16 %v360
      %v646 = vunpack.c.h.b16 %v360
      %v647 = vunpack.c.l.b16 %v361
      %v648 = vunpack.c.h.b16 %v361
      %v649 = vunpack.c.l.b16 %v362
      %v650 = vunpack.c.h.b16 %v362
      %v651 = vunpack.c.l.b16 %v363
      %v652 = vunpack.c.h.b16 %v363
      %v653 = vunpack.c.l.b16 %v364
      %v654 = vunpack.c.h.b16 %v364
      %v655 = vunpack.c.l.b16 %v365
      %v656 = vunpack.c.h.b16 %v365
      %v657 = vunpack.c.l.b16 %v366
      %v658 = vunpack.c.h.b16 %v366
      %v659 = vunpack.c.l.b16 %v367
      %v660 = vunpack.c.h.b16 %v367
      %v661 = vunpack.c.l.b16 %v368
      %v662 = vunpack.c.h.b16 %v368
      %v663 = vunpack.c.l.b16 %v369
      %v664 = vunpack.c.h.b16 %v369
      %v665 = vunpack.c.l.b16 %v370
      %v666 = vunpack.c.h.b16 %v370
      %v667 = vunpack.c.l.b16 %v371
      %v668 = vunpack.c.h.b16 %v371
      %v669 = vunpack.c.l.b16 %v372
      %v670 = vunpack.c.h.b16 %v372
      %v671 = vunpack.c.l.b16 %v373
      %v672 = vunpack.c.h.b16 %v373
      %v673 = vunpack.c.l.b16 %v374
      %v674 = vunpack.c.h.b16 %v374
      %v675 = vunpack.c.l.b16 %v375
      %v676 = vunpack.c.h.b16 %v375
      %v677 = vunpack.c.l.b16 %v376
      %v678 = vunpack.c.h.b16 %v376
      %v679 = vunpack.c.l.b16 %v377
      %v680 = vunpack.c.h.b16 %v377
      %v681 = vunpack.c.l.b16 %v378
      %v682 = vunpack.c.h.b16 %v378
      %v683 = vunpack.c.l.b16 %v379
      %v684 = vunpack.c.h.b16 %v379
      %v685 = vunpack.c.l.b16 %v380
      %v686 = vunpack.c.h.b16 %v380
      %v687 = vunpack.c.l.b16 %v381
      %v688 = vunpack.c.h.b16 %v381
      %v689 = vunpack.c.l.b16 %v382
      %v690 = vunpack.c.h.b16 %v382
      %v691 = vunpack.c.l.b16 %v383
      %v692 = vunpack.c.h.b16 %v383
      %v693 = vpack.c.b16 %v503, %v501
      %v694 = vpack.c.b16 %v504, %v502
      %v695 = vpack.c.b16 %v507, %v505
      %v696 = vpack.c.b16 %v508, %v506
      %v697 = vpack.c.b16 %v511, %v509
      %v698 = vpack.c.b16 %v512, %v510
      %v699 = vpack.c.b16 %v515, %v513
      %v700 = vpack.c.b16 %v516, %v514
      %v701 = vpack.c.b16 %v519, %v517
      %v702 = vpack.c.b16 %v520, %v518
      %v703 = vpack.c.b16 %v523, %v521
      %v704 = vpack.c.b16 %v524, %v522
      %v705 = vpack.c.b16 %v527, %v525
      %v706 = vpack.c.b16 %v528, %v526
      %v707 = vpack.c.b16 %v531, %v529
      %v708 = vpack.c.b16 %v532, %v530
      %v709 = vpack.c.b16 %v535, %v533
      %v710 = vpack.c.b16 %v536, %v534
      %v711 = vpack.c.b16 %v539, %v537
      %v712 = vpack.c.b16 %v540, %v538
      %v713 = vpack.c.b16 %v543, %v541
      %v714 = vpack.c.b16 %v544, %v542
      %v715 = vpack.c.b16 %v547, %v545
      %v716 = vpack.c.b16 %v548, %v546
      %v717 = vpack.c.b16 %v551, %v549
      %v718 = vpack.c.b16 %v552, %v550
      %v719 = vpack.c.b16 %v555, %v553
      %v720 = vpack.c.b16 %v556, %v554
      %v721 = vpack.c.b16 %v559, %v557
      %v722 = vpack.c.b16 %v560, %v558
      %v723 = vpack.c.b16 %v563, %v561
      %v724 = vpack.c.b16 %v564, %v562
      %v725 = vpack.c.b16 %v567, %v565
      %v726 = vpack.c.b16 %v568, %v566
      %v727 = vpack.c.b16 %v571, %v569
      %v728 = vpack.c.b16 %v572, %v570
      %v729 = vpack.c.b16 %v575, %v573
      %v730 = vpack.c.b16 %v576, %v574
      %v731 = vpack.c.b16 %v579, %v577
      %v732 = vpack.c.b16 %v580, %v578
      %v733 = vpack.c.b16 %v583, %v581
      %v734 = vpack.c.b16 %v584, %v582
      %v735 = vpack.c.b16 %v587, %v585
      %v736 = vpack.c.b16 %v588, %v586
      %v737 = vpack.c.b16 %v591, %v589
      %v738 = vpack.c.b16 %v592, %v590
      %v739 = vpack.c.b16 %v595, %v593
      %v740 = vpack.c.b16 %v596, %v594
      %v741 = vpack.c.b16 %v599, %v597
      %v742 = vpack.c.b16 %v600, %v598
      %v743 = vpack.c.b16 %v603, %v601
      %v744 = vpack.c.b16 %v604, %v602
      %v745 = vpack.c.b16 %v607, %v605
      %v746 = vpack.c.b16 %v608, %v606
      %v747 = vpack.c.b16 %v611, %v609
      %v748 = vpack.c.b16 %v612, %v610
      %v749 = vpack.c.b16 %v615, %v613
      %v750 = vpack.c.b16 %v616, %v614
      %v751 = vpack.c.b16 %v619, %v617
      %v752 = vpack.c.b16 %v620, %v618
      %v753 = vpack.c.b16 %v623, %v621
      %v754 = vpack.c.b16 %v624, %v622
      %v755 = vpack.c.b16 %v627, %v625
      %v756 = vpack.c.b16 %v628, %v626
      %v757 = vpack.c.b16 %v631, %v629
      %v758 = vpack.c.b16 %v632, %v630
      %v759 = vpack.c.b16 %v635, %v633
      %v760 = vpack.c.b16 %v636, %v634
      %v761 = vpack.c.b16 %v639, %v637
      %v762 = vpack.c.b16 %v640, %v638
      %v763 = vpack.c.b16 %v643, %v641
      %v764 = vpack.c.b16 %v644, %v642
      %v765 = vpack.c.b16 %v647, %v645
      %v766 = vpack.c.b16 %v648, %v646
      %v767 = vpack.c.b16 %v651, %v649
      %v768 = vpack.c.b16 %v652, %v650
      %v769 = vpack.c.b16 %v655, %v653
      %v770 = vpack.c.b16 %v656, %v654
      %v771 = vpack.c.b16 %v659, %v657
      %v772 = vpack.c.b16 %v660, %v658
      %v773 = vpack.c.b16 %v663, %v661
      %v774 = vpack.c.b16 %v664, %v662
      %v775 = vpack.c.b16 %v667, %v665
      %v776 = vpack.c.b16 %v668, %v666
      %v777 = vpack.c.b16 %v671, %v669
      %v778 = vpack.c.b16 %v672, %v670
      %v779 = vpack.c.b16 %v675, %v673
      %v780 = vpack.c.b16 %v676, %v674
      %v781 = vpack.c.b16 %v679, %v677
      %v782 = vpack.c.b16 %v680, %v678
      %v783 = vpack.c.b16 %v683, %v681
      %v784 = vpack.c.b16 %v684, %v682
      %v785 = vpack.c.b16 %v687, %v685
      %v786 = vpack.c.b16 %v688, %v686
      %v787 = vpack.c.b16 %v691, %v689
      %v788 = vpack.c.b16 %v692, %v690
      %885 = vmatprep.subr.bf16.mxu0 %v694
      %886 = vmatpush1.bf16.msra.mxu0 %v693
      %887 = vmatprep.subr.bf16.mxu0 %v696
      %888 = vmatpush1.bf16.msra.mxu0 %v695
      %889 = vmatprep.subr.bf16.mxu0 %v698
      %890 = vmatpush1.bf16.msra.mxu0 %v697
      %891 = vmatprep.subr.bf16.mxu0 %v700
      %892 = vmatpush1.bf16.msra.mxu0 %v699
      %893 = vmatprep.subr.bf16.mxu0 %v702
      %894 = vmatpush1.bf16.msra.mxu0 %v701
      %895 = vmatprep.subr.bf16.mxu0 %v704
      %896 = vmatpush1.bf16.msra.mxu0 %v703
      %897 = vmatprep.subr.bf16.mxu0 %v706
      %898 = vmatpush1.bf16.msra.mxu0 %v705
      %899 = vmatprep.subr.bf16.mxu0 %v708
      %900 = vmatpush1.bf16.msra.mxu0 %v707
      %901 = vmatprep.subr.bf16.mxu0 %v710
      %902 = vmatpush1.bf16.msra.mxu0 %v709
      %903 = vmatprep.subr.bf16.mxu0 %v712
      %904 = vmatpush1.bf16.msra.mxu0 %v711
      %905 = vmatprep.subr.bf16.mxu0 %v714
      %906 = vmatpush1.bf16.msra.mxu0 %v713
      %907 = vmatprep.subr.bf16.mxu0 %v716
      %908 = vmatpush1.bf16.msra.mxu0 %v715
      %909 = vmatprep.subr.bf16.mxu0 %v718
      %910 = vmatpush1.bf16.msra.mxu0 %v717
      %911 = vmatprep.subr.bf16.mxu0 %v720
      %912 = vmatpush1.bf16.msra.mxu0 %v719
      %913 = vmatprep.subr.bf16.mxu0 %v722
      %914 = vmatpush1.bf16.msra.mxu0 %v721
      %915 = vmatprep.subr.bf16.mxu0 %v724
      %916 = vmatpush1.bf16.msra.mxu0 %v723
      %917 = vmatprep.mubr.bf16.mxu0 %v394
      %918 = vmatmul.mubr.bf16.gmra.mrb[0].mxu0 %v393
      %v919 = vpop.f32.mrb[0].mxu0
      %v920 = vadd.f32 0.0, %v919
      %v921 = vpop.f32.mrb[0].mxu0
      %v922 = vadd.f32 0.0, %v921
      %v923 = vpop.f32.mrb[0].mxu0
      %v924 = vpop.f32.mrb[0].mxu0
      %925 = vdwg.mxu0
      %926 = vmatprep.subr.bf16.mxu0 %v726
      %927 = vmatpush1.bf16.msra.mxu0 %v725
      %928 = vmatprep.subr.bf16.mxu0 %v728
      %929 = vmatpush1.bf16.msra.mxu0 %v727
      %930 = vmatprep.subr.bf16.mxu0 %v730
      %931 = vmatpush1.bf16.msra.mxu0 %v729
      %932 = vmatprep.subr.bf16.mxu0 %v732
      %933 = vmatpush1.bf16.msra.mxu0 %v731
      %934 = vmatprep.subr.bf16.mxu0 %v734
      %935 = vmatpush1.bf16.msra.mxu0 %v733
      %936 = vmatprep.subr.bf16.mxu0 %v736
      %937 = vmatpush1.bf16.msra.mxu0 %v735
      %938 = vmatprep.subr.bf16.mxu0 %v738
      %939 = vmatpush1.bf16.msra.mxu0 %v737
      %940 = vmatprep.subr.bf16.mxu0 %v740
      %941 = vmatpush1.bf16.msra.mxu0 %v739
      %942 = vmatprep.subr.bf16.mxu0 %v742
      %943 = vmatpush1.bf16.msra.mxu0 %v741
      %944 = vmatprep.subr.bf16.mxu0 %v744
      %945 = vmatpush1.bf16.msra.mxu0 %v743
      %946 = vmatprep.subr.bf16.mxu0 %v746
      %947 = vmatpush1.bf16.msra.mxu0 %v745
      %948 = vmatprep.subr.bf16.mxu0 %v748
      %949 = vmatpush1.bf16.msra.mxu0 %v747
      %950 = vmatprep.subr.bf16.mxu0 %v750
      %951 = vmatpush1.bf16.msra.mxu0 %v749
      %952 = vmatprep.subr.bf16.mxu0 %v752
      %953 = vmatpush1.bf16.msra.mxu0 %v751
      %954 = vmatprep.subr.bf16.mxu0 %v754
      %955 = vmatpush1.bf16.msra.mxu0 %v753
      %956 = vmatprep.subr.bf16.mxu0 %v756
      %957 = vmatpush1.bf16.msra.mxu0 %v755
      %958 = vmatprep.mubr.bf16.mxu0 %v396
      %959 = vmatmul.mubr.bf16.gmra.mrb[0].mxu0 %v395
      %v960 = vpop.f32.mrb[0].mxu0
      %v961 = vadd.f32 %v920, %v960
      %v962 = vpop.f32.mrb[0].mxu0
      %v963 = vadd.f32 %v922, %v962
      %v964 = vpop.f32.mrb[0].mxu0
      %v965 = vpop.f32.mrb[0].mxu0
      %966 = vdwg.mxu0
      %967 = vmatprep.subr.bf16.mxu0 %v758
      %968 = vmatpush1.bf16.msra.mxu0 %v757
      %969 = vmatprep.subr.bf16.mxu0 %v760
      %970 = vmatpush1.bf16.msra.mxu0 %v759
      %971 = vmatprep.subr.bf16.mxu0 %v762
      %972 = vmatpush1.bf16.msra.mxu0 %v761
      %973 = vmatprep.subr.bf16.mxu0 %v764
      %974 = vmatpush1.bf16.msra.mxu0 %v763
      %975 = vmatprep.subr.bf16.mxu0 %v766
      %976 = vmatpush1.bf16.msra.mxu0 %v765
      %977 = vmatprep.subr.bf16.mxu0 %v768
      %978 = vmatpush1.bf16.msra.mxu0 %v767
      %979 = vmatprep.subr.bf16.mxu0 %v770
      %980 = vmatpush1.bf16.msra.mxu0 %v769
      %981 = vmatprep.subr.bf16.mxu0 %v772
      %982 = vmatpush1.bf16.msra.mxu0 %v771
      %983 = vmatprep.subr.bf16.mxu0 %v774
      %984 = vmatpush1.bf16.msra.mxu0 %v773
      %985 = vmatprep.subr.bf16.mxu0 %v776
      %986 = vmatpush1.bf16.msra.mxu0 %v775
      %987 = vmatprep.subr.bf16.mxu0 %v778
      %988 = vmatpush1.bf16.msra.mxu0 %v777
      %989 = vmatprep.subr.bf16.mxu0 %v780
      %990 = vmatpush1.bf16.msra.mxu0 %v779
      %991 = vmatprep.subr.bf16.mxu0 %v782
      %992 = vmatpush1.bf16.msra.mxu0 %v781
      %993 = vmatprep.subr.bf16.mxu0 %v784
      %994 = vmatpush1.bf16.msra.mxu0 %v783
      %995 = vmatprep.subr.bf16.mxu0 %v786
      %996 = vmatpush1.bf16.msra.mxu0 %v785
      %997 = vmatprep.subr.bf16.mxu0 %v788
      %998 = vmatpush1.bf16.msra.mxu0 %v787
      %999 = vmatprep.mubr.bf16.mxu0 %v398
      %1000 = vmatmul.mubr.bf16.gmra.mrb[0].mxu0 %v397
      %v1001 = vpop.f32.mrb[0].mxu0
      %v1002 = vadd.f32 %v961, %v1001
      %v1003 = vpop.f32.mrb[0].mxu0
      %v1004 = vadd.f32 %v963, %v1003
      %v1005 = vpop.f32.mrb[0].mxu0
      %v1006 = vpop.f32.mrb[0].mxu0
      %1007 = vdwg.mxu0
      %v1008 = vadd.f32 %v283, %v1002
      %v1009 = vadd.f32 %v284, %v1004
      %1010 = vst [vmem:[#allocation2] sm:$0xff] %v1008
      %1011 = vst [vmem:[#allocation2 + $0x8] sm:$0xff] %v1009
      %p1012 = scmp.eq.s32.totalorder %s21, 2
      // Predicated region
      $region37: #{_lambda_.9} parent=31 // pred_check
        %p1013 = pneg %p1012
      $region38: #{_lambda_.9} parent=31 // pred_check_branch
        %1015 = sbr.rel (%p1013) target = $region40
      $region39: #{_lambda_.9} parent=31 // pred_region
        %v1016 = vld [vmem:[#allocation2] sm:$0xff]
        %v1017 = vld [vmem:[#allocation2 + $0x8] sm:$0xff]
        %v1018 = vld [vmem:[%s265] sm:$0x3]
        %v1020 = vlaneseq
        %v1021 = vshrl.u32 %v1020, 7
        %v1022 = vsub.s32 0, %v1021
        %v1023 = vrot.slane %v1018, %v1022
        %v1024 = vlaneseq
        %v1025 = vshrl.u32 %v1024, 7
        %v1026 = vsub.s32 1, %v1025
        %v1027 = vrot.slane %v1018, %v1026
        %v1030 = vadd.f32 %v1016, %v1023
        %v1031 = vadd.f32 %v1017, %v1027
        %v1032 = vmax.f32 %v1030, 0.0
        %v1033 = vmax.f32 %v1031, 0.0
        %1034 = vst [vmem:[%s275] sm:$0xff] %v1032
        %1035 = vst [vmem:[%s275 + $0x8] sm:$0xff] %v1033
      $region40: #{_lambda_.9} parent=31 // pred_fallthru
        _
      %s1036 = smul.u32 2, %s20
      %p1037 = scmp.lt.s32.totalorder %s19, 0
      %s1038 = scalar_select %p1037, %s19, 0
      %p1039 = scmp.lt.s32.totalorder %s1036, 1
      %s1040 = scalar_select %p1039, %s1036, 1
      %s1041 = smul.addr %s1038, 2
      %s1042 = sadd.s32 %s1040, %s1041
      %s1043 = smul.addr %s1042, 8
      %s1044 = scalar_lea.vmem %s3, %s1043
      // Predicated region
      $region41: #{_lambda_.9} parent=31 // pred_check
        %p1045 = pneg %p135
      $region42: #{_lambda_.9} parent=31 // pred_check_branch
        %1047 = sbr.rel (%p1045) target = $region44
      $region43: #{_lambda_.9} parent=31 // pred_region
        %s1048 = smul.u32 2, %s20
      $region44: #{_lambda_.9} parent=31 // pred_fallthru
        _
      // Predicated region
      $region45: #{_lambda_.9} parent=31 // pred_check
        %p1049 = pneg %p135
      $region46: #{_lambda_.9} parent=31 // pred_check_branch
        %1051 = sbr.rel (%p1049) target = $region48
      $region47: #{_lambda_.9} parent=31 // pred_region
        %s1052 = smul.u32 2, %s20
        %p1053 = scmp.lt.s32.totalorder %s19, 0
        %s1054 = scalar_select %p1053, %s19, 0
        %p1055 = scmp.lt.s32.totalorder %s1052, 1
        %s1056 = scalar_select %p1055, %s1052, 1
        %s1057 = smul.addr %s1054, 2
        %s1058 = sadd.s32 %s1056, %s1057
        %s1059 = smul.addr %s1058, 8
        %s1060 = scalar_lea.vmem %s3, %s1059
      $region48: #{_lambda_.9} parent=31 // pred_fallthru
        _
    $region32: #{_lambda_.9} parent=5 // pred_fallthru
      _
    %p1061 = scmp.le.s32.totalorder 2, %s9
    // Predicated region
    $region49: #{_lambda_.9} parent=5 // pred_check
      %p1062 = pneg %p1061
    $region50: #{_lambda_.9} parent=5 // pred_check_branch
      %1064 = sbr.rel (%p1062) target = $region52
    $region51: #{_lambda_.9} parent=5 // pred_region
      %s1065 = ssub.s32 %s9, 2
    $region52: #{_lambda_.9} parent=5 // pred_fallthru
      _
  $region6: #{_lambda_.9} parent=0 // loop_footer
    %s13 = sadd.s32 1, %s9
  $region7: #{_lambda_.9} parent=0 // loop_footer_branch
    %8 = sbr.rel target = $region3
  $region8: #{_lambda_.9} parent=0 // loop_exit
    _

// kernel: tile.18
$region0: #{tile.18}
  #allocation0 [shape = 's32[1]{0}', space=sflag, size = 0x4, scoped, tag = 'scoped memory for tile.18']
  %s0 = inlined_call_operand.vmem [shape: f32[128], index: 0, kind: input, shape index: {}]
  %s1 = inlined_call_operand.vmem [shape: f32[4,128], index: 1, kind: output, shape index: {}]
  // Predicated region
  $region2: #{tile.18} parent=0 // pred_check
    _
  $region3: #{tile.18} parent=0 // pred_check_branch
    %3 = sbr.rel (0) target = $region5
  $region4: #{tile.18} parent=0 // pred_region
    _
  $region5: #{tile.18} parent=0 // pred_fallthru
    _
  %v4 = vld [vmem:[%s0] ss:$0 sm:$0xff]
  %5 = vst [vmem:[%s1] sm:$0xf] %v4

// kernel: _lambda_.10
$region0: #{_lambda_.10}
  #allocation0 [shape = 'u32[]', space=smem, size = 0x4, offset = 0x4, fixed_abs, tag = 'smem constant byte address 0x4 - core index']
  #allocation1 [shape = 'u32[144,128]{1,0:T(1,128)}', space=vmem, size = 0x12000, scoped, tag = 'internal scratch']
  #allocation2 [shape = 'f32[8,256]{1,0:T(8,128)}', space=vmem, size = 0x2000, scoped, tag = 'scratch operand']
  %s0 = inlined_call_operand.vmem [shape: bf16[8,2304], index: 0, kind: input, shape index: {}]
  %s1 = inlined_call_operand.vmem [shape: bf16[2304,512], index: 1, kind: input, shape index: {}]
  %s2 = inlined_call_operand.vmem [shape: f32[1,512], index: 2, kind: input, shape index: {}]
  %s3 = inlined_call_operand.vmem [shape: f32[8,512], index: 3, kind: output, shape index: {}]
  %s4 = sld [smem:[#allocation0]]
  $region91: #{_lambda_.10} parent=0
    _
  %s6 = ssub.s32 1, %s4
  %s7 = scalar_select 0, %s6, %s4
  $region1: #{_lambda_.10} parent=0
    #allocation3 [shape = 'u8[786432]{0}', space=vmem, size = 0xc0000, scoped, tag = 'input window, operand 1']
    loop: start=0, step=1, limit=8
    $region2: #{_lambda_.10} parent=1 // loop_pre_header
      _
    $region3: #{_lambda_.10} parent=1 // loop_header
      %s9 = sphi 0, %s13
      %p10 = scmp.ge.s32.totalorder %s9, 8
      %s16 = sphi 0, %s35
      %s17 = sphi 0, %s31
      %s18 = sphi 0, %s27
      %s19 = sphi 0, %s16
      %s20 = sphi 0, %s17
      %s21 = sphi 0, %s18
      %s22 = sphi 0, %s19
      %s23 = sphi 0, %s20
      %s24 = sphi 0, %s21
      %s40 = sphi 0, %s42
      %s43 = sphi 0, %s40
      %s44 = sphi 0, %s43
      %s60 = sphi 0, %s44
      %s68 = sphi 0, %s70
      %s71 = sphi 0, %s68
      %s72 = sphi 0, %s71
      %s88 = sphi 0, %s72
      %s94 = sphi 0, %s96
      %s97 = sphi 0, %s94
      %s98 = sphi 0, %s97
      %s114 = sphi 0, %s98
      %s122 = sphi 0, %s124
      %s125 = sphi 0, %s122
      %s126 = sphi 0, %s125
      %s142 = sphi 0, %s126
    $region4: #{_lambda_.10} parent=1 // loop_header_branch
      %12 = sbr.rel (%p10) target = $region8
    $region5: #{_lambda_.10} parent=1 // loop_body
      %s14 = ssub.s32 %s9, 1
      %s15 = ssub.s32 %s9, 2
      %s25 = sadd.s32 1, %s18
      %p26 = scmp.ge.s32.totalorder %s25, 3
      %s27 = scalar_select %p26, 0, %s25
      %s28 = sadd.s32 1, %s17
      %s29 = scalar_select %p26, %s28, %s17
      %p30 = scmp.ge.s32.totalorder %s29, 2
      %s31 = scalar_select %p30, 0, %s29
      %s32 = sadd.s32 1, %s16
      %s33 = scalar_select %p30, %s32, %s16
      %p34 = scmp.ge.s32.totalorder %s33, 1
      %s35 = scalar_select %p34, 0, %s33
      %s36 = ssub.s32 %s16, %s35
      %s37 = ssub.s32 %s18, %s27
      %s38 = sor.u32 %s36, %s37
      %p39 = scmp.eq.s32.totalorder %s38, 0
      %s41 = sadd.s32 %s40, 1
      %s42 = scalar_select %p39, %s40, %s41
      %p45 = pneg %p39
      %p46 = scmp.eq.s32.totalorder %s9, 5
      %p47 = por %p45, %p46
      %p48 = scmp.ne.s32.totalorder %s40, %s43
      %p49 = scmp.eq.s32.totalorder %s9, 0
      %p50 = por %p48, %p49
      %p51 = scmp.ne.s32.totalorder %s40, %s43
      %p52 = scmp.eq.s32.totalorder %s14, 5
      %p53 = por %p51, %p52
      %p54 = scmp.ne.s32.totalorder %s43, %s44
      %p55 = scmp.eq.s32.totalorder %s14, 0
      %p56 = por %p54, %p55
      %p57 = scmp.ne.s32.totalorder %s43, %s44
      %p58 = scmp.eq.s32.totalorder %s15, 5
      %p59 = por %p57, %p58
      %p61 = scmp.ne.s32.totalorder %s44, %s60
      %p62 = scmp.eq.s32.totalorder %s15, 0
      %p63 = por %p61, %p62
      %s64 = ssub.s32 %s18, %s27
      %s65 = ssub.s32 %s17, %s31
      %s66 = sor.u32 %s64, %s65
      %p67 = scmp.eq.s32.totalorder %s66, 0
      %s69 = sadd.s32 %s68, 1
      %s70 = scalar_select %p67, %s68, %s69
      %p73 = pneg %p67
      %p74 = scmp.eq.s32.totalorder %s9, 5
      %p75 = por %p73, %p74
      %p76 = scmp.ne.s32.totalorder %s68, %s71
      %p77 = scmp.eq.s32.totalorder %s9, 0
      %p78 = por %p76, %p77
      %p79 = scmp.ne.s32.totalorder %s68, %s71
      %p80 = scmp.eq.s32.totalorder %s14, 5
      %p81 = por %p79, %p80
      %p82 = scmp.ne.s32.totalorder %s71, %s72
      %p83 = scmp.eq.s32.totalorder %s14, 0
      %p84 = por %p82, %p83
      %p85 = scmp.ne.s32.totalorder %s71, %s72
      %p86 = scmp.eq.s32.totalorder %s15, 5
      %p87 = por %p85, %p86
      %p89 = scmp.ne.s32.totalorder %s72, %s88
      %p90 = scmp.eq.s32.totalorder %s15, 0
      %p91 = por %p89, %p90
      %s92 = ssub.s32 %s17, %s31
      %p93 = scmp.eq.s32.totalorder %s92, 0
      %s95 = sadd.s32 %s94, 1
      %s96 = scalar_select %p93, %s94, %s95
      %p99 = pneg %p93
      %p100 = scmp.eq.s32.totalorder %s9, 5
      %p101 = por %p99, %p100
      %p102 = scmp.ne.s32.totalorder %s94, %s97
      %p103 = scmp.eq.s32.totalorder %s9, 0
      %p104 = por %p102, %p103
      %p105 = scmp.ne.s32.totalorder %s94, %s97
      %p106 = scmp.eq.s32.totalorder %s14, 5
      %p107 = por %p105, %p106
      %p108 = scmp.ne.s32.totalorder %s97, %s98
      %p109 = scmp.eq.s32.totalorder %s14, 0
      %p110 = por %p108, %p109
      %p111 = scmp.ne.s32.totalorder %s97, %s98
      %p112 = scmp.eq.s32.totalorder %s15, 5
      %p113 = por %p111, %p112
      %p115 = scmp.ne.s32.totalorder %s98, %s114
      %p116 = scmp.eq.s32.totalorder %s15, 0
      %p117 = por %p115, %p116
      %s118 = ssub.s32 %s16, %s35
      %s119 = ssub.s32 %s17, %s31
      %s120 = sor.u32 %s118, %s119
      %p121 = scmp.eq.s32.totalorder %s120, 0
      %s123 = sadd.s32 %s122, 1
      %s124 = scalar_select %p121, %s122, %s123
      %p127 = pneg %p121
      %p128 = scmp.eq.s32.totalorder %s9, 5
      %p129 = por %p127, %p128
      %p130 = scmp.ne.s32.totalorder %s122, %s125
      %p131 = scmp.eq.s32.totalorder %s9, 0
      %p132 = por %p130, %p131
      %p133 = scmp.ne.s32.totalorder %s122, %s125
      %p134 = scmp.eq.s32.totalorder %s14, 5
      %p135 = por %p133, %p134
      %p136 = scmp.ne.s32.totalorder %s125, %s126
      %p137 = scmp.eq.s32.totalorder %s14, 0
      %p138 = por %p136, %p137
      %p139 = scmp.ne.s32.totalorder %s125, %s126
      %p140 = scmp.eq.s32.totalorder %s15, 5
      %p141 = por %p139, %p140
      %p143 = scmp.ne.s32.totalorder %s126, %s142
      %p144 = scmp.eq.s32.totalorder %s15, 0
      %p145 = por %p143, %p144
      %p146 = scmp.le.s32.totalorder 1, %s9
      %p147 = scmp.lt.s32.totalorder %s9, 7
      %p148 = pnand %p146, %p147
      %p149 = pneg %p148
      // Predicated region
      $region9: #{_lambda_.10} parent=5 // pred_check
        _
      $region10: #{_lambda_.10} parent=5 // pred_check_branch
        %151 = sbr.rel (%p148) target = $region12
      $region11: #{_lambda_.10} parent=5 // pred_region
        %s152 = ssub.s32 %s9, 1
      $region12: #{_lambda_.10} parent=5 // pred_fallthru
        _
      %p153 = scmp.lt.s32.totalorder %s9, 6
      // Predicated region
      $region13: #{_lambda_.10} parent=5 // pred_check
        %p154 = pneg %p153
      $region14: #{_lambda_.10} parent=5 // pred_check_branch
        %156 = sbr.rel (%p154) target = $region16
      $region15: #{_lambda_.10} parent=5 // pred_region
        // Predicated region
        $region17: #{_lambda_.10} parent=15 // pred_check
          %p157 = pneg %p50
        $region18: #{_lambda_.10} parent=15 // pred_check_branch
          %159 = sbr.rel (%p157) target = $region20
        $region19: #{_lambda_.10} parent=15 // pred_region
          %s160 = smul.u32 6, %s18
          %p161 = scmp.lt.s32.totalorder %s16, 0
          %s162 = scalar_select %p161, %s16, 0
          %p163 = scmp.lt.s32.totalorder %s160, 17
          %s164 = scalar_select %p163, %s160, 17
          %s165 = smul.addr %s162, 18
          %s166 = sadd.s32 %s164, %s165
          %s167 = smul.addr %s166, 4
          %s168 = scalar_lea.vmem %s0, %s167
          %s169 = smul.u32 6, %s18
        $region20: #{_lambda_.10} parent=15 // pred_fallthru
          _
        // Predicated region
        $region21: #{_lambda_.10} parent=15 // pred_check
          %p170 = pneg %p78
        $region22: #{_lambda_.10} parent=15 // pred_check_branch
          %172 = sbr.rel (%p170) target = $region24
        $region23: #{_lambda_.10} parent=15 // pred_region
          %s173 = sand.u32 %s68, 1
          %s174 = sand.u32 %s68, 1
          %s175 = smul.addr %s174, 768
          %s176 = scalar_lea.vmem [#allocation3], %s175
          %s177 = smul.u32 96, %s18
          %s178 = smul.u32 2, %s17
          %s179 = smul.addr %s177, 4
          %s180 = sadd.s32 %s178, %s179
          %s181 = smul.addr %s180, 4
          %s182 = scalar_lea.vmem %s1, %s181
          // Predicated region
          $region25: #{_lambda_.10} parent=23 // pred_check
            _
          $region26: #{_lambda_.10} parent=23 // pred_check_branch
            %184 = sbr.rel (0) target = $region28
          $region27: #{_lambda_.10} parent=23 // pred_region
            // Predicated region
            $region29: #{_lambda_.10} parent=27 // pred_check
              _
            $region30: #{_lambda_.10} parent=27 // pred_check_branch
              %186 = sbr.rel (0) target = $region32
            $region31: #{_lambda_.10} parent=27 // pred_region
              // Predicated region
              $region44: #{_lambda_.10} parent=31 // pred_check
                _
              $region45: #{_lambda_.10} parent=31 // pred_check_branch
                %391 = sbr.rel (0) target = $region47
              $region46: #{_lambda_.10} parent=31 // pred_region
                loop: start=0, step=1, limit=1
                $region48: #{_lambda_.10} parent=46 // loop_pre_header
                  _
                $region49: #{_lambda_.10} parent=46 // loop_header
                  %s393 = sphi 0, %s397
                  %p394 = scmp.ge.s32.totalorder %s393, 1
                  %s398 = sphi %s182, %s182
                  %s399 = sphi %s176, %s176
                $region50: #{_lambda_.10} parent=46 // loop_header_branch
                  %396 = sbr.rel (%p394) target = $region54
                $region51: #{_lambda_.10} parent=46 // loop_body
                  %v400 = vld [vmem:[%s398] sm:$0xff]
                  %401 = vst [vmem:[%s399] sm:$0xff] %v400
                  %v402 = vld [vmem:[%s398 + $0x10] sm:$0xff]
                  %403 = vst [vmem:[%s399 + $0x8] sm:$0xff] %v402
                  %v404 = vld [vmem:[%s398 + $0x20] sm:$0xff]
                  %405 = vst [vmem:[%s399 + $0x10] sm:$0xff] %v404
                  %v406 = vld [vmem:[%s398 + $0x30] sm:$0xff]
                  %407 = vst [vmem:[%s399 + $0x18] sm:$0xff] %v406
                  %v408 = vld [vmem:[%s398 + $0x40] sm:$0xff]
                  %409 = vst [vmem:[%s399 + $0x20] sm:$0xff] %v408
                  %v410 = vld [vmem:[%s398 + $0x50] sm:$0xff]
                  %411 = vst [vmem:[%s399 + $0x28] sm:$0xff] %v410
                  %v412 = vld [vmem:[%s398 + $0x60] sm:$0xff]
                  %413 = vst [vmem:[%s399 + $0x30] sm:$0xff] %v412
                  %v414 = vld [vmem:[%s398 + $0x70] sm:$0xff]
                  %415 = vst [vmem:[%s399 + $0x38] sm:$0xff] %v414
                  %v416 = vld [vmem:[%s398 + $0x80] sm:$0xff]
                  %417 = vst [vmem:[%s399 + $0x40] sm:$0xff] %v416
                  %v418 = vld [vmem:[%s398 + $0x90] sm:$0xff]
                  %419 = vst [vmem:[%s399 + $0x48] sm:$0xff] %v418
                  %v420 = vld [vmem:[%s398 + $0xa0] sm:$0xff]
                  %421 = vst [vmem:[%s399 + $0x50] sm:$0xff] %v420
                  %v422 = vld [vmem:[%s398 + $0xb0] sm:$0xff]
                  %423 = vst [vmem:[%s399 + $0x58] sm:$0xff] %v422
                  %v424 = vld [vmem:[%s398 + $0xc0] sm:$0xff]
                  %425 = vst [vmem:[%s399 + $0x60] sm:$0xff] %v424
                  %v426 = vld [vmem:[%s398 + $0xd0] sm:$0xff]
                  %427 = vst [vmem:[%s399 + $0x68] sm:$0xff] %v426
                  %v428 = vld [vmem:[%s398 + $0xe0] sm:$0xff]
                  %429 = vst [vmem:[%s399 + $0x70] sm:$0xff] %v428
                  %v430 = vld [vmem:[%s398 + $0xf0] sm:$0xff]
                  %431 = vst [vmem:[%s399 + $0x78] sm:$0xff] %v430
                  %v432 = vld [vmem:[%s398 + $0x100] sm:$0xff]
                  %433 = vst [vmem:[%s399 + $0x80] sm:$0xff] %v432
                  %v434 = vld [vmem:[%s398 + $0x110] sm:$0xff]
                  %435 = vst [vmem:[%s399 + $0x88] sm:$0xff] %v434
                  %v436 = vld [vmem:[%s398 + $0x120] sm:$0xff]
                  %437 = vst [vmem:[%s399 + $0x90] sm:$0xff] %v436
                  %v438 = vld [vmem:[%s398 + $0x130] sm:$0xff]
                  %439 = vst [vmem:[%s399 + $0x98] sm:$0xff] %v438
                  %v440 = vld [vmem:[%s398 + $0x140] sm:$0xff]
                  %441 = vst [vmem:[%s399 + $0xa0] sm:$0xff] %v440
                  %v442 = vld [vmem:[%s398 + $0x150] sm:$0xff]
                  %443 = vst [vmem:[%s399 + $0xa8] sm:$0xff] %v442
                  %v444 = vld [vmem:[%s398 + $0x160] sm:$0xff]
                  %445 = vst [vmem:[%s399 + $0xb0] sm:$0xff] %v444
                  %v446 = vld [vmem:[%s398 + $0x170] sm:$0xff]
                  %447 = vst [vmem:[%s399 + $0xb8] sm:$0xff] %v446
                  %v448 = vld [vmem:[%s398 + $0x180] sm:$0xff]
                  %449 = vst [vmem:[%s399 + $0xc0] sm:$0xff] %v448
                  %v450 = vld [vmem:[%s398 + $0x190] sm:$0xff]
                  %451 = vst [vmem:[%s399 + $0xc8] sm:$0xff] %v450
                  %v452 = vld [vmem:[%s398 + $0x1a0] sm:$0xff]
                  %453 = vst [vmem:[%s399 + $0xd0] sm:$0xff] %v452
                  %v454 = vld [vmem:[%s398 + $0x1b0] sm:$0xff]
                  %455 = vst [vmem:[%s399 + $0xd8] sm:$0xff] %v454
                  %v456 = vld [vmem:[%s398 + $0x1c0] sm:$0xff]
                  %457 = vst [vmem:[%s399 + $0xe0] sm:$0xff] %v456
                  %v458 = vld [vmem:[%s398 + $0x1d0] sm:$0xff]
                  %459 = vst [vmem:[%s399 + $0xe8] sm:$0xff] %v458
                  %v460 = vld [vmem:[%s398 + $0x1e0] sm:$0xff]
                  %461 = vst [vmem:[%s399 + $0xf0] sm:$0xff] %v460
                  %v462 = vld [vmem:[%s398 + $0x1f0] sm:$0xff]
                  %463 = vst [vmem:[%s399 + $0xf8] sm:$0xff] %v462
                  %v464 = vld [vmem:[%s398 + $0x200] sm:$0xff]
                  %465 = vst [vmem:[%s399 + $0x100] sm:$0xff] %v464
                  %v466 = vld [vmem:[%s398 + $0x210] sm:$0xff]
                  %467 = vst [vmem:[%s399 + $0x108] sm:$0xff] %v466
                  %v468 = vld [vmem:[%s398 + $0x220] sm:$0xff]
                  %469 = vst [vmem:[%s399 + $0x110] sm:$0xff] %v468
                  %v470 = vld [vmem:[%s398 + $0x230] sm:$0xff]
                  %471 = vst [vmem:[%s399 + $0x118] sm:$0xff] %v470
                  %v472 = vld [vmem:[%s398 + $0x240] sm:$0xff]
                  %473 = vst [vmem:[%s399 + $0x120] sm:$0xff] %v472
                  %v474 = vld [vmem:[%s398 + $0x250] sm:$0xff]
                  %475 = vst [vmem:[%s399 + $0x128] sm:$0xff] %v474
                  %v476 = vld [vmem:[%s398 + $0x260] sm:$0xff]
                  %477 = vst [vmem:[%s399 + $0x130] sm:$0xff] %v476
                  %v478 = vld [vmem:[%s398 + $0x270] sm:$0xff]
                  %479 = vst [vmem:[%s399 + $0x138] sm:$0xff] %v478
                  %v480 = vld [vmem:[%s398 + $0x280] sm:$0xff]
                  %481 = vst [vmem:[%s399 + $0x140] sm:$0xff] %v480
                  %v482 = vld [vmem:[%s398 + $0x290] sm:$0xff]
                  %483 = vst [vmem:[%s399 + $0x148] sm:$0xff] %v482
                  %v484 = vld [vmem:[%s398 + $0x2a0] sm:$0xff]
                  %485 = vst [vmem:[%s399 + $0x150] sm:$0xff] %v484
                  %v486 = vld [vmem:[%s398 + $0x2b0] sm:$0xff]
                  %487 = vst [vmem:[%s399 + $0x158] sm:$0xff] %v486
                  %v488 = vld [vmem:[%s398 + $0x2c0] sm:$0xff]
                  %489 = vst [vmem:[%s399 + $0x160] sm:$0xff] %v488
                  %v490 = vld [vmem:[%s398 + $0x2d0] sm:$0xff]
                  %491 = vst [vmem:[%s399 + $0x168] sm:$0xff] %v490
                  %v492 = vld [vmem:[%s398 + $0x2e0] sm:$0xff]
                  %493 = vst [vmem:[%s399 + $0x170] sm:$0xff] %v492
                  %v494 = vld [vmem:[%s398 + $0x2f0] sm:$0xff]
                  %495 = vst [vmem:[%s399 + $0x178] sm:$0xff] %v494
                  %v496 = vld [vmem:[%s398 + $0x300] sm:$0xff]
                  %497 = vst [vmem:[%s399 + $0x180] sm:$0xff] %v496
                  %v498 = vld [vmem:[%s398 + $0x310] sm:$0xff]
                  %499 = vst [vmem:[%s399 + $0x188] sm:$0xff] %v498
                  %v500 = vld [vmem:[%s398 + $0x320] sm:$0xff]
                  %501 = vst [vmem:[%s399 + $0x190] sm:$0xff] %v500
                  %v502 = vld [vmem:[%s398 + $0x330] sm:$0xff]
                  %503 = vst [vmem:[%s399 + $0x198] sm:$0xff] %v502
                  %v504 = vld [vmem:[%s398 + $0x340] sm:$0xff]
                  %505 = vst [vmem:[%s399 + $0x1a0] sm:$0xff] %v504
                  %v506 = vld [vmem:[%s398 + $0x350] sm:$0xff]
                  %507 = vst [vmem:[%s399 + $0x1a8] sm:$0xff] %v506
                  %v508 = vld [vmem:[%s398 + $0x360] sm:$0xff]
                  %509 = vst [vmem:[%s399 + $0x1b0] sm:$0xff] %v508
                  %v510 = vld [vmem:[%s398 + $0x370] sm:$0xff]
                  %511 = vst [vmem:[%s399 + $0x1b8] sm:$0xff] %v510
                  %v512 = vld [vmem:[%s398 + $0x380] sm:$0xff]
                  %513 = vst [vmem:[%s399 + $0x1c0] sm:$0xff] %v512
                  %v514 = vld [vmem:[%s398 + $0x390] sm:$0xff]
                  %515 = vst [vmem:[%s399 + $0x1c8] sm:$0xff] %v514
                  %v516 = vld [vmem:[%s398 + $0x3a0] sm:$0xff]
                  %517 = vst [vmem:[%s399 + $0x1d0] sm:$0xff] %v516
                  %v518 = vld [vmem:[%s398 + $0x3b0] sm:$0xff]
                  %519 = vst [vmem:[%s399 + $0x1d8] sm:$0xff] %v518
                  %v520 = vld [vmem:[%s398 + $0x3c0] sm:$0xff]
                  %521 = vst [vmem:[%s399 + $0x1e0] sm:$0xff] %v520
                  %v522 = vld [vmem:[%s398 + $0x3d0] sm:$0xff]
                  %523 = vst [vmem:[%s399 + $0x1e8] sm:$0xff] %v522
                  %v524 = vld [vmem:[%s398 + $0x3e0] sm:$0xff]
                  %525 = vst [vmem:[%s399 + $0x1f0] sm:$0xff] %v524
                  %v526 = vld [vmem:[%s398 + $0x3f0] sm:$0xff]
                  %527 = vst [vmem:[%s399 + $0x1f8] sm:$0xff] %v526
                  %v528 = vld [vmem:[%s398 + $0x400] sm:$0xff]
                  %529 = vst [vmem:[%s399 + $0x200] sm:$0xff] %v528
                  %v530 = vld [vmem:[%s398 + $0x410] sm:$0xff]
                  %531 = vst [vmem:[%s399 + $0x208] sm:$0xff] %v530
                  %v532 = vld [vmem:[%s398 + $0x420] sm:$0xff]
                  %533 = vst [vmem:[%s399 + $0x210] sm:$0xff] %v532
                  %v534 = vld [vmem:[%s398 + $0x430] sm:$0xff]
                  %535 = vst [vmem:[%s399 + $0x218] sm:$0xff] %v534
                  %v536 = vld [vmem:[%s398 + $0x440] sm:$0xff]
                  %537 = vst [vmem:[%s399 + $0x220] sm:$0xff] %v536
                  %v538 = vld [vmem:[%s398 + $0x450] sm:$0xff]
                  %539 = vst [vmem:[%s399 + $0x228] sm:$0xff] %v538
                  %v540 = vld [vmem:[%s398 + $0x460] sm:$0xff]
                  %541 = vst [vmem:[%s399 + $0x230] sm:$0xff] %v540
                  %v542 = vld [vmem:[%s398 + $0x470] sm:$0xff]
                  %543 = vst [vmem:[%s399 + $0x238] sm:$0xff] %v542
                  %v544 = vld [vmem:[%s398 + $0x480] sm:$0xff]
                  %545 = vst [vmem:[%s399 + $0x240] sm:$0xff] %v544
                  %v546 = vld [vmem:[%s398 + $0x490] sm:$0xff]
                  %547 = vst [vmem:[%s399 + $0x248] sm:$0xff] %v546
                  %v548 = vld [vmem:[%s398 + $0x4a0] sm:$0xff]
                  %549 = vst [vmem:[%s399 + $0x250] sm:$0xff] %v548
                  %v550 = vld [vmem:[%s398 + $0x4b0] sm:$0xff]
                  %551 = vst [vmem:[%s399 + $0x258] sm:$0xff] %v550
                  %v552 = vld [vmem:[%s398 + $0x4c0] sm:$0xff]
                  %553 = vst [vmem:[%s399 + $0x260] sm:$0xff] %v552
                  %v554 = vld [vmem:[%s398 + $0x4d0] sm:$0xff]
                  %555 = vst [vmem:[%s399 + $0x268] sm:$0xff] %v554
                  %v556 = vld [vmem:[%s398 + $0x4e0] sm:$0xff]
                  %557 = vst [vmem:[%s399 + $0x270] sm:$0xff] %v556
                  %v558 = vld [vmem:[%s398 + $0x4f0] sm:$0xff]
                  %559 = vst [vmem:[%s399 + $0x278] sm:$0xff] %v558
                  %v560 = vld [vmem:[%s398 + $0x500] sm:$0xff]
                  %561 = vst [vmem:[%s399 + $0x280] sm:$0xff] %v560
                  %v562 = vld [vmem:[%s398 + $0x510] sm:$0xff]
                  %563 = vst [vmem:[%s399 + $0x288] sm:$0xff] %v562
                  %v564 = vld [vmem:[%s398 + $0x520] sm:$0xff]
                  %565 = vst [vmem:[%s399 + $0x290] sm:$0xff] %v564
                  %v566 = vld [vmem:[%s398 + $0x530] sm:$0xff]
                  %567 = vst [vmem:[%s399 + $0x298] sm:$0xff] %v566
                  %v568 = vld [vmem:[%s398 + $0x540] sm:$0xff]
                  %569 = vst [vmem:[%s399 + $0x2a0] sm:$0xff] %v568
                  %v570 = vld [vmem:[%s398 + $0x550] sm:$0xff]
                  %571 = vst [vmem:[%s399 + $0x2a8] sm:$0xff] %v570
                  %v572 = vld [vmem:[%s398 + $0x560] sm:$0xff]
                  %573 = vst [vmem:[%s399 + $0x2b0] sm:$0xff] %v572
                  %v574 = vld [vmem:[%s398 + $0x570] sm:$0xff]
                  %575 = vst [vmem:[%s399 + $0x2b8] sm:$0xff] %v574
                  %v576 = vld [vmem:[%s398 + $0x580] sm:$0xff]
                  %577 = vst [vmem:[%s399 + $0x2c0] sm:$0xff] %v576
                  %v578 = vld [vmem:[%s398 + $0x590] sm:$0xff]
                  %579 = vst [vmem:[%s399 + $0x2c8] sm:$0xff] %v578
                  %v580 = vld [vmem:[%s398 + $0x5a0] sm:$0xff]
                  %581 = vst [vmem:[%s399 + $0x2d0] sm:$0xff] %v580
                  %v582 = vld [vmem:[%s398 + $0x5b0] sm:$0xff]
                  %583 = vst [vmem:[%s399 + $0x2d8] sm:$0xff] %v582
                  %v584 = vld [vmem:[%s398 + $0x5c0] sm:$0xff]
                  %585 = vst [vmem:[%s399 + $0x2e0] sm:$0xff] %v584
                  %v586 = vld [vmem:[%s398 + $0x5d0] sm:$0xff]
                  %587 = vst [vmem:[%s399 + $0x2e8] sm:$0xff] %v586
                  %v588 = vld [vmem:[%s398 + $0x5e0] sm:$0xff]
                  %589 = vst [vmem:[%s399 + $0x2f0] sm:$0xff] %v588
                  %v590 = vld [vmem:[%s398 + $0x5f0] sm:$0xff]
                  %591 = vst [vmem:[%s399 + $0x2f8] sm:$0xff] %v590
                $region52: #{_lambda_.10} parent=46 // loop_footer
                  %s397 = sadd.s32 1, %s393
                $region53: #{_lambda_.10} parent=46 // loop_footer_branch
                  %392 = sbr.rel target = $region49
                $region54: #{_lambda_.10} parent=46 // loop_exit
                  _
              $region47: #{_lambda_.10} parent=31 // pred_fallthru
                _
              // Predicated region
              $region55: #{_lambda_.10} parent=31 // pred_check
                _
              $region56: #{_lambda_.10} parent=31 // pred_check_branch
                %593 = sbr.rel target = $region58
              $region57: #{_lambda_.10} parent=31 // pred_region
                _
              $region58: #{_lambda_.10} parent=31 // pred_fallthru
                _
            $region32: #{_lambda_.10} parent=27 // pred_fallthru
              _
            // Predicated region
            $region33: #{_lambda_.10} parent=27 // pred_check
              _
            $region34: #{_lambda_.10} parent=27 // pred_check_branch
              %188 = sbr.rel target = $region36
            $region35: #{_lambda_.10} parent=27 // pred_region
              loop: start=0, step=1, limit=1
              $region37: #{_lambda_.10} parent=35 // loop_pre_header
                _
              $region38: #{_lambda_.10} parent=35 // loop_header
                %s191 = sphi 0, %s195
                %p192 = scmp.ge.s32.totalorder %s191, 1
                %s196 = sphi %s182, %s182
                %s197 = sphi %s176, %s176
              $region39: #{_lambda_.10} parent=35 // loop_header_branch
                %194 = sbr.rel (%p192) target = $region43
              $region40: #{_lambda_.10} parent=35 // loop_body
                %v198 = vld [vmem:[%s196] sm:$0xff]
                %199 = vst [vmem:[%s197] sm:$0xff] %v198
                %v200 = vld [vmem:[%s196 + $0x10] sm:$0xff]
                %201 = vst [vmem:[%s197 + $0x8] sm:$0xff] %v200
                %v202 = vld [vmem:[%s196 + $0x20] sm:$0xff]
                %203 = vst [vmem:[%s197 + $0x10] sm:$0xff] %v202
                %v204 = vld [vmem:[%s196 + $0x30] sm:$0xff]
                %205 = vst [vmem:[%s197 + $0x18] sm:$0xff] %v204
                %v206 = vld [vmem:[%s196 + $0x40] sm:$0xff]
                %207 = vst [vmem:[%s197 + $0x20] sm:$0xff] %v206
                %v208 = vld [vmem:[%s196 + $0x50] sm:$0xff]
                %209 = vst [vmem:[%s197 + $0x28] sm:$0xff] %v208
                %v210 = vld [vmem:[%s196 + $0x60] sm:$0xff]
                %211 = vst [vmem:[%s197 + $0x30] sm:$0xff] %v210
                %v212 = vld [vmem:[%s196 + $0x70] sm:$0xff]
                %213 = vst [vmem:[%s197 + $0x38] sm:$0xff] %v212
                %v214 = vld [vmem:[%s196 + $0x80] sm:$0xff]
                %215 = vst [vmem:[%s197 + $0x40] sm:$0xff] %v214
                %v216 = vld [vmem:[%s196 + $0x90] sm:$0xff]
                %217 = vst [vmem:[%s197 + $0x48] sm:$0xff] %v216
                %v218 = vld [vmem:[%s196 + $0xa0] sm:$0xff]
                %219 = vst [vmem:[%s197 + $0x50] sm:$0xff] %v218
                %v220 = vld [vmem:[%s196 + $0xb0] sm:$0xff]
                %221 = vst [vmem:[%s197 + $0x58] sm:$0xff] %v220
                %v222 = vld [vmem:[%s196 + $0xc0] sm:$0xff]
                %223 = vst [vmem:[%s197 + $0x60] sm:$0xff] %v222
                %v224 = vld [vmem:[%s196 + $0xd0] sm:$0xff]
                %225 = vst [vmem:[%s197 + $0x68] sm:$0xff] %v224
                %v226 = vld [vmem:[%s196 + $0xe0] sm:$0xff]
                %227 = vst [vmem:[%s197 + $0x70] sm:$0xff] %v226
                %v228 = vld [vmem:[%s196 + $0xf0] sm:$0xff]
                %229 = vst [vmem:[%s197 + $0x78] sm:$0xff] %v228
                %v230 = vld [vmem:[%s196 + $0x100] sm:$0xff]
                %231 = vst [vmem:[%s197 + $0x80] sm:$0xff] %v230
                %v232 = vld [vmem:[%s196 + $0x110] sm:$0xff]
                %233 = vst [vmem:[%s197 + $0x88] sm:$0xff] %v232
                %v234 = vld [vmem:[%s196 + $0x120] sm:$0xff]
                %235 = vst [vmem:[%s197 + $0x90] sm:$0xff] %v234
                %v236 = vld [vmem:[%s196 + $0x130] sm:$0xff]
                %237 = vst [vmem:[%s197 + $0x98] sm:$0xff] %v236
                %v238 = vld [vmem:[%s196 + $0x140] sm:$0xff]
                %239 = vst [vmem:[%s197 + $0xa0] sm:$0xff] %v238
                %v240 = vld [vmem:[%s196 + $0x150] sm:$0xff]
                %241 = vst [vmem:[%s197 + $0xa8] sm:$0xff] %v240
                %v242 = vld [vmem:[%s196 + $0x160] sm:$0xff]
                %243 = vst [vmem:[%s197 + $0xb0] sm:$0xff] %v242
                %v244 = vld [vmem:[%s196 + $0x170] sm:$0xff]
                %245 = vst [vmem:[%s197 + $0xb8] sm:$0xff] %v244
                %v246 = vld [vmem:[%s196 + $0x180] sm:$0xff]
                %247 = vst [vmem:[%s197 + $0xc0] sm:$0xff] %v246
                %v248 = vld [vmem:[%s196 + $0x190] sm:$0xff]
                %249 = vst [vmem:[%s197 + $0xc8] sm:$0xff] %v248
                %v250 = vld [vmem:[%s196 + $0x1a0] sm:$0xff]
                %251 = vst [vmem:[%s197 + $0xd0] sm:$0xff] %v250
                %v252 = vld [vmem:[%s196 + $0x1b0] sm:$0xff]
                %253 = vst [vmem:[%s197 + $0xd8] sm:$0xff] %v252
                %v254 = vld [vmem:[%s196 + $0x1c0] sm:$0xff]
                %255 = vst [vmem:[%s197 + $0xe0] sm:$0xff] %v254
                %v256 = vld [vmem:[%s196 + $0x1d0] sm:$0xff]
                %257 = vst [vmem:[%s197 + $0xe8] sm:$0xff] %v256
                %v258 = vld [vmem:[%s196 + $0x1e0] sm:$0xff]
                %259 = vst [vmem:[%s197 + $0xf0] sm:$0xff] %v258
                %v260 = vld [vmem:[%s196 + $0x1f0] sm:$0xff]
                %261 = vst [vmem:[%s197 + $0xf8] sm:$0xff] %v260
                %v262 = vld [vmem:[%s196 + $0x200] sm:$0xff]
                %263 = vst [vmem:[%s197 + $0x100] sm:$0xff] %v262
                %v264 = vld [vmem:[%s196 + $0x210] sm:$0xff]
                %265 = vst [vmem:[%s197 + $0x108] sm:$0xff] %v264
                %v266 = vld [vmem:[%s196 + $0x220] sm:$0xff]
                %267 = vst [vmem:[%s197 + $0x110] sm:$0xff] %v266
                %v268 = vld [vmem:[%s196 + $0x230] sm:$0xff]
                %269 = vst [vmem:[%s197 + $0x118] sm:$0xff] %v268
                %v270 = vld [vmem:[%s196 + $0x240] sm:$0xff]
                %271 = vst [vmem:[%s197 + $0x120] sm:$0xff] %v270
                %v272 = vld [vmem:[%s196 + $0x250] sm:$0xff]
                %273 = vst [vmem:[%s197 + $0x128] sm:$0xff] %v272
                %v274 = vld [vmem:[%s196 + $0x260] sm:$0xff]
                %275 = vst [vmem:[%s197 + $0x130] sm:$0xff] %v274
                %v276 = vld [vmem:[%s196 + $0x270] sm:$0xff]
                %277 = vst [vmem:[%s197 + $0x138] sm:$0xff] %v276
                %v278 = vld [vmem:[%s196 + $0x280] sm:$0xff]
                %279 = vst [vmem:[%s197 + $0x140] sm:$0xff] %v278
                %v280 = vld [vmem:[%s196 + $0x290] sm:$0xff]
                %281 = vst [vmem:[%s197 + $0x148] sm:$0xff] %v280
                %v282 = vld [vmem:[%s196 + $0x2a0] sm:$0xff]
                %283 = vst [vmem:[%s197 + $0x150] sm:$0xff] %v282
                %v284 = vld [vmem:[%s196 + $0x2b0] sm:$0xff]
                %285 = vst [vmem:[%s197 + $0x158] sm:$0xff] %v284
                %v286 = vld [vmem:[%s196 + $0x2c0] sm:$0xff]
                %287 = vst [vmem:[%s197 + $0x160] sm:$0xff] %v286
                %v288 = vld [vmem:[%s196 + $0x2d0] sm:$0xff]
                %289 = vst [vmem:[%s197 + $0x168] sm:$0xff] %v288
                %v290 = vld [vmem:[%s196 + $0x2e0] sm:$0xff]
                %291 = vst [vmem:[%s197 + $0x170] sm:$0xff] %v290
                %v292 = vld [vmem:[%s196 + $0x2f0] sm:$0xff]
                %293 = vst [vmem:[%s197 + $0x178] sm:$0xff] %v292
                %v294 = vld [vmem:[%s196 + $0x300] sm:$0xff]
                %295 = vst [vmem:[%s197 + $0x180] sm:$0xff] %v294
                %v296 = vld [vmem:[%s196 + $0x310] sm:$0xff]
                %297 = vst [vmem:[%s197 + $0x188] sm:$0xff] %v296
                %v298 = vld [vmem:[%s196 + $0x320] sm:$0xff]
                %299 = vst [vmem:[%s197 + $0x190] sm:$0xff] %v298
                %v300 = vld [vmem:[%s196 + $0x330] sm:$0xff]
                %301 = vst [vmem:[%s197 + $0x198] sm:$0xff] %v300
                %v302 = vld [vmem:[%s196 + $0x340] sm:$0xff]
                %303 = vst [vmem:[%s197 + $0x1a0] sm:$0xff] %v302
                %v304 = vld [vmem:[%s196 + $0x350] sm:$0xff]
                %305 = vst [vmem:[%s197 + $0x1a8] sm:$0xff] %v304
                %v306 = vld [vmem:[%s196 + $0x360] sm:$0xff]
                %307 = vst [vmem:[%s197 + $0x1b0] sm:$0xff] %v306
                %v308 = vld [vmem:[%s196 + $0x370] sm:$0xff]
                %309 = vst [vmem:[%s197 + $0x1b8] sm:$0xff] %v308
                %v310 = vld [vmem:[%s196 + $0x380] sm:$0xff]
                %311 = vst [vmem:[%s197 + $0x1c0] sm:$0xff] %v310
                %v312 = vld [vmem:[%s196 + $0x390] sm:$0xff]
                %313 = vst [vmem:[%s197 + $0x1c8] sm:$0xff] %v312
                %v314 = vld [vmem:[%s196 + $0x3a0] sm:$0xff]
                %315 = vst [vmem:[%s197 + $0x1d0] sm:$0xff] %v314
                %v316 = vld [vmem:[%s196 + $0x3b0] sm:$0xff]
                %317 = vst [vmem:[%s197 + $0x1d8] sm:$0xff] %v316
                %v318 = vld [vmem:[%s196 + $0x3c0] sm:$0xff]
                %319 = vst [vmem:[%s197 + $0x1e0] sm:$0xff] %v318
                %v320 = vld [vmem:[%s196 + $0x3d0] sm:$0xff]
                %321 = vst [vmem:[%s197 + $0x1e8] sm:$0xff] %v320
                %v322 = vld [vmem:[%s196 + $0x3e0] sm:$0xff]
                %323 = vst [vmem:[%s197 + $0x1f0] sm:$0xff] %v322
                %v324 = vld [vmem:[%s196 + $0x3f0] sm:$0xff]
                %325 = vst [vmem:[%s197 + $0x1f8] sm:$0xff] %v324
                %v326 = vld [vmem:[%s196 + $0x400] sm:$0xff]
                %327 = vst [vmem:[%s197 + $0x200] sm:$0xff] %v326
                %v328 = vld [vmem:[%s196 + $0x410] sm:$0xff]
                %329 = vst [vmem:[%s197 + $0x208] sm:$0xff] %v328
                %v330 = vld [vmem:[%s196 + $0x420] sm:$0xff]
                %331 = vst [vmem:[%s197 + $0x210] sm:$0xff] %v330
                %v332 = vld [vmem:[%s196 + $0x430] sm:$0xff]
                %333 = vst [vmem:[%s197 + $0x218] sm:$0xff] %v332
                %v334 = vld [vmem:[%s196 + $0x440] sm:$0xff]
                %335 = vst [vmem:[%s197 + $0x220] sm:$0xff] %v334
                %v336 = vld [vmem:[%s196 + $0x450] sm:$0xff]
                %337 = vst [vmem:[%s197 + $0x228] sm:$0xff] %v336
                %v338 = vld [vmem:[%s196 + $0x460] sm:$0xff]
                %339 = vst [vmem:[%s197 + $0x230] sm:$0xff] %v338
                %v340 = vld [vmem:[%s196 + $0x470] sm:$0xff]
                %341 = vst [vmem:[%s197 + $0x238] sm:$0xff] %v340
                %v342 = vld [vmem:[%s196 + $0x480] sm:$0xff]
                %343 = vst [vmem:[%s197 + $0x240] sm:$0xff] %v342
                %v344 = vld [vmem:[%s196 + $0x490] sm:$0xff]
                %345 = vst [vmem:[%s197 + $0x248] sm:$0xff] %v344
                %v346 = vld [vmem:[%s196 + $0x4a0] sm:$0xff]
                %347 = vst [vmem:[%s197 + $0x250] sm:$0xff] %v346
                %v348 = vld [vmem:[%s196 + $0x4b0] sm:$0xff]
                %349 = vst [vmem:[%s197 + $0x258] sm:$0xff] %v348
                %v350 = vld [vmem:[%s196 + $0x4c0] sm:$0xff]
                %351 = vst [vmem:[%s197 + $0x260] sm:$0xff] %v350
                %v352 = vld [vmem:[%s196 + $0x4d0] sm:$0xff]
                %353 = vst [vmem:[%s197 + $0x268] sm:$0xff] %v352
                %v354 = vld [vmem:[%s196 + $0x4e0] sm:$0xff]
                %355 = vst [vmem:[%s197 + $0x270] sm:$0xff] %v354
                %v356 = vld [vmem:[%s196 + $0x4f0] sm:$0xff]
                %357 = vst [vmem:[%s197 + $0x278] sm:$0xff] %v356
                %v358 = vld [vmem:[%s196 + $0x500] sm:$0xff]
                %359 = vst [vmem:[%s197 + $0x280] sm:$0xff] %v358
                %v360 = vld [vmem:[%s196 + $0x510] sm:$0xff]
                %361 = vst [vmem:[%s197 + $0x288] sm:$0xff] %v360
                %v362 = vld [vmem:[%s196 + $0x520] sm:$0xff]
                %363 = vst [vmem:[%s197 + $0x290] sm:$0xff] %v362
                %v364 = vld [vmem:[%s196 + $0x530] sm:$0xff]
                %365 = vst [vmem:[%s197 + $0x298] sm:$0xff] %v364
                %v366 = vld [vmem:[%s196 + $0x540] sm:$0xff]
                %367 = vst [vmem:[%s197 + $0x2a0] sm:$0xff] %v366
                %v368 = vld [vmem:[%s196 + $0x550] sm:$0xff]
                %369 = vst [vmem:[%s197 + $0x2a8] sm:$0xff] %v368
                %v370 = vld [vmem:[%s196 + $0x560] sm:$0xff]
                %371 = vst [vmem:[%s197 + $0x2b0] sm:$0xff] %v370
                %v372 = vld [vmem:[%s196 + $0x570] sm:$0xff]
                %373 = vst [vmem:[%s197 + $0x2b8] sm:$0xff] %v372
                %v374 = vld [vmem:[%s196 + $0x580] sm:$0xff]
                %375 = vst [vmem:[%s197 + $0x2c0] sm:$0xff] %v374
                %v376 = vld [vmem:[%s196 + $0x590] sm:$0xff]
                %377 = vst [vmem:[%s197 + $0x2c8] sm:$0xff] %v376
                %v378 = vld [vmem:[%s196 + $0x5a0] sm:$0xff]
                %379 = vst [vmem:[%s197 + $0x2d0] sm:$0xff] %v378
                %v380 = vld [vmem:[%s196 + $0x5b0] sm:$0xff]
                %381 = vst [vmem:[%s197 + $0x2d8] sm:$0xff] %v380
                %v382 = vld [vmem:[%s196 + $0x5c0] sm:$0xff]
                %383 = vst [vmem:[%s197 + $0x2e0] sm:$0xff] %v382
                %v384 = vld [vmem:[%s196 + $0x5d0] sm:$0xff]
                %385 = vst [vmem:[%s197 + $0x2e8] sm:$0xff] %v384
                %v386 = vld [vmem:[%s196 + $0x5e0] sm:$0xff]
                %387 = vst [vmem:[%s197 + $0x2f0] sm:$0xff] %v386
                %v388 = vld [vmem:[%s196 + $0x5f0] sm:$0xff]
                %389 = vst [vmem:[%s197 + $0x2f8] sm:$0xff] %v388
              $region41: #{_lambda_.10} parent=35 // loop_footer
                %s195 = sadd.s32 1, %s191
              $region42: #{_lambda_.10} parent=35 // loop_footer_branch
                %190 = sbr.rel target = $region38
              $region43: #{_lambda_.10} parent=35 // loop_exit
                _
            $region36: #{_lambda_.10} parent=27 // pred_fallthru
              _
          $region28: #{_lambda_.10} parent=23 // pred_fallthru
            _
          %594 = vnop
        $region24: #{_lambda_.10} parent=15 // pred_fallthru
          _
        // Predicated region
        $region59: #{_lambda_.10} parent=15 // pred_check
          %p595 = pneg %p104
        $region60: #{_lambda_.10} parent=15 // pred_check_branch
          %597 = sbr.rel (%p595) target = $region62
        $region61: #{_lambda_.10} parent=15 // pred_region
          %s598 = smul.u32 2, %s17
          %p599 = scmp.lt.s32.totalorder %s598, 3
          %s600 = scalar_select %p599, %s598, 3
          %s601 = scalar_lea.vmem %s2, %s600
          %s602 = smul.u32 2, %s17
        $region62: #{_lambda_.10} parent=15 // pred_fallthru
          _
      $region16: #{_lambda_.10} parent=5 // pred_fallthru
        _
      %p603 = scmp.le.s32.totalorder 1, %s9
      %p604 = scmp.lt.s32.totalorder %s9, 7
      %p605 = pnand %p603, %p604
      %p606 = pneg %p605
      // Predicated region
      $region63: #{_lambda_.10} parent=5 // pred_check
        _
      $region64: #{_lambda_.10} parent=5 // pred_check_branch
        %608 = sbr.rel (%p605) target = $region66
      $region65: #{_lambda_.10} parent=5 // pred_region
        %s609 = ssub.s32 %s9, 1
        %s610 = sand.u32 %s71, 1
        %s611 = sand.u32 %s71, 1
        %s612 = smul.addr %s611, 768
        %s613 = scalar_lea.vmem [#allocation3], %s612
        // Predicated region
        $region67: #{_lambda_.10} parent=65 // pred_check
          %p614 = pneg %p84
        $region68: #{_lambda_.10} parent=65 // pred_check_branch
          %616 = sbr.rel (%p614) target = $region70
        $region69: #{_lambda_.10} parent=65 // pred_region
          _
        $region70: #{_lambda_.10} parent=65 // pred_fallthru
          _
        %s617 = smul.u32 6, %s21
        %p618 = scmp.lt.s32.totalorder %s19, 0
        %s619 = scalar_select %p618, %s19, 0
        %p620 = scmp.lt.s32.totalorder %s617, 17
        %s621 = scalar_select %p620, %s617, 17
        %s622 = smul.addr %s619, 18
        %s623 = sadd.s32 %s621, %s622
        %s624 = smul.addr %s623, 4
        %s625 = scalar_lea.vmem %s0, %s624
        %p626 = pneg %p56
        %p627 = pneg %p53
        %s628 = sand.u32 %s71, 1
        %s629 = sand.u32 %s71, 1
        %s630 = smul.addr %s629, 768
        %s631 = scalar_lea.vmem [#allocation3], %s630
        %p632 = pneg %p84
        %p633 = pneg %p81
        %s634 = smul.u32 2, %s20
        %p635 = scmp.lt.s32.totalorder %s634, 3
        %s636 = scalar_select %p635, %s634, 3
        %s637 = scalar_lea.vmem %s2, %s636
        %p638 = pneg %p110
        %p639 = pneg %p107
        %p640 = pneg %p138
        %p641 = pneg %p135
        %s642 = smul.u32 2, %s20
        %p643 = scmp.lt.s32.totalorder %s19, 0
        %s644 = scalar_select %p643, %s19, 0
        %p645 = scmp.lt.s32.totalorder %s642, 3
        %s646 = scalar_select %p645, %s642, 3
        %s647 = smul.addr %s644, 4
        %s648 = sadd.s32 %s646, %s647
        %s649 = smul.addr %s648, 8
        %s650 = scalar_lea.vmem %s3, %s649
        %s651 = smul.u32 6, %s21
        %p652 = scmp.lt.s32.totalorder %s19, 0
        %s653 = scalar_select %p652, %s19, 0
        %p654 = scmp.lt.s32.totalorder %s651, 17
        %s655 = scalar_select %p654, %s651, 17
        %s656 = smul.addr %s653, 18
        %s657 = sadd.s32 %s655, %s656
        %s658 = smul.addr %s657, 4
        %s659 = scalar_lea.vmem %s0, %s658
        %s660 = smul.u32 6, %s21
        %s661 = smul.u32 96, %s21
        %s662 = smul.u32 2, %s20
        %s663 = smul.u32 2, %s20
        %p664 = scmp.lt.s32.totalorder %s663, 3
        %s665 = scalar_select %p664, %s663, 3
        %s666 = scalar_lea.vmem %s2, %s665
        %s667 = smul.u32 2, %s20
        %s668 = smul.u32 2, %s20
        %p669 = scmp.lt.s32.totalorder %s19, 0
        %s670 = scalar_select %p669, %s19, 0
        %p671 = scmp.lt.s32.totalorder %s668, 3
        %s672 = scalar_select %p671, %s668, 3
        %s673 = smul.addr %s670, 4
        %s674 = sadd.s32 %s672, %s673
        %s675 = smul.addr %s674, 8
        %s676 = scalar_lea.vmem %s3, %s675
        %s677 = smul.u32 2, %s20
        %p678 = scmp.eq.s32.totalorder %s21, 0
        // Predicated region
        $region71: #{_lambda_.10} parent=65 // pred_check
          %p679 = pneg %p678
        $region72: #{_lambda_.10} parent=65 // pred_check_branch
          %681 = sbr.rel (%p679) target = $region74
        $region73: #{_lambda_.10} parent=65 // pred_region
          %682 = vst [vmem:[#allocation2] sm:$0xff] 0.0
          %683 = vst [vmem:[#allocation2 + $0x8] sm:$0xff] 0.0
        $region74: #{_lambda_.10} parent=65 // pred_fallthru
          _
        %v684 = vld [vmem:[#allocation2] sm:$0xff]
        %v685 = vld [vmem:[#allocation2 + $0x8] sm:$0xff]
        %v686 = vld [vmem:[%s659] sm:$0xff]
        %v687 = vld [vmem:[%s659 + $0x8] sm:$0xff]
        %v688 = vld [vmem:[%s659 + $0x10] sm:$0xff]
        %v689 = vld [vmem:[%s613] sm:$0xff]
        %v690 = vld [vmem:[%s613 + $0x8] sm:$0xff]
        %v691 = vld [vmem:[%s613 + $0x10] sm:$0xff]
        %v692 = vld [vmem:[%s613 + $0x18] sm:$0xff]
        %v693 = vld [vmem:[%s613 + $0x20] sm:$0xff]
        %v694 = vld [vmem:[%s613 + $0x28] sm:$0xff]
        %v695 = vld [vmem:[%s613 + $0x30] sm:$0xff]
        %v696 = vld [vmem:[%s613 + $0x38] sm:$0xff]
        %v697 = vld [vmem:[%s613 + $0x40] sm:$0xff]
        %v698 = vld [vmem:[%s613 + $0x48] sm:$0xff]
        %v699 = vld [vmem:[%s613 + $0x50] sm:$0xff]
        %v700 = vld [vmem:[%s613 + $0x58] sm:$0xff]
        %v701 = vld [vmem:[%s613 + $0x60] sm:$0xff]
        %v702 = vld [vmem:[%s613 + $0x68] sm:$0xff]
        %v703 = vld [vmem:[%s613 + $0x70] sm:$0xff]
        %v704 = vld [vmem:[%s613 + $0x78] sm:$0xff]
        %v705 = vld [vmem:[%s613 + $0x80] sm:$0xff]
        %v706 = vld [vmem:[%s613 + $0x88] sm:$0xff]
        %v707 = vld [vmem:[%s613 + $0x90] sm:$0xff]
        %v708 = vld [vmem:[%s613 + $0x98] sm:$0xff]
        %v709 = vld [vmem:[%s613 + $0xa0] sm:$0xff]
        %v710 = vld [vmem:[%s613 + $0xa8] sm:$0xff]
        %v711 = vld [vmem:[%s613 + $0xb0] sm:$0xff]
        %v712 = vld [vmem:[%s613 + $0xb8] sm:$0xff]
        %v713 = vld [vmem:[%s613 + $0xc0] sm:$0xff]
        %v714 = vld [vmem:[%s613 + $0xc8] sm:$0xff]
        %v715 = vld [vmem:[%s613 + $0xd0] sm:$0xff]
        %v716 = vld [vmem:[%s613 + $0xd8] sm:$0xff]
        %v717 = vld [vmem:[%s613 + $0xe0] sm:$0xff]
        %v718 = vld [vmem:[%s613 + $0xe8] sm:$0xff]
        %v719 = vld [vmem:[%s613 + $0xf0] sm:$0xff]
        %v720 = vld [vmem:[%s613 + $0xf8] sm:$0xff]
        %v721 = vld [vmem:[%s613 + $0x100] sm:$0xff]
        %v722 = vld [vmem:[%s613 + $0x108] sm:$0xff]
        %v723 = vld [vmem:[%s613 + $0x110] sm:$0xff]
        %v724 = vld [vmem:[%s613 + $0x118] sm:$0xff]
        %v725 = vld [vmem:[%s613 + $0x120] sm:$0xff]
        %v726 = vld [vmem:[%s613 + $0x128] sm:$0xff]
        %v727 = vld [vmem:[%s613 + $0x130] sm:$0xff]
        %v728 = vld [vmem:[%s613 + $0x138] sm:$0xff]
        %v729 = vld [vmem:[%s613 + $0x140] sm:$0xff]
        %v730 = vld [vmem:[%s613 + $0x148] sm:$0xff]
        %v731 = vld [vmem:[%s613 + $0x150] sm:$0xff]
        %v732 = vld [vmem:[%s613 + $0x158] sm:$0xff]
        %v733 = vld [vmem:[%s613 + $0x160] sm:$0xff]
        %v734 = vld [vmem:[%s613 + $0x168] sm:$0xff]
        %v735 = vld [vmem:[%s613 + $0x170] sm:$0xff]
        %v736 = vld [vmem:[%s613 + $0x178] sm:$0xff]
        %v737 = vld [vmem:[%s613 + $0x180] sm:$0xff]
        %v738 = vld [vmem:[%s613 + $0x188] sm:$0xff]
        %v739 = vld [vmem:[%s613 + $0x190] sm:$0xff]
        %v740 = vld [vmem:[%s613 + $0x198] sm:$0xff]
        %v741 = vld [vmem:[%s613 + $0x1a0] sm:$0xff]
        %v742 = vld [vmem:[%s613 + $0x1a8] sm:$0xff]
        %v743 = vld [vmem:[%s613 + $0x1b0] sm:$0xff]
        %v744 = vld [vmem:[%s613 + $0x1b8] sm:$0xff]
        %v745 = vld [vmem:[%s613 + $0x1c0] sm:$0xff]
        %v746 = vld [vmem:[%s613 + $0x1c8] sm:$0xff]
        %v747 = vld [vmem:[%s613 + $0x1d0] sm:$0xff]
        %v748 = vld [vmem:[%s613 + $0x1d8] sm:$0xff]
        %v749 = vld [vmem:[%s613 + $0x1e0] sm:$0xff]
        %v750 = vld [vmem:[%s613 + $0x1e8] sm:$0xff]
        %v751 = vld [vmem:[%s613 + $0x1f0] sm:$0xff]
        %v752 = vld [vmem:[%s613 + $0x1f8] sm:$0xff]
        %v753 = vld [vmem:[%s613 + $0x200] sm:$0xff]
        %v754 = vld [vmem:[%s613 + $0x208] sm:$0xff]
        %v755 = vld [vmem:[%s613 + $0x210] sm:$0xff]
        %v756 = vld [vmem:[%s613 + $0x218] sm:$0xff]
        %v757 = vld [vmem:[%s613 + $0x220] sm:$0xff]
        %v758 = vld [vmem:[%s613 + $0x228] sm:$0xff]
        %v759 = vld [vmem:[%s613 + $0x230] sm:$0xff]
        %v760 = vld [vmem:[%s613 + $0x238] sm:$0xff]
        %v761 = vld [vmem:[%s613 + $0x240] sm:$0xff]
        %v762 = vld [vmem:[%s613 + $0x248] sm:$0xff]
        %v763 = vld [vmem:[%s613 + $0x250] sm:$0xff]
        %v764 = vld [vmem:[%s613 + $0x258] sm:$0xff]
        %v765 = vld [vmem:[%s613 + $0x260] sm:$0xff]
        %v766 = vld [vmem:[%s613 + $0x268] sm:$0xff]
        %v767 = vld [vmem:[%s613 + $0x270] sm:$0xff]
        %v768 = vld [vmem:[%s613 + $0x278] sm:$0xff]
        %v769 = vld [vmem:[%s613 + $0x280] sm:$0xff]
        %v770 = vld [vmem:[%s613 + $0x288] sm:$0xff]
        %v771 = vld [vmem:[%s613 + $0x290] sm:$0xff]
        %v772 = vld [vmem:[%s613 + $0x298] sm:$0xff]
        %v773 = vld [vmem:[%s613 + $0x2a0] sm:$0xff]
        %v774 = vld [vmem:[%s613 + $0x2a8] sm:$0xff]
        %v775 = vld [vmem:[%s613 + $0x2b0] sm:$0xff]
        %v776 = vld [vmem:[%s613 + $0x2b8] sm:$0xff]
        %v777 = vld [vmem:[%s613 + $0x2c0] sm:$0xff]
        %v778 = vld [vmem:[%s613 + $0x2c8] sm:$0xff]
        %v779 = vld [vmem:[%s613 + $0x2d0] sm:$0xff]
        %v780 = vld [vmem:[%s613 + $0x2d8] sm:$0xff]
        %v781 = vld [vmem:[%s613 + $0x2e0] sm:$0xff]
        %v782 = vld [vmem:[%s613 + $0x2e8] sm:$0xff]
        %v783 = vld [vmem:[%s613 + $0x2f0] sm:$0xff]
        %v784 = vld [vmem:[%s613 + $0x2f8] sm:$0xff]
        %v788 = vunpack.c.l.b16 %v686
        %v789 = vunpack.c.h.b16 %v686
        %v790 = vunpack.c.l.b16 %v687
        %v791 = vunpack.c.h.b16 %v687
        %v792 = vunpack.c.l.b16 %v688
        %v793 = vunpack.c.h.b16 %v688
        %v794 = vpack.c.b16 %v788, %v788
        %v795 = vpack.c.b16 %v789, %v789
        %v796 = vpack.c.b16 %v790, %v790
        %v797 = vpack.c.b16 %v791, %v791
        %v798 = vpack.c.b16 %v792, %v792
        %v799 = vpack.c.b16 %v793, %v793
        %v902 = vunpack.c.l.b16 %v689
        %v903 = vunpack.c.h.b16 %v689
        %v904 = vunpack.c.l.b16 %v690
        %v905 = vunpack.c.h.b16 %v690
        %v906 = vunpack.c.l.b16 %v691
        %v907 = vunpack.c.h.b16 %v691
        %v908 = vunpack.c.l.b16 %v692
        %v909 = vunpack.c.h.b16 %v692
        %v910 = vunpack.c.l.b16 %v693
        %v911 = vunpack.c.h.b16 %v693
        %v912 = vunpack.c.l.b16 %v694
        %v913 = vunpack.c.h.b16 %v694
        %v914 = vunpack.c.l.b16 %v695
        %v915 = vunpack.c.h.b16 %v695
        %v916 = vunpack.c.l.b16 %v696
        %v917 = vunpack.c.h.b16 %v696
        %v918 = vunpack.c.l.b16 %v697
        %v919 = vunpack.c.h.b16 %v697
        %v920 = vunpack.c.l.b16 %v698
        %v921 = vunpack.c.h.b16 %v698
        %v922 = vunpack.c.l.b16 %v699
        %v923 = vunpack.c.h.b16 %v699
        %v924 = vunpack.c.l.b16 %v700
        %v925 = vunpack.c.h.b16 %v700
        %v926 = vunpack.c.l.b16 %v701
        %v927 = vunpack.c.h.b16 %v701
        %v928 = vunpack.c.l.b16 %v702
        %v929 = vunpack.c.h.b16 %v702
        %v930 = vunpack.c.l.b16 %v703
        %v931 = vunpack.c.h.b16 %v703
        %v932 = vunpack.c.l.b16 %v704
        %v933 = vunpack.c.h.b16 %v704
        %v934 = vunpack.c.l.b16 %v705
        %v935 = vunpack.c.h.b16 %v705
        %v936 = vunpack.c.l.b16 %v706
        %v937 = vunpack.c.h.b16 %v706
        %v938 = vunpack.c.l.b16 %v707
        %v939 = vunpack.c.h.b16 %v707
        %v940 = vunpack.c.l.b16 %v708
        %v941 = vunpack.c.h.b16 %v708
        %v942 = vunpack.c.l.b16 %v709
        %v943 = vunpack.c.h.b16 %v709
        %v944 = vunpack.c.l.b16 %v710
        %v945 = vunpack.c.h.b16 %v710
        %v946 = vunpack.c.l.b16 %v711
        %v947 = vunpack.c.h.b16 %v711
        %v948 = vunpack.c.l.b16 %v712
        %v949 = vunpack.c.h.b16 %v712
        %v950 = vunpack.c.l.b16 %v713
        %v951 = vunpack.c.h.b16 %v713
        %v952 = vunpack.c.l.b16 %v714
        %v953 = vunpack.c.h.b16 %v714
        %v954 = vunpack.c.l.b16 %v715
        %v955 = vunpack.c.h.b16 %v715
        %v956 = vunpack.c.l.b16 %v716
        %v957 = vunpack.c.h.b16 %v716
        %v958 = vunpack.c.l.b16 %v717
        %v959 = vunpack.c.h.b16 %v717
        %v960 = vunpack.c.l.b16 %v718
        %v961 = vunpack.c.h.b16 %v718
        %v962 = vunpack.c.l.b16 %v719
        %v963 = vunpack.c.h.b16 %v719
        %v964 = vunpack.c.l.b16 %v720
        %v965 = vunpack.c.h.b16 %v720
        %v966 = vunpack.c.l.b16 %v721
        %v967 = vunpack.c.h.b16 %v721
        %v968 = vunpack.c.l.b16 %v722
        %v969 = vunpack.c.h.b16 %v722
        %v970 = vunpack.c.l.b16 %v723
        %v971 = vunpack.c.h.b16 %v723
        %v972 = vunpack.c.l.b16 %v724
        %v973 = vunpack.c.h.b16 %v724
        %v974 = vunpack.c.l.b16 %v725
        %v975 = vunpack.c.h.b16 %v725
        %v976 = vunpack.c.l.b16 %v726
        %v977 = vunpack.c.h.b16 %v726
        %v978 = vunpack.c.l.b16 %v727
        %v979 = vunpack.c.h.b16 %v727
        %v980 = vunpack.c.l.b16 %v728
        %v981 = vunpack.c.h.b16 %v728
        %v982 = vunpack.c.l.b16 %v729
        %v983 = vunpack.c.h.b16 %v729
        %v984 = vunpack.c.l.b16 %v730
        %v985 = vunpack.c.h.b16 %v730
        %v986 = vunpack.c.l.b16 %v731
        %v987 = vunpack.c.h.b16 %v731
        %v988 = vunpack.c.l.b16 %v732
        %v989 = vunpack.c.h.b16 %v732
        %v990 = vunpack.c.l.b16 %v733
        %v991 = vunpack.c.h.b16 %v733
        %v992 = vunpack.c.l.b16 %v734
        %v993 = vunpack.c.h.b16 %v734
        %v994 = vunpack.c.l.b16 %v735
        %v995 = vunpack.c.h.b16 %v735
        %v996 = vunpack.c.l.b16 %v736
        %v997 = vunpack.c.h.b16 %v736
        %v998 = vunpack.c.l.b16 %v737
        %v999 = vunpack.c.h.b16 %v737
        %v1000 = vunpack.c.l.b16 %v738
        %v1001 = vunpack.c.h.b16 %v738
        %v1002 = vunpack.c.l.b16 %v739
        %v1003 = vunpack.c.h.b16 %v739
        %v1004 = vunpack.c.l.b16 %v740
        %v1005 = vunpack.c.h.b16 %v740
        %v1006 = vunpack.c.l.b16 %v741
        %v1007 = vunpack.c.h.b16 %v741
        %v1008 = vunpack.c.l.b16 %v742
        %v1009 = vunpack.c.h.b16 %v742
        %v1010 = vunpack.c.l.b16 %v743
        %v1011 = vunpack.c.h.b16 %v743
        %v1012 = vunpack.c.l.b16 %v744
        %v1013 = vunpack.c.h.b16 %v744
        %v1014 = vunpack.c.l.b16 %v745
        %v1015 = vunpack.c.h.b16 %v745
        %v1016 = vunpack.c.l.b16 %v746
        %v1017 = vunpack.c.h.b16 %v746
        %v1018 = vunpack.c.l.b16 %v747
        %v1019 = vunpack.c.h.b16 %v747
        %v1020 = vunpack.c.l.b16 %v748
        %v1021 = vunpack.c.h.b16 %v748
        %v1022 = vunpack.c.l.b16 %v749
        %v1023 = vunpack.c.h.b16 %v749
        %v1024 = vunpack.c.l.b16 %v750
        %v1025 = vunpack.c.h.b16 %v750
        %v1026 = vunpack.c.l.b16 %v751
        %v1027 = vunpack.c.h.b16 %v751
        %v1028 = vunpack.c.l.b16 %v752
        %v1029 = vunpack.c.h.b16 %v752
        %v1030 = vunpack.c.l.b16 %v753
        %v1031 = vunpack.c.h.b16 %v753
        %v1032 = vunpack.c.l.b16 %v754
        %v1033 = vunpack.c.h.b16 %v754
        %v1034 = vunpack.c.l.b16 %v755
        %v1035 = vunpack.c.h.b16 %v755
        %v1036 = vunpack.c.l.b16 %v756
        %v1037 = vunpack.c.h.b16 %v756
        %v1038 = vunpack.c.l.b16 %v757
        %v1039 = vunpack.c.h.b16 %v757
        %v1040 = vunpack.c.l.b16 %v758
        %v1041 = vunpack.c.h.b16 %v758
        %v1042 = vunpack.c.l.b16 %v759
        %v1043 = vunpack.c.h.b16 %v759
        %v1044 = vunpack.c.l.b16 %v760
        %v1045 = vunpack.c.h.b16 %v760
        %v1046 = vunpack.c.l.b16 %v761
        %v1047 = vunpack.c.h.b16 %v761
        %v1048 = vunpack.c.l.b16 %v762
        %v1049 = vunpack.c.h.b16 %v762
        %v1050 = vunpack.c.l.b16 %v763
        %v1051 = vunpack.c.h.b16 %v763
        %v1052 = vunpack.c.l.b16 %v764
        %v1053 = vunpack.c.h.b16 %v764
        %v1054 = vunpack.c.l.b16 %v765
        %v1055 = vunpack.c.h.b16 %v765
        %v1056 = vunpack.c.l.b16 %v766
        %v1057 = vunpack.c.h.b16 %v766
        %v1058 = vunpack.c.l.b16 %v767
        %v1059 = vunpack.c.h.b16 %v767
        %v1060 = vunpack.c.l.b16 %v768
        %v1061 = vunpack.c.h.b16 %v768
        %v1062 = vunpack.c.l.b16 %v769
        %v1063 = vunpack.c.h.b16 %v769
        %v1064 = vunpack.c.l.b16 %v770
        %v1065 = vunpack.c.h.b16 %v770
        %v1066 = vunpack.c.l.b16 %v771
        %v1067 = vunpack.c.h.b16 %v771
        %v1068 = vunpack.c.l.b16 %v772
        %v1069 = vunpack.c.h.b16 %v772
        %v1070 = vunpack.c.l.b16 %v773
        %v1071 = vunpack.c.h.b16 %v773
        %v1072 = vunpack.c.l.b16 %v774
        %v1073 = vunpack.c.h.b16 %v774
        %v1074 = vunpack.c.l.b16 %v775
        %v1075 = vunpack.c.h.b16 %v775
        %v1076 = vunpack.c.l.b16 %v776
        %v1077 = vunpack.c.h.b16 %v776
        %v1078 = vunpack.c.l.b16 %v777
        %v1079 = vunpack.c.h.b16 %v777
        %v1080 = vunpack.c.l.b16 %v778
        %v1081 = vunpack.c.h.b16 %v778
        %v1082 = vunpack.c.l.b16 %v779
        %v1083 = vunpack.c.h.b16 %v779
        %v1084 = vunpack.c.l.b16 %v780
        %v1085 = vunpack.c.h.b16 %v780
        %v1086 = vunpack.c.l.b16 %v781
        %v1087 = vunpack.c.h.b16 %v781
        %v1088 = vunpack.c.l.b16 %v782
        %v1089 = vunpack.c.h.b16 %v782
        %v1090 = vunpack.c.l.b16 %v783
        %v1091 = vunpack.c.h.b16 %v783
        %v1092 = vunpack.c.l.b16 %v784
        %v1093 = vunpack.c.h.b16 %v784
        %v1094 = vpack.c.b16 %v904, %v902
        %v1095 = vpack.c.b16 %v905, %v903
        %v1096 = vpack.c.b16 %v908, %v906
        %v1097 = vpack.c.b16 %v909, %v907
        %v1098 = vpack.c.b16 %v912, %v910
        %v1099 = vpack.c.b16 %v913, %v911
        %v1100 = vpack.c.b16 %v916, %v914
        %v1101 = vpack.c.b16 %v917, %v915
        %v1102 = vpack.c.b16 %v920, %v918
        %v1103 = vpack.c.b16 %v921, %v919
        %v1104 = vpack.c.b16 %v924, %v922
        %v1105 = vpack.c.b16 %v925, %v923
        %v1106 = vpack.c.b16 %v928, %v926
        %v1107 = vpack.c.b16 %v929, %v927
        %v1108 = vpack.c.b16 %v932, %v930
        %v1109 = vpack.c.b16 %v933, %v931
        %v1110 = vpack.c.b16 %v936, %v934
        %v1111 = vpack.c.b16 %v937, %v935
        %v1112 = vpack.c.b16 %v940, %v938
        %v1113 = vpack.c.b16 %v941, %v939
        %v1114 = vpack.c.b16 %v944, %v942
        %v1115 = vpack.c.b16 %v945, %v943
        %v1116 = vpack.c.b16 %v948, %v946
        %v1117 = vpack.c.b16 %v949, %v947
        %v1118 = vpack.c.b16 %v952, %v950
        %v1119 = vpack.c.b16 %v953, %v951
        %v1120 = vpack.c.b16 %v956, %v954
        %v1121 = vpack.c.b16 %v957, %v955
        %v1122 = vpack.c.b16 %v960, %v958
        %v1123 = vpack.c.b16 %v961, %v959
        %v1124 = vpack.c.b16 %v964, %v962
        %v1125 = vpack.c.b16 %v965, %v963
        %v1126 = vpack.c.b16 %v968, %v966
        %v1127 = vpack.c.b16 %v969, %v967
        %v1128 = vpack.c.b16 %v972, %v970
        %v1129 = vpack.c.b16 %v973, %v971
        %v1130 = vpack.c.b16 %v976, %v974
        %v1131 = vpack.c.b16 %v977, %v975
        %v1132 = vpack.c.b16 %v980, %v978
        %v1133 = vpack.c.b16 %v981, %v979
        %v1134 = vpack.c.b16 %v984, %v982
        %v1135 = vpack.c.b16 %v985, %v983
        %v1136 = vpack.c.b16 %v988, %v986
        %v1137 = vpack.c.b16 %v989, %v987
        %v1138 = vpack.c.b16 %v992, %v990
        %v1139 = vpack.c.b16 %v993, %v991
        %v1140 = vpack.c.b16 %v996, %v994
        %v1141 = vpack.c.b16 %v997, %v995
        %v1142 = vpack.c.b16 %v1000, %v998
        %v1143 = vpack.c.b16 %v1001, %v999
        %v1144 = vpack.c.b16 %v1004, %v1002
        %v1145 = vpack.c.b16 %v1005, %v1003
        %v1146 = vpack.c.b16 %v1008, %v1006
        %v1147 = vpack.c.b16 %v1009, %v1007
        %v1148 = vpack.c.b16 %v1012, %v1010
        %v1149 = vpack.c.b16 %v1013, %v1011
        %v1150 = vpack.c.b16 %v1016, %v1014
        %v1151 = vpack.c.b16 %v1017, %v1015
        %v1152 = vpack.c.b16 %v1020, %v1018
        %v1153 = vpack.c.b16 %v1021, %v1019
        %v1154 = vpack.c.b16 %v1024, %v1022
        %v1155 = vpack.c.b16 %v1025, %v1023
        %v1156 = vpack.c.b16 %v1028, %v1026
        %v1157 = vpack.c.b16 %v1029, %v1027
        %v1158 = vpack.c.b16 %v1032, %v1030
        %v1159 = vpack.c.b16 %v1033, %v1031
        %v1160 = vpack.c.b16 %v1036, %v1034
        %v1161 = vpack.c.b16 %v1037, %v1035
        %v1162 = vpack.c.b16 %v1040, %v1038
        %v1163 = vpack.c.b16 %v1041, %v1039
        %v1164 = vpack.c.b16 %v1044, %v1042
        %v1165 = vpack.c.b16 %v1045, %v1043
        %v1166 = vpack.c.b16 %v1048, %v1046
        %v1167 = vpack.c.b16 %v1049, %v1047
        %v1168 = vpack.c.b16 %v1052, %v1050
        %v1169 = vpack.c.b16 %v1053, %v1051
        %v1170 = vpack.c.b16 %v1056, %v1054
        %v1171 = vpack.c.b16 %v1057, %v1055
        %v1172 = vpack.c.b16 %v1060, %v1058
        %v1173 = vpack.c.b16 %v1061, %v1059
        %v1174 = vpack.c.b16 %v1064, %v1062
        %v1175 = vpack.c.b16 %v1065, %v1063
        %v1176 = vpack.c.b16 %v1068, %v1066
        %v1177 = vpack.c.b16 %v1069, %v1067
        %v1178 = vpack.c.b16 %v1072, %v1070
        %v1179 = vpack.c.b16 %v1073, %v1071
        %v1180 = vpack.c.b16 %v1076, %v1074
        %v1181 = vpack.c.b16 %v1077, %v1075
        %v1182 = vpack.c.b16 %v1080, %v1078
        %v1183 = vpack.c.b16 %v1081, %v1079
        %v1184 = vpack.c.b16 %v1084, %v1082
        %v1185 = vpack.c.b16 %v1085, %v1083
        %v1186 = vpack.c.b16 %v1088, %v1086
        %v1187 = vpack.c.b16 %v1089, %v1087
        %v1188 = vpack.c.b16 %v1092, %v1090
        %v1189 = vpack.c.b16 %v1093, %v1091
        %1286 = vmatprep.subr.bf16.mxu0 %v1095
        %1287 = vmatpush1.bf16.msra.mxu0 %v1094
        %1288 = vmatprep.subr.bf16.mxu0 %v1097
        %1289 = vmatpush1.bf16.msra.mxu0 %v1096
        %1290 = vmatprep.subr.bf16.mxu0 %v1099
        %1291 = vmatpush1.bf16.msra.mxu0 %v1098
        %1292 = vmatprep.subr.bf16.mxu0 %v1101
        %1293 = vmatpush1.bf16.msra.mxu0 %v1100
        %1294 = vmatprep.subr.bf16.mxu0 %v1103
        %1295 = vmatpush1.bf16.msra.mxu0 %v1102
        %1296 = vmatprep.subr.bf16.mxu0 %v1105
        %1297 = vmatpush1.bf16.msra.mxu0 %v1104
        %1298 = vmatprep.subr.bf16.mxu0 %v1107
        %1299 = vmatpush1.bf16.msra.mxu0 %v1106
        %1300 = vmatprep.subr.bf16.mxu0 %v1109
        %1301 = vmatpush1.bf16.msra.mxu0 %v1108
        %1302 = vmatprep.subr.bf16.mxu0 %v1111
        %1303 = vmatpush1.bf16.msra.mxu0 %v1110
        %1304 = vmatprep.subr.bf16.mxu0 %v1113
        %1305 = vmatpush1.bf16.msra.mxu0 %v1112
        %1306 = vmatprep.subr.bf16.mxu0 %v1115
        %1307 = vmatpush1.bf16.msra.mxu0 %v1114
        %1308 = vmatprep.subr.bf16.mxu0 %v1117
        %1309 = vmatpush1.bf16.msra.mxu0 %v1116
        %1310 = vmatprep.subr.bf16.mxu0 %v1119
        %1311 = vmatpush1.bf16.msra.mxu0 %v1118
        %1312 = vmatprep.subr.bf16.mxu0 %v1121
        %1313 = vmatpush1.bf16.msra.mxu0 %v1120
        %1314 = vmatprep.subr.bf16.mxu0 %v1123
        %1315 = vmatpush1.bf16.msra.mxu0 %v1122
        %1316 = vmatprep.subr.bf16.mxu0 %v1125
        %1317 = vmatpush1.bf16.msra.mxu0 %v1124
        %1318 = vmatprep.mubr.bf16.mxu0 %v795
        %1319 = vmatmul.mubr.bf16.gmra.mrb[0].mxu0 %v794
        %v1320 = vpop.f32.mrb[0].mxu0
        %v1321 = vadd.f32 0.0, %v1320
        %v1322 = vpop.f32.mrb[0].mxu0
        %v1323 = vadd.f32 0.0, %v1322
        %v1324 = vpop.f32.mrb[0].mxu0
        %v1325 = vpop.f32.mrb[0].mxu0
        %1326 = vdwg.mxu0
        %1327 = vmatprep.subr.bf16.mxu0 %v1127
        %1328 = vmatpush1.bf16.msra.mxu0 %v1126
        %1329 = vmatprep.subr.bf16.mxu0 %v1129
        %1330 = vmatpush1.bf16.msra.mxu0 %v1128
        %1331 = vmatprep.subr.bf16.mxu0 %v1131
        %1332 = vmatpush1.bf16.msra.mxu0 %v1130
        %1333 = vmatprep.subr.bf16.mxu0 %v1133
        %1334 = vmatpush1.bf16.msra.mxu0 %v1132
        %1335 = vmatprep.subr.bf16.mxu0 %v1135
        %1336 = vmatpush1.bf16.msra.mxu0 %v1134
        %1337 = vmatprep.subr.bf16.mxu0 %v1137
        %1338 = vmatpush1.bf16.msra.mxu0 %v1136
        %1339 = vmatprep.subr.bf16.mxu0 %v1139
        %1340 = vmatpush1.bf16.msra.mxu0 %v1138
        %1341 = vmatprep.subr.bf16.mxu0 %v1141
        %1342 = vmatpush1.bf16.msra.mxu0 %v1140
        %1343 = vmatprep.subr.bf16.mxu0 %v1143
        %1344 = vmatpush1.bf16.msra.mxu0 %v1142
        %1345 = vmatprep.subr.bf16.mxu0 %v1145
        %1346 = vmatpush1.bf16.msra.mxu0 %v1144
        %1347 = vmatprep.subr.bf16.mxu0 %v1147
        %1348 = vmatpush1.bf16.msra.mxu0 %v1146
        %1349 = vmatprep.subr.bf16.mxu0 %v1149
        %1350 = vmatpush1.bf16.msra.mxu0 %v1148
        %1351 = vmatprep.subr.bf16.mxu0 %v1151
        %1352 = vmatpush1.bf16.msra.mxu0 %v1150
        %1353 = vmatprep.subr.bf16.mxu0 %v1153
        %1354 = vmatpush1.bf16.msra.mxu0 %v1152
        %1355 = vmatprep.subr.bf16.mxu0 %v1155
        %1356 = vmatpush1.bf16.msra.mxu0 %v1154
        %1357 = vmatprep.subr.bf16.mxu0 %v1157
        %1358 = vmatpush1.bf16.msra.mxu0 %v1156
        %1359 = vmatprep.mubr.bf16.mxu0 %v797
        %1360 = vmatmul.mubr.bf16.gmra.mrb[0].mxu0 %v796
        %v1361 = vpop.f32.mrb[0].mxu0
        %v1362 = vadd.f32 %v1321, %v1361
        %v1363 = vpop.f32.mrb[0].mxu0
        %v1364 = vadd.f32 %v1323, %v1363
        %v1365 = vpop.f32.mrb[0].mxu0
        %v1366 = vpop.f32.mrb[0].mxu0
        %1367 = vdwg.mxu0
        %1368 = vmatprep.subr.bf16.mxu0 %v1159
        %1369 = vmatpush1.bf16.msra.mxu0 %v1158
        %1370 = vmatprep.subr.bf16.mxu0 %v1161
        %1371 = vmatpush1.bf16.msra.mxu0 %v1160
        %1372 = vmatprep.subr.bf16.mxu0 %v1163
        %1373 = vmatpush1.bf16.msra.mxu0 %v1162
        %1374 = vmatprep.subr.bf16.mxu0 %v1165
        %1375 = vmatpush1.bf16.msra.mxu0 %v1164
        %1376 = vmatprep.subr.bf16.mxu0 %v1167
        %1377 = vmatpush1.bf16.msra.mxu0 %v1166
        %1378 = vmatprep.subr.bf16.mxu0 %v1169
        %1379 = vmatpush1.bf16.msra.mxu0 %v1168
        %1380 = vmatprep.subr.bf16.mxu0 %v1171
        %1381 = vmatpush1.bf16.msra.mxu0 %v1170
        %1382 = vmatprep.subr.bf16.mxu0 %v1173
        %1383 = vmatpush1.bf16.msra.mxu0 %v1172
        %1384 = vmatprep.subr.bf16.mxu0 %v1175
        %1385 = vmatpush1.bf16.msra.mxu0 %v1174
        %1386 = vmatprep.subr.bf16.mxu0 %v1177
        %1387 = vmatpush1.bf16.msra.mxu0 %v1176
        %1388 = vmatprep.subr.bf16.mxu0 %v1179
        %1389 = vmatpush1.bf16.msra.mxu0 %v1178
        %1390 = vmatprep.subr.bf16.mxu0 %v1181
        %1391 = vmatpush1.bf16.msra.mxu0 %v1180
        %1392 = vmatprep.subr.bf16.mxu0 %v1183
        %1393 = vmatpush1.bf16.msra.mxu0 %v1182
        %1394 = vmatprep.subr.bf16.mxu0 %v1185
        %1395 = vmatpush1.bf16.msra.mxu0 %v1184
        %1396 = vmatprep.subr.bf16.mxu0 %v1187
        %1397 = vmatpush1.bf16.msra.mxu0 %v1186
        %1398 = vmatprep.subr.bf16.mxu0 %v1189
        %1399 = vmatpush1.bf16.msra.mxu0 %v1188
        %1400 = vmatprep.mubr.bf16.mxu0 %v799
        %1401 = vmatmul.mubr.bf16.gmra.mrb[0].mxu0 %v798
        %v1402 = vpop.f32.mrb[0].mxu0
        %v1403 = vadd.f32 %v1362, %v1402
        %v1404 = vpop.f32.mrb[0].mxu0
        %v1405 = vadd.f32 %v1364, %v1404
        %v1406 = vpop.f32.mrb[0].mxu0
        %v1407 = vpop.f32.mrb[0].mxu0
        %1408 = vdwg.mxu0
        %v1409 = vadd.f32 %v684, %v1403
        %v1410 = vadd.f32 %v685, %v1405
        %1411 = vst [vmem:[#allocation2] sm:$0xff] %v1409
        %1412 = vst [vmem:[#allocation2 + $0x8] sm:$0xff] %v1410
        %p1413 = scmp.eq.s32.totalorder %s21, 2
        // Predicated region
        $region75: #{_lambda_.10} parent=65 // pred_check
          %p1414 = pneg %p1413
        $region76: #{_lambda_.10} parent=65 // pred_check_branch
          %1416 = sbr.rel (%p1414) target = $region78
        $region77: #{_lambda_.10} parent=65 // pred_region
          %v1417 = vld [vmem:[#allocation2] sm:$0xff]
          %v1418 = vld [vmem:[#allocation2 + $0x8] sm:$0xff]
          %v1419 = vld [vmem:[%s666] sm:$0x3]
          %v1421 = vlaneseq
          %v1422 = vshrl.u32 %v1421, 7
          %v1423 = vsub.s32 0, %v1422
          %v1424 = vrot.slane %v1419, %v1423
          %v1425 = vlaneseq
          %v1426 = vshrl.u32 %v1425, 7
          %v1427 = vsub.s32 1, %v1426
          %v1428 = vrot.slane %v1419, %v1427
          %v1431 = vadd.f32 %v1417, %v1424
          %v1432 = vadd.f32 %v1418, %v1428
          %v1433 = vmax.f32 %v1431, 0.0
          %v1434 = vmax.f32 %v1432, 0.0
          %1435 = vst [vmem:[%s676] sm:$0xff] %v1433
          %1436 = vst [vmem:[%s676 + $0x8] sm:$0xff] %v1434
        $region78: #{_lambda_.10} parent=65 // pred_fallthru
          _
        %s1437 = smul.u32 2, %s20
        %p1438 = scmp.lt.s32.totalorder %s19, 0
        %s1439 = scalar_select %p1438, %s19, 0
        %p1440 = scmp.lt.s32.totalorder %s1437, 3
        %s1441 = scalar_select %p1440, %s1437, 3
        %s1442 = smul.addr %s1439, 4
        %s1443 = sadd.s32 %s1441, %s1442
        %s1444 = smul.addr %s1443, 8
        %s1445 = scalar_lea.vmem %s3, %s1444
        // Predicated region
        $region79: #{_lambda_.10} parent=65 // pred_check
          %p1446 = pneg %p135
        $region80: #{_lambda_.10} parent=65 // pred_check_branch
          %1448 = sbr.rel (%p1446) target = $region82
        $region81: #{_lambda_.10} parent=65 // pred_region
          %s1449 = smul.u32 2, %s20
        $region82: #{_lambda_.10} parent=65 // pred_fallthru
          _
      $region66: #{_lambda_.10} parent=5 // pred_fallthru
        _
      %p1450 = scmp.le.s32.totalorder 2, %s9
      // Predicated region
      $region83: #{_lambda_.10} parent=5 // pred_check
        %p1451 = pneg %p1450
      $region84: #{_lambda_.10} parent=5 // pred_check_branch
        %1453 = sbr.rel (%p1451) target = $region86
      $region85: #{_lambda_.10} parent=5 // pred_region
        %s1454 = ssub.s32 %s9, 2
        // Predicated region
        $region87: #{_lambda_.10} parent=85 // pred_check
          %p1455 = pneg %p141
        $region88: #{_lambda_.10} parent=85 // pred_check_branch
          %1457 = sbr.rel (%p1455) target = $region90
        $region89: #{_lambda_.10} parent=85 // pred_region
          %s1458 = smul.u32 2, %s23
          %p1459 = scmp.lt.s32.totalorder %s22, 0
          %s1460 = scalar_select %p1459, %s22, 0
          %p1461 = scmp.lt.s32.totalorder %s1458, 3
          %s1462 = scalar_select %p1461, %s1458, 3
          %s1463 = smul.addr %s1460, 4
          %s1464 = sadd.s32 %s1462, %s1463
          %s1465 = smul.addr %s1464, 8
          %s1466 = scalar_lea.vmem %s3, %s1465
        $region90: #{_lambda_.10} parent=85 // pred_fallthru
          _
      $region86: #{_lambda_.10} parent=5 // pred_fallthru
        _
    $region6: #{_lambda_.10} parent=1 // loop_footer
      %s13 = sadd.s32 1, %s9
    $region7: #{_lambda_.10} parent=1 // loop_footer_branch
      %8 = sbr.rel target = $region3
    $region8: #{_lambda_.10} parent=1 // loop_exit
      _

// kernel: tile.22
$region0: #{tile.22}
  #allocation0 [shape = 's32[1]{0}', space=sflag, size = 0x4, scoped, tag = 'scoped memory for tile.22']
  %s0 = inlined_call_operand.vmem [shape: f32[64], index: 0, kind: input, shape index: {}]
  %s1 = inlined_call_operand.vmem [shape: f32[4,64], index: 1, kind: output, shape index: {}]
  // Predicated region
  $region2: #{tile.22} parent=0 // pred_check
    _
  $region3: #{tile.22} parent=0 // pred_check_branch
    %3 = sbr.rel (0) target = $region5
  $region4: #{tile.22} parent=0 // pred_region
    _
  $region5: #{tile.22} parent=0 // pred_fallthru
    _
  %v4 = vld [vmem:[%s0] ss:$0 sm:$0xff]
  %5 = vst [vmem:[%s1] sm:$0xf] %v4

// kernel: tile.28
$region0: #{tile.28}
  %s0 = inlined_call_operand.vmem [shape: f32[4,64], index: 0, kind: input, shape index: {}]
  %s1 = inlined_call_operand.vmem [shape: f32[1,256], index: 1, kind: output, shape index: {}]
  $region1: #{tile.28} parent=0
    #allocation0 [shape = 'u8[8192]{0}', space=vmem, size = 0x2000, scoped, tag = 'scoped mem for output reshape']
    #allocation1 [shape = 'u8[4096]{0}', space=vmem, size = 0x1000, scoped, tag = 'scoped mem for input reshape']
    %s3 = sshllo.u32 0, 4
    %v4 = vld [vmem:[%s0] sm:%s3]
    %5 = vst [vmem:[#allocation1] sm:%s3] %v4
    %s6 = smov 3
    %v7 = vld [vmem:[#allocation1] ss:$2 sm:%s6]
    %vm8 = vcmask 523264
    %9 = vst.msk [vmem:[#allocation0] ss:$8 sm:$0x3] %vm8, %v7
    %s10 = scalar_lea.vmem [#allocation1], 1
    %s11 = smov 3
    %v12 = vld [vmem:[%s10] ss:$2 sm:%s11]
    %13 = vrot.lane.b32.xlu0 %v12, 64
    %v14 = vpop.permute.xlu0 %13
    %vm15 = vcmask 1048064
    %16 = vst.msk [vmem:[#allocation0] ss:$8 sm:$0x3] %vm15, %v14
    %s18 = sshllo.u32 0, 1
    %v20 = vld [vmem:[#allocation0] sm:%s18]
    %s21 = sshllo.u32 0, 1
    %22 = vst [vmem:[%s1] sm:%s21] %v20
    %s23 = scalar_lea.vmem [#allocation0], 8
    %v24 = vld [vmem:[%s23] sm:%s18]
    %s25 = sshllo.u32 0, 1
    %s26 = scalar_lea.vmem %s1, 1
    %27 = vst [vmem:[%s26] sm:%s25] %v24

// kernel: _lambda_.11
$region0: #{_lambda_.11}
  #allocation0 [shape = 'u32[]', space=smem, size = 0x4, offset = 0x4, fixed_abs, tag = 'smem constant byte address 0x4 - core index']
  #allocation1 [shape = 'u32[144,128]{1,0:T(1,128)}', space=vmem, size = 0x12000, scoped, tag = 'internal scratch']
  #allocation2 [shape = 'f32[32,256]{1,0:T(8,128)}', space=vmem, size = 0x8000, scoped, tag = 'scratch operand']
  %s0 = inlined_call_operand.vmem [shape: bf16[32,1152], index: 0, kind: input, shape index: {}]
  %s1 = inlined_call_operand.vmem [shape: bf16[1152,256], index: 1, kind: input, shape index: {}]
  %s2 = inlined_call_operand.vmem [shape: f32[1,256], index: 2, kind: input, shape index: {}]
  %s3 = inlined_call_operand.vmem [shape: f32[32,256], index: 3, kind: output, shape index: {}]
  %s4 = sld [smem:[#allocation0]]
  $region79: #{_lambda_.11} parent=0
    _
  %s6 = ssub.s32 1, %s4
  %s7 = scalar_select 0, %s6, %s4
  $region1: #{_lambda_.11} parent=0
    #allocation3 [shape = 'u8[49152]{0}', space=vmem, size = 0xc000, scoped, tag = 'input window, operand 0']
    loop: start=0, step=1, limit=5
    $region2: #{_lambda_.11} parent=1 // loop_pre_header
      _
    $region3: #{_lambda_.11} parent=1 // loop_header
      %s9 = sphi 0, %s13
      %p10 = scmp.ge.s32.totalorder %s9, 5
      %s16 = sphi 0, %s35
      %s17 = sphi 0, %s31
      %s18 = sphi 0, %s27
      %s19 = sphi 0, %s16
      %s20 = sphi 0, %s17
      %s21 = sphi 0, %s18
      %s22 = sphi 0, %s19
      %s23 = sphi 0, %s20
      %s24 = sphi 0, %s21
      %s40 = sphi 0, %s42
      %s43 = sphi 0, %s40
      %s44 = sphi 0, %s43
      %s60 = sphi 0, %s44
      %s68 = sphi 0, %s70
      %s71 = sphi 0, %s68
      %s72 = sphi 0, %s71
      %s88 = sphi 0, %s72
      %s94 = sphi 0, %s96
      %s97 = sphi 0, %s94
      %s98 = sphi 0, %s97
      %s114 = sphi 0, %s98
      %s122 = sphi 0, %s124
      %s125 = sphi 0, %s122
      %s126 = sphi 0, %s125
      %s142 = sphi 0, %s126
    $region4: #{_lambda_.11} parent=1 // loop_header_branch
      %12 = sbr.rel (%p10) target = $region8
    $region5: #{_lambda_.11} parent=1 // loop_body
      %s14 = ssub.s32 %s9, 1
      %s15 = ssub.s32 %s9, 2
      %s25 = sadd.s32 1, %s18
      %p26 = scmp.ge.s32.totalorder %s25, 3
      %s27 = scalar_select %p26, 0, %s25
      %s28 = sadd.s32 1, %s17
      %s29 = scalar_select %p26, %s28, %s17
      %p30 = scmp.ge.s32.totalorder %s29, 1
      %s31 = scalar_select %p30, 0, %s29
      %s32 = sadd.s32 1, %s16
      %s33 = scalar_select %p30, %s32, %s16
      %p34 = scmp.ge.s32.totalorder %s33, 1
      %s35 = scalar_select %p34, 0, %s33
      %s36 = ssub.s32 %s16, %s35
      %s37 = ssub.s32 %s18, %s27
      %s38 = sor.u32 %s36, %s37
      %p39 = scmp.eq.s32.totalorder %s38, 0
      %s41 = sadd.s32 %s40, 1
      %s42 = scalar_select %p39, %s40, %s41
      %p45 = pneg %p39
      %p46 = scmp.eq.s32.totalorder %s9, 2
      %p47 = por %p45, %p46
      %p48 = scmp.ne.s32.totalorder %s40, %s43
      %p49 = scmp.eq.s32.totalorder %s9, 0
      %p50 = por %p48, %p49
      %p51 = scmp.ne.s32.totalorder %s40, %s43
      %p52 = scmp.eq.s32.totalorder %s14, 2
      %p53 = por %p51, %p52
      %p54 = scmp.ne.s32.totalorder %s43, %s44
      %p55 = scmp.eq.s32.totalorder %s14, 0
      %p56 = por %p54, %p55
      %p57 = scmp.ne.s32.totalorder %s43, %s44
      %p58 = scmp.eq.s32.totalorder %s15, 2
      %p59 = por %p57, %p58
      %p61 = scmp.ne.s32.totalorder %s44, %s60
      %p62 = scmp.eq.s32.totalorder %s15, 0
      %p63 = por %p61, %p62
      %s64 = ssub.s32 %s18, %s27
      %s65 = ssub.s32 %s17, %s31
      %s66 = sor.u32 %s64, %s65
      %p67 = scmp.eq.s32.totalorder %s66, 0
      %s69 = sadd.s32 %s68, 1
      %s70 = scalar_select %p67, %s68, %s69
      %p73 = pneg %p67
      %p74 = scmp.eq.s32.totalorder %s9, 2
      %p75 = por %p73, %p74
      %p76 = scmp.ne.s32.totalorder %s68, %s71
      %p77 = scmp.eq.s32.totalorder %s9, 0
      %p78 = por %p76, %p77
      %p79 = scmp.ne.s32.totalorder %s68, %s71
      %p80 = scmp.eq.s32.totalorder %s14, 2
      %p81 = por %p79, %p80
      %p82 = scmp.ne.s32.totalorder %s71, %s72
      %p83 = scmp.eq.s32.totalorder %s14, 0
      %p84 = por %p82, %p83
      %p85 = scmp.ne.s32.totalorder %s71, %s72
      %p86 = scmp.eq.s32.totalorder %s15, 2
      %p87 = por %p85, %p86
      %p89 = scmp.ne.s32.totalorder %s72, %s88
      %p90 = scmp.eq.s32.totalorder %s15, 0
      %p91 = por %p89, %p90
      %s92 = ssub.s32 %s17, %s31
      %p93 = scmp.eq.s32.totalorder %s92, 0
      %s95 = sadd.s32 %s94, 1
      %s96 = scalar_select %p93, %s94, %s95
      %p99 = pneg %p93
      %p100 = scmp.eq.s32.totalorder %s9, 2
      %p101 = por %p99, %p100
      %p102 = scmp.ne.s32.totalorder %s94, %s97
      %p103 = scmp.eq.s32.totalorder %s9, 0
      %p104 = por %p102, %p103
      %p105 = scmp.ne.s32.totalorder %s94, %s97
      %p106 = scmp.eq.s32.totalorder %s14, 2
      %p107 = por %p105, %p106
      %p108 = scmp.ne.s32.totalorder %s97, %s98
      %p109 = scmp.eq.s32.totalorder %s14, 0
      %p110 = por %p108, %p109
      %p111 = scmp.ne.s32.totalorder %s97, %s98
      %p112 = scmp.eq.s32.totalorder %s15, 2
      %p113 = por %p111, %p112
      %p115 = scmp.ne.s32.totalorder %s98, %s114
      %p116 = scmp.eq.s32.totalorder %s15, 0
      %p117 = por %p115, %p116
      %s118 = ssub.s32 %s16, %s35
      %s119 = ssub.s32 %s17, %s31
      %s120 = sor.u32 %s118, %s119
      %p121 = scmp.eq.s32.totalorder %s120, 0
      %s123 = sadd.s32 %s122, 1
      %s124 = scalar_select %p121, %s122, %s123
      %p127 = pneg %p121
      %p128 = scmp.eq.s32.totalorder %s9, 2
      %p129 = por %p127, %p128
      %p130 = scmp.ne.s32.totalorder %s122, %s125
      %p131 = scmp.eq.s32.totalorder %s9, 0
      %p132 = por %p130, %p131
      %p133 = scmp.ne.s32.totalorder %s122, %s125
      %p134 = scmp.eq.s32.totalorder %s14, 2
      %p135 = por %p133, %p134
      %p136 = scmp.ne.s32.totalorder %s125, %s126
      %p137 = scmp.eq.s32.totalorder %s14, 0
      %p138 = por %p136, %p137
      %p139 = scmp.ne.s32.totalorder %s125, %s126
      %p140 = scmp.eq.s32.totalorder %s15, 2
      %p141 = por %p139, %p140
      %p143 = scmp.ne.s32.totalorder %s126, %s142
      %p144 = scmp.eq.s32.totalorder %s15, 0
      %p145 = por %p143, %p144
      %p146 = scmp.le.s32.totalorder 1, %s9
      %p147 = scmp.lt.s32.totalorder %s9, 4
      %p148 = pnand %p146, %p147
      %p149 = pneg %p148
      // Predicated region
      $region9: #{_lambda_.11} parent=5 // pred_check
        _
      $region10: #{_lambda_.11} parent=5 // pred_check_branch
        %151 = sbr.rel (%p148) target = $region12
      $region11: #{_lambda_.11} parent=5 // pred_region
        %s152 = ssub.s32 %s9, 1
        // Predicated region
        $region13: #{_lambda_.11} parent=11 // pred_check
          %p153 = pneg %p110
        $region14: #{_lambda_.11} parent=11 // pred_check_branch
          %155 = sbr.rel (%p153) target = $region16
        $region15: #{_lambda_.11} parent=11 // pred_region
          %s156 = smul.u32 2, %s20
          %p157 = scmp.lt.s32.totalorder %s156, 1
          %s158 = scalar_select %p157, %s156, 1
          %s159 = scalar_lea.vmem %s2, %s158
          %s160 = smul.u32 2, %s20
        $region16: #{_lambda_.11} parent=11 // pred_fallthru
          _
      $region12: #{_lambda_.11} parent=5 // pred_fallthru
        _
      %p161 = scmp.lt.s32.totalorder %s9, 3
      // Predicated region
      $region17: #{_lambda_.11} parent=5 // pred_check
        %p162 = pneg %p161
      $region18: #{_lambda_.11} parent=5 // pred_check_branch
        %164 = sbr.rel (%p162) target = $region20
      $region19: #{_lambda_.11} parent=5 // pred_region
        // Predicated region
        $region21: #{_lambda_.11} parent=19 // pred_check
          %p165 = pneg %p50
        $region22: #{_lambda_.11} parent=19 // pred_check_branch
          %167 = sbr.rel (%p165) target = $region24
        $region23: #{_lambda_.11} parent=19 // pred_region
          %s168 = sand.u32 %s40, 1
          %s169 = sand.u32 %s40, 1
          %s170 = smul.addr %s169, 48
          %s171 = scalar_lea.vmem [#allocation3], %s170
          %s172 = smul.u32 4, %s16
          %s173 = smul.u32 3, %s18
          %s174 = smul.addr %s172, 9
          %s175 = sadd.s32 %s173, %s174
          %s176 = smul.addr %s175, 4
          %s177 = scalar_lea.vmem %s0, %s176
          // Predicated region
          $region25: #{_lambda_.11} parent=23 // pred_check
            _
          $region26: #{_lambda_.11} parent=23 // pred_check_branch
            %179 = sbr.rel (0) target = $region28
          $region27: #{_lambda_.11} parent=23 // pred_region
            // Predicated region
            $region29: #{_lambda_.11} parent=27 // pred_check
              _
            $region30: #{_lambda_.11} parent=27 // pred_check_branch
              %181 = sbr.rel (0) target = $region32
            $region31: #{_lambda_.11} parent=27 // pred_region
              %s182 = scalar_lea.vmem %s177, 8
              %s183 = scalar_lea.vmem %s171, 8 [#allocation3]
              loop: start=0, step=1, limit=1
              $region33: #{_lambda_.11} parent=31 // loop_pre_header
                _
              $region34: #{_lambda_.11} parent=31 // loop_header
                %s185 = sphi 0, %s189
                %p186 = scmp.ge.s32.totalorder %s185, 1
                %s190 = sphi %s177, %s177
                %s191 = sphi %s171, %s171
              $region35: #{_lambda_.11} parent=31 // loop_header_branch
                %188 = sbr.rel (%p186) target = $region39
              $region36: #{_lambda_.11} parent=31 // loop_body
                %v192 = vld [vmem:[%s190] sm:$0xff]
                %193 = vst [vmem:[%s191] sm:$0xff] %v192
                %v194 = vld [vmem:[%s190 + $0x24] sm:$0xff]
                %195 = vst [vmem:[%s191 + $0xc] sm:$0xff] %v194
                %v196 = vld [vmem:[%s190 + $0x48] sm:$0xff]
                %197 = vst [vmem:[%s191 + $0x18] sm:$0xff] %v196
                %v198 = vld [vmem:[%s190 + $0x6c] sm:$0xff]
                %199 = vst [vmem:[%s191 + $0x24] sm:$0xff] %v198
              $region37: #{_lambda_.11} parent=31 // loop_footer
                %s189 = sadd.s32 1, %s185
              $region38: #{_lambda_.11} parent=31 // loop_footer_branch
                %184 = sbr.rel target = $region34
              $region39: #{_lambda_.11} parent=31 // loop_exit
                _
              loop: start=0, step=1, limit=1
              $region40: #{_lambda_.11} parent=31 // loop_pre_header
                _
              $region41: #{_lambda_.11} parent=31 // loop_header
                %s202 = sphi 0, %s206
                %p203 = scmp.ge.s32.totalorder %s202, 1
                %s207 = sphi %s182, %s182
                %s208 = sphi %s183, %s183
              $region42: #{_lambda_.11} parent=31 // loop_header_branch
                %205 = sbr.rel (%p203) target = $region46
              $region43: #{_lambda_.11} parent=31 // loop_body
                %v209 = vld [vmem:[%s207] sm:$0xf]
                %210 = vst [vmem:[%s208] sm:$0xf] %v209
                %v211 = vld [vmem:[%s207 + $0x24] sm:$0xf]
                %212 = vst [vmem:[%s208 + $0xc] sm:$0xf] %v211
                %v213 = vld [vmem:[%s207 + $0x48] sm:$0xf]
                %214 = vst [vmem:[%s208 + $0x18] sm:$0xf] %v213
                %v215 = vld [vmem:[%s207 + $0x6c] sm:$0xf]
                %216 = vst [vmem:[%s208 + $0x24] sm:$0xf] %v215
              $region44: #{_lambda_.11} parent=31 // loop_footer
                %s206 = sadd.s32 1, %s202
              $region45: #{_lambda_.11} parent=31 // loop_footer_branch
                %201 = sbr.rel target = $region41
              $region46: #{_lambda_.11} parent=31 // loop_exit
                _
            $region32: #{_lambda_.11} parent=27 // pred_fallthru
              _
          $region28: #{_lambda_.11} parent=23 // pred_fallthru
            _
          %217 = vnop
        $region24: #{_lambda_.11} parent=19 // pred_fallthru
          _
        // Predicated region
        $region47: #{_lambda_.11} parent=19 // pred_check
          %p218 = pneg %p78
        $region48: #{_lambda_.11} parent=19 // pred_check_branch
          %220 = sbr.rel (%p218) target = $region50
        $region49: #{_lambda_.11} parent=19 // pred_region
          %s221 = smul.u32 48, %s18
          %s222 = smul.u32 2, %s17
          %p223 = scmp.lt.s32.totalorder %s221, 143
          %s224 = scalar_select %p223, %s221, 143
          %p225 = scmp.lt.s32.totalorder %s222, 1
          %s226 = scalar_select %p225, %s222, 1
          %s227 = smul.addr %s224, 2
          %s228 = sadd.s32 %s226, %s227
          %s229 = smul.addr %s228, 4
          %s230 = scalar_lea.vmem %s1, %s229
          %s231 = smul.u32 48, %s18
          %s232 = smul.u32 2, %s17
        $region50: #{_lambda_.11} parent=19 // pred_fallthru
          _
      $region20: #{_lambda_.11} parent=5 // pred_fallthru
        _
      %p233 = scmp.le.s32.totalorder 1, %s9
      %p234 = scmp.lt.s32.totalorder %s9, 4
      %p235 = pnand %p233, %p234
      %p236 = pneg %p235
      // Predicated region
      $region51: #{_lambda_.11} parent=5 // pred_check
        _
      $region52: #{_lambda_.11} parent=5 // pred_check_branch
        %238 = sbr.rel (%p235) target = $region54
      $region53: #{_lambda_.11} parent=5 // pred_region
        %s239 = ssub.s32 %s9, 1
        %s240 = sand.u32 %s43, 1
        %s241 = sand.u32 %s43, 1
        %s242 = smul.addr %s241, 48
        %s243 = scalar_lea.vmem [#allocation3], %s242
        // Predicated region
        $region55: #{_lambda_.11} parent=53 // pred_check
          %p244 = pneg %p56
        $region56: #{_lambda_.11} parent=53 // pred_check_branch
          %246 = sbr.rel (%p244) target = $region58
        $region57: #{_lambda_.11} parent=53 // pred_region
          _
        $region58: #{_lambda_.11} parent=53 // pred_fallthru
          _
        %s247 = sand.u32 %s43, 1
        %s248 = sand.u32 %s43, 1
        %s249 = smul.addr %s248, 48
        %s250 = scalar_lea.vmem [#allocation3], %s249
        %p251 = pneg %p56
        %p252 = pneg %p53
        %s253 = smul.u32 48, %s21
        %s254 = smul.u32 2, %s20
        %p255 = scmp.lt.s32.totalorder %s253, 143
        %s256 = scalar_select %p255, %s253, 143
        %p257 = scmp.lt.s32.totalorder %s254, 1
        %s258 = scalar_select %p257, %s254, 1
        %s259 = smul.addr %s256, 2
        %s260 = sadd.s32 %s258, %s259
        %s261 = smul.addr %s260, 4
        %s262 = scalar_lea.vmem %s1, %s261
        %p263 = pneg %p84
        %p264 = pneg %p81
        %s265 = smul.u32 2, %s20
        %p266 = scmp.lt.s32.totalorder %s265, 1
        %s267 = scalar_select %p266, %s265, 1
        %s268 = scalar_lea.vmem %s2, %s267
        %p269 = pneg %p110
        %p270 = pneg %p107
        %p271 = pneg %p138
        %p272 = pneg %p135
        %s273 = smul.u32 4, %s19
        %s274 = smul.u32 2, %s20
        %p275 = scmp.lt.s32.totalorder %s273, 3
        %s276 = scalar_select %p275, %s273, 3
        %p277 = scmp.lt.s32.totalorder %s274, 1
        %s278 = scalar_select %p277, %s274, 1
        %s279 = smul.addr %s276, 2
        %s280 = sadd.s32 %s278, %s279
        %s281 = smul.addr %s280, 8
        %s282 = scalar_lea.vmem %s3, %s281
        %s283 = smul.u32 4, %s19
        %s284 = smul.u32 3, %s21
        %s285 = smul.u32 48, %s21
        %s286 = smul.u32 2, %s20
        %p287 = scmp.lt.s32.totalorder %s285, 143
        %s288 = scalar_select %p287, %s285, 143
        %p289 = scmp.lt.s32.totalorder %s286, 1
        %s290 = scalar_select %p289, %s286, 1
        %s291 = smul.addr %s288, 2
        %s292 = sadd.s32 %s290, %s291
        %s293 = smul.addr %s292, 4
        %s294 = scalar_lea.vmem %s1, %s293
        %s295 = smul.u32 48, %s21
        %s296 = smul.u32 2, %s20
        %s297 = smul.u32 2, %s20
        %p298 = scmp.lt.s32.totalorder %s297, 1
        %s299 = scalar_select %p298, %s297, 1
        %s300 = scalar_lea.vmem %s2, %s299
        %s301 = smul.u32 2, %s20
        %s302 = smul.u32 4, %s19
        %s303 = smul.u32 2, %s20
        %p304 = scmp.lt.s32.totalorder %s302, 3
        %s305 = scalar_select %p304, %s302, 3
        %p306 = scmp.lt.s32.totalorder %s303, 1
        %s307 = scalar_select %p306, %s303, 1
        %s308 = smul.addr %s305, 2
        %s309 = sadd.s32 %s307, %s308
        %s310 = smul.addr %s309, 8
        %s311 = scalar_lea.vmem %s3, %s310
        %s312 = smul.u32 4, %s19
        %s313 = smul.u32 2, %s20
        %p315 = scmp.eq.s32.totalorder %s21, 0
        // Predicated region
        $region59: #{_lambda_.11} parent=53 // pred_check
          %p316 = pneg %p315
        $region60: #{_lambda_.11} parent=53 // pred_check_branch
          %318 = sbr.rel (%p316) target = $region62
        $region61: #{_lambda_.11} parent=53 // pred_region
          %319 = vst [vmem:[#allocation2] sm:$0xff] 0.0
          %320 = vst [vmem:[#allocation2 + $0x8] sm:$0xff] 0.0
          %321 = vst [vmem:[#allocation2 + $0x10] sm:$0xff] 0.0
          %322 = vst [vmem:[#allocation2 + $0x18] sm:$0xff] 0.0
          %323 = vst [vmem:[#allocation2 + $0x20] sm:$0xff] 0.0
          %324 = vst [vmem:[#allocation2 + $0x28] sm:$0xff] 0.0
          %325 = vst [vmem:[#allocation2 + $0x30] sm:$0xff] 0.0
          %326 = vst [vmem:[#allocation2 + $0x38] sm:$0xff] 0.0
        $region62: #{_lambda_.11} parent=53 // pred_fallthru
          _
        %v327 = vld [vmem:[#allocation2] sm:$0xff]
        %v328 = vld [vmem:[#allocation2 + $0x8] sm:$0xff]
        %v329 = vld [vmem:[#allocation2 + $0x10] sm:$0xff]
        %v330 = vld [vmem:[#allocation2 + $0x18] sm:$0xff]
        %v331 = vld [vmem:[#allocation2 + $0x20] sm:$0xff]
        %v332 = vld [vmem:[#allocation2 + $0x28] sm:$0xff]
        %v333 = vld [vmem:[#allocation2 + $0x30] sm:$0xff]
        %v334 = vld [vmem:[#allocation2 + $0x38] sm:$0xff]
        %v335 = vld [vmem:[%s243] sm:$0xff]
        %v336 = vld [vmem:[%s243 + $0x8] sm:$0xf]
        %v337 = vld [vmem:[%s243 + $0xc] sm:$0xff]
        %v338 = vld [vmem:[%s243 + $0x14] sm:$0xf]
        %v339 = vld [vmem:[%s243 + $0x18] sm:$0xff]
        %v340 = vld [vmem:[%s243 + $0x20] sm:$0xf]
        %v341 = vld [vmem:[%s243 + $0x24] sm:$0xff]
        %v342 = vld [vmem:[%s243 + $0x2c] sm:$0xf]
        %v343 = vld [vmem:[%s294] sm:$0xff]
        %v344 = vld [vmem:[%s294 + $0x8] sm:$0xff]
        %v345 = vld [vmem:[%s294 + $0x10] sm:$0xff]
        %v346 = vld [vmem:[%s294 + $0x18] sm:$0xff]
        %v347 = vld [vmem:[%s294 + $0x20] sm:$0xff]
        %v348 = vld [vmem:[%s294 + $0x28] sm:$0xff]
        %v349 = vld [vmem:[%s294 + $0x30] sm:$0xff]
        %v350 = vld [vmem:[%s294 + $0x38] sm:$0xff]
        %v351 = vld [vmem:[%s294 + $0x40] sm:$0xff]
        %v352 = vld [vmem:[%s294 + $0x48] sm:$0xff]
        %v353 = vld [vmem:[%s294 + $0x50] sm:$0xff]
        %v354 = vld [vmem:[%s294 + $0x58] sm:$0xff]
        %v355 = vld [vmem:[%s294 + $0x60] sm:$0xff]
        %v356 = vld [vmem:[%s294 + $0x68] sm:$0xff]
        %v357 = vld [vmem:[%s294 + $0x70] sm:$0xff]
        %v358 = vld [vmem:[%s294 + $0x78] sm:$0xff]
        %v359 = vld [vmem:[%s294 + $0x80] sm:$0xff]
        %v360 = vld [vmem:[%s294 + $0x88] sm:$0xff]
        %v361 = vld [vmem:[%s294 + $0x90] sm:$0xff]
        %v362 = vld [vmem:[%s294 + $0x98] sm:$0xff]
        %v363 = vld [vmem:[%s294 + $0xa0] sm:$0xff]
        %v364 = vld [vmem:[%s294 + $0xa8] sm:$0xff]
        %v365 = vld [vmem:[%s294 + $0xb0] sm:$0xff]
        %v366 = vld [vmem:[%s294 + $0xb8] sm:$0xff]
        %v367 = vld [vmem:[%s294 + $0xc0] sm:$0xff]
        %v368 = vld [vmem:[%s294 + $0xc8] sm:$0xff]
        %v369 = vld [vmem:[%s294 + $0xd0] sm:$0xff]
        %v370 = vld [vmem:[%s294 + $0xd8] sm:$0xff]
        %v371 = vld [vmem:[%s294 + $0xe0] sm:$0xff]
        %v372 = vld [vmem:[%s294 + $0xe8] sm:$0xff]
        %v373 = vld [vmem:[%s294 + $0xf0] sm:$0xff]
        %v374 = vld [vmem:[%s294 + $0xf8] sm:$0xff]
        %v375 = vld [vmem:[%s294 + $0x100] sm:$0xff]
        %v376 = vld [vmem:[%s294 + $0x108] sm:$0xff]
        %v377 = vld [vmem:[%s294 + $0x110] sm:$0xff]
        %v378 = vld [vmem:[%s294 + $0x118] sm:$0xff]
        %v379 = vld [vmem:[%s294 + $0x120] sm:$0xff]
        %v380 = vld [vmem:[%s294 + $0x128] sm:$0xff]
        %v381 = vld [vmem:[%s294 + $0x130] sm:$0xff]
        %v382 = vld [vmem:[%s294 + $0x138] sm:$0xff]
        %v383 = vld [vmem:[%s294 + $0x140] sm:$0xff]
        %v384 = vld [vmem:[%s294 + $0x148] sm:$0xff]
        %v385 = vld [vmem:[%s294 + $0x150] sm:$0xff]
        %v386 = vld [vmem:[%s294 + $0x158] sm:$0xff]
        %v387 = vld [vmem:[%s294 + $0x160] sm:$0xff]
        %v388 = vld [vmem:[%s294 + $0x168] sm:$0xff]
        %v389 = vld [vmem:[%s294 + $0x170] sm:$0xff]
        %v390 = vld [vmem:[%s294 + $0x178] sm:$0xff]
        %v399 = vunpack.c.l.b16 %v335
        %v400 = vunpack.c.h.b16 %v335
        %v401 = vunpack.c.l.b16 %v336
        %v402 = vunpack.c.l.b16 %v337
        %v403 = vunpack.c.h.b16 %v337
        %v404 = vunpack.c.l.b16 %v338
        %v405 = vunpack.c.l.b16 %v339
        %v406 = vunpack.c.h.b16 %v339
        %v407 = vunpack.c.l.b16 %v340
        %v408 = vunpack.c.l.b16 %v341
        %v409 = vunpack.c.h.b16 %v341
        %v410 = vunpack.c.l.b16 %v342
        %v411 = vpack.c.b16 %v402, %v399
        %v412 = vpack.c.b16 %v403, %v400
        %v413 = vpack.c.b16 %v404, %v401
        %v414 = vpack.c.b16 %v408, %v405
        %v415 = vpack.c.b16 %v409, %v406
        %v416 = vpack.c.b16 %v410, %v407
        %v471 = vunpack.c.l.b16 %v343
        %v472 = vunpack.c.h.b16 %v343
        %v473 = vunpack.c.l.b16 %v344
        %v474 = vunpack.c.h.b16 %v344
        %v475 = vunpack.c.l.b16 %v345
        %v476 = vunpack.c.h.b16 %v345
        %v477 = vunpack.c.l.b16 %v346
        %v478 = vunpack.c.h.b16 %v346
        %v479 = vunpack.c.l.b16 %v347
        %v480 = vunpack.c.h.b16 %v347
        %v481 = vunpack.c.l.b16 %v348
        %v482 = vunpack.c.h.b16 %v348
        %v483 = vunpack.c.l.b16 %v349
        %v484 = vunpack.c.h.b16 %v349
        %v485 = vunpack.c.l.b16 %v350
        %v486 = vunpack.c.h.b16 %v350
        %v487 = vunpack.c.l.b16 %v351
        %v488 = vunpack.c.h.b16 %v351
        %v489 = vunpack.c.l.b16 %v352
        %v490 = vunpack.c.h.b16 %v352
        %v491 = vunpack.c.l.b16 %v353
        %v492 = vunpack.c.h.b16 %v353
        %v493 = vunpack.c.l.b16 %v354
        %v494 = vunpack.c.h.b16 %v354
        %v495 = vunpack.c.l.b16 %v355
        %v496 = vunpack.c.h.b16 %v355
        %v497 = vunpack.c.l.b16 %v356
        %v498 = vunpack.c.h.b16 %v356
        %v499 = vunpack.c.l.b16 %v357
        %v500 = vunpack.c.h.b16 %v357
        %v501 = vunpack.c.l.b16 %v358
        %v502 = vunpack.c.h.b16 %v358
        %v503 = vunpack.c.l.b16 %v359
        %v504 = vunpack.c.h.b16 %v359
        %v505 = vunpack.c.l.b16 %v360
        %v506 = vunpack.c.h.b16 %v360
        %v507 = vunpack.c.l.b16 %v361
        %v508 = vunpack.c.h.b16 %v361
        %v509 = vunpack.c.l.b16 %v362
        %v510 = vunpack.c.h.b16 %v362
        %v511 = vunpack.c.l.b16 %v363
        %v512 = vunpack.c.h.b16 %v363
        %v513 = vunpack.c.l.b16 %v364
        %v514 = vunpack.c.h.b16 %v364
        %v515 = vunpack.c.l.b16 %v365
        %v516 = vunpack.c.h.b16 %v365
        %v517 = vunpack.c.l.b16 %v366
        %v518 = vunpack.c.h.b16 %v366
        %v519 = vunpack.c.l.b16 %v367
        %v520 = vunpack.c.h.b16 %v367
        %v521 = vunpack.c.l.b16 %v368
        %v522 = vunpack.c.h.b16 %v368
        %v523 = vunpack.c.l.b16 %v369
        %v524 = vunpack.c.h.b16 %v369
        %v525 = vunpack.c.l.b16 %v370
        %v526 = vunpack.c.h.b16 %v370
        %v527 = vunpack.c.l.b16 %v371
        %v528 = vunpack.c.h.b16 %v371
        %v529 = vunpack.c.l.b16 %v372
        %v530 = vunpack.c.h.b16 %v372
        %v531 = vunpack.c.l.b16 %v373
        %v532 = vunpack.c.h.b16 %v373
        %v533 = vunpack.c.l.b16 %v374
        %v534 = vunpack.c.h.b16 %v374
        %v535 = vunpack.c.l.b16 %v375
        %v536 = vunpack.c.h.b16 %v375
        %v537 = vunpack.c.l.b16 %v376
        %v538 = vunpack.c.h.b16 %v376
        %v539 = vunpack.c.l.b16 %v377
        %v540 = vunpack.c.h.b16 %v377
        %v541 = vunpack.c.l.b16 %v378
        %v542 = vunpack.c.h.b16 %v378
        %v543 = vunpack.c.l.b16 %v379
        %v544 = vunpack.c.h.b16 %v379
        %v545 = vunpack.c.l.b16 %v380
        %v546 = vunpack.c.h.b16 %v380
        %v547 = vunpack.c.l.b16 %v381
        %v548 = vunpack.c.h.b16 %v381
        %v549 = vunpack.c.l.b16 %v382
        %v550 = vunpack.c.h.b16 %v382
        %v551 = vunpack.c.l.b16 %v383
        %v552 = vunpack.c.h.b16 %v383
        %v553 = vunpack.c.l.b16 %v384
        %v554 = vunpack.c.h.b16 %v384
        %v555 = vunpack.c.l.b16 %v385
        %v556 = vunpack.c.h.b16 %v385
        %v557 = vunpack.c.l.b16 %v386
        %v558 = vunpack.c.h.b16 %v386
        %v559 = vunpack.c.l.b16 %v387
        %v560 = vunpack.c.h.b16 %v387
        %v561 = vunpack.c.l.b16 %v388
        %v562 = vunpack.c.h.b16 %v388
        %v563 = vunpack.c.l.b16 %v389
        %v564 = vunpack.c.h.b16 %v389
        %v565 = vunpack.c.l.b16 %v390
        %v566 = vunpack.c.h.b16 %v390
        %v567 = vpack.c.b16 %v473, %v471
        %v568 = vpack.c.b16 %v474, %v472
        %v569 = vpack.c.b16 %v477, %v475
        %v570 = vpack.c.b16 %v478, %v476
        %v571 = vpack.c.b16 %v481, %v479
        %v572 = vpack.c.b16 %v482, %v480
        %v573 = vpack.c.b16 %v485, %v483
        %v574 = vpack.c.b16 %v486, %v484
        %v575 = vpack.c.b16 %v489, %v487
        %v576 = vpack.c.b16 %v490, %v488
        %v577 = vpack.c.b16 %v493, %v491
        %v578 = vpack.c.b16 %v494, %v492
        %v579 = vpack.c.b16 %v497, %v495
        %v580 = vpack.c.b16 %v498, %v496
        %v581 = vpack.c.b16 %v501, %v499
        %v582 = vpack.c.b16 %v502, %v500
        %v583 = vpack.c.b16 %v505, %v503
        %v584 = vpack.c.b16 %v506, %v504
        %v585 = vpack.c.b16 %v509, %v507
        %v586 = vpack.c.b16 %v510, %v508
        %v587 = vpack.c.b16 %v513, %v511
        %v588 = vpack.c.b16 %v514, %v512
        %v589 = vpack.c.b16 %v517, %v515
        %v590 = vpack.c.b16 %v518, %v516
        %v591 = vpack.c.b16 %v521, %v519
        %v592 = vpack.c.b16 %v522, %v520
        %v593 = vpack.c.b16 %v525, %v523
        %v594 = vpack.c.b16 %v526, %v524
        %v595 = vpack.c.b16 %v529, %v527
        %v596 = vpack.c.b16 %v530, %v528
        %v597 = vpack.c.b16 %v533, %v531
        %v598 = vpack.c.b16 %v534, %v532
        %v599 = vpack.c.b16 %v537, %v535
        %v600 = vpack.c.b16 %v538, %v536
        %v601 = vpack.c.b16 %v541, %v539
        %v602 = vpack.c.b16 %v542, %v540
        %v603 = vpack.c.b16 %v545, %v543
        %v604 = vpack.c.b16 %v546, %v544
        %v605 = vpack.c.b16 %v549, %v547
        %v606 = vpack.c.b16 %v550, %v548
        %v607 = vpack.c.b16 %v553, %v551
        %v608 = vpack.c.b16 %v554, %v552
        %v609 = vpack.c.b16 %v557, %v555
        %v610 = vpack.c.b16 %v558, %v556
        %v611 = vpack.c.b16 %v561, %v559
        %v612 = vpack.c.b16 %v562, %v560
        %v613 = vpack.c.b16 %v565, %v563
        %v614 = vpack.c.b16 %v566, %v564
        %663 = vmatprep.subr.bf16.mxu0 %v568
        %664 = vmatpush1.bf16.msra.mxu0 %v567
        %665 = vmatprep.subr.bf16.mxu0 %v570
        %666 = vmatpush1.bf16.msra.mxu0 %v569
        %667 = vmatprep.subr.bf16.mxu0 %v572
        %668 = vmatpush1.bf16.msra.mxu0 %v571
        %669 = vmatprep.subr.bf16.mxu0 %v574
        %670 = vmatpush1.bf16.msra.mxu0 %v573
        %671 = vmatprep.subr.bf16.mxu0 %v576
        %672 = vmatpush1.bf16.msra.mxu0 %v575
        %673 = vmatprep.subr.bf16.mxu0 %v578
        %674 = vmatpush1.bf16.msra.mxu0 %v577
        %675 = vmatprep.subr.bf16.mxu0 %v580
        %676 = vmatpush1.bf16.msra.mxu0 %v579
        %677 = vmatprep.subr.bf16.mxu0 %v582
        %678 = vmatpush1.bf16.msra.mxu0 %v581
        %679 = vmatprep.subr.bf16.mxu0 %v584
        %680 = vmatpush1.bf16.msra.mxu0 %v583
        %681 = vmatprep.subr.bf16.mxu0 %v586
        %682 = vmatpush1.bf16.msra.mxu0 %v585
        %683 = vmatprep.subr.bf16.mxu0 %v588
        %684 = vmatpush1.bf16.msra.mxu0 %v587
        %685 = vmatprep.subr.bf16.mxu0 %v590
        %686 = vmatpush1.bf16.msra.mxu0 %v589
        %687 = vmatprep.subr.bf16.mxu0 %v592
        %688 = vmatpush1.bf16.msra.mxu0 %v591
        %689 = vmatprep.subr.bf16.mxu0 %v594
        %690 = vmatpush1.bf16.msra.mxu0 %v593
        %691 = vmatprep.subr.bf16.mxu0 %v596
        %692 = vmatpush1.bf16.msra.mxu0 %v595
        %693 = vmatprep.subr.bf16.mxu0 %v598
        %694 = vmatpush1.bf16.msra.mxu0 %v597
        %695 = vmatprep.mubr.bf16.mxu0 %v412
        %696 = vmatmul.mubr.bf16.gmra.mrb[0].mxu0 %v411
        %v697 = vpop.f32.mrb[0].mxu0
        %v698 = vadd.f32 0.0, %v697
        %v699 = vpop.f32.mrb[0].mxu0
        %v700 = vadd.f32 0.0, %v699
        %v701 = vpop.f32.mrb[0].mxu0
        %v702 = vadd.f32 0.0, %v701
        %v703 = vpop.f32.mrb[0].mxu0
        %v704 = vadd.f32 0.0, %v703
        %705 = vmatprep.mubr.bf16.mxu0 %v415
        %706 = vmatmul.mubr.bf16.gmra.mrb[0].mxu0 %v414
        %v707 = vpop.f32.mrb[0].mxu0
        %v708 = vadd.f32 0.0, %v707
        %v709 = vpop.f32.mrb[0].mxu0
        %v710 = vadd.f32 0.0, %v709
        %v711 = vpop.f32.mrb[0].mxu0
        %v712 = vadd.f32 0.0, %v711
        %v713 = vpop.f32.mrb[0].mxu0
        %v714 = vadd.f32 0.0, %v713
        %715 = vdwg.mxu0
        %716 = vmatprep.subr.bf16.mxu0 %v600
        %717 = vmatpush1.bf16.msra.mxu0 %v599
        %718 = vmatprep.subr.bf16.mxu0 %v602
        %719 = vmatpush1.bf16.msra.mxu0 %v601
        %720 = vmatprep.subr.bf16.mxu0 %v604
        %721 = vmatpush1.bf16.msra.mxu0 %v603
        %722 = vmatprep.subr.bf16.mxu0 %v606
        %723 = vmatpush1.bf16.msra.mxu0 %v605
        %724 = vmatprep.subr.bf16.mxu0 %v608
        %725 = vmatpush1.bf16.msra.mxu0 %v607
        %726 = vmatprep.subr.bf16.mxu0 %v610
        %727 = vmatpush1.bf16.msra.mxu0 %v609
        %728 = vmatprep.subr.bf16.mxu0 %v612
        %729 = vmatpush1.bf16.msra.mxu0 %v611
        %730 = vmatprep.subr.bf16.mxu0 %v614
        %731 = vmatpush1.bf16.msra.mxu0 %v613
        %732 = vmatprep.subr.bf16.mxu0 0
        %733 = vmatpush1.bf16.msra.mxu0 0
        %734 = vmatprep.subr.bf16.mxu0 0
        %735 = vmatpush1.bf16.msra.mxu0 0
        %736 = vmatprep.subr.bf16.mxu0 0
        %737 = vmatpush1.bf16.msra.mxu0 0
        %738 = vmatprep.subr.bf16.mxu0 0
        %739 = vmatpush1.bf16.msra.mxu0 0
        %740 = vmatprep.subr.bf16.mxu0 0
        %741 = vmatpush1.bf16.msra.mxu0 0
        %742 = vmatprep.subr.bf16.mxu0 0
        %743 = vmatpush1.bf16.msra.mxu0 0
        %744 = vmatprep.subr.bf16.mxu0 0
        %745 = vmatpush1.bf16.msra.mxu0 0
        %746 = vmatprep.subr.bf16.mxu0 0
        %747 = vmatpush1.bf16.msra.mxu0 0
        %748 = vmatprep.mubr.bf16.mxu0 0
        %749 = vmatmul.mubr.bf16.gmra.mrb[0].mxu0 %v413
        %v750 = vpop.f32.mrb[0].mxu0
        %v751 = vadd.f32 %v698, %v750
        %v752 = vpop.f32.mrb[0].mxu0
        %v753 = vadd.f32 %v700, %v752
        %v754 = vpop.f32.mrb[0].mxu0
        %v755 = vadd.f32 %v702, %v754
        %v756 = vpop.f32.mrb[0].mxu0
        %v757 = vadd.f32 %v704, %v756
        %758 = vmatprep.mubr.bf16.mxu0 0
        %759 = vmatmul.mubr.bf16.gmra.mrb[0].mxu0 %v416
        %v760 = vpop.f32.mrb[0].mxu0
        %v761 = vadd.f32 %v708, %v760
        %v762 = vpop.f32.mrb[0].mxu0
        %v763 = vadd.f32 %v710, %v762
        %v764 = vpop.f32.mrb[0].mxu0
        %v765 = vadd.f32 %v712, %v764
        %v766 = vpop.f32.mrb[0].mxu0
        %v767 = vadd.f32 %v714, %v766
        %768 = vdwg.mxu0
        %v769 = vadd.f32 %v327, %v751
        %v770 = vadd.f32 %v328, %v753
        %v771 = vadd.f32 %v329, %v755
        %v772 = vadd.f32 %v330, %v757
        %v773 = vadd.f32 %v331, %v761
        %v774 = vadd.f32 %v332, %v763
        %v775 = vadd.f32 %v333, %v765
        %v776 = vadd.f32 %v334, %v767
        %777 = vst [vmem:[#allocation2] sm:$0xff] %v769
        %778 = vst [vmem:[#allocation2 + $0x8] sm:$0xff] %v770
        %779 = vst [vmem:[#allocation2 + $0x10] sm:$0xff] %v771
        %780 = vst [vmem:[#allocation2 + $0x18] sm:$0xff] %v772
        %781 = vst [vmem:[#allocation2 + $0x20] sm:$0xff] %v773
        %782 = vst [vmem:[#allocation2 + $0x28] sm:$0xff] %v774
        %783 = vst [vmem:[#allocation2 + $0x30] sm:$0xff] %v775
        %784 = vst [vmem:[#allocation2 + $0x38] sm:$0xff] %v776
        %p785 = scmp.eq.s32.totalorder %s21, 2
        // Predicated region
        $region63: #{_lambda_.11} parent=53 // pred_check
          %p786 = pneg %p785
        $region64: #{_lambda_.11} parent=53 // pred_check_branch
          %788 = sbr.rel (%p786) target = $region66
        $region65: #{_lambda_.11} parent=53 // pred_region
          %v789 = vld [vmem:[#allocation2] sm:$0xff]
          %v790 = vld [vmem:[#allocation2 + $0x8] sm:$0xff]
          %v791 = vld [vmem:[#allocation2 + $0x10] sm:$0xff]
          %v792 = vld [vmem:[#allocation2 + $0x18] sm:$0xff]
          %v793 = vld [vmem:[#allocation2 + $0x20] sm:$0xff]
          %v794 = vld [vmem:[#allocation2 + $0x28] sm:$0xff]
          %v795 = vld [vmem:[#allocation2 + $0x30] sm:$0xff]
          %v796 = vld [vmem:[#allocation2 + $0x38] sm:$0xff]
          %v797 = vld [vmem:[%s300] sm:$0x3]
          %v799 = vlaneseq
          %v800 = vshrl.u32 %v799, 7
          %v801 = vsub.s32 0, %v800
          %v802 = vrot.slane %v797, %v801
          %v803 = vlaneseq
          %v804 = vshrl.u32 %v803, 7
          %v805 = vsub.s32 1, %v804
          %v806 = vrot.slane %v797, %v805
          %v809 = vadd.f32 %v789, %v802
          %v810 = vadd.f32 %v790, %v806
          %v811 = vadd.f32 %v791, %v802
          %v812 = vadd.f32 %v792, %v806
          %v813 = vadd.f32 %v793, %v802
          %v814 = vadd.f32 %v794, %v806
          %v815 = vadd.f32 %v795, %v802
          %v816 = vadd.f32 %v796, %v806
          %v817 = vmax.f32 %v809, 0.0
          %v818 = vmax.f32 %v810, 0.0
          %v819 = vmax.f32 %v811, 0.0
          %v820 = vmax.f32 %v812, 0.0
          %v821 = vmax.f32 %v813, 0.0
          %v822 = vmax.f32 %v814, 0.0
          %v823 = vmax.f32 %v815, 0.0
          %v824 = vmax.f32 %v816, 0.0
          %825 = vst [vmem:[%s311] sm:$0xff] %v817
          %826 = vst [vmem:[%s311 + $0x8] sm:$0xff] %v818
          %827 = vst [vmem:[%s311 + $0x10] sm:$0xff] %v819
          %828 = vst [vmem:[%s311 + $0x18] sm:$0xff] %v820
          %829 = vst [vmem:[%s311 + $0x20] sm:$0xff] %v821
          %830 = vst [vmem:[%s311 + $0x28] sm:$0xff] %v822
          %831 = vst [vmem:[%s311 + $0x30] sm:$0xff] %v823
          %832 = vst [vmem:[%s311 + $0x38] sm:$0xff] %v824
        $region66: #{_lambda_.11} parent=53 // pred_fallthru
          _
        %s833 = smul.u32 4, %s19
        %s834 = smul.u32 2, %s20
        %p835 = scmp.lt.s32.totalorder %s833, 3
        %s836 = scalar_select %p835, %s833, 3
        %p837 = scmp.lt.s32.totalorder %s834, 1
        %s838 = scalar_select %p837, %s834, 1
        %s839 = smul.addr %s836, 2
        %s840 = sadd.s32 %s838, %s839
        %s841 = smul.addr %s840, 8
        %s842 = scalar_lea.vmem %s3, %s841
        // Predicated region
        $region67: #{_lambda_.11} parent=53 // pred_check
          %p843 = pneg %p135
        $region68: #{_lambda_.11} parent=53 // pred_check_branch
          %845 = sbr.rel (%p843) target = $region70
        $region69: #{_lambda_.11} parent=53 // pred_region
          %s846 = smul.u32 4, %s19
          %s847 = smul.u32 2, %s20
        $region70: #{_lambda_.11} parent=53 // pred_fallthru
          _
        // Predicated region
        $region71: #{_lambda_.11} parent=53 // pred_check
          %p848 = pneg %p135
        $region72: #{_lambda_.11} parent=53 // pred_check_branch
          %850 = sbr.rel (%p848) target = $region74
        $region73: #{_lambda_.11} parent=53 // pred_region
          %s851 = smul.u32 4, %s19
          %s852 = smul.u32 2, %s20
          %p853 = scmp.lt.s32.totalorder %s851, 3
          %s854 = scalar_select %p853, %s851, 3
          %p855 = scmp.lt.s32.totalorder %s852, 1
          %s856 = scalar_select %p855, %s852, 1
          %s857 = smul.addr %s854, 2
          %s858 = sadd.s32 %s856, %s857
          %s859 = smul.addr %s858, 8
          %s860 = scalar_lea.vmem %s3, %s859
        $region74: #{_lambda_.11} parent=53 // pred_fallthru
          _
      $region54: #{_lambda_.11} parent=5 // pred_fallthru
        _
      %p861 = scmp.le.s32.totalorder 2, %s9
      // Predicated region
      $region75: #{_lambda_.11} parent=5 // pred_check
        %p862 = pneg %p861
      $region76: #{_lambda_.11} parent=5 // pred_check_branch
        %864 = sbr.rel (%p862) target = $region78
      $region77: #{_lambda_.11} parent=5 // pred_region
        %s865 = ssub.s32 %s9, 2
      $region78: #{_lambda_.11} parent=5 // pred_fallthru
        _
    $region6: #{_lambda_.11} parent=1 // loop_footer
      %s13 = sadd.s32 1, %s9
    $region7: #{_lambda_.11} parent=1 // loop_footer_branch
      %8 = sbr.rel target = $region3
    $region8: #{_lambda_.11} parent=1 // loop_exit
      _

// kernel: tile.26
$region0: #{tile.26}
  #allocation0 [shape = 's32[1]{0}', space=sflag, size = 0x4, scoped, tag = 'scoped memory for tile.26']
  %s0 = inlined_call_operand.vmem [shape: f32[32], index: 0, kind: input, shape index: {}]
  %s1 = inlined_call_operand.vmem [shape: f32[4,32], index: 1, kind: output, shape index: {}]
  // Predicated region
  $region2: #{tile.26} parent=0 // pred_check
    _
  $region3: #{tile.26} parent=0 // pred_check_branch
    %3 = sbr.rel (0) target = $region5
  $region4: #{tile.26} parent=0 // pred_region
    _
  $region5: #{tile.26} parent=0 // pred_fallthru
    _
  %v4 = vld [vmem:[%s0] ss:$0 sm:$0xff]
  %5 = vst [vmem:[%s1] sm:$0xf] %v4

// kernel: tile.29
$region0: #{tile.29}
  %s0 = inlined_call_operand.vmem [shape: f32[4,32], index: 0, kind: input, shape index: {}]
  %s1 = inlined_call_operand.vmem [shape: f32[1,128], index: 1, kind: output, shape index: {}]
  $region1: #{tile.29} parent=0
    #allocation0 [shape = 'u8[4096]{0}', space=vmem, size = 0x1000, scoped, tag = 'scoped mem for output reshape']
    #allocation1 [shape = 'u8[4096]{0}', space=vmem, size = 0x1000, scoped, tag = 'scoped mem for input reshape']
    %s3 = sshllo.u32 0, 4
    %v4 = vld [vmem:[%s0] sm:%s3]
    %5 = vst [vmem:[#allocation1] sm:%s3] %v4
    %v6 = vld [vmem:[#allocation1] sm:$0x1]
    %vm7 = vcmask 261120
    %8 = vst.msk [vmem:[#allocation0] sm:$0x1] %vm7, %v6
    %s9 = scalar_lea.vmem [#allocation1], 3
    %v10 = vld [vmem:[%s9] sm:$0x1]
    %11 = vrot.lane.b32.xlu0 %v10, 96
    %v12 = vpop.permute.xlu0 %11
    %vm13 = vcmask 1048320
    %14 = vst.msk [vmem:[#allocation0] sm:$0x1] %vm13, %v12
    %s15 = scalar_lea.vmem [#allocation1], 2
    %v16 = vld [vmem:[%s15] sm:$0x1]
    %17 = vrot.lane.b32.xlu0 %v16, 64
    %v18 = vpop.permute.xlu0 %17
    %vm19 = vcmask 785920
    %20 = vst.msk [vmem:[#allocation0] sm:$0x1] %vm19, %v18
    %s21 = scalar_lea.vmem [#allocation1], 1
    %v22 = vld [vmem:[%s21] sm:$0x1]
    %23 = vrot.lane.b32.xlu0 %v22, 32
    %v24 = vpop.permute.xlu0 %23
    %vm25 = vcmask 523520
    %26 = vst.msk [vmem:[#allocation0] sm:$0x1] %vm25, %v24
    %s28 = sshllo.u32 0, 1
    %v30 = vld [vmem:[#allocation0] sm:%s28]
    %s31 = sshllo.u32 0, 1
    %32 = vst [vmem:[%s1] sm:%s31] %v30

// kernel: _lambda_.12
$region0: #{_lambda_.12}
  #allocation0 [shape = 'u32[]', space=smem, size = 0x4, offset = 0x4, fixed_abs, tag = 'smem constant byte address 0x4 - core index']
  #allocation1 [shape = 'u32[144,128]{1,0:T(1,128)}', space=vmem, size = 0x12000, scoped, tag = 'internal scratch']
  #allocation2 [shape = 'f32[128,128]{1,0:T(8,128)}', space=vmem, size = 0x10000, scoped, tag = 'scratch operand']
  %s0 = inlined_call_operand.vmem [shape: bf16[128,640], index: 0, kind: input, shape index: {}]
  %s1 = inlined_call_operand.vmem [shape: bf16[640,128], index: 1, kind: input, shape index: {}]
  %s2 = inlined_call_operand.vmem [shape: f32[1,128], index: 2, kind: input, shape index: {}]
  %s3 = inlined_call_operand.vmem [shape: f32[128,128], index: 3, kind: output, shape index: {}]
  %s4 = sld [smem:[#allocation0]]
  $region30: #{_lambda_.12} parent=0
    _
  %s6 = ssub.s32 1, %s4
  %s7 = scalar_select 0, %s6, %s4
  // Predicated region
  $region2: #{_lambda_.12} parent=0 // pred_check
    _
  $region3: #{_lambda_.12} parent=0 // pred_check_branch
    %9 = sbr.rel (0) target = $region5
  $region4: #{_lambda_.12} parent=0 // pred_region
    _
  $region5: #{_lambda_.12} parent=0 // pred_fallthru
    _
  // Predicated region
  $region6: #{_lambda_.12} parent=0 // pred_check
    _
  $region7: #{_lambda_.12} parent=0 // pred_check_branch
    %11 = sbr.rel (0) target = $region9
  $region8: #{_lambda_.12} parent=0 // pred_region
    _
  $region9: #{_lambda_.12} parent=0 // pred_fallthru
    _
  // Predicated region
  $region10: #{_lambda_.12} parent=0 // pred_check
    _
  $region11: #{_lambda_.12} parent=0 // pred_check_branch
    %13 = sbr.rel (0) target = $region13
  $region12: #{_lambda_.12} parent=0 // pred_region
    _
  $region13: #{_lambda_.12} parent=0 // pred_fallthru
    _
  %p15 = scmp.eq.s32.totalorder 0, 0
  // Predicated region
  $region14: #{_lambda_.12} parent=0 // pred_check
    %p16 = pneg %p15
  $region15: #{_lambda_.12} parent=0 // pred_check_branch
    %18 = sbr.rel (%p16) target = $region17
  $region16: #{_lambda_.12} parent=0 // pred_region
    %19 = vst [vmem:[#allocation2] sm:$0xff] 0.0
    %20 = vst [vmem:[#allocation2 + $0x8] sm:$0xff] 0.0
    %21 = vst [vmem:[#allocation2 + $0x10] sm:$0xff] 0.0
    %22 = vst [vmem:[#allocation2 + $0x18] sm:$0xff] 0.0
    %23 = vst [vmem:[#allocation2 + $0x20] sm:$0xff] 0.0
    %24 = vst [vmem:[#allocation2 + $0x28] sm:$0xff] 0.0
    %25 = vst [vmem:[#allocation2 + $0x30] sm:$0xff] 0.0
    %26 = vst [vmem:[#allocation2 + $0x38] sm:$0xff] 0.0
    %27 = vst [vmem:[#allocation2 + $0x40] sm:$0xff] 0.0
    %28 = vst [vmem:[#allocation2 + $0x48] sm:$0xff] 0.0
    %29 = vst [vmem:[#allocation2 + $0x50] sm:$0xff] 0.0
    %30 = vst [vmem:[#allocation2 + $0x58] sm:$0xff] 0.0
    %31 = vst [vmem:[#allocation2 + $0x60] sm:$0xff] 0.0
    %32 = vst [vmem:[#allocation2 + $0x68] sm:$0xff] 0.0
    %33 = vst [vmem:[#allocation2 + $0x70] sm:$0xff] 0.0
    %34 = vst [vmem:[#allocation2 + $0x78] sm:$0xff] 0.0
  $region17: #{_lambda_.12} parent=0 // pred_fallthru
    _
  %v35 = vld [vmem:[#allocation2] sm:$0xff]
  %v36 = vld [vmem:[#allocation2 + $0x8] sm:$0xff]
  %v37 = vld [vmem:[#allocation2 + $0x10] sm:$0xff]
  %v38 = vld [vmem:[#allocation2 + $0x18] sm:$0xff]
  %v39 = vld [vmem:[#allocation2 + $0x20] sm:$0xff]
  %v40 = vld [vmem:[#allocation2 + $0x28] sm:$0xff]
  %v41 = vld [vmem:[#allocation2 + $0x30] sm:$0xff]
  %v42 = vld [vmem:[#allocation2 + $0x38] sm:$0xff]
  %v43 = vld [vmem:[#allocation2 + $0x40] sm:$0xff]
  %v44 = vld [vmem:[#allocation2 + $0x48] sm:$0xff]
  %v45 = vld [vmem:[#allocation2 + $0x50] sm:$0xff]
  %v46 = vld [vmem:[#allocation2 + $0x58] sm:$0xff]
  %v47 = vld [vmem:[#allocation2 + $0x60] sm:$0xff]
  %v48 = vld [vmem:[#allocation2 + $0x68] sm:$0xff]
  %v49 = vld [vmem:[#allocation2 + $0x70] sm:$0xff]
  %v50 = vld [vmem:[#allocation2 + $0x78] sm:$0xff]
  %v51 = vld [vmem:[%s0] sm:$0xff]
  %v52 = vld [vmem:[%s0 + $0x8] sm:$0xff]
  %v53 = vld [vmem:[%s0 + $0x10] sm:$0xf]
  %v54 = vld [vmem:[%s0 + $0x14] sm:$0xff]
  %v55 = vld [vmem:[%s0 + $0x1c] sm:$0xff]
  %v56 = vld [vmem:[%s0 + $0x24] sm:$0xf]
  %v57 = vld [vmem:[%s0 + $0x28] sm:$0xff]
  %v58 = vld [vmem:[%s0 + $0x30] sm:$0xff]
  %v59 = vld [vmem:[%s0 + $0x38] sm:$0xf]
  %v60 = vld [vmem:[%s0 + $0x3c] sm:$0xff]
  %v61 = vld [vmem:[%s0 + $0x44] sm:$0xff]
  %v62 = vld [vmem:[%s0 + $0x4c] sm:$0xf]
  %v63 = vld [vmem:[%s0 + $0x50] sm:$0xff]
  %v64 = vld [vmem:[%s0 + $0x58] sm:$0xff]
  %v65 = vld [vmem:[%s0 + $0x60] sm:$0xf]
  %v66 = vld [vmem:[%s0 + $0x64] sm:$0xff]
  %v67 = vld [vmem:[%s0 + $0x6c] sm:$0xff]
  %v68 = vld [vmem:[%s0 + $0x74] sm:$0xf]
  %v69 = vld [vmem:[%s0 + $0x78] sm:$0xff]
  %v70 = vld [vmem:[%s0 + $0x80] sm:$0xff]
  %v71 = vld [vmem:[%s0 + $0x88] sm:$0xf]
  %v72 = vld [vmem:[%s0 + $0x8c] sm:$0xff]
  %v73 = vld [vmem:[%s0 + $0x94] sm:$0xff]
  %v74 = vld [vmem:[%s0 + $0x9c] sm:$0xf]
  %v75 = vld [vmem:[%s0 + $0xa0] sm:$0xff]
  %v76 = vld [vmem:[%s0 + $0xa8] sm:$0xff]
  %v77 = vld [vmem:[%s0 + $0xb0] sm:$0xf]
  %v78 = vld [vmem:[%s0 + $0xb4] sm:$0xff]
  %v79 = vld [vmem:[%s0 + $0xbc] sm:$0xff]
  %v80 = vld [vmem:[%s0 + $0xc4] sm:$0xf]
  %v81 = vld [vmem:[%s0 + $0xc8] sm:$0xff]
  %v82 = vld [vmem:[%s0 + $0xd0] sm:$0xff]
  %v83 = vld [vmem:[%s0 + $0xd8] sm:$0xf]
  %v84 = vld [vmem:[%s0 + $0xdc] sm:$0xff]
  %v85 = vld [vmem:[%s0 + $0xe4] sm:$0xff]
  %v86 = vld [vmem:[%s0 + $0xec] sm:$0xf]
  %v87 = vld [vmem:[%s0 + $0xf0] sm:$0xff]
  %v88 = vld [vmem:[%s0 + $0xf8] sm:$0xff]
  %v89 = vld [vmem:[%s0 + $0x100] sm:$0xf]
  %v90 = vld [vmem:[%s0 + $0x104] sm:$0xff]
  %v91 = vld [vmem:[%s0 + $0x10c] sm:$0xff]
  %v92 = vld [vmem:[%s0 + $0x114] sm:$0xf]
  %v93 = vld [vmem:[%s0 + $0x118] sm:$0xff]
  %v94 = vld [vmem:[%s0 + $0x120] sm:$0xff]
  %v95 = vld [vmem:[%s0 + $0x128] sm:$0xf]
  %v96 = vld [vmem:[%s0 + $0x12c] sm:$0xff]
  %v97 = vld [vmem:[%s0 + $0x134] sm:$0xff]
  %v98 = vld [vmem:[%s0 + $0x13c] sm:$0xf]
  %v99 = vld [vmem:[%s1] sm:$0xf]
  %v100 = vld [vmem:[%s1 + $0x4] sm:$0xf]
  %v101 = vld [vmem:[%s1 + $0x8] sm:$0xf]
  %v102 = vld [vmem:[%s1 + $0xc] sm:$0xf]
  %v103 = vld [vmem:[%s1 + $0x10] sm:$0xf]
  %v104 = vld [vmem:[%s1 + $0x14] sm:$0xf]
  %v105 = vld [vmem:[%s1 + $0x18] sm:$0xf]
  %v106 = vld [vmem:[%s1 + $0x1c] sm:$0xf]
  %v107 = vld [vmem:[%s1 + $0x20] sm:$0xf]
  %v108 = vld [vmem:[%s1 + $0x24] sm:$0xf]
  %v109 = vld [vmem:[%s1 + $0x28] sm:$0xf]
  %v110 = vld [vmem:[%s1 + $0x2c] sm:$0xf]
  %v111 = vld [vmem:[%s1 + $0x30] sm:$0xf]
  %v112 = vld [vmem:[%s1 + $0x34] sm:$0xf]
  %v113 = vld [vmem:[%s1 + $0x38] sm:$0xf]
  %v114 = vld [vmem:[%s1 + $0x3c] sm:$0xf]
  %v115 = vld [vmem:[%s1 + $0x40] sm:$0xf]
  %v116 = vld [vmem:[%s1 + $0x44] sm:$0xf]
  %v117 = vld [vmem:[%s1 + $0x48] sm:$0xf]
  %v118 = vld [vmem:[%s1 + $0x4c] sm:$0xf]
  %v119 = vld [vmem:[%s1 + $0x50] sm:$0xf]
  %v120 = vld [vmem:[%s1 + $0x54] sm:$0xf]
  %v121 = vld [vmem:[%s1 + $0x58] sm:$0xf]
  %v122 = vld [vmem:[%s1 + $0x5c] sm:$0xf]
  %v123 = vld [vmem:[%s1 + $0x60] sm:$0xf]
  %v124 = vld [vmem:[%s1 + $0x64] sm:$0xf]
  %v125 = vld [vmem:[%s1 + $0x68] sm:$0xf]
  %v126 = vld [vmem:[%s1 + $0x6c] sm:$0xf]
  %v127 = vld [vmem:[%s1 + $0x70] sm:$0xf]
  %v128 = vld [vmem:[%s1 + $0x74] sm:$0xf]
  %v129 = vld [vmem:[%s1 + $0x78] sm:$0xf]
  %v130 = vld [vmem:[%s1 + $0x7c] sm:$0xf]
  %v131 = vld [vmem:[%s1 + $0x80] sm:$0xf]
  %v132 = vld [vmem:[%s1 + $0x84] sm:$0xf]
  %v133 = vld [vmem:[%s1 + $0x88] sm:$0xf]
  %v134 = vld [vmem:[%s1 + $0x8c] sm:$0xf]
  %v135 = vld [vmem:[%s1 + $0x90] sm:$0xf]
  %v136 = vld [vmem:[%s1 + $0x94] sm:$0xf]
  %v137 = vld [vmem:[%s1 + $0x98] sm:$0xf]
  %v138 = vld [vmem:[%s1 + $0x9c] sm:$0xf]
  %v139 = vld [vmem:[%s1 + $0xa0] sm:$0xf]
  %v140 = vld [vmem:[%s1 + $0xa4] sm:$0xf]
  %v141 = vld [vmem:[%s1 + $0xa8] sm:$0xf]
  %v142 = vld [vmem:[%s1 + $0xac] sm:$0xf]
  %v143 = vld [vmem:[%s1 + $0xb0] sm:$0xf]
  %v144 = vld [vmem:[%s1 + $0xb4] sm:$0xf]
  %v145 = vld [vmem:[%s1 + $0xb8] sm:$0xf]
  %v146 = vld [vmem:[%s1 + $0xbc] sm:$0xf]
  %v147 = vld [vmem:[%s1 + $0xc0] sm:$0xf]
  %v148 = vld [vmem:[%s1 + $0xc4] sm:$0xf]
  %v149 = vld [vmem:[%s1 + $0xc8] sm:$0xf]
  %v150 = vld [vmem:[%s1 + $0xcc] sm:$0xf]
  %v151 = vld [vmem:[%s1 + $0xd0] sm:$0xf]
  %v152 = vld [vmem:[%s1 + $0xd4] sm:$0xf]
  %v153 = vld [vmem:[%s1 + $0xd8] sm:$0xf]
  %v154 = vld [vmem:[%s1 + $0xdc] sm:$0xf]
  %v155 = vld [vmem:[%s1 + $0xe0] sm:$0xf]
  %v156 = vld [vmem:[%s1 + $0xe4] sm:$0xf]
  %v157 = vld [vmem:[%s1 + $0xe8] sm:$0xf]
  %v158 = vld [vmem:[%s1 + $0xec] sm:$0xf]
  %v159 = vld [vmem:[%s1 + $0xf0] sm:$0xf]
  %v160 = vld [vmem:[%s1 + $0xf4] sm:$0xf]
  %v161 = vld [vmem:[%s1 + $0xf8] sm:$0xf]
  %v162 = vld [vmem:[%s1 + $0xfc] sm:$0xf]
  %v163 = vld [vmem:[%s1 + $0x100] sm:$0xf]
  %v164 = vld [vmem:[%s1 + $0x104] sm:$0xf]
  %v165 = vld [vmem:[%s1 + $0x108] sm:$0xf]
  %v166 = vld [vmem:[%s1 + $0x10c] sm:$0xf]
  %v167 = vld [vmem:[%s1 + $0x110] sm:$0xf]
  %v168 = vld [vmem:[%s1 + $0x114] sm:$0xf]
  %v169 = vld [vmem:[%s1 + $0x118] sm:$0xf]
  %v170 = vld [vmem:[%s1 + $0x11c] sm:$0xf]
  %v171 = vld [vmem:[%s1 + $0x120] sm:$0xf]
  %v172 = vld [vmem:[%s1 + $0x124] sm:$0xf]
  %v173 = vld [vmem:[%s1 + $0x128] sm:$0xf]
  %v174 = vld [vmem:[%s1 + $0x12c] sm:$0xf]
  %v175 = vld [vmem:[%s1 + $0x130] sm:$0xf]
  %v176 = vld [vmem:[%s1 + $0x134] sm:$0xf]
  %v177 = vld [vmem:[%s1 + $0x138] sm:$0xf]
  %v178 = vld [vmem:[%s1 + $0x13c] sm:$0xf]
  %v227 = vunpack.c.l.b16 %v51
  %v228 = vunpack.c.h.b16 %v51
  %v229 = vunpack.c.l.b16 %v52
  %v230 = vunpack.c.h.b16 %v52
  %v231 = vunpack.c.l.b16 %v53
  %v232 = vunpack.c.l.b16 %v54
  %v233 = vunpack.c.h.b16 %v54
  %v234 = vunpack.c.l.b16 %v55
  %v235 = vunpack.c.h.b16 %v55
  %v236 = vunpack.c.l.b16 %v56
  %v237 = vunpack.c.l.b16 %v57
  %v238 = vunpack.c.h.b16 %v57
  %v239 = vunpack.c.l.b16 %v58
  %v240 = vunpack.c.h.b16 %v58
  %v241 = vunpack.c.l.b16 %v59
  %v242 = vunpack.c.l.b16 %v60
  %v243 = vunpack.c.h.b16 %v60
  %v244 = vunpack.c.l.b16 %v61
  %v245 = vunpack.c.h.b16 %v61
  %v246 = vunpack.c.l.b16 %v62
  %v247 = vunpack.c.l.b16 %v63
  %v248 = vunpack.c.h.b16 %v63
  %v249 = vunpack.c.l.b16 %v64
  %v250 = vunpack.c.h.b16 %v64
  %v251 = vunpack.c.l.b16 %v65
  %v252 = vunpack.c.l.b16 %v66
  %v253 = vunpack.c.h.b16 %v66
  %v254 = vunpack.c.l.b16 %v67
  %v255 = vunpack.c.h.b16 %v67
  %v256 = vunpack.c.l.b16 %v68
  %v257 = vunpack.c.l.b16 %v69
  %v258 = vunpack.c.h.b16 %v69
  %v259 = vunpack.c.l.b16 %v70
  %v260 = vunpack.c.h.b16 %v70
  %v261 = vunpack.c.l.b16 %v71
  %v262 = vunpack.c.l.b16 %v72
  %v263 = vunpack.c.h.b16 %v72
  %v264 = vunpack.c.l.b16 %v73
  %v265 = vunpack.c.h.b16 %v73
  %v266 = vunpack.c.l.b16 %v74
  %v267 = vunpack.c.l.b16 %v75
  %v268 = vunpack.c.h.b16 %v75
  %v269 = vunpack.c.l.b16 %v76
  %v270 = vunpack.c.h.b16 %v76
  %v271 = vunpack.c.l.b16 %v77
  %v272 = vunpack.c.l.b16 %v78
  %v273 = vunpack.c.h.b16 %v78
  %v274 = vunpack.c.l.b16 %v79
  %v275 = vunpack.c.h.b16 %v79
  %v276 = vunpack.c.l.b16 %v80
  %v277 = vunpack.c.l.b16 %v81
  %v278 = vunpack.c.h.b16 %v81
  %v279 = vunpack.c.l.b16 %v82
  %v280 = vunpack.c.h.b16 %v82
  %v281 = vunpack.c.l.b16 %v83
  %v282 = vunpack.c.l.b16 %v84
  %v283 = vunpack.c.h.b16 %v84
  %v284 = vunpack.c.l.b16 %v85
  %v285 = vunpack.c.h.b16 %v85
  %v286 = vunpack.c.l.b16 %v86
  %v287 = vunpack.c.l.b16 %v87
  %v288 = vunpack.c.h.b16 %v87
  %v289 = vunpack.c.l.b16 %v88
  %v290 = vunpack.c.h.b16 %v88
  %v291 = vunpack.c.l.b16 %v89
  %v292 = vunpack.c.l.b16 %v90
  %v293 = vunpack.c.h.b16 %v90
  %v294 = vunpack.c.l.b16 %v91
  %v295 = vunpack.c.h.b16 %v91
  %v296 = vunpack.c.l.b16 %v92
  %v297 = vunpack.c.l.b16 %v93
  %v298 = vunpack.c.h.b16 %v93
  %v299 = vunpack.c.l.b16 %v94
  %v300 = vunpack.c.h.b16 %v94
  %v301 = vunpack.c.l.b16 %v95
  %v302 = vunpack.c.l.b16 %v96
  %v303 = vunpack.c.h.b16 %v96
  %v304 = vunpack.c.l.b16 %v97
  %v305 = vunpack.c.h.b16 %v97
  %v306 = vunpack.c.l.b16 %v98
  %v307 = vpack.c.b16 %v232, %v227
  %v308 = vpack.c.b16 %v233, %v228
  %v309 = vpack.c.b16 %v234, %v229
  %v310 = vpack.c.b16 %v235, %v230
  %v311 = vpack.c.b16 %v236, %v231
  %v312 = vpack.c.b16 %v242, %v237
  %v313 = vpack.c.b16 %v243, %v238
  %v314 = vpack.c.b16 %v244, %v239
  %v315 = vpack.c.b16 %v245, %v240
  %v316 = vpack.c.b16 %v246, %v241
  %v317 = vpack.c.b16 %v252, %v247
  %v318 = vpack.c.b16 %v253, %v248
  %v319 = vpack.c.b16 %v254, %v249
  %v320 = vpack.c.b16 %v255, %v250
  %v321 = vpack.c.b16 %v256, %v251
  %v322 = vpack.c.b16 %v262, %v257
  %v323 = vpack.c.b16 %v263, %v258
  %v324 = vpack.c.b16 %v264, %v259
  %v325 = vpack.c.b16 %v265, %v260
  %v326 = vpack.c.b16 %v266, %v261
  %v327 = vpack.c.b16 %v272, %v267
  %v328 = vpack.c.b16 %v273, %v268
  %v329 = vpack.c.b16 %v274, %v269
  %v330 = vpack.c.b16 %v275, %v270
  %v331 = vpack.c.b16 %v276, %v271
  %v332 = vpack.c.b16 %v282, %v277
  %v333 = vpack.c.b16 %v283, %v278
  %v334 = vpack.c.b16 %v284, %v279
  %v335 = vpack.c.b16 %v285, %v280
  %v336 = vpack.c.b16 %v286, %v281
  %v337 = vpack.c.b16 %v292, %v287
  %v338 = vpack.c.b16 %v293, %v288
  %v339 = vpack.c.b16 %v294, %v289
  %v340 = vpack.c.b16 %v295, %v290
  %v341 = vpack.c.b16 %v296, %v291
  %v342 = vpack.c.b16 %v302, %v297
  %v343 = vpack.c.b16 %v303, %v298
  %v344 = vpack.c.b16 %v304, %v299
  %v345 = vpack.c.b16 %v305, %v300
  %v346 = vpack.c.b16 %v306, %v301
  %v467 = vunpack.c.l.b16 %v99
  %v468 = vunpack.c.l.b16 %v100
  %v469 = vunpack.c.l.b16 %v101
  %v470 = vunpack.c.l.b16 %v102
  %v471 = vunpack.c.l.b16 %v103
  %v472 = vunpack.c.l.b16 %v104
  %v473 = vunpack.c.l.b16 %v105
  %v474 = vunpack.c.l.b16 %v106
  %v475 = vunpack.c.l.b16 %v107
  %v476 = vunpack.c.l.b16 %v108
  %v477 = vunpack.c.l.b16 %v109
  %v478 = vunpack.c.l.b16 %v110
  %v479 = vunpack.c.l.b16 %v111
  %v480 = vunpack.c.l.b16 %v112
  %v481 = vunpack.c.l.b16 %v113
  %v482 = vunpack.c.l.b16 %v114
  %v483 = vunpack.c.l.b16 %v115
  %v484 = vunpack.c.l.b16 %v116
  %v485 = vunpack.c.l.b16 %v117
  %v486 = vunpack.c.l.b16 %v118
  %v487 = vunpack.c.l.b16 %v119
  %v488 = vunpack.c.l.b16 %v120
  %v489 = vunpack.c.l.b16 %v121
  %v490 = vunpack.c.l.b16 %v122
  %v491 = vunpack.c.l.b16 %v123
  %v492 = vunpack.c.l.b16 %v124
  %v493 = vunpack.c.l.b16 %v125
  %v494 = vunpack.c.l.b16 %v126
  %v495 = vunpack.c.l.b16 %v127
  %v496 = vunpack.c.l.b16 %v128
  %v497 = vunpack.c.l.b16 %v129
  %v498 = vunpack.c.l.b16 %v130
  %v499 = vunpack.c.l.b16 %v131
  %v500 = vunpack.c.l.b16 %v132
  %v501 = vunpack.c.l.b16 %v133
  %v502 = vunpack.c.l.b16 %v134
  %v503 = vunpack.c.l.b16 %v135
  %v504 = vunpack.c.l.b16 %v136
  %v505 = vunpack.c.l.b16 %v137
  %v506 = vunpack.c.l.b16 %v138
  %v507 = vunpack.c.l.b16 %v139
  %v508 = vunpack.c.l.b16 %v140
  %v509 = vunpack.c.l.b16 %v141
  %v510 = vunpack.c.l.b16 %v142
  %v511 = vunpack.c.l.b16 %v143
  %v512 = vunpack.c.l.b16 %v144
  %v513 = vunpack.c.l.b16 %v145
  %v514 = vunpack.c.l.b16 %v146
  %v515 = vunpack.c.l.b16 %v147
  %v516 = vunpack.c.l.b16 %v148
  %v517 = vunpack.c.l.b16 %v149
  %v518 = vunpack.c.l.b16 %v150
  %v519 = vunpack.c.l.b16 %v151
  %v520 = vunpack.c.l.b16 %v152
  %v521 = vunpack.c.l.b16 %v153
  %v522 = vunpack.c.l.b16 %v154
  %v523 = vunpack.c.l.b16 %v155
  %v524 = vunpack.c.l.b16 %v156
  %v525 = vunpack.c.l.b16 %v157
  %v526 = vunpack.c.l.b16 %v158
  %v527 = vunpack.c.l.b16 %v159
  %v528 = vunpack.c.l.b16 %v160
  %v529 = vunpack.c.l.b16 %v161
  %v530 = vunpack.c.l.b16 %v162
  %v531 = vunpack.c.l.b16 %v163
  %v532 = vunpack.c.l.b16 %v164
  %v533 = vunpack.c.l.b16 %v165
  %v534 = vunpack.c.l.b16 %v166
  %v535 = vunpack.c.l.b16 %v167
  %v536 = vunpack.c.l.b16 %v168
  %v537 = vunpack.c.l.b16 %v169
  %v538 = vunpack.c.l.b16 %v170
  %v539 = vunpack.c.l.b16 %v171
  %v540 = vunpack.c.l.b16 %v172
  %v541 = vunpack.c.l.b16 %v173
  %v542 = vunpack.c.l.b16 %v174
  %v543 = vunpack.c.l.b16 %v175
  %v544 = vunpack.c.l.b16 %v176
  %v545 = vunpack.c.l.b16 %v177
  %v546 = vunpack.c.l.b16 %v178
  %v547 = vpack.c.b16 %v468, %v467
  %v548 = vpack.c.b16 %v470, %v469
  %v549 = vpack.c.b16 %v472, %v471
  %v550 = vpack.c.b16 %v474, %v473
  %v551 = vpack.c.b16 %v476, %v475
  %v552 = vpack.c.b16 %v478, %v477
  %v553 = vpack.c.b16 %v480, %v479
  %v554 = vpack.c.b16 %v482, %v481
  %v555 = vpack.c.b16 %v484, %v483
  %v556 = vpack.c.b16 %v486, %v485
  %v557 = vpack.c.b16 %v488, %v487
  %v558 = vpack.c.b16 %v490, %v489
  %v559 = vpack.c.b16 %v492, %v491
  %v560 = vpack.c.b16 %v494, %v493
  %v561 = vpack.c.b16 %v496, %v495
  %v562 = vpack.c.b16 %v498, %v497
  %v563 = vpack.c.b16 %v500, %v499
  %v564 = vpack.c.b16 %v502, %v501
  %v565 = vpack.c.b16 %v504, %v503
  %v566 = vpack.c.b16 %v506, %v505
  %v567 = vpack.c.b16 %v508, %v507
  %v568 = vpack.c.b16 %v510, %v509
  %v569 = vpack.c.b16 %v512, %v511
  %v570 = vpack.c.b16 %v514, %v513
  %v571 = vpack.c.b16 %v516, %v515
  %v572 = vpack.c.b16 %v518, %v517
  %v573 = vpack.c.b16 %v520, %v519
  %v574 = vpack.c.b16 %v522, %v521
  %v575 = vpack.c.b16 %v524, %v523
  %v576 = vpack.c.b16 %v526, %v525
  %v577 = vpack.c.b16 %v528, %v527
  %v578 = vpack.c.b16 %v530, %v529
  %v579 = vpack.c.b16 %v532, %v531
  %v580 = vpack.c.b16 %v534, %v533
  %v581 = vpack.c.b16 %v536, %v535
  %v582 = vpack.c.b16 %v538, %v537
  %v583 = vpack.c.b16 %v540, %v539
  %v584 = vpack.c.b16 %v542, %v541
  %v585 = vpack.c.b16 %v544, %v543
  %v586 = vpack.c.b16 %v546, %v545
  %627 = vmatprep.subr.bf16.mxu0 0
  %628 = vmatpush1.bf16.msra.mxu0 %v547
  %629 = vmatprep.subr.bf16.mxu0 0
  %630 = vmatpush1.bf16.msra.mxu0 %v548
  %631 = vmatprep.subr.bf16.mxu0 0
  %632 = vmatpush1.bf16.msra.mxu0 %v549
  %633 = vmatprep.subr.bf16.mxu0 0
  %634 = vmatpush1.bf16.msra.mxu0 %v550
  %635 = vmatprep.subr.bf16.mxu0 0
  %636 = vmatpush1.bf16.msra.mxu0 %v551
  %637 = vmatprep.subr.bf16.mxu0 0
  %638 = vmatpush1.bf16.msra.mxu0 %v552
  %639 = vmatprep.subr.bf16.mxu0 0
  %640 = vmatpush1.bf16.msra.mxu0 %v553
  %641 = vmatprep.subr.bf16.mxu0 0
  %642 = vmatpush1.bf16.msra.mxu0 %v554
  %643 = vmatprep.subr.bf16.mxu0 0
  %644 = vmatpush1.bf16.msra.mxu0 %v555
  %645 = vmatprep.subr.bf16.mxu0 0
  %646 = vmatpush1.bf16.msra.mxu0 %v556
  %647 = vmatprep.subr.bf16.mxu0 0
  %648 = vmatpush1.bf16.msra.mxu0 %v557
  %649 = vmatprep.subr.bf16.mxu0 0
  %650 = vmatpush1.bf16.msra.mxu0 %v558
  %651 = vmatprep.subr.bf16.mxu0 0
  %652 = vmatpush1.bf16.msra.mxu0 %v559
  %653 = vmatprep.subr.bf16.mxu0 0
  %654 = vmatpush1.bf16.msra.mxu0 %v560
  %655 = vmatprep.subr.bf16.mxu0 0
  %656 = vmatpush1.bf16.msra.mxu0 %v561
  %657 = vmatprep.subr.bf16.mxu0 0
  %658 = vmatpush1.bf16.msra.mxu0 %v562
  %659 = vmatprep.mubr.bf16.mxu0 %v308
  %660 = vmatmul.mubr.bf16.gmra.mrb[0].mxu0 %v307
  %v661 = vpop.f32.mrb[0].mxu0
  %v662 = vadd.f32 0.0, %v661
  %v663 = vpop.f32.mrb[0].mxu0
  %v664 = vpop.f32.mrb[0].mxu0
  %v665 = vadd.f32 0.0, %v664
  %v666 = vpop.f32.mrb[0].mxu0
  %667 = vmatprep.mubr.bf16.mxu0 %v313
  %668 = vmatmul.mubr.bf16.gmra.mrb[0].mxu0 %v312
  %v669 = vpop.f32.mrb[0].mxu0
  %v670 = vadd.f32 0.0, %v669
  %v671 = vpop.f32.mrb[0].mxu0
  %v672 = vpop.f32.mrb[0].mxu0
  %v673 = vadd.f32 0.0, %v672
  %v674 = vpop.f32.mrb[0].mxu0
  %675 = vmatprep.mubr.bf16.mxu0 %v318
  %676 = vmatmul.mubr.bf16.gmra.mrb[0].mxu0 %v317
  %v677 = vpop.f32.mrb[0].mxu0
  %v678 = vadd.f32 0.0, %v677
  %v679 = vpop.f32.mrb[0].mxu0
  %v680 = vpop.f32.mrb[0].mxu0
  %v681 = vadd.f32 0.0, %v680
  %v682 = vpop.f32.mrb[0].mxu0
  %683 = vmatprep.mubr.bf16.mxu0 %v323
  %684 = vmatmul.mubr.bf16.gmra.mrb[0].mxu0 %v322
  %v685 = vpop.f32.mrb[0].mxu0
  %v686 = vadd.f32 0.0, %v685
  %v687 = vpop.f32.mrb[0].mxu0
  %v688 = vpop.f32.mrb[0].mxu0
  %v689 = vadd.f32 0.0, %v688
  %v690 = vpop.f32.mrb[0].mxu0
  %691 = vmatprep.mubr.bf16.mxu0 %v328
  %692 = vmatmul.mubr.bf16.gmra.mrb[0].mxu0 %v327
  %v693 = vpop.f32.mrb[0].mxu0
  %v694 = vadd.f32 0.0, %v693
  %v695 = vpop.f32.mrb[0].mxu0
  %v696 = vpop.f32.mrb[0].mxu0
  %v697 = vadd.f32 0.0, %v696
  %v698 = vpop.f32.mrb[0].mxu0
  %699 = vmatprep.mubr.bf16.mxu0 %v333
  %700 = vmatmul.mubr.bf16.gmra.mrb[0].mxu0 %v332
  %v701 = vpop.f32.mrb[0].mxu0
  %v702 = vadd.f32 0.0, %v701
  %v703 = vpop.f32.mrb[0].mxu0
  %v704 = vpop.f32.mrb[0].mxu0
  %v705 = vadd.f32 0.0, %v704
  %v706 = vpop.f32.mrb[0].mxu0
  %707 = vmatprep.mubr.bf16.mxu0 %v338
  %708 = vmatmul.mubr.bf16.gmra.mrb[0].mxu0 %v337
  %v709 = vpop.f32.mrb[0].mxu0
  %v710 = vadd.f32 0.0, %v709
  %v711 = vpop.f32.mrb[0].mxu0
  %v712 = vpop.f32.mrb[0].mxu0
  %v713 = vadd.f32 0.0, %v712
  %v714 = vpop.f32.mrb[0].mxu0
  %715 = vmatprep.mubr.bf16.mxu0 %v343
  %716 = vmatmul.mubr.bf16.gmra.mrb[0].mxu0 %v342
  %v717 = vpop.f32.mrb[0].mxu0
  %v718 = vadd.f32 0.0, %v717
  %v719 = vpop.f32.mrb[0].mxu0
  %v720 = vpop.f32.mrb[0].mxu0
  %v721 = vadd.f32 0.0, %v720
  %v722 = vpop.f32.mrb[0].mxu0
  %723 = vdwg.mxu0
  %724 = vmatprep.subr.bf16.mxu0 0
  %725 = vmatpush1.bf16.msra.mxu0 %v563
  %726 = vmatprep.subr.bf16.mxu0 0
  %727 = vmatpush1.bf16.msra.mxu0 %v564
  %728 = vmatprep.subr.bf16.mxu0 0
  %729 = vmatpush1.bf16.msra.mxu0 %v565
  %730 = vmatprep.subr.bf16.mxu0 0
  %731 = vmatpush1.bf16.msra.mxu0 %v566
  %732 = vmatprep.subr.bf16.mxu0 0
  %733 = vmatpush1.bf16.msra.mxu0 %v567
  %734 = vmatprep.subr.bf16.mxu0 0
  %735 = vmatpush1.bf16.msra.mxu0 %v568
  %736 = vmatprep.subr.bf16.mxu0 0
  %737 = vmatpush1.bf16.msra.mxu0 %v569
  %738 = vmatprep.subr.bf16.mxu0 0
  %739 = vmatpush1.bf16.msra.mxu0 %v570
  %740 = vmatprep.subr.bf16.mxu0 0
  %741 = vmatpush1.bf16.msra.mxu0 %v571
  %742 = vmatprep.subr.bf16.mxu0 0
  %743 = vmatpush1.bf16.msra.mxu0 %v572
  %744 = vmatprep.subr.bf16.mxu0 0
  %745 = vmatpush1.bf16.msra.mxu0 %v573
  %746 = vmatprep.subr.bf16.mxu0 0
  %747 = vmatpush1.bf16.msra.mxu0 %v574
  %748 = vmatprep.subr.bf16.mxu0 0
  %749 = vmatpush1.bf16.msra.mxu0 %v575
  %750 = vmatprep.subr.bf16.mxu0 0
  %751 = vmatpush1.bf16.msra.mxu0 %v576
  %752 = vmatprep.subr.bf16.mxu0 0
  %753 = vmatpush1.bf16.msra.mxu0 %v577
  %754 = vmatprep.subr.bf16.mxu0 0
  %755 = vmatpush1.bf16.msra.mxu0 %v578
  %756 = vmatprep.mubr.bf16.mxu0 %v310
  %757 = vmatmul.mubr.bf16.gmra.mrb[0].mxu0 %v309
  %v758 = vpop.f32.mrb[0].mxu0
  %v759 = vadd.f32 %v662, %v758
  %v760 = vpop.f32.mrb[0].mxu0
  %v761 = vpop.f32.mrb[0].mxu0
  %v762 = vadd.f32 %v665, %v761
  %v763 = vpop.f32.mrb[0].mxu0
  %764 = vmatprep.mubr.bf16.mxu0 %v315
  %765 = vmatmul.mubr.bf16.gmra.mrb[0].mxu0 %v314
  %v766 = vpop.f32.mrb[0].mxu0
  %v767 = vadd.f32 %v670, %v766
  %v768 = vpop.f32.mrb[0].mxu0
  %v769 = vpop.f32.mrb[0].mxu0
  %v770 = vadd.f32 %v673, %v769
  %v771 = vpop.f32.mrb[0].mxu0
  %772 = vmatprep.mubr.bf16.mxu0 %v320
  %773 = vmatmul.mubr.bf16.gmra.mrb[0].mxu0 %v319
  %v774 = vpop.f32.mrb[0].mxu0
  %v775 = vadd.f32 %v678, %v774
  %v776 = vpop.f32.mrb[0].mxu0
  %v777 = vpop.f32.mrb[0].mxu0
  %v778 = vadd.f32 %v681, %v777
  %v779 = vpop.f32.mrb[0].mxu0
  %780 = vmatprep.mubr.bf16.mxu0 %v325
  %781 = vmatmul.mubr.bf16.gmra.mrb[0].mxu0 %v324
  %v782 = vpop.f32.mrb[0].mxu0
  %v783 = vadd.f32 %v686, %v782
  %v784 = vpop.f32.mrb[0].mxu0
  %v785 = vpop.f32.mrb[0].mxu0
  %v786 = vadd.f32 %v689, %v785
  %v787 = vpop.f32.mrb[0].mxu0
  %788 = vmatprep.mubr.bf16.mxu0 %v330
  %789 = vmatmul.mubr.bf16.gmra.mrb[0].mxu0 %v329
  %v790 = vpop.f32.mrb[0].mxu0
  %v791 = vadd.f32 %v694, %v790
  %v792 = vpop.f32.mrb[0].mxu0
  %v793 = vpop.f32.mrb[0].mxu0
  %v794 = vadd.f32 %v697, %v793
  %v795 = vpop.f32.mrb[0].mxu0
  %796 = vmatprep.mubr.bf16.mxu0 %v335
  %797 = vmatmul.mubr.bf16.gmra.mrb[0].mxu0 %v334
  %v798 = vpop.f32.mrb[0].mxu0
  %v799 = vadd.f32 %v702, %v798
  %v800 = vpop.f32.mrb[0].mxu0
  %v801 = vpop.f32.mrb[0].mxu0
  %v802 = vadd.f32 %v705, %v801
  %v803 = vpop.f32.mrb[0].mxu0
  %804 = vmatprep.mubr.bf16.mxu0 %v340
  %805 = vmatmul.mubr.bf16.gmra.mrb[0].mxu0 %v339
  %v806 = vpop.f32.mrb[0].mxu0
  %v807 = vadd.f32 %v710, %v806
  %v808 = vpop.f32.mrb[0].mxu0
  %v809 = vpop.f32.mrb[0].mxu0
  %v810 = vadd.f32 %v713, %v809
  %v811 = vpop.f32.mrb[0].mxu0
  %812 = vmatprep.mubr.bf16.mxu0 %v345
  %813 = vmatmul.mubr.bf16.gmra.mrb[0].mxu0 %v344
  %v814 = vpop.f32.mrb[0].mxu0
  %v815 = vadd.f32 %v718, %v814
  %v816 = vpop.f32.mrb[0].mxu0
  %v817 = vpop.f32.mrb[0].mxu0
  %v818 = vadd.f32 %v721, %v817
  %v819 = vpop.f32.mrb[0].mxu0
  %820 = vdwg.mxu0
  %821 = vmatprep.subr.bf16.mxu0 0
  %822 = vmatpush1.bf16.msra.mxu0 %v579
  %823 = vmatprep.subr.bf16.mxu0 0
  %824 = vmatpush1.bf16.msra.mxu0 %v580
  %825 = vmatprep.subr.bf16.mxu0 0
  %826 = vmatpush1.bf16.msra.mxu0 %v581
  %827 = vmatprep.subr.bf16.mxu0 0
  %828 = vmatpush1.bf16.msra.mxu0 %v582
  %829 = vmatprep.subr.bf16.mxu0 0
  %830 = vmatpush1.bf16.msra.mxu0 %v583
  %831 = vmatprep.subr.bf16.mxu0 0
  %832 = vmatpush1.bf16.msra.mxu0 %v584
  %833 = vmatprep.subr.bf16.mxu0 0
  %834 = vmatpush1.bf16.msra.mxu0 %v585
  %835 = vmatprep.subr.bf16.mxu0 0
  %836 = vmatpush1.bf16.msra.mxu0 %v586
  %837 = vmatprep.subr.bf16.mxu0 0
  %838 = vmatpush1.bf16.msra.mxu0 0
  %839 = vmatprep.subr.bf16.mxu0 0
  %840 = vmatpush1.bf16.msra.mxu0 0
  %841 = vmatprep.subr.bf16.mxu0 0
  %842 = vmatpush1.bf16.msra.mxu0 0
  %843 = vmatprep.subr.bf16.mxu0 0
  %844 = vmatpush1.bf16.msra.mxu0 0
  %845 = vmatprep.subr.bf16.mxu0 0
  %846 = vmatpush1.bf16.msra.mxu0 0
  %847 = vmatprep.subr.bf16.mxu0 0
  %848 = vmatpush1.bf16.msra.mxu0 0
  %849 = vmatprep.subr.bf16.mxu0 0
  %850 = vmatpush1.bf16.msra.mxu0 0
  %851 = vmatprep.subr.bf16.mxu0 0
  %852 = vmatpush1.bf16.msra.mxu0 0
  %853 = vmatprep.mubr.bf16.mxu0 0
  %854 = vmatmul.mubr.bf16.gmra.mrb[0].mxu0 %v311
  %v855 = vpop.f32.mrb[0].mxu0
  %v856 = vadd.f32 %v759, %v855
  %v857 = vpop.f32.mrb[0].mxu0
  %v858 = vpop.f32.mrb[0].mxu0
  %v859 = vadd.f32 %v762, %v858
  %v860 = vpop.f32.mrb[0].mxu0
  %861 = vmatprep.mubr.bf16.mxu0 0
  %862 = vmatmul.mubr.bf16.gmra.mrb[0].mxu0 %v316
  %v863 = vpop.f32.mrb[0].mxu0
  %v864 = vadd.f32 %v767, %v863
  %v865 = vpop.f32.mrb[0].mxu0
  %v866 = vpop.f32.mrb[0].mxu0
  %v867 = vadd.f32 %v770, %v866
  %v868 = vpop.f32.mrb[0].mxu0
  %869 = vmatprep.mubr.bf16.mxu0 0
  %870 = vmatmul.mubr.bf16.gmra.mrb[0].mxu0 %v321
  %v871 = vpop.f32.mrb[0].mxu0
  %v872 = vadd.f32 %v775, %v871
  %v873 = vpop.f32.mrb[0].mxu0
  %v874 = vpop.f32.mrb[0].mxu0
  %v875 = vadd.f32 %v778, %v874
  %v876 = vpop.f32.mrb[0].mxu0
  %877 = vmatprep.mubr.bf16.mxu0 0
  %878 = vmatmul.mubr.bf16.gmra.mrb[0].mxu0 %v326
  %v879 = vpop.f32.mrb[0].mxu0
  %v880 = vadd.f32 %v783, %v879
  %v881 = vpop.f32.mrb[0].mxu0
  %v882 = vpop.f32.mrb[0].mxu0
  %v883 = vadd.f32 %v786, %v882
  %v884 = vpop.f32.mrb[0].mxu0
  %885 = vmatprep.mubr.bf16.mxu0 0
  %886 = vmatmul.mubr.bf16.gmra.mrb[0].mxu0 %v331
  %v887 = vpop.f32.mrb[0].mxu0
  %v888 = vadd.f32 %v791, %v887
  %v889 = vpop.f32.mrb[0].mxu0
  %v890 = vpop.f32.mrb[0].mxu0
  %v891 = vadd.f32 %v794, %v890
  %v892 = vpop.f32.mrb[0].mxu0
  %893 = vmatprep.mubr.bf16.mxu0 0
  %894 = vmatmul.mubr.bf16.gmra.mrb[0].mxu0 %v336
  %v895 = vpop.f32.mrb[0].mxu0
  %v896 = vadd.f32 %v799, %v895
  %v897 = vpop.f32.mrb[0].mxu0
  %v898 = vpop.f32.mrb[0].mxu0
  %v899 = vadd.f32 %v802, %v898
  %v900 = vpop.f32.mrb[0].mxu0
  %901 = vmatprep.mubr.bf16.mxu0 0
  %902 = vmatmul.mubr.bf16.gmra.mrb[0].mxu0 %v341
  %v903 = vpop.f32.mrb[0].mxu0
  %v904 = vadd.f32 %v807, %v903
  %v905 = vpop.f32.mrb[0].mxu0
  %v906 = vpop.f32.mrb[0].mxu0
  %v907 = vadd.f32 %v810, %v906
  %v908 = vpop.f32.mrb[0].mxu0
  %909 = vmatprep.mubr.bf16.mxu0 0
  %910 = vmatmul.mubr.bf16.gmra.mrb[0].mxu0 %v346
  %v911 = vpop.f32.mrb[0].mxu0
  %v912 = vadd.f32 %v815, %v911
  %v913 = vpop.f32.mrb[0].mxu0
  %v914 = vpop.f32.mrb[0].mxu0
  %v915 = vadd.f32 %v818, %v914
  %v916 = vpop.f32.mrb[0].mxu0
  %917 = vdwg.mxu0
  %v918 = vadd.f32 %v35, %v856
  %v919 = vadd.f32 %v36, %v859
  %v920 = vadd.f32 %v37, %v864
  %v921 = vadd.f32 %v38, %v867
  %v922 = vadd.f32 %v39, %v872
  %v923 = vadd.f32 %v40, %v875
  %v924 = vadd.f32 %v41, %v880
  %v925 = vadd.f32 %v42, %v883
  %v926 = vadd.f32 %v43, %v888
  %v927 = vadd.f32 %v44, %v891
  %v928 = vadd.f32 %v45, %v896
  %v929 = vadd.f32 %v46, %v899
  %v930 = vadd.f32 %v47, %v904
  %v931 = vadd.f32 %v48, %v907
  %v932 = vadd.f32 %v49, %v912
  %v933 = vadd.f32 %v50, %v915
  %934 = vst [vmem:[#allocation2] sm:$0xff] %v918
  %935 = vst [vmem:[#allocation2 + $0x8] sm:$0xff] %v919
  %936 = vst [vmem:[#allocation2 + $0x10] sm:$0xff] %v920
  %937 = vst [vmem:[#allocation2 + $0x18] sm:$0xff] %v921
  %938 = vst [vmem:[#allocation2 + $0x20] sm:$0xff] %v922
  %939 = vst [vmem:[#allocation2 + $0x28] sm:$0xff] %v923
  %940 = vst [vmem:[#allocation2 + $0x30] sm:$0xff] %v924
  %941 = vst [vmem:[#allocation2 + $0x38] sm:$0xff] %v925
  %942 = vst [vmem:[#allocation2 + $0x40] sm:$0xff] %v926
  %943 = vst [vmem:[#allocation2 + $0x48] sm:$0xff] %v927
  %944 = vst [vmem:[#allocation2 + $0x50] sm:$0xff] %v928
  %945 = vst [vmem:[#allocation2 + $0x58] sm:$0xff] %v929
  %946 = vst [vmem:[#allocation2 + $0x60] sm:$0xff] %v930
  %947 = vst [vmem:[#allocation2 + $0x68] sm:$0xff] %v931
  %948 = vst [vmem:[#allocation2 + $0x70] sm:$0xff] %v932
  %949 = vst [vmem:[#allocation2 + $0x78] sm:$0xff] %v933
  // Predicated region
  $region18: #{_lambda_.12} parent=0 // pred_check
    %p950 = pneg %p15
  $region19: #{_lambda_.12} parent=0 // pred_check_branch
    %952 = sbr.rel (%p950) target = $region21
  $region20: #{_lambda_.12} parent=0 // pred_region
    %v953 = vld [vmem:[#allocation2] sm:$0xff]
    %v954 = vld [vmem:[#allocation2 + $0x8] sm:$0xff]
    %v955 = vld [vmem:[#allocation2 + $0x10] sm:$0xff]
    %v956 = vld [vmem:[#allocation2 + $0x18] sm:$0xff]
    %v957 = vld [vmem:[#allocation2 + $0x20] sm:$0xff]
    %v958 = vld [vmem:[#allocation2 + $0x28] sm:$0xff]
    %v959 = vld [vmem:[#allocation2 + $0x30] sm:$0xff]
    %v960 = vld [vmem:[#allocation2 + $0x38] sm:$0xff]
    %v961 = vld [vmem:[#allocation2 + $0x40] sm:$0xff]
    %v962 = vld [vmem:[#allocation2 + $0x48] sm:$0xff]
    %v963 = vld [vmem:[#allocation2 + $0x50] sm:$0xff]
    %v964 = vld [vmem:[#allocation2 + $0x58] sm:$0xff]
    %v965 = vld [vmem:[#allocation2 + $0x60] sm:$0xff]
    %v966 = vld [vmem:[#allocation2 + $0x68] sm:$0xff]
    %v967 = vld [vmem:[#allocation2 + $0x70] sm:$0xff]
    %v968 = vld [vmem:[#allocation2 + $0x78] sm:$0xff]
    %v969 = vld [vmem:[%s2] sm:$0x1]
    %v971 = vlaneseq
    %v972 = vshrl.u32 %v971, 7
    %v973 = vsub.s32 0, %v972
    %v974 = vrot.slane %v969, %v973
    %v976 = vadd.f32 %v953, %v974
    %v977 = vadd.f32 %v954, %v974
    %v978 = vadd.f32 %v955, %v974
    %v979 = vadd.f32 %v956, %v974
    %v980 = vadd.f32 %v957, %v974
    %v981 = vadd.f32 %v958, %v974
    %v982 = vadd.f32 %v959, %v974
    %v983 = vadd.f32 %v960, %v974
    %v984 = vadd.f32 %v961, %v974
    %v985 = vadd.f32 %v962, %v974
    %v986 = vadd.f32 %v963, %v974
    %v987 = vadd.f32 %v964, %v974
    %v988 = vadd.f32 %v965, %v974
    %v989 = vadd.f32 %v966, %v974
    %v990 = vadd.f32 %v967, %v974
    %v991 = vadd.f32 %v968, %v974
    %v992 = vmax.f32 %v976, 0.0
    %v993 = vmax.f32 %v977, 0.0
    %v994 = vmax.f32 %v978, 0.0
    %v995 = vmax.f32 %v979, 0.0
    %v996 = vmax.f32 %v980, 0.0
    %v997 = vmax.f32 %v981, 0.0
    %v998 = vmax.f32 %v982, 0.0
    %v999 = vmax.f32 %v983, 0.0
    %v1000 = vmax.f32 %v984, 0.0
    %v1001 = vmax.f32 %v985, 0.0
    %v1002 = vmax.f32 %v986, 0.0
    %v1003 = vmax.f32 %v987, 0.0
    %v1004 = vmax.f32 %v988, 0.0
    %v1005 = vmax.f32 %v989, 0.0
    %v1006 = vmax.f32 %v990, 0.0
    %v1007 = vmax.f32 %v991, 0.0
    %1008 = vst [vmem:[%s3] sm:$0xff] %v992
    %1009 = vst [vmem:[%s3 + $0x8] sm:$0xff] %v993
    %1010 = vst [vmem:[%s3 + $0x10] sm:$0xff] %v994
    %1011 = vst [vmem:[%s3 + $0x18] sm:$0xff] %v995
    %1012 = vst [vmem:[%s3 + $0x20] sm:$0xff] %v996
    %1013 = vst [vmem:[%s3 + $0x28] sm:$0xff] %v997
    %1014 = vst [vmem:[%s3 + $0x30] sm:$0xff] %v998
    %1015 = vst [vmem:[%s3 + $0x38] sm:$0xff] %v999
    %1016 = vst [vmem:[%s3 + $0x40] sm:$0xff] %v1000
    %1017 = vst [vmem:[%s3 + $0x48] sm:$0xff] %v1001
    %1018 = vst [vmem:[%s3 + $0x50] sm:$0xff] %v1002
    %1019 = vst [vmem:[%s3 + $0x58] sm:$0xff] %v1003
    %1020 = vst [vmem:[%s3 + $0x60] sm:$0xff] %v1004
    %1021 = vst [vmem:[%s3 + $0x68] sm:$0xff] %v1005
    %1022 = vst [vmem:[%s3 + $0x70] sm:$0xff] %v1006
    %1023 = vst [vmem:[%s3 + $0x78] sm:$0xff] %v1007
  $region21: #{_lambda_.12} parent=0 // pred_fallthru
    _
  // Predicated region
  $region22: #{_lambda_.12} parent=0 // pred_check
    _
  $region23: #{_lambda_.12} parent=0 // pred_check_branch
    %1025 = sbr.rel (0) target = $region25
  $region24: #{_lambda_.12} parent=0 // pred_region
    _
  $region25: #{_lambda_.12} parent=0 // pred_fallthru
    _
  // Predicated region
  $region26: #{_lambda_.12} parent=0 // pred_check
    _
  $region27: #{_lambda_.12} parent=0 // pred_check_branch
    %1027 = sbr.rel (0) target = $region29
  $region28: #{_lambda_.12} parent=0 // pred_region
    _
  $region29: #{_lambda_.12} parent=0 // pred_fallthru
    _

// kernel: _lambda_.13
$region0: #{_lambda_.13}
  #allocation0 [shape = 'u32[]', space=smem, size = 0x4, offset = 0x4, fixed_abs, tag = 'smem constant byte address 0x4 - core index']
  #allocation1 [shape = 'u32[144,128]{1,0:T(1,128)}', space=vmem, size = 0x12000, scoped, tag = 'internal scratch']
  #allocation2 [shape = 'f32[1]{0:T(128)S(6)}', space=smem, size = 0x200, scoped, tag = 'scoped memory for _lambda_.13']
  %s0 = inlined_call_operand.vmem [shape: f32[2,16,16,288], index: 0, kind: input, shape index: {}]
  %s1 = inlined_call_operand.vmem [shape: f32[1,1,1,288], index: 1, kind: input, shape index: {}]
  %s2 = inlined_call_operand.<no memory space> [shape: f32[1], index: 2, kind: input, shape index: {}]
  %s3 = inlined_call_operand.vmem [shape: f32[32,16], index: 3, kind: input, shape index: {}]
  %s4 = inlined_call_operand.vmem [shape: f32[16,128], index: 4, kind: input, shape index: {}]
  %s5 = inlined_call_operand.vmem [shape: f32[2,1,32,128], index: 5, kind: output, shape index: {}]
  %s6 = sld [smem:[#allocation0]]
  $region53: #{_lambda_.13} parent=0
    _
  %s8 = ssub.s32 1, %s6
  %s9 = scalar_select 0, %s8, %s6
  %10 = sst [smem:[#allocation2]] %s2
  loop: start=0, step=1, limit=4
  $region2: #{_lambda_.13} parent=0 // loop_pre_header
    _
  $region3: #{_lambda_.13} parent=0 // loop_header
    %s12 = sphi 0, %s16
    %p13 = scmp.ge.s32.totalorder %s12, 4
    %s19 = sphi 0, %s31
    %s20 = sphi 0, %s27
    %s21 = sphi 0, %s19
    %s22 = sphi 0, %s20
    %s23 = sphi 0, %s21
    %s24 = sphi 0, %s22
    %s34 = sphi 0, %s36
    %s37 = sphi 0, %s34
    %s38 = sphi 0, %s37
    %s54 = sphi 0, %s38
    %s60 = sphi 0, %s62
    %s63 = sphi 0, %s60
    %s64 = sphi 0, %s63
    %s80 = sphi 0, %s64
    %s84 = sphi 0, %s84
    %s86 = sphi 0, %s84
    %s87 = sphi 0, %s86
    %s101 = sphi 0, %s87
    %s105 = sphi 0, %s105
    %s107 = sphi 0, %s105
    %s108 = sphi 0, %s107
    %s122 = sphi 0, %s108
    %s126 = sphi 0, %s126
    %s128 = sphi 0, %s126
    %s129 = sphi 0, %s128
    %s143 = sphi 0, %s129
    %s151 = sphi 0, %s153
    %s154 = sphi 0, %s151
    %s155 = sphi 0, %s154
    %s171 = sphi 0, %s155
  $region4: #{_lambda_.13} parent=0 // loop_header_branch
    %15 = sbr.rel (%p13) target = $region8
  $region5: #{_lambda_.13} parent=0 // loop_body
    %s17 = ssub.s32 %s12, 1
    %s18 = ssub.s32 %s12, 2
    %s25 = sadd.s32 1, %s20
    %p26 = scmp.ge.s32.totalorder %s25, 1
    %s27 = scalar_select %p26, 0, %s25
    %s28 = sadd.s32 1, %s19
    %s29 = scalar_select %p26, %s28, %s19
    %p30 = scmp.ge.s32.totalorder %s29, 2
    %s31 = scalar_select %p30, 0, %s29
    %s32 = ssub.s32 %s19, %s31
    %p33 = scmp.eq.s32.totalorder %s32, 0
    %s35 = sadd.s32 %s34, 1
    %s36 = scalar_select %p33, %s34, %s35
    %p39 = pneg %p33
    %p40 = scmp.eq.s32.totalorder %s12, 1
    %p41 = por %p39, %p40
    %p42 = scmp.ne.s32.totalorder %s34, %s37
    %p43 = scmp.eq.s32.totalorder %s12, 0
    %p44 = por %p42, %p43
    %p45 = scmp.ne.s32.totalorder %s34, %s37
    %p46 = scmp.eq.s32.totalorder %s17, 1
    %p47 = por %p45, %p46
    %p48 = scmp.ne.s32.totalorder %s37, %s38
    %p49 = scmp.eq.s32.totalorder %s17, 0
    %p50 = por %p48, %p49
    %p51 = scmp.ne.s32.totalorder %s37, %s38
    %p52 = scmp.eq.s32.totalorder %s18, 1
    %p53 = por %p51, %p52
    %p55 = scmp.ne.s32.totalorder %s38, %s54
    %p56 = scmp.eq.s32.totalorder %s18, 0
    %p57 = por %p55, %p56
    %s58 = ssub.s32 %s20, %s27
    %p59 = scmp.eq.s32.totalorder %s58, 0
    %s61 = sadd.s32 %s60, 1
    %s62 = scalar_select %p59, %s60, %s61
    %p65 = pneg %p59
    %p66 = scmp.eq.s32.totalorder %s12, 1
    %p67 = por %p65, %p66
    %p68 = scmp.ne.s32.totalorder %s60, %s63
    %p69 = scmp.eq.s32.totalorder %s12, 0
    %p70 = por %p68, %p69
    %p71 = scmp.ne.s32.totalorder %s60, %s63
    %p72 = scmp.eq.s32.totalorder %s17, 1
    %p73 = por %p71, %p72
    %p74 = scmp.ne.s32.totalorder %s63, %s64
    %p75 = scmp.eq.s32.totalorder %s17, 0
    %p76 = por %p74, %p75
    %p77 = scmp.ne.s32.totalorder %s63, %s64
    %p78 = scmp.eq.s32.totalorder %s18, 1
    %p79 = por %p77, %p78
    %p81 = scmp.ne.s32.totalorder %s64, %s80
    %p82 = scmp.eq.s32.totalorder %s18, 0
    %p83 = por %p81, %p82
    %s85 = sadd.s32 %s84, 1
    %p88 = scmp.eq.s32.totalorder %s12, 1
    %p89 = scmp.ne.s32.totalorder %s84, %s86
    %p90 = scmp.eq.s32.totalorder %s12, 0
    %p91 = por %p89, %p90
    %p92 = scmp.ne.s32.totalorder %s84, %s86
    %p93 = scmp.eq.s32.totalorder %s17, 1
    %p94 = por %p92, %p93
    %p95 = scmp.ne.s32.totalorder %s86, %s87
    %p96 = scmp.eq.s32.totalorder %s17, 0
    %p97 = por %p95, %p96
    %p98 = scmp.ne.s32.totalorder %s86, %s87
    %p99 = scmp.eq.s32.totalorder %s18, 1
    %p100 = por %p98, %p99
    %p102 = scmp.ne.s32.totalorder %s87, %s101
    %p103 = scmp.eq.s32.totalorder %s18, 0
    %p104 = por %p102, %p103
    %s106 = sadd.s32 %s105, 1
    %p109 = scmp.eq.s32.totalorder %s12, 1
    %p110 = scmp.ne.s32.totalorder %s105, %s107
    %p111 = scmp.eq.s32.totalorder %s12, 0
    %p112 = por %p110, %p111
    %p113 = scmp.ne.s32.totalorder %s105, %s107
    %p114 = scmp.eq.s32.totalorder %s17, 1
    %p115 = por %p113, %p114
    %p116 = scmp.ne.s32.totalorder %s107, %s108
    %p117 = scmp.eq.s32.totalorder %s17, 0
    %p118 = por %p116, %p117
    %p119 = scmp.ne.s32.totalorder %s107, %s108
    %p120 = scmp.eq.s32.totalorder %s18, 1
    %p121 = por %p119, %p120
    %p123 = scmp.ne.s32.totalorder %s108, %s122
    %p124 = scmp.eq.s32.totalorder %s18, 0
    %p125 = por %p123, %p124
    %s127 = sadd.s32 %s126, 1
    %p130 = scmp.eq.s32.totalorder %s12, 1
    %p131 = scmp.ne.s32.totalorder %s126, %s128
    %p132 = scmp.eq.s32.totalorder %s12, 0
    %p133 = por %p131, %p132
    %p134 = scmp.ne.s32.totalorder %s126, %s128
    %p135 = scmp.eq.s32.totalorder %s17, 1
    %p136 = por %p134, %p135
    %p137 = scmp.ne.s32.totalorder %s128, %s129
    %p138 = scmp.eq.s32.totalorder %s17, 0
    %p139 = por %p137, %p138
    %p140 = scmp.ne.s32.totalorder %s128, %s129
    %p141 = scmp.eq.s32.totalorder %s18, 1
    %p142 = por %p140, %p141
    %p144 = scmp.ne.s32.totalorder %s129, %s143
    %p145 = scmp.eq.s32.totalorder %s18, 0
    %p146 = por %p144, %p145
    %s147 = ssub.s32 %s19, %s31
    %s148 = ssub.s32 %s20, %s27
    %s149 = sor.u32 %s147, %s148
    %p150 = scmp.eq.s32.totalorder %s149, 0
    %s152 = sadd.s32 %s151, 1
    %s153 = scalar_select %p150, %s151, %s152
    %p156 = pneg %p150
    %p157 = scmp.eq.s32.totalorder %s12, 1
    %p158 = por %p156, %p157
    %p159 = scmp.ne.s32.totalorder %s151, %s154
    %p160 = scmp.eq.s32.totalorder %s12, 0
    %p161 = por %p159, %p160
    %p162 = scmp.ne.s32.totalorder %s151, %s154
    %p163 = scmp.eq.s32.totalorder %s17, 1
    %p164 = por %p162, %p163
    %p165 = scmp.ne.s32.totalorder %s154, %s155
    %p166 = scmp.eq.s32.totalorder %s17, 0
    %p167 = por %p165, %p166
    %p168 = scmp.ne.s32.totalorder %s154, %s155
    %p169 = scmp.eq.s32.totalorder %s18, 1
    %p170 = por %p168, %p169
    %p172 = scmp.ne.s32.totalorder %s155, %s171
    %p173 = scmp.eq.s32.totalorder %s18, 0
    %p174 = por %p172, %p173
    %p175 = scmp.le.s32.totalorder 1, %s12
    %p176 = scmp.lt.s32.totalorder %s12, 3
    %p177 = pnand %p175, %p176
    %p178 = pneg %p177
    // Predicated region
    $region9: #{_lambda_.13} parent=5 // pred_check
      _
    $region10: #{_lambda_.13} parent=5 // pred_check_branch
      %180 = sbr.rel (%p177) target = $region12
    $region11: #{_lambda_.13} parent=5 // pred_region
      %s181 = ssub.s32 %s12, 1
      // Predicated region
      $region13: #{_lambda_.13} parent=11 // pred_check
        %p182 = pneg %p76
      $region14: #{_lambda_.13} parent=11 // pred_check_branch
        %184 = sbr.rel (%p182) target = $region16
      $region15: #{_lambda_.13} parent=11 // pred_region
        %p185 = scmp.lt.s32.totalorder %s22, 0
        %s186 = scalar_select %p185, %s22, 0
        %s187 = smul.addr %s186, 3
        %s188 = scalar_lea.vmem %s1, %s187
      $region16: #{_lambda_.13} parent=11 // pred_fallthru
        _
      // Predicated region
      $region17: #{_lambda_.13} parent=11 // pred_check
        %p189 = pneg %p97
      $region18: #{_lambda_.13} parent=11 // pred_check_branch
        %191 = sbr.rel (%p189) target = $region20
      $region19: #{_lambda_.13} parent=11 // pred_region
        _
      $region20: #{_lambda_.13} parent=11 // pred_fallthru
        _
      // Predicated region
      $region21: #{_lambda_.13} parent=11 // pred_check
        %p192 = pneg %p118
      $region22: #{_lambda_.13} parent=11 // pred_check_branch
        %194 = sbr.rel (%p192) target = $region24
      $region23: #{_lambda_.13} parent=11 // pred_region
        _
      $region24: #{_lambda_.13} parent=11 // pred_fallthru
        _
      // Predicated region
      $region25: #{_lambda_.13} parent=11 // pred_check
        %p195 = pneg %p139
      $region26: #{_lambda_.13} parent=11 // pred_check_branch
        %197 = sbr.rel (%p195) target = $region28
      $region27: #{_lambda_.13} parent=11 // pred_region
        _
      $region28: #{_lambda_.13} parent=11 // pred_fallthru
        _
    $region12: #{_lambda_.13} parent=5 // pred_fallthru
      _
    %p198 = scmp.lt.s32.totalorder %s12, 2
    // Predicated region
    $region29: #{_lambda_.13} parent=5 // pred_check
      %p199 = pneg %p198
    $region30: #{_lambda_.13} parent=5 // pred_check_branch
      %201 = sbr.rel (%p199) target = $region32
    $region31: #{_lambda_.13} parent=5 // pred_region
      // Predicated region
      $region33: #{_lambda_.13} parent=31 // pred_check
        %p202 = pneg %p44
      $region34: #{_lambda_.13} parent=31 // pred_check_branch
        %204 = sbr.rel (%p202) target = $region36
      $region35: #{_lambda_.13} parent=31 // pred_region
        %p205 = scmp.lt.s32.totalorder %s19, 1
        %s206 = scalar_select %p205, %s19, 1
        %s207 = smul.addr %s206, 96
        %s208 = smul.addr %s207, 8
        %s209 = scalar_lea.vmem %s0, %s208
      $region36: #{_lambda_.13} parent=31 // pred_fallthru
        _
    $region32: #{_lambda_.13} parent=5 // pred_fallthru
      _
    %p210 = scmp.le.s32.totalorder 1, %s12
    %p211 = scmp.lt.s32.totalorder %s12, 3
    %p212 = pnand %p210, %p211
    %p213 = pneg %p212
    // Predicated region
    $region37: #{_lambda_.13} parent=5 // pred_check
      _
    $region38: #{_lambda_.13} parent=5 // pred_check_branch
      %215 = sbr.rel (%p212) target = $region40
    $region39: #{_lambda_.13} parent=5 // pred_region
      %s216 = ssub.s32 %s12, 1
      %p217 = scmp.lt.s32.totalorder %s21, 1
      %s218 = scalar_select %p217, %s21, 1
      %s219 = smul.addr %s218, 96
      %s220 = smul.addr %s219, 8
      %s221 = scalar_lea.vmem %s0, %s220
      %p222 = pneg %p50
      %p223 = pneg %p47
      %p224 = scmp.lt.s32.totalorder %s22, 0
      %s225 = scalar_select %p224, %s22, 0
      %s226 = smul.addr %s225, 3
      %s227 = scalar_lea.vmem %s1, %s226
      %p228 = pneg %p76
      %p229 = pneg %p73
      %p230 = pneg %p97
      %p231 = pneg %p94
      %p232 = pneg %p118
      %p233 = pneg %p115
      %p234 = pneg %p139
      %p235 = pneg %p136
      %p236 = pneg %p167
      %p237 = pneg %p164
      %p238 = scmp.lt.s32.totalorder %s21, 1
      %s239 = scalar_select %p238, %s21, 1
      %p240 = scmp.lt.s32.totalorder %s22, 0
      %s241 = scalar_select %p240, %s22, 0
      %s242 = smul.addr %s241, 4
      %s243 = smul.addr %s239, 4
      %s244 = sadd.s32 %s242, %s243
      %s245 = smul.addr %s244, 8
      %s246 = scalar_lea.vmem %s5, %s245
      %p247 = scmp.lt.s32.totalorder %s21, 1
      %s248 = scalar_select %p247, %s21, 1
      %s249 = smul.addr %s248, 96
      %s250 = smul.addr %s249, 8
      %s251 = scalar_lea.vmem %s0, %s250
      %p252 = scmp.lt.s32.totalorder %s22, 0
      %s253 = scalar_select %p252, %s22, 0
      %s254 = smul.addr %s253, 3
      %s255 = scalar_lea.vmem %s1, %s254
      %p256 = scmp.lt.s32.totalorder %s21, 1
      %s257 = scalar_select %p256, %s21, 1
      %p258 = scmp.lt.s32.totalorder %s22, 0
      %s259 = scalar_select %p258, %s22, 0
      %s260 = smul.addr %s259, 4
      %s261 = smul.addr %s257, 4
      %s262 = sadd.s32 %s260, %s261
      %s263 = smul.addr %s262, 8
      %s264 = scalar_lea.vmem %s5, %s263
      %v265 = vld [vmem:[%s251] sm:$0xff]
      %v266 = vld [vmem:[%s251 + $0x8] sm:$0xff]
      %v267 = vld [vmem:[%s251 + $0x10] sm:$0xff]
      %v268 = vld [vmem:[%s251 + $0x18] sm:$0xff]
      %v269 = vld [vmem:[%s251 + $0x20] sm:$0xff]
      %v270 = vld [vmem:[%s251 + $0x28] sm:$0xff]
      %v271 = vld [vmem:[%s251 + $0x30] sm:$0xff]
      %v272 = vld [vmem:[%s251 + $0x38] sm:$0xff]
      %v273 = vld [vmem:[%s251 + $0x40] sm:$0xff]
      %v274 = vld [vmem:[%s251 + $0x48] sm:$0xff]
      %v275 = vld [vmem:[%s251 + $0x50] sm:$0xff]
      %v276 = vld [vmem:[%s251 + $0x58] sm:$0xff]
      %v277 = vld [vmem:[%s251 + $0x60] sm:$0xff]
      %v278 = vld [vmem:[%s251 + $0x68] sm:$0xff]
      %v279 = vld [vmem:[%s251 + $0x70] sm:$0xff]
      %v280 = vld [vmem:[%s251 + $0x78] sm:$0xff]
      %v281 = vld [vmem:[%s251 + $0x80] sm:$0xff]
      %v282 = vld [vmem:[%s251 + $0x88] sm:$0xff]
      %v283 = vld [vmem:[%s251 + $0x90] sm:$0xff]
      %v284 = vld [vmem:[%s251 + $0x98] sm:$0xff]
      %v285 = vld [vmem:[%s251 + $0xa0] sm:$0xff]
      %v286 = vld [vmem:[%s251 + $0xa8] sm:$0xff]
      %v287 = vld [vmem:[%s251 + $0xb0] sm:$0xff]
      %v288 = vld [vmem:[%s251 + $0xb8] sm:$0xff]
      %v289 = vld [vmem:[%s251 + $0xc0] sm:$0xff]
      %v290 = vld [vmem:[%s251 + $0xc8] sm:$0xff]
      %v291 = vld [vmem:[%s251 + $0xd0] sm:$0xff]
      %v292 = vld [vmem:[%s251 + $0xd8] sm:$0xff]
      %v293 = vld [vmem:[%s251 + $0xe0] sm:$0xff]
      %v294 = vld [vmem:[%s251 + $0xe8] sm:$0xff]
      %v295 = vld [vmem:[%s251 + $0xf0] sm:$0xff]
      %v296 = vld [vmem:[%s251 + $0xf8] sm:$0xff]
      %v297 = vld [vmem:[%s251 + $0x100] sm:$0xff]
      %v298 = vld [vmem:[%s251 + $0x108] sm:$0xff]
      %v299 = vld [vmem:[%s251 + $0x110] sm:$0xff]
      %v300 = vld [vmem:[%s251 + $0x118] sm:$0xff]
      %v301 = vld [vmem:[%s251 + $0x120] sm:$0xff]
      %v302 = vld [vmem:[%s251 + $0x128] sm:$0xff]
      %v303 = vld [vmem:[%s251 + $0x130] sm:$0xff]
      %v304 = vld [vmem:[%s251 + $0x138] sm:$0xff]
      %v305 = vld [vmem:[%s251 + $0x140] sm:$0xff]
      %v306 = vld [vmem:[%s251 + $0x148] sm:$0xff]
      %v307 = vld [vmem:[%s251 + $0x150] sm:$0xff]
      %v308 = vld [vmem:[%s251 + $0x158] sm:$0xff]
      %v309 = vld [vmem:[%s251 + $0x160] sm:$0xff]
      %v310 = vld [vmem:[%s251 + $0x168] sm:$0xff]
      %v311 = vld [vmem:[%s251 + $0x170] sm:$0xff]
      %v312 = vld [vmem:[%s251 + $0x178] sm:$0xff]
      %v313 = vld [vmem:[%s251 + $0x180] sm:$0xff]
      %v314 = vld [vmem:[%s251 + $0x188] sm:$0xff]
      %v315 = vld [vmem:[%s251 + $0x190] sm:$0xff]
      %v316 = vld [vmem:[%s251 + $0x198] sm:$0xff]
      %v317 = vld [vmem:[%s251 + $0x1a0] sm:$0xff]
      %v318 = vld [vmem:[%s251 + $0x1a8] sm:$0xff]
      %v319 = vld [vmem:[%s251 + $0x1b0] sm:$0xff]
      %v320 = vld [vmem:[%s251 + $0x1b8] sm:$0xff]
      %v321 = vld [vmem:[%s251 + $0x1c0] sm:$0xff]
      %v322 = vld [vmem:[%s251 + $0x1c8] sm:$0xff]
      %v323 = vld [vmem:[%s251 + $0x1d0] sm:$0xff]
      %v324 = vld [vmem:[%s251 + $0x1d8] sm:$0xff]
      %v325 = vld [vmem:[%s251 + $0x1e0] sm:$0xff]
      %v326 = vld [vmem:[%s251 + $0x1e8] sm:$0xff]
      %v327 = vld [vmem:[%s251 + $0x1f0] sm:$0xff]
      %v328 = vld [vmem:[%s251 + $0x1f8] sm:$0xff]
      %v329 = vld [vmem:[%s251 + $0x200] sm:$0xff]
      %v330 = vld [vmem:[%s251 + $0x208] sm:$0xff]
      %v331 = vld [vmem:[%s251 + $0x210] sm:$0xff]
      %v332 = vld [vmem:[%s251 + $0x218] sm:$0xff]
      %v333 = vld [vmem:[%s251 + $0x220] sm:$0xff]
      %v334 = vld [vmem:[%s251 + $0x228] sm:$0xff]
      %v335 = vld [vmem:[%s251 + $0x230] sm:$0xff]
      %v336 = vld [vmem:[%s251 + $0x238] sm:$0xff]
      %v337 = vld [vmem:[%s251 + $0x240] sm:$0xff]
      %v338 = vld [vmem:[%s251 + $0x248] sm:$0xff]
      %v339 = vld [vmem:[%s251 + $0x250] sm:$0xff]
      %v340 = vld [vmem:[%s251 + $0x258] sm:$0xff]
      %v341 = vld [vmem:[%s251 + $0x260] sm:$0xff]
      %v342 = vld [vmem:[%s251 + $0x268] sm:$0xff]
      %v343 = vld [vmem:[%s251 + $0x270] sm:$0xff]
      %v344 = vld [vmem:[%s251 + $0x278] sm:$0xff]
      %v345 = vld [vmem:[%s251 + $0x280] sm:$0xff]
      %v346 = vld [vmem:[%s251 + $0x288] sm:$0xff]
      %v347 = vld [vmem:[%s251 + $0x290] sm:$0xff]
      %v348 = vld [vmem:[%s251 + $0x298] sm:$0xff]
      %v349 = vld [vmem:[%s251 + $0x2a0] sm:$0xff]
      %v350 = vld [vmem:[%s251 + $0x2a8] sm:$0xff]
      %v351 = vld [vmem:[%s251 + $0x2b0] sm:$0xff]
      %v352 = vld [vmem:[%s251 + $0x2b8] sm:$0xff]
      %v353 = vld [vmem:[%s251 + $0x2c0] sm:$0xff]
      %v354 = vld [vmem:[%s251 + $0x2c8] sm:$0xff]
      %v355 = vld [vmem:[%s251 + $0x2d0] sm:$0xff]
      %v356 = vld [vmem:[%s251 + $0x2d8] sm:$0xff]
      %v357 = vld [vmem:[%s251 + $0x2e0] sm:$0xff]
      %v358 = vld [vmem:[%s251 + $0x2e8] sm:$0xff]
      %v359 = vld [vmem:[%s251 + $0x2f0] sm:$0xff]
      %v360 = vld [vmem:[%s251 + $0x2f8] sm:$0xff]
      %v361 = vld [vmem:[%s255] sm:$0x7]
      %v363 = vlaneseq
      %v364 = vshrl.u32 %v363, 7
      %v365 = vsub.s32 0, %v364
      %v366 = vrot.slane %v361, %v365
      %v367 = vlaneseq
      %v368 = vshrl.u32 %v367, 7
      %v369 = vsub.s32 1, %v368
      %v370 = vrot.slane %v361, %v369
      %v371 = vlaneseq
      %v372 = vshrl.u32 %v371, 7
      %v373 = vsub.s32 2, %v372
      %v374 = vrot.slane %v361, %v373
      %v378 = vmul.f32 %v265, %v366
      %v379 = vmul.f32 %v266, %v370
      %v380 = vmul.f32 %v267, %v374
      %v381 = vmul.f32 %v268, %v366
      %v382 = vmul.f32 %v269, %v370
      %v383 = vmul.f32 %v270, %v374
      %v384 = vmul.f32 %v271, %v366
      %v385 = vmul.f32 %v272, %v370
      %v386 = vmul.f32 %v273, %v374
      %v387 = vmul.f32 %v274, %v366
      %v388 = vmul.f32 %v275, %v370
      %v389 = vmul.f32 %v276, %v374
      %v390 = vmul.f32 %v277, %v366
      %v391 = vmul.f32 %v278, %v370
      %v392 = vmul.f32 %v279, %v374
      %v393 = vmul.f32 %v280, %v366
      %v394 = vmul.f32 %v281, %v370
      %v395 = vmul.f32 %v282, %v374
      %v396 = vmul.f32 %v283, %v366
      %v397 = vmul.f32 %v284, %v370
      %v398 = vmul.f32 %v285, %v374
      %v399 = vmul.f32 %v286, %v366
      %v400 = vmul.f32 %v287, %v370
      %v401 = vmul.f32 %v288, %v374
      %v402 = vmul.f32 %v289, %v366
      %v403 = vmul.f32 %v290, %v370
      %v404 = vmul.f32 %v291, %v374
      %v405 = vmul.f32 %v292, %v366
      %v406 = vmul.f32 %v293, %v370
      %v407 = vmul.f32 %v294, %v374
      %v408 = vmul.f32 %v295, %v366
      %v409 = vmul.f32 %v296, %v370
      %v410 = vmul.f32 %v297, %v374
      %v411 = vmul.f32 %v298, %v366
      %v412 = vmul.f32 %v299, %v370
      %v413 = vmul.f32 %v300, %v374
      %v414 = vmul.f32 %v301, %v366
      %v415 = vmul.f32 %v302, %v370
      %v416 = vmul.f32 %v303, %v374
      %v417 = vmul.f32 %v304, %v366
      %v418 = vmul.f32 %v305, %v370
      %v419 = vmul.f32 %v306, %v374
      %v420 = vmul.f32 %v307, %v366
      %v421 = vmul.f32 %v308, %v370
      %v422 = vmul.f32 %v309, %v374
      %v423 = vmul.f32 %v310, %v366
      %v424 = vmul.f32 %v311, %v370
      %v425 = vmul.f32 %v312, %v374
      %v426 = vmul.f32 %v313, %v366
      %v427 = vmul.f32 %v314, %v370
      %v428 = vmul.f32 %v315, %v374
      %v429 = vmul.f32 %v316, %v366
      %v430 = vmul.f32 %v317, %v370
      %v431 = vmul.f32 %v318, %v374
      %v432 = vmul.f32 %v319, %v366
      %v433 = vmul.f32 %v320, %v370
      %v434 = vmul.f32 %v321, %v374
      %v435 = vmul.f32 %v322, %v366
      %v436 = vmul.f32 %v323, %v370
      %v437 = vmul.f32 %v324, %v374
      %v438 = vmul.f32 %v325, %v366
      %v439 = vmul.f32 %v326, %v370
      %v440 = vmul.f32 %v327, %v374
      %v441 = vmul.f32 %v328, %v366
      %v442 = vmul.f32 %v329, %v370
      %v443 = vmul.f32 %v330, %v374
      %v444 = vmul.f32 %v331, %v366
      %v445 = vmul.f32 %v332, %v370
      %v446 = vmul.f32 %v333, %v374
      %v447 = vmul.f32 %v334, %v366
      %v448 = vmul.f32 %v335, %v370
      %v449 = vmul.f32 %v336, %v374
      %v450 = vmul.f32 %v337, %v366
      %v451 = vmul.f32 %v338, %v370
      %v452 = vmul.f32 %v339, %v374
      %v453 = vmul.f32 %v340, %v366
      %v454 = vmul.f32 %v341, %v370
      %v455 = vmul.f32 %v342, %v374
      %v456 = vmul.f32 %v343, %v366
      %v457 = vmul.f32 %v344, %v370
      %v458 = vmul.f32 %v345, %v374
      %v459 = vmul.f32 %v346, %v366
      %v460 = vmul.f32 %v347, %v370
      %v461 = vmul.f32 %v348, %v374
      %v462 = vmul.f32 %v349, %v366
      %v463 = vmul.f32 %v350, %v370
      %v464 = vmul.f32 %v351, %v374
      %v465 = vmul.f32 %v352, %v366
      %v466 = vmul.f32 %v353, %v370
      %v467 = vmul.f32 %v354, %v374
      %v468 = vmul.f32 %v355, %v366
      %v469 = vmul.f32 %v356, %v370
      %v470 = vmul.f32 %v357, %v374
      %v471 = vmul.f32 %v358, %v366
      %v472 = vmul.f32 %v359, %v370
      %v473 = vmul.f32 %v360, %v374
      %v474 = vadd.f32 %v378, %v379
      %vm475 = vcmask 261120
      %v476 = vsel %vm475, %v380, 0.0
      %v477 = vadd.f32 %v474, %v476
      %478 = vadd.xlane.f32.xlu0 %v477
      %v479 = vpop.xlane.xlu0 %478
      %v480 = vadd.f32 %v381, %v382
      %v481 = vsel %vm475, %v383, 0.0
      %v482 = vadd.f32 %v480, %v481
      %483 = vadd.xlane.f32.xlu0 %v482
      %v484 = vpop.xlane.xlu0 %483
      %v485 = vadd.f32 %v384, %v385
      %v486 = vsel %vm475, %v386, 0.0
      %v487 = vadd.f32 %v485, %v486
      %488 = vadd.xlane.f32.xlu0 %v487
      %v489 = vpop.xlane.xlu0 %488
      %v490 = vadd.f32 %v387, %v388
      %v491 = vsel %vm475, %v389, 0.0
      %v492 = vadd.f32 %v490, %v491
      %493 = vadd.xlane.f32.xlu0 %v492
      %v494 = vpop.xlane.xlu0 %493
      %v495 = vadd.f32 %v390, %v391
      %v496 = vsel %vm475, %v392, 0.0
      %v497 = vadd.f32 %v495, %v496
      %498 = vadd.xlane.f32.xlu0 %v497
      %v499 = vpop.xlane.xlu0 %498
      %v500 = vadd.f32 %v393, %v394
      %v501 = vsel %vm475, %v395, 0.0
      %v502 = vadd.f32 %v500, %v501
      %503 = vadd.xlane.f32.xlu0 %v502
      %v504 = vpop.xlane.xlu0 %503
      %v505 = vadd.f32 %v396, %v397
      %v506 = vsel %vm475, %v398, 0.0
      %v507 = vadd.f32 %v505, %v506
      %508 = vadd.xlane.f32.xlu0 %v507
      %v509 = vpop.xlane.xlu0 %508
      %v510 = vadd.f32 %v399, %v400
      %v511 = vsel %vm475, %v401, 0.0
      %v512 = vadd.f32 %v510, %v511
      %513 = vadd.xlane.f32.xlu0 %v512
      %v514 = vpop.xlane.xlu0 %513
      %v515 = vadd.f32 %v402, %v403
      %v516 = vsel %vm475, %v404, 0.0
      %v517 = vadd.f32 %v515, %v516
      %518 = vadd.xlane.f32.xlu0 %v517
      %v519 = vpop.xlane.xlu0 %518
      %v520 = vadd.f32 %v405, %v406
      %v521 = vsel %vm475, %v407, 0.0
      %v522 = vadd.f32 %v520, %v521
      %523 = vadd.xlane.f32.xlu0 %v522
      %v524 = vpop.xlane.xlu0 %523
      %v525 = vadd.f32 %v408, %v409
      %v526 = vsel %vm475, %v410, 0.0
      %v527 = vadd.f32 %v525, %v526
      %528 = vadd.xlane.f32.xlu0 %v527
      %v529 = vpop.xlane.xlu0 %528
      %v530 = vadd.f32 %v411, %v412
      %v531 = vsel %vm475, %v413, 0.0
      %v532 = vadd.f32 %v530, %v531
      %533 = vadd.xlane.f32.xlu0 %v532
      %v534 = vpop.xlane.xlu0 %533
      %v535 = vadd.f32 %v414, %v415
      %v536 = vsel %vm475, %v416, 0.0
      %v537 = vadd.f32 %v535, %v536
      %538 = vadd.xlane.f32.xlu0 %v537
      %v539 = vpop.xlane.xlu0 %538
      %v540 = vadd.f32 %v417, %v418
      %v541 = vsel %vm475, %v419, 0.0
      %v542 = vadd.f32 %v540, %v541
      %543 = vadd.xlane.f32.xlu0 %v542
      %v544 = vpop.xlane.xlu0 %543
      %v545 = vadd.f32 %v420, %v421
      %v546 = vsel %vm475, %v422, 0.0
      %v547 = vadd.f32 %v545, %v546
      %548 = vadd.xlane.f32.xlu0 %v547
      %v549 = vpop.xlane.xlu0 %548
      %v550 = vadd.f32 %v423, %v424
      %v551 = vsel %vm475, %v425, 0.0
      %v552 = vadd.f32 %v550, %v551
      %553 = vadd.xlane.f32.xlu0 %v552
      %v554 = vpop.xlane.xlu0 %553
      %v555 = vadd.f32 %v426, %v427
      %v556 = vsel %vm475, %v428, 0.0
      %v557 = vadd.f32 %v555, %v556
      %558 = vadd.xlane.f32.xlu0 %v557
      %v559 = vpop.xlane.xlu0 %558
      %v560 = vadd.f32 %v429, %v430
      %v561 = vsel %vm475, %v431, 0.0
      %v562 = vadd.f32 %v560, %v561
      %563 = vadd.xlane.f32.xlu0 %v562
      %v564 = vpop.xlane.xlu0 %563
      %v565 = vadd.f32 %v432, %v433
      %v566 = vsel %vm475, %v434, 0.0
      %v567 = vadd.f32 %v565, %v566
      %568 = vadd.xlane.f32.xlu0 %v567
      %v569 = vpop.xlane.xlu0 %568
      %v570 = vadd.f32 %v435, %v436
      %v571 = vsel %vm475, %v437, 0.0
      %v572 = vadd.f32 %v570, %v571
      %573 = vadd.xlane.f32.xlu0 %v572
      %v574 = vpop.xlane.xlu0 %573
      %v575 = vadd.f32 %v438, %v439
      %v576 = vsel %vm475, %v440, 0.0
      %v577 = vadd.f32 %v575, %v576
      %578 = vadd.xlane.f32.xlu0 %v577
      %v579 = vpop.xlane.xlu0 %578
      %v580 = vadd.f32 %v441, %v442
      %v581 = vsel %vm475, %v443, 0.0
      %v582 = vadd.f32 %v580, %v581
      %583 = vadd.xlane.f32.xlu0 %v582
      %v584 = vpop.xlane.xlu0 %583
      %v585 = vadd.f32 %v444, %v445
      %v586 = vsel %vm475, %v446, 0.0
      %v587 = vadd.f32 %v585, %v586
      %588 = vadd.xlane.f32.xlu0 %v587
      %v589 = vpop.xlane.xlu0 %588
      %v590 = vadd.f32 %v447, %v448
      %v591 = vsel %vm475, %v449, 0.0
      %v592 = vadd.f32 %v590, %v591
      %593 = vadd.xlane.f32.xlu0 %v592
      %v594 = vpop.xlane.xlu0 %593
      %v595 = vadd.f32 %v450, %v451
      %v596 = vsel %vm475, %v452, 0.0
      %v597 = vadd.f32 %v595, %v596
      %598 = vadd.xlane.f32.xlu0 %v597
      %v599 = vpop.xlane.xlu0 %598
      %v600 = vadd.f32 %v453, %v454
      %v601 = vsel %vm475, %v455, 0.0
      %v602 = vadd.f32 %v600, %v601
      %603 = vadd.xlane.f32.xlu0 %v602
      %v604 = vpop.xlane.xlu0 %603
      %v605 = vadd.f32 %v456, %v457
      %v606 = vsel %vm475, %v458, 0.0
      %v607 = vadd.f32 %v605, %v606
      %608 = vadd.xlane.f32.xlu0 %v607
      %v609 = vpop.xlane.xlu0 %608
      %v610 = vadd.f32 %v459, %v460
      %v611 = vsel %vm475, %v461, 0.0
      %v612 = vadd.f32 %v610, %v611
      %613 = vadd.xlane.f32.xlu0 %v612
      %v614 = vpop.xlane.xlu0 %613
      %v615 = vadd.f32 %v462, %v463
      %v616 = vsel %vm475, %v464, 0.0
      %v617 = vadd.f32 %v615, %v616
      %618 = vadd.xlane.f32.xlu0 %v617
      %v619 = vpop.xlane.xlu0 %618
      %v620 = vadd.f32 %v465, %v466
      %v621 = vsel %vm475, %v467, 0.0
      %v622 = vadd.f32 %v620, %v621
      %623 = vadd.xlane.f32.xlu0 %v622
      %v624 = vpop.xlane.xlu0 %623
      %v625 = vadd.f32 %v468, %v469
      %v626 = vsel %vm475, %v470, 0.0
      %v627 = vadd.f32 %v625, %v626
      %628 = vadd.xlane.f32.xlu0 %v627
      %v629 = vpop.xlane.xlu0 %628
      %v630 = vadd.f32 %v471, %v472
      %v631 = vsel %vm475, %v473, 0.0
      %v632 = vadd.f32 %v630, %v631
      %633 = vadd.xlane.f32.xlu0 %v632
      %v634 = vpop.xlane.xlu0 %633
      %s635 = sld [smem:[#allocation2 + %s22]]
      %v636 = vstv %s635
      %v637 = vadd.f32 %v479, %v636
      %v638 = vadd.f32 %v484, %v636
      %v639 = vadd.f32 %v489, %v636
      %v640 = vadd.f32 %v494, %v636
      %v641 = vadd.f32 %v499, %v636
      %v642 = vadd.f32 %v504, %v636
      %v643 = vadd.f32 %v509, %v636
      %v644 = vadd.f32 %v514, %v636
      %v645 = vadd.f32 %v519, %v636
      %v646 = vadd.f32 %v524, %v636
      %v647 = vadd.f32 %v529, %v636
      %v648 = vadd.f32 %v534, %v636
      %v649 = vadd.f32 %v539, %v636
      %v650 = vadd.f32 %v544, %v636
      %v651 = vadd.f32 %v549, %v636
      %v652 = vadd.f32 %v554, %v636
      %v653 = vadd.f32 %v559, %v636
      %v654 = vadd.f32 %v564, %v636
      %v655 = vadd.f32 %v569, %v636
      %v656 = vadd.f32 %v574, %v636
      %v657 = vadd.f32 %v579, %v636
      %v658 = vadd.f32 %v584, %v636
      %v659 = vadd.f32 %v589, %v636
      %v660 = vadd.f32 %v594, %v636
      %v661 = vadd.f32 %v599, %v636
      %v662 = vadd.f32 %v604, %v636
      %v663 = vadd.f32 %v609, %v636
      %v664 = vadd.f32 %v614, %v636
      %v665 = vadd.f32 %v619, %v636
      %v666 = vadd.f32 %v624, %v636
      %v667 = vadd.f32 %v629, %v636
      %v668 = vadd.f32 %v634, %v636
      %v669 = vxor.u32 %v637, 2147483648
      %v670 = vxor.u32 %v638, 2147483648
      %v671 = vxor.u32 %v639, 2147483648
      %v672 = vxor.u32 %v640, 2147483648
      %v673 = vxor.u32 %v641, 2147483648
      %v674 = vxor.u32 %v642, 2147483648
      %v675 = vxor.u32 %v643, 2147483648
      %v676 = vxor.u32 %v644, 2147483648
      %v677 = vxor.u32 %v645, 2147483648
      %v678 = vxor.u32 %v646, 2147483648
      %v679 = vxor.u32 %v647, 2147483648
      %v680 = vxor.u32 %v648, 2147483648
      %v681 = vxor.u32 %v649, 2147483648
      %v682 = vxor.u32 %v650, 2147483648
      %v683 = vxor.u32 %v651, 2147483648
      %v684 = vxor.u32 %v652, 2147483648
      %v685 = vxor.u32 %v653, 2147483648
      %v686 = vxor.u32 %v654, 2147483648
      %v687 = vxor.u32 %v655, 2147483648
      %v688 = vxor.u32 %v656, 2147483648
      %v689 = vxor.u32 %v657, 2147483648
      %v690 = vxor.u32 %v658, 2147483648
      %v691 = vxor.u32 %v659, 2147483648
      %v692 = vxor.u32 %v660, 2147483648
      %v693 = vxor.u32 %v661, 2147483648
      %v694 = vxor.u32 %v662, 2147483648
      %v695 = vxor.u32 %v663, 2147483648
      %v696 = vxor.u32 %v664, 2147483648
      %v697 = vxor.u32 %v665, 2147483648
      %v698 = vxor.u32 %v666, 2147483648
      %v699 = vxor.u32 %v667, 2147483648
      %v700 = vxor.u32 %v668, 2147483648
      %v701 = vmul.f32 %v669, 1.442695
      %v702 = vpow.pop %v701
      %v703 = vmul.f32 %v670, 1.442695
      %v704 = vpow.pop %v703
      %v705 = vmul.f32 %v671, 1.442695
      %v706 = vpow.pop %v705
      %v707 = vmul.f32 %v672, 1.442695
      %v708 = vpow.pop %v707
      %v709 = vmul.f32 %v673, 1.442695
      %v710 = vpow.pop %v709
      %v711 = vmul.f32 %v674, 1.442695
      %v712 = vpow.pop %v711
      %v713 = vmul.f32 %v675, 1.442695
      %v714 = vpow.pop %v713
      %v715 = vmul.f32 %v676, 1.442695
      %v716 = vpow.pop %v715
      %v717 = vmul.f32 %v677, 1.442695
      %v718 = vpow.pop %v717
      %v719 = vmul.f32 %v678, 1.442695
      %v720 = vpow.pop %v719
      %v721 = vmul.f32 %v679, 1.442695
      %v722 = vpow.pop %v721
      %v723 = vmul.f32 %v680, 1.442695
      %v724 = vpow.pop %v723
      %v725 = vmul.f32 %v681, 1.442695
      %v726 = vpow.pop %v725
      %v727 = vmul.f32 %v682, 1.442695
      %v728 = vpow.pop %v727
      %v729 = vmul.f32 %v683, 1.442695
      %v730 = vpow.pop %v729
      %v731 = vmul.f32 %v684, 1.442695
      %v732 = vpow.pop %v731
      %v733 = vmul.f32 %v685, 1.442695
      %v734 = vpow.pop %v733
      %v735 = vmul.f32 %v686, 1.442695
      %v736 = vpow.pop %v735
      %v737 = vmul.f32 %v687, 1.442695
      %v738 = vpow.pop %v737
      %v739 = vmul.f32 %v688, 1.442695
      %v740 = vpow.pop %v739
      %v741 = vmul.f32 %v689, 1.442695
      %v742 = vpow.pop %v741
      %v743 = vmul.f32 %v690, 1.442695
      %v744 = vpow.pop %v743
      %v745 = vmul.f32 %v691, 1.442695
      %v746 = vpow.pop %v745
      %v747 = vmul.f32 %v692, 1.442695
      %v748 = vpow.pop %v747
      %v749 = vmul.f32 %v693, 1.442695
      %v750 = vpow.pop %v749
      %v751 = vmul.f32 %v694, 1.442695
      %v752 = vpow.pop %v751
      %v753 = vmul.f32 %v695, 1.442695
      %v754 = vpow.pop %v753
      %v755 = vmul.f32 %v696, 1.442695
      %v756 = vpow.pop %v755
      %v757 = vmul.f32 %v697, 1.442695
      %v758 = vpow.pop %v757
      %v759 = vmul.f32 %v698, 1.442695
      %v760 = vpow.pop %v759
      %v761 = vmul.f32 %v699, 1.442695
      %v762 = vpow.pop %v761
      %v763 = vmul.f32 %v700, 1.442695
      %v764 = vpow.pop %v763
      %v765 = vadd.f32 %v702, 1.0
      %v766 = vadd.f32 %v704, 1.0
      %v767 = vadd.f32 %v706, 1.0
      %v768 = vadd.f32 %v708, 1.0
      %v769 = vadd.f32 %v710, 1.0
      %v770 = vadd.f32 %v712, 1.0
      %v771 = vadd.f32 %v714, 1.0
      %v772 = vadd.f32 %v716, 1.0
      %v773 = vadd.f32 %v718, 1.0
      %v774 = vadd.f32 %v720, 1.0
      %v775 = vadd.f32 %v722, 1.0
      %v776 = vadd.f32 %v724, 1.0
      %v777 = vadd.f32 %v726, 1.0
      %v778 = vadd.f32 %v728, 1.0
      %v779 = vadd.f32 %v730, 1.0
      %v780 = vadd.f32 %v732, 1.0
      %v781 = vadd.f32 %v734, 1.0
      %v782 = vadd.f32 %v736, 1.0
      %v783 = vadd.f32 %v738, 1.0
      %v784 = vadd.f32 %v740, 1.0
      %v785 = vadd.f32 %v742, 1.0
      %v786 = vadd.f32 %v744, 1.0
      %v787 = vadd.f32 %v746, 1.0
      %v788 = vadd.f32 %v748, 1.0
      %v789 = vadd.f32 %v750, 1.0
      %v790 = vadd.f32 %v752, 1.0
      %v791 = vadd.f32 %v754, 1.0
      %v792 = vadd.f32 %v756, 1.0
      %v793 = vadd.f32 %v758, 1.0
      %v794 = vadd.f32 %v760, 1.0
      %v795 = vadd.f32 %v762, 1.0
      %v796 = vadd.f32 %v764, 1.0
      %v797 = vrcp.pop %v765
      %v798 = vmul.f32 1.0, %v797
      %v799 = vrcp.pop %v766
      %v800 = vmul.f32 1.0, %v799
      %v801 = vrcp.pop %v767
      %v802 = vmul.f32 1.0, %v801
      %v803 = vrcp.pop %v768
      %v804 = vmul.f32 1.0, %v803
      %v805 = vrcp.pop %v769
      %v806 = vmul.f32 1.0, %v805
      %v807 = vrcp.pop %v770
      %v808 = vmul.f32 1.0, %v807
      %v809 = vrcp.pop %v771
      %v810 = vmul.f32 1.0, %v809
      %v811 = vrcp.pop %v772
      %v812 = vmul.f32 1.0, %v811
      %v813 = vrcp.pop %v773
      %v814 = vmul.f32 1.0, %v813
      %v815 = vrcp.pop %v774
      %v816 = vmul.f32 1.0, %v815
      %v817 = vrcp.pop %v775
      %v818 = vmul.f32 1.0, %v817
      %v819 = vrcp.pop %v776
      %v820 = vmul.f32 1.0, %v819
      %v821 = vrcp.pop %v777
      %v822 = vmul.f32 1.0, %v821
      %v823 = vrcp.pop %v778
      %v824 = vmul.f32 1.0, %v823
      %v825 = vrcp.pop %v779
      %v826 = vmul.f32 1.0, %v825
      %v827 = vrcp.pop %v780
      %v828 = vmul.f32 1.0, %v827
      %v829 = vrcp.pop %v781
      %v830 = vmul.f32 1.0, %v829
      %v831 = vrcp.pop %v782
      %v832 = vmul.f32 1.0, %v831
      %v833 = vrcp.pop %v783
      %v834 = vmul.f32 1.0, %v833
      %v835 = vrcp.pop %v784
      %v836 = vmul.f32 1.0, %v835
      %v837 = vrcp.pop %v785
      %v838 = vmul.f32 1.0, %v837
      %v839 = vrcp.pop %v786
      %v840 = vmul.f32 1.0, %v839
      %v841 = vrcp.pop %v787
      %v842 = vmul.f32 1.0, %v841
      %v843 = vrcp.pop %v788
      %v844 = vmul.f32 1.0, %v843
      %v845 = vrcp.pop %v789
      %v846 = vmul.f32 1.0, %v845
      %v847 = vrcp.pop %v790
      %v848 = vmul.f32 1.0, %v847
      %v849 = vrcp.pop %v791
      %v850 = vmul.f32 1.0, %v849
      %v851 = vrcp.pop %v792
      %v852 = vmul.f32 1.0, %v851
      %v853 = vrcp.pop %v793
      %v854 = vmul.f32 1.0, %v853
      %v855 = vrcp.pop %v794
      %v856 = vmul.f32 1.0, %v855
      %v857 = vrcp.pop %v795
      %v858 = vmul.f32 1.0, %v857
      %v859 = vrcp.pop %v796
      %v860 = vmul.f32 1.0, %v859
      %v861 = vld [vmem:[%s3] sm:$0xff]
      %v862 = vld [vmem:[%s3 + $0x8] sm:$0xff]
      %v863 = vld [vmem:[%s3 + $0x10] sm:$0xff]
      %v864 = vld [vmem:[%s3 + $0x18] sm:$0xff]
      %v897 = vlaneseq
      %v898 = vand.u32 %v897, 127
      %v899 = vlaneseq
      %v900 = vshrl.u32 %v899, 7
      %v901 = vsub.s32 %v898, %v900
      %v902 = vrot.slane %v798, %v901
      %v903 = vadd.s32 %v898, 4294967288
      %v904 = vlaneseq
      %v905 = vshrl.u32 %v904, 7
      %v906 = vsub.s32 %v903, %v905
      %v907 = vrot.slane %v800, %v906
      %vm908 = vcmask 130112
      %v909 = vsel %vm908, %v907, %v902
      %v910 = vlaneseq
      %v911 = vshrl.u32 %v910, 7
      %v912 = vsub.s32 %v898, %v911
      %v913 = vrot.slane %v802, %v912
      %v914 = vlaneseq
      %v915 = vshrl.u32 %v914, 7
      %v916 = vsub.s32 %v903, %v915
      %v917 = vrot.slane %v804, %v916
      %v918 = vsel %vm908, %v917, %v913
      %v919 = vlaneseq
      %v920 = vshrl.u32 %v919, 7
      %v921 = vsub.s32 %v898, %v920
      %v922 = vrot.slane %v806, %v921
      %v923 = vlaneseq
      %v924 = vshrl.u32 %v923, 7
      %v925 = vsub.s32 %v903, %v924
      %v926 = vrot.slane %v808, %v925
      %v927 = vsel %vm908, %v926, %v922
      %v928 = vlaneseq
      %v929 = vshrl.u32 %v928, 7
      %v930 = vsub.s32 %v898, %v929
      %v931 = vrot.slane %v810, %v930
      %v932 = vlaneseq
      %v933 = vshrl.u32 %v932, 7
      %v934 = vsub.s32 %v903, %v933
      %v935 = vrot.slane %v812, %v934
      %v936 = vsel %vm908, %v935, %v931
      %v937 = vlaneseq
      %v938 = vshrl.u32 %v937, 7
      %v939 = vsub.s32 %v898, %v938
      %v940 = vrot.slane %v814, %v939
      %v941 = vlaneseq
      %v942 = vshrl.u32 %v941, 7
      %v943 = vsub.s32 %v903, %v942
      %v944 = vrot.slane %v816, %v943
      %v945 = vsel %vm908, %v944, %v940
      %v946 = vlaneseq
      %v947 = vshrl.u32 %v946, 7
      %v948 = vsub.s32 %v898, %v947
      %v949 = vrot.slane %v818, %v948
      %v950 = vlaneseq
      %v951 = vshrl.u32 %v950, 7
      %v952 = vsub.s32 %v903, %v951
      %v953 = vrot.slane %v820, %v952
      %v954 = vsel %vm908, %v953, %v949
      %v955 = vlaneseq
      %v956 = vshrl.u32 %v955, 7
      %v957 = vsub.s32 %v898, %v956
      %v958 = vrot.slane %v822, %v957
      %v959 = vlaneseq
      %v960 = vshrl.u32 %v959, 7
      %v961 = vsub.s32 %v903, %v960
      %v962 = vrot.slane %v824, %v961
      %v963 = vsel %vm908, %v962, %v958
      %v964 = vlaneseq
      %v965 = vshrl.u32 %v964, 7
      %v966 = vsub.s32 %v898, %v965
      %v967 = vrot.slane %v826, %v966
      %v968 = vlaneseq
      %v969 = vshrl.u32 %v968, 7
      %v970 = vsub.s32 %v903, %v969
      %v971 = vrot.slane %v828, %v970
      %v972 = vsel %vm908, %v971, %v967
      %v973 = vlaneseq
      %v974 = vshrl.u32 %v973, 7
      %v975 = vsub.s32 %v898, %v974
      %v976 = vrot.slane %v830, %v975
      %v977 = vlaneseq
      %v978 = vshrl.u32 %v977, 7
      %v979 = vsub.s32 %v903, %v978
      %v980 = vrot.slane %v832, %v979
      %v981 = vsel %vm908, %v980, %v976
      %v982 = vlaneseq
      %v983 = vshrl.u32 %v982, 7
      %v984 = vsub.s32 %v898, %v983
      %v985 = vrot.slane %v834, %v984
      %v986 = vlaneseq
      %v987 = vshrl.u32 %v986, 7
      %v988 = vsub.s32 %v903, %v987
      %v989 = vrot.slane %v836, %v988
      %v990 = vsel %vm908, %v989, %v985
      %v991 = vlaneseq
      %v992 = vshrl.u32 %v991, 7
      %v993 = vsub.s32 %v898, %v992
      %v994 = vrot.slane %v838, %v993
      %v995 = vlaneseq
      %v996 = vshrl.u32 %v995, 7
      %v997 = vsub.s32 %v903, %v996
      %v998 = vrot.slane %v840, %v997
      %v999 = vsel %vm908, %v998, %v994
      %v1000 = vlaneseq
      %v1001 = vshrl.u32 %v1000, 7
      %v1002 = vsub.s32 %v898, %v1001
      %v1003 = vrot.slane %v842, %v1002
      %v1004 = vlaneseq
      %v1005 = vshrl.u32 %v1004, 7
      %v1006 = vsub.s32 %v903, %v1005
      %v1007 = vrot.slane %v844, %v1006
      %v1008 = vsel %vm908, %v1007, %v1003
      %v1009 = vlaneseq
      %v1010 = vshrl.u32 %v1009, 7
      %v1011 = vsub.s32 %v898, %v1010
      %v1012 = vrot.slane %v846, %v1011
      %v1013 = vlaneseq
      %v1014 = vshrl.u32 %v1013, 7
      %v1015 = vsub.s32 %v903, %v1014
      %v1016 = vrot.slane %v848, %v1015
      %v1017 = vsel %vm908, %v1016, %v1012
      %v1018 = vlaneseq
      %v1019 = vshrl.u32 %v1018, 7
      %v1020 = vsub.s32 %v898, %v1019
      %v1021 = vrot.slane %v850, %v1020
      %v1022 = vlaneseq
      %v1023 = vshrl.u32 %v1022, 7
      %v1024 = vsub.s32 %v903, %v1023
      %v1025 = vrot.slane %v852, %v1024
      %v1026 = vsel %vm908, %v1025, %v1021
      %v1027 = vlaneseq
      %v1028 = vshrl.u32 %v1027, 7
      %v1029 = vsub.s32 %v898, %v1028
      %v1030 = vrot.slane %v854, %v1029
      %v1031 = vlaneseq
      %v1032 = vshrl.u32 %v1031, 7
      %v1033 = vsub.s32 %v903, %v1032
      %v1034 = vrot.slane %v856, %v1033
      %v1035 = vsel %vm908, %v1034, %v1030
      %v1036 = vlaneseq
      %v1037 = vshrl.u32 %v1036, 7
      %v1038 = vsub.s32 %v898, %v1037
      %v1039 = vrot.slane %v858, %v1038
      %v1040 = vlaneseq
      %v1041 = vshrl.u32 %v1040, 7
      %v1042 = vsub.s32 %v903, %v1041
      %v1043 = vrot.slane %v860, %v1042
      %v1044 = vsel %vm908, %v1043, %v1039
      %vm1045 = vcmask 1041409
      %v1046 = vsel %vm1045, %v918, %v909
      %vm1047 = vcmask 1042434
      %v1048 = vsel %vm1047, %v927, %v1046
      %vm1049 = vcmask 1043459
      %v1050 = vsel %vm1049, %v936, %v1048
      %vm1051 = vcmask 1044484
      %v1052 = vsel %vm1051, %v945, %v1050
      %vm1053 = vcmask 1045509
      %v1054 = vsel %vm1053, %v954, %v1052
      %vm1055 = vcmask 1046534
      %v1056 = vsel %vm1055, %v963, %v1054
      %vm1057 = vcmask 1047559
      %v1058 = vsel %vm1057, %v972, %v1056
      %v1059 = vsel %vm1045, %v990, %v981
      %v1060 = vsel %vm1047, %v999, %v1059
      %v1061 = vsel %vm1049, %v1008, %v1060
      %v1062 = vsel %vm1051, %v1017, %v1061
      %v1063 = vsel %vm1053, %v1026, %v1062
      %v1064 = vsel %vm1055, %v1035, %v1063
      %v1065 = vsel %vm1057, %v1044, %v1064
      %vm1068 = vcmask 130048
      %v1070 = vsel %vm1068, %v861, 0
      %v1073 = vsel %vm1068, %v862, 0
      %v1076 = vsel %vm1068, %v863, 0
      %v1079 = vsel %vm1068, %v864, 0
      %1081 = vmatprep.subr.mxu0 0.0
      %1082 = vmatpush1.msra.mxu0 %v1058
      %1083 = vmatprep.subr.mxu0 0.0
      %1084 = vmatpush1.msra.mxu0 %v1065
      %1085 = vmatprep.subr.mxu0 0.0
      %1086 = vmatpush1.msra.mxu0 0.0
      %1087 = vmatprep.subr.mxu0 0.0
      %1088 = vmatpush1.msra.mxu0 0.0
      %1089 = vmatprep.subr.mxu0 0.0
      %1090 = vmatpush1.msra.mxu0 0.0
      %1091 = vmatprep.subr.mxu0 0.0
      %1092 = vmatpush1.msra.mxu0 0.0
      %1093 = vmatprep.subr.mxu0 0.0
      %1094 = vmatpush1.msra.mxu0 0.0
      %1095 = vmatprep.subr.mxu0 0.0
      %1096 = vmatpush1.msra.mxu0 0.0
      %1097 = vmatprep.subr.mxu0 0.0
      %1098 = vmatpush1.msra.mxu0 0.0
      %1099 = vmatprep.subr.mxu0 0.0
      %1100 = vmatpush1.msra.mxu0 0.0
      %1101 = vmatprep.subr.mxu0 0.0
      %1102 = vmatpush1.msra.mxu0 0.0
      %1103 = vmatprep.subr.mxu0 0.0
      %1104 = vmatpush1.msra.mxu0 0.0
      %1105 = vmatprep.subr.mxu0 0.0
      %1106 = vmatpush1.msra.mxu0 0.0
      %1107 = vmatprep.subr.mxu0 0.0
      %1108 = vmatpush1.msra.mxu0 0.0
      %1109 = vmatprep.subr.mxu0 0.0
      %1110 = vmatpush1.msra.mxu0 0.0
      %1111 = vmatprep.subr.mxu0 0.0
      %1112 = vmatpush1.msra.mxu0 0.0
      %1113 = vmatprep.subr.mxu0 0.0
      %1114 = vmatpush1.msra.mxu0 0.0
      %1115 = vmatprep.subr.mxu0 0.0
      %1116 = vmatpush1.msra.mxu0 0.0
      %1117 = vmatprep.subr.mxu0 0.0
      %1118 = vmatpush1.msra.mxu0 0.0
      %1119 = vmatprep.subr.mxu0 0.0
      %1120 = vmatpush1.msra.mxu0 0.0
      %1121 = vmatprep.subr.mxu0 0.0
      %1122 = vmatpush1.msra.mxu0 0.0
      %1123 = vmatprep.subr.mxu0 0.0
      %1124 = vmatpush1.msra.mxu0 0.0
      %1125 = vmatprep.subr.mxu0 0.0
      %1126 = vmatpush1.msra.mxu0 0.0
      %1127 = vmatprep.subr.mxu0 0.0
      %1128 = vmatpush1.msra.mxu0 0.0
      %1129 = vmatprep.subr.mxu0 0.0
      %1130 = vmatpush1.msra.mxu0 0.0
      %1131 = vmatprep.subr.mxu0 0.0
      %1132 = vmatpush1.msra.mxu0 0.0
      %1133 = vmatprep.subr.mxu0 0.0
      %1134 = vmatpush1.msra.mxu0 0.0
      %1135 = vmatprep.subr.mxu0 0.0
      %1136 = vmatpush1.msra.mxu0 0.0
      %1137 = vmatprep.subr.mxu0 0.0
      %1138 = vmatpush1.msra.mxu0 0.0
      %1139 = vmatprep.subr.mxu0 0.0
      %1140 = vmatpush1.msra.mxu0 0.0
      %1141 = vmatprep.subr.mxu0 0.0
      %1142 = vmatpush1.msra.mxu0 0.0
      %1143 = vmatprep.subr.mxu0 0.0
      %1144 = vmatpush1.msra.mxu0 0.0
      %1145 = vmatprep.mubr.f32.mxu0 0.0
      %1146 = vmatmul.mubr.f32.gmra.mrb[0].mxu0 %v1070
      %v1147 = vpop.f32.mrb[0].mxu0
      %v1148 = vadd.f32 0.0, %v1147
      %v1149 = vpop.f32.mrb[0].mxu0
      %1150 = vmatprep.mubr.f32.mxu0 0.0
      %1151 = vmatmul.mubr.f32.gmra.mrb[0].mxu0 %v1073
      %v1152 = vpop.f32.mrb[0].mxu0
      %v1153 = vadd.f32 0.0, %v1152
      %v1154 = vpop.f32.mrb[0].mxu0
      %1155 = vmatprep.mubr.f32.mxu0 0.0
      %1156 = vmatmul.mubr.f32.gmra.mrb[0].mxu0 %v1076
      %v1157 = vpop.f32.mrb[0].mxu0
      %v1158 = vadd.f32 0.0, %v1157
      %v1159 = vpop.f32.mrb[0].mxu0
      %1160 = vmatprep.mubr.f32.mxu0 0.0
      %1161 = vmatmul.mubr.f32.gmra.mrb[0].mxu0 %v1079
      %v1162 = vpop.f32.mrb[0].mxu0
      %v1163 = vadd.f32 0.0, %v1162
      %v1164 = vpop.f32.mrb[0].mxu0
      %1165 = vdwg.mxu0
      %v1166 = vld [vmem:[%s4] sm:$0xff]
      %v1167 = vld [vmem:[%s4 + $0x8] sm:$0xff]
      %v1169 = vsel %vm1068, %v1148, 0
      %v1172 = vsel %vm1068, %v1153, 0
      %v1175 = vsel %vm1068, %v1158, 0
      %v1178 = vsel %vm1068, %v1163, 0
      %1180 = vmatprep.subr.mxu0 0.0
      %1181 = vmatpush1.msra.mxu0 %v1166
      %1182 = vmatprep.subr.mxu0 0.0
      %1183 = vmatpush1.msra.mxu0 %v1167
      %1184 = vmatprep.subr.mxu0 0.0
      %1185 = vmatpush1.msra.mxu0 0.0
      %1186 = vmatprep.subr.mxu0 0.0
      %1187 = vmatpush1.msra.mxu0 0.0
      %1188 = vmatprep.subr.mxu0 0.0
      %1189 = vmatpush1.msra.mxu0 0.0
      %1190 = vmatprep.subr.mxu0 0.0
      %1191 = vmatpush1.msra.mxu0 0.0
      %1192 = vmatprep.subr.mxu0 0.0
      %1193 = vmatpush1.msra.mxu0 0.0
      %1194 = vmatprep.subr.mxu0 0.0
      %1195 = vmatpush1.msra.mxu0 0.0
      %1196 = vmatprep.subr.mxu0 0.0
      %1197 = vmatpush1.msra.mxu0 0.0
      %1198 = vmatprep.subr.mxu0 0.0
      %1199 = vmatpush1.msra.mxu0 0.0
      %1200 = vmatprep.subr.mxu0 0.0
      %1201 = vmatpush1.msra.mxu0 0.0
      %1202 = vmatprep.subr.mxu0 0.0
      %1203 = vmatpush1.msra.mxu0 0.0
      %1204 = vmatprep.subr.mxu0 0.0
      %1205 = vmatpush1.msra.mxu0 0.0
      %1206 = vmatprep.subr.mxu0 0.0
      %1207 = vmatpush1.msra.mxu0 0.0
      %1208 = vmatprep.subr.mxu0 0.0
      %1209 = vmatpush1.msra.mxu0 0.0
      %1210 = vmatprep.subr.mxu0 0.0
      %1211 = vmatpush1.msra.mxu0 0.0
      %1212 = vmatprep.subr.mxu0 0.0
      %1213 = vmatpush1.msra.mxu0 0.0
      %1214 = vmatprep.subr.mxu0 0.0
      %1215 = vmatpush1.msra.mxu0 0.0
      %1216 = vmatprep.subr.mxu0 0.0
      %1217 = vmatpush1.msra.mxu0 0.0
      %1218 = vmatprep.subr.mxu0 0.0
      %1219 = vmatpush1.msra.mxu0 0.0
      %1220 = vmatprep.subr.mxu0 0.0
      %1221 = vmatpush1.msra.mxu0 0.0
      %1222 = vmatprep.subr.mxu0 0.0
      %1223 = vmatpush1.msra.mxu0 0.0
      %1224 = vmatprep.subr.mxu0 0.0
      %1225 = vmatpush1.msra.mxu0 0.0
      %1226 = vmatprep.subr.mxu0 0.0
      %1227 = vmatpush1.msra.mxu0 0.0
      %1228 = vmatprep.subr.mxu0 0.0
      %1229 = vmatpush1.msra.mxu0 0.0
      %1230 = vmatprep.subr.mxu0 0.0
      %1231 = vmatpush1.msra.mxu0 0.0
      %1232 = vmatprep.subr.mxu0 0.0
      %1233 = vmatpush1.msra.mxu0 0.0
      %1234 = vmatprep.subr.mxu0 0.0
      %1235 = vmatpush1.msra.mxu0 0.0
      %1236 = vmatprep.subr.mxu0 0.0
      %1237 = vmatpush1.msra.mxu0 0.0
      %1238 = vmatprep.subr.mxu0 0.0
      %1239 = vmatpush1.msra.mxu0 0.0
      %1240 = vmatprep.subr.mxu0 0.0
      %1241 = vmatpush1.msra.mxu0 0.0
      %1242 = vmatprep.subr.mxu0 0.0
      %1243 = vmatpush1.msra.mxu0 0.0
      %1244 = vmatprep.mubr.f32.mxu0 0.0
      %1245 = vmatmul.mubr.f32.gmra.mrb[0].mxu0 %v1169
      %v1246 = vpop.f32.mrb[0].mxu0
      %v1247 = vadd.f32 0.0, %v1246
      %v1248 = vpop.f32.mrb[0].mxu0
      %1249 = vmatprep.mubr.f32.mxu0 0.0
      %1250 = vmatmul.mubr.f32.gmra.mrb[0].mxu0 %v1172
      %v1251 = vpop.f32.mrb[0].mxu0
      %v1252 = vadd.f32 0.0, %v1251
      %v1253 = vpop.f32.mrb[0].mxu0
      %1254 = vmatprep.mubr.f32.mxu0 0.0
      %1255 = vmatmul.mubr.f32.gmra.mrb[0].mxu0 %v1175
      %v1256 = vpop.f32.mrb[0].mxu0
      %v1257 = vadd.f32 0.0, %v1256
      %v1258 = vpop.f32.mrb[0].mxu0
      %1259 = vmatprep.mubr.f32.mxu0 0.0
      %1260 = vmatmul.mubr.f32.gmra.mrb[0].mxu0 %v1178
      %v1261 = vpop.f32.mrb[0].mxu0
      %v1262 = vadd.f32 0.0, %v1261
      %v1263 = vpop.f32.mrb[0].mxu0
      %1264 = vdwg.mxu0
      %1265 = vst [vmem:[%s264] sm:$0xff] %v1247
      %1266 = vst [vmem:[%s264 + $0x8] sm:$0xff] %v1252
      %1267 = vst [vmem:[%s264 + $0x10] sm:$0xff] %v1257
      %1268 = vst [vmem:[%s264 + $0x18] sm:$0xff] %v1262
      %p1269 = scmp.lt.s32.totalorder %s21, 1
      %s1270 = scalar_select %p1269, %s21, 1
      %p1271 = scmp.lt.s32.totalorder %s22, 0
      %s1272 = scalar_select %p1271, %s22, 0
      %s1273 = smul.addr %s1272, 4
      %s1274 = smul.addr %s1270, 4
      %s1275 = sadd.s32 %s1273, %s1274
      %s1276 = smul.addr %s1275, 8
      %s1277 = scalar_lea.vmem %s5, %s1276
      // Predicated region
      $region41: #{_lambda_.13} parent=39 // pred_check
        %p1278 = pneg %p164
      $region42: #{_lambda_.13} parent=39 // pred_check_branch
        %1280 = sbr.rel (%p1278) target = $region44
      $region43: #{_lambda_.13} parent=39 // pred_region
        _
      $region44: #{_lambda_.13} parent=39 // pred_fallthru
        _
    $region40: #{_lambda_.13} parent=5 // pred_fallthru
      _
    %p1281 = scmp.le.s32.totalorder 2, %s12
    // Predicated region
    $region45: #{_lambda_.13} parent=5 // pred_check
      %p1282 = pneg %p1281
    $region46: #{_lambda_.13} parent=5 // pred_check_branch
      %1284 = sbr.rel (%p1282) target = $region48
    $region47: #{_lambda_.13} parent=5 // pred_region
      %s1285 = ssub.s32 %s12, 2
      // Predicated region
      $region49: #{_lambda_.13} parent=47 // pred_check
        %p1286 = pneg %p170
      $region50: #{_lambda_.13} parent=47 // pred_check_branch
        %1288 = sbr.rel (%p1286) target = $region52
      $region51: #{_lambda_.13} parent=47 // pred_region
        %p1289 = scmp.lt.s32.totalorder %s23, 1
        %s1290 = scalar_select %p1289, %s23, 1
        %p1291 = scmp.lt.s32.totalorder %s24, 0
        %s1292 = scalar_select %p1291, %s24, 0
        %s1293 = smul.addr %s1292, 4
        %s1294 = smul.addr %s1290, 4
        %s1295 = sadd.s32 %s1293, %s1294
        %s1296 = smul.addr %s1295, 8
        %s1297 = scalar_lea.vmem %s5, %s1296
      $region52: #{_lambda_.13} parent=47 // pred_fallthru
        _
    $region48: #{_lambda_.13} parent=5 // pred_fallthru
      _
  $region6: #{_lambda_.13} parent=0 // loop_footer
    %s16 = sadd.s32 1, %s12
  $region7: #{_lambda_.13} parent=0 // loop_footer_branch
    %11 = sbr.rel target = $region3
  $region8: #{_lambda_.13} parent=0 // loop_exit
    _

</llo_original>
